<compile_context>
chip_gen: v5e
topology: v5e:2x2
jax: 0.10.0
libtpu: 0.0.40
codegen_flags: <defaults>
</compile_context>

<pallas_src>
import functools
import math

import jax
import jax.numpy as jnp
from jax import lax
from jax.experimental import pallas as pl
from jax.experimental.pallas import tpu as pltpu

K = 7        # conv kernel size
P = 3        # conv spatial padding
LANES = 128  # TPU lane width


def _round_up(x, m):
    return ((x + m - 1) // m) * m


def _pick_chunk(c1w, mb):
    """Largest 128-multiple lane chunk whose (mb, chunk) f32 slab stays <=128KB."""
    for c in (512, 256, 128):
        if c1w % c == 0 and mb * c * 4 <= 128 * 1024:
            return c
    return c1w


def _choose_batch_block(n, h, block_rows):
    """Images per grid step: MB=b*h rows on the matmul M dim, MB % 8 == 0."""
    unit = 8 // math.gcd(h, 8)                       # keep MB a multiple of 8 sublanes
    b = max(unit, (max(block_rows, h) // h) // unit * unit)
    if n > 1 and 2 * b > n:                          # >=2 grid steps when possible (v7x: 2 TCs)
        b = max(unit, ((n + 1) // 2) // unit * unit)
    b = min(b, _round_up(n, unit))                   # don't pad the batch more than needed
    return max(b, unit)


def _generator_kernel(x_ref, w1_ref, b1_ref, w2_ref, b2_ref, sh_ref,
                      wd1_ref, bd1_ref, wd2_ref, bd2_ref, out_ref, a1_ref):
    # Per grid step (one block of B_blk images, MB = B_blk*H stacked rows):
    #   x_ref  : (MB, K1p)        im2col'd padded input rows (MXU dtype)
    #   w1_ref : (K1p, W*64)      conv1 merged banded weight
    #   b1_ref : (1, W*64)        conv1 bias tiled per (w, c) column
    #   w2_ref : (K, W*64, Cout*W) conv2 banded weights, one slab per kernel row
    #   b2_ref : (1, Cout*W)
    #   sh_ref : (K, MB, MB)      per-image H-shift 0/1 matrices (block-diag)
    #   wd1_ref: (Cout*W, Cout*hidden)   block-diagonal dense1 weight
    #   bd1_ref: (1, Cout*hidden)
    #   wd2_ref: (Cout*hidden, OUTP)     block-diagonal dense2 weight, 128-lane padded
    #   bd2_ref: (1, OUTP)
    #   out_ref: (MB, OUTP)       lane-dense output slab
    #   a1_ref : (MB, W*64)       VMEM scratch for the conv1 activation (MXU dtype)
    mb = x_ref.shape[0]
    c1w = w1_ref.shape[1]                 # W * 64
    cw = w2_ref.shape[2]                  # Cout * W
    cdt = w1_ref.dtype                    # MXU operand dtype (f32 or bf16)
    nc = _pick_chunk(c1w, mb)             # lane chunk: keeps f32 partials <=128KB of vregs
    nck = c1w // nc

    # ---- conv1: one logical (MB, K1) @ (K1, W*64) dot, chunked over output lanes.
    # Bias + ReLU in f32, single cast on the store into the MXU-dtype scratch.
    for j in range(nck):
        lo = j * nc
        part = jnp.dot(x_ref[...], w1_ref[:, lo:lo + nc],
                       preferred_element_type=jnp.float32)
        a1_ref[:, lo:lo + nc] = jnp.maximum(part + b1_ref[:, lo:lo + nc],
                                            0.0).astype(cdt)

    # ---- conv2: per kernel row kh, the W-direction band + channel reduction is a
    # matmul (t = a1 @ R_kh), and the H shift/zero-padding is a second matmul with
    # a constant 0/1 block-diagonal shift matrix.  Everything stays on the MXU;
    # no padded scratch, no misaligned sublane slices, no rolls, no casts on load.
    acc2 = jnp.zeros((mb, cw), jnp.float32)
    for kh in range(K):
        t = jnp.zeros((mb, cw), jnp.float32)
        for j in range(nck):
            lo = j * nc
            t = t + jnp.dot(a1_ref[:, lo:lo + nc], w2_ref[kh, lo:lo + nc, :],
                            preferred_element_type=jnp.float32)
        acc2 = acc2 + jnp.dot(sh_ref[kh], t.astype(cdt),
                              preferred_element_type=jnp.float32)
    y2 = acc2 + b2_ref[...]                                     # (MB, Cout*W)

    # ---- dense stack, block-diagonal over Cout (one dot each, no concats).
    h1 = jnp.dot(y2.astype(cdt), wd1_ref[...], preferred_element_type=jnp.float32)
    h1 = jnp.maximum(h1 + bd1_ref[...], 0.0)                    # (MB, Cout*hidden)
    y = jnp.dot(h1.astype(cdt), wd2_ref[...], preferred_element_type=jnp.float32)
    y = jnp.tanh(y + bd2_ref[...])                              # (MB, OUTP) lane-dense

    out_ref[...] = y.astype(out_ref.dtype)


def generator_linear_forward(x, params, *, mxu_dtype=jnp.float32, block_rows=128,
                             vmem_limit_bytes=None):
    """x: (N, Cin, H, W) float32 with W == size.  Returns (N, Cout, H, size).

    mxu_dtype=jnp.bfloat16 + block_rows=256 is the recommended configuration on
    v6e/v7x (bf16-native MXU, halved weight VMEM/DMA); f32 is kept as the default
    here for tight numerical checking.
    """
    w1, b1, w2, b2, wd1, bd1, wd2, bd2 = params          # PyTorch-native shapes
    N, Cin, H, W = x.shape
    C1 = w1.shape[0]                                     # 64 conv channels
    Cout = w2.shape[0]                                   # color_channels
    hidden, size = wd1.shape
    assert W == size, "nn.Linear(size, hidden) acts on the last (W) dim"

    f32 = jnp.float32
    b_blk = _choose_batch_block(N, H, block_rows)
    n_blocks = -(-N // b_blk)
    n_pad = n_blocks * b_blk
    mb = b_blk * H

    Wp = W + 2 * P
    k1 = K * Cin * Wp
    k1p = _round_up(k1, LANES)
    c1w = W * C1
    cw = Cout * W
    ch = Cout * hidden
    outp = _round_up(Cout * size, LANES)

    # ---- wrapper-side layout plumbing (all constant-index inputs stay VMEM-resident)
    # im2col of the zero-padded input: row (n, h) holds padded rows h..h+6 of all
    # input channels (~K x more input bytes, but only tens of KB per image).
    xp = jnp.pad(x.astype(f32), ((0, n_pad - N), (0, 0), (P, P), (P, P)))
    cols = jnp.stack([xp[:, :, h:h + K, :] for h in range(H)], axis=1)  # (n_pad,H,Cin,K,Wp)
    x_i2c = jnp.transpose(cols, (0, 1, 3, 2, 4)).reshape(n_pad * H, k1)
    x_i2c = jnp.pad(x_i2c, ((0, 0), (0, k1p - k1))).astype(mxu_dtype)

    # conv1 merged banded weight: w1e[(kh,ci,wp),(w,c)] = w1[c,ci,kh,wp-w] (0<=.<K)
    off1 = jnp.arange(Wp)[:, None] - jnp.arange(W)[None, :]
    v1 = (off1 >= 0) & (off1 < K)
    g1 = jnp.transpose(w1.astype(f32), (2, 1, 3, 0))[:, :, jnp.clip(off1, 0, K - 1), :]
    g1 = jnp.where(v1[None, None, :, :, None], g1, 0.0)        # (K, Cin, Wp, W, C1)
    w1e = jnp.pad(g1.reshape(k1, c1w), ((0, k1p - k1), (0, 0))).astype(mxu_dtype)
    b1t = jnp.tile(b1.astype(f32), W).reshape(1, c1w)           # [w*C1+c] = b1[c]

    # conv2 banded weights per kernel row: w2b[kh,(win,c),(co,wout)] = w2[co,c,kh,win-wout+P]
    off2 = jnp.arange(W)[:, None] - jnp.arange(W)[None, :] + P
    v2 = (off2 >= 0) & (off2 < K)
    g2 = jnp.transpose(w2.astype(f32), (2, 1, 3, 0))[:, :, jnp.clip(off2, 0, K - 1), :]
    g2 = jnp.where(v2[None, None, :, :, None], g2, 0.0)        # (K, C1, Win, Wout, Cout)
    w2b = jnp.transpose(g2, (0, 2, 1, 4, 3)).reshape(K, c1w, cw).astype(mxu_dtype)
    b2t = jnp.repeat(b2.astype(f32), W).reshape(1, cw)          # [co*W+w] = b2[co]

    # per-image H-shift matrices: sh[kh, (b,h), (b,h')] = 1 iff h' == h + kh - P.
    hh = jnp.arange(H)
    s_small = (hh[None, :, None] + jnp.arange(K)[:, None, None] - P
               == hh[None, None, :]).astype(f32)                # (K, H, H)
    sh = jnp.einsum('bB,khg->kbhBg', jnp.eye(b_blk, dtype=f32), s_small)
    sh = sh.reshape(K, mb, mb).astype(mxu_dtype)

    # block-diagonal dense weights over Cout; dense2 columns padded to 128 lanes
    # so the kernel's output store is lane-dense (pad sliced off below).
    eye_c = jnp.eye(Cout, dtype=f32)
    wd1bd = jnp.kron(eye_c, wd1.astype(f32).T).astype(mxu_dtype)          # (cw, ch)
    bd1t = jnp.tile(bd1.astype(f32), Cout).reshape(1, ch)
    wd2bd = jnp.kron(eye_c, wd2.astype(f32).T)                            # (ch, Cout*size)
    wd2bd = jnp.pad(wd2bd, ((0, 0), (0, outp - Cout * size))).astype(mxu_dtype)
    bd2t = jnp.pad(jnp.tile(bd2.astype(f32), Cout),
                   (0, outp - Cout * size)).reshape(1, outp)

    grid_spec = pltpu.PrefetchScalarGridSpec(
        num_scalar_prefetch=0,
        grid=(n_blocks,),
        in_specs=[
            pl.BlockSpec((mb, k1p), lambda n: (n, 0)),
            pl.BlockSpec((k1p, c1w), lambda n: (0, 0)),
            pl.BlockSpec((1, c1w), lambda n: (0, 0)),
            pl.BlockSpec((K, c1w, cw), lambda n: (0, 0, 0)),
            pl.BlockSpec((1, cw), lambda n: (0, 0)),
            pl.BlockSpec((K, mb, mb), lambda n: (0, 0, 0)),
            pl.BlockSpec((cw, ch), lambda n: (0, 0)),
            pl.BlockSpec((1, ch), lambda n: (0, 0)),
            pl.BlockSpec((ch, outp), lambda n: (0, 0)),
            pl.BlockSpec((1, outp), lambda n: (0, 0)),
        ],
        out_specs=pl.BlockSpec((mb, outp), lambda n: (n, 0)),
        scratch_shapes=[pltpu.VMEM((mb, c1w), mxu_dtype)],
    )
    out_flat = pl.pallas_call(
        _generator_kernel,
        out_shape=jax.ShapeDtypeStruct((n_pad * H, outp), x.dtype),
        grid_spec=grid_spec,
        compiler_params=pltpu.CompilerParams(
            dimension_semantics=("parallel",),          # megacore: blocks shard across TCs
            vmem_limit_bytes=vmem_limit_bytes),
    )(x_i2c, w1e, b1t, w2b, b2t, sh, wd1bd, bd1t, wd2bd, bd2t)

    out = out_flat[:N * H, :Cout * size].reshape(N, H, Cout, size)
    return jnp.transpose(out, (0, 2, 1, 3))


def reference_forward(x, params):
    """Pure-JAX reference mirroring the PyTorch module (accurate f32)."""
    w1, b1, w2, b2, wd1, bd1, wd2, bd2 = params
    dn = ('NCHW', 'OIHW', 'NCHW')
    hi = lax.Precision.HIGHEST
    y = lax.conv_general_dilated(x, w1, (1, 1), [(P, P), (P, P)],
                                 dimension_numbers=dn, precision=hi)
    y = jnp.maximum(y + b1[None, :, None, None], 0.0)
    y = lax.conv_general_dilated(y, w2, (1, 1), [(P, P), (P, P)],
                                 dimension_numbers=dn, precision=hi)
    y = y + b2[None, :, None, None]
    y = jnp.maximum(jnp.einsum('nchw,jw->nchj', y, wd1, precision=hi) + bd1, 0.0)
    y = jnp.tanh(jnp.einsum('nchj,sj->nchs', y, wd2, precision=hi) + bd2)
    return y


def _make_inputs(key, N, color_channels, H, size, hidden, C1=64):
    ks = jax.random.split(key, 9)
    Cin = Cout = color_channels
    x = jax.random.normal(ks[0], (N, Cin, H, size), jnp.float32)
    w1 = jax.random.normal(ks[1], (C1, Cin, K, K), jnp.float32) * 0.05
    b1 = jax.random.normal(ks[2], (C1,), jnp.float32) * 0.05
    w2 = jax.random.normal(ks[3], (Cout, C1, K, K), jnp.float32) * 0.05
    b2 = jax.random.normal(ks[4], (Cout,), jnp.float32) * 0.05
    wd1 = jax.random.normal(ks[5], (hidden, size), jnp.float32) * 0.1
    bd1 = jax.random.normal(ks[6], (hidden,), jnp.float32) * 0.1
    wd2 = jax.random.normal(ks[7], (size, hidden), jnp.float32) * 0.1
    bd2 = jax.random.normal(ks[8], (size,), jnp.float32) * 0.1
    return x, (w1, b1, w2, b2, wd1, bd1, wd2, bd2)


def _check(x, params, mxu_dtype, block_rows, tol, tag):
    fwd = jax.jit(functools.partial(generator_linear_forward,
                                    mxu_dtype=mxu_dtype, block_rows=block_rows))
    out = jax.block_until_ready(fwd(x, params))
    ref = reference_forward(x, params)
    assert out.shape == ref.shape, (tag, out.shape, ref.shape)
    err = float(jnp.max(jnp.abs(out - ref)))
    if err > tol:
        raise AssertionError(f"{tag}: max abs err {err} > {tol}")


if __name__ == "__main__":
    key = jax.random.PRNGKey(0)
    k1, k2, k3 = jax.random.split(key, 3)

    # batch 16, 1 channel: B_blk=8 -> MB=128 rows per step, 2 parallel grid steps.
    x1, p1 = _make_inputs(k1, N=16, color_channels=1, H=16, size=16, hidden=32)
    _check(x1, p1, jnp.float32, 128, 1e-3, "f32 / 1ch / MB=128")

    # 3 channels + batch padding (N=5 -> B_blk=3, 2 steps, 1 padded image sliced off).
    x3, p3 = _make_inputs(k2, N=5, color_channels=3, H=16, size=16, hidden=32)
    _check(x3, p3, jnp.float32, 128, 1e-3, "f32 / 3ch / batch pad")

    # bf16 MXU operands (v6e/v7x fast path), MB=256 rows per step, 2 steps.
    x2, p2 = _make_inputs(k3, N=32, color_channels=1, H=16, size=16, hidden=32)
    _check(x2, p2, jnp.bfloat16, 256, 5e-2, "bf16 / 1ch / MB=256")

    print("KERNEL_OK")
</pallas_src>

<mosaic_0001>
module attributes {stable_mosaic.version = 11 : i64} {
  func.func @_generator_kernel(%arg0: i32, %arg1: memref<128x256xf32, #tpu.memory_space<vmem>>, %arg2: memref<256x1024xf32, #tpu.memory_space<vmem>>, %arg3: memref<1x1024xf32, #tpu.memory_space<vmem>>, %arg4: memref<7x1024x16xf32, #tpu.memory_space<vmem>>, %arg5: memref<1x16xf32, #tpu.memory_space<vmem>>, %arg6: memref<7x128x128xf32, #tpu.memory_space<vmem>>, %arg7: memref<16x32xf32, #tpu.memory_space<vmem>>, %arg8: memref<1x32xf32, #tpu.memory_space<vmem>>, %arg9: memref<32x128xf32, #tpu.memory_space<vmem>>, %arg10: memref<1x128xf32, #tpu.memory_space<vmem>>, %arg11: memref<128x128xf32, #tpu.memory_space<vmem>>, %arg12: memref<128x1024xf32, #tpu.memory_space<vmem>>) attributes {dimension_semantics = [#tpu.dimension_semantics<parallel>], iteration_bounds = array<i64: 2>, scalar_prefetch = 0 : i64, scratch_operands = 1 : i64, tpu.core_type = #tpu.core_type<tc>, window_params = [{transform_indices = @transform_0, window_bounds = array<i64: 128, 256>}, {pipeline_mode = #tpu.pipeline_mode<synchronous>, transform_indices = @transform_1, window_bounds = array<i64: 256, 1024>}, {pipeline_mode = #tpu.pipeline_mode<synchronous>, transform_indices = @transform_2, window_bounds = array<i64: 1, 1024>}, {pipeline_mode = #tpu.pipeline_mode<synchronous>, transform_indices = @transform_3, window_bounds = array<i64: 7, 1024, 16>}, {pipeline_mode = #tpu.pipeline_mode<synchronous>, transform_indices = @transform_4, window_bounds = array<i64: 1, 16>}, {pipeline_mode = #tpu.pipeline_mode<synchronous>, transform_indices = @transform_5, window_bounds = array<i64: 7, 128, 128>}, {pipeline_mode = #tpu.pipeline_mode<synchronous>, transform_indices = @transform_6, window_bounds = array<i64: 16, 32>}, {pipeline_mode = #tpu.pipeline_mode<synchronous>, transform_indices = @transform_7, window_bounds = array<i64: 1, 32>}, {pipeline_mode = #tpu.pipeline_mode<synchronous>, transform_indices = @transform_8, window_bounds = array<i64: 32, 128>}, {pipeline_mode = #tpu.pipeline_mode<synchronous>, transform_indices = @transform_9, window_bounds = array<i64: 1, 128>}, {transform_indices = @transform_10, window_bounds = array<i64: 128, 128>}]} {
    %c0 = arith.constant 0 : index
    %c0_0 = arith.constant 0 : index
    %0 = vector.load %arg1[%c0, %c0_0] : memref<128x256xf32, #tpu.memory_space<vmem>>, vector<128x256xf32>
    %c0_1 = arith.constant 0 : index
    %c0_2 = arith.constant 0 : index
    %1 = vector.load %arg2[%c0_1, %c0_2] : memref<256x1024xf32, #tpu.memory_space<vmem>>, vector<256x256xf32>
    %cst = arith.constant dense<0.000000e+00> : vector<128x256xf32>
    %2 = tpu.matmul %0, %1, %cst {dimension_numbers = #tpu.dot_dimension_numbers<[1], [0], [0], [1], [0, 0, 1, 1], [], []>} : vector<128x256xf32>, vector<256x256xf32>, vector<128x256xf32> -> vector<128x256xf32>
    %c0_3 = arith.constant 0 : index
    %c0_4 = arith.constant 0 : index
    %3 = vector.load %arg3[%c0_3, %c0_4] : memref<1x1024xf32, #tpu.memory_space<vmem>>, vector<1x256xf32>
    %4 = vector.broadcast %3 : vector<1x256xf32> to vector<128x256xf32>
    %5 = arith.addf %2, %4 : vector<128x256xf32>
    %cst_5 = arith.constant 0.000000e+00 : f32
    %6 = vector.broadcast %cst_5 : f32 to vector<128x256xf32>
    %7 = arith.maximumf %5, %6 : vector<128x256xf32>
    %c0_6 = arith.constant 0 : index
    %c0_7 = arith.constant 0 : index
    %8 = vector.load %arg12[%c0_6, %c0_7] : memref<128x1024xf32, #tpu.memory_space<vmem>>, vector<128x256xf32>
    tpu.vector_store %arg12[%c0_6, %c0_7], %7 {strides = array<i32>} : memref<128x1024xf32, #tpu.memory_space<vmem>>, vector<128x256xf32>,
    %c0_8 = arith.constant 0 : index
    %c0_9 = arith.constant 0 : index
    %9 = vector.load %arg1[%c0_8, %c0_9] : memref<128x256xf32, #tpu.memory_space<vmem>>, vector<128x256xf32>
    %c0_10 = arith.constant 0 : index
    %c256 = arith.constant 256 : index
    %10 = vector.load %arg2[%c0_10, %c256] : memref<256x1024xf32, #tpu.memory_space<vmem>>, vector<256x256xf32>
    %cst_11 = arith.constant dense<0.000000e+00> : vector<128x256xf32>
    %11 = tpu.matmul %9, %10, %cst_11 {dimension_numbers = #tpu.dot_dimension_numbers<[1], [0], [0], [1], [0, 0, 1, 1], [], []>} : vector<128x256xf32>, vector<256x256xf32>, vector<128x256xf32> -> vector<128x256xf32>
    %c0_12 = arith.constant 0 : index
    %c256_13 = arith.constant 256 : index
    %12 = vector.load %arg3[%c0_12, %c256_13] : memref<1x1024xf32, #tpu.memory_space<vmem>>, vector<1x256xf32>
    %13 = vector.broadcast %12 : vector<1x256xf32> to vector<128x256xf32>
    %14 = arith.addf %11, %13 : vector<128x256xf32>
    %cst_14 = arith.constant 0.000000e+00 : f32
    %15 = vector.broadcast %cst_14 : f32 to vector<128x256xf32>
    %16 = arith.maximumf %14, %15 : vector<128x256xf32>
    %c0_15 = arith.constant 0 : index
    %c256_16 = arith.constant 256 : index
    %17 = vector.load %arg12[%c0_15, %c256_16] : memref<128x1024xf32, #tpu.memory_space<vmem>>, vector<128x256xf32>
    tpu.vector_store %arg12[%c0_15, %c256_16], %16 {strides = array<i32>} : memref<128x1024xf32, #tpu.memory_space<vmem>>, vector<128x256xf32>,
    %c0_17 = arith.constant 0 : index
    %c0_18 = arith.constant 0 : index
    %18 = vector.load %arg1[%c0_17, %c0_18] : memref<128x256xf32, #tpu.memory_space<vmem>>, vector<128x256xf32>
    %c0_19 = arith.constant 0 : index
    %c512 = arith.constant 512 : index
    %19 = vector.load %arg2[%c0_19, %c512] : memref<256x1024xf32, #tpu.memory_space<vmem>>, vector<256x256xf32>
    %cst_20 = arith.constant dense<0.000000e+00> : vector<128x256xf32>
    %20 = tpu.matmul %18, %19, %cst_20 {dimension_numbers = #tpu.dot_dimension_numbers<[1], [0], [0], [1], [0, 0, 1, 1], [], []>} : vector<128x256xf32>, vector<256x256xf32>, vector<128x256xf32> -> vector<128x256xf32>
    %c0_21 = arith.constant 0 : index
    %c512_22 = arith.constant 512 : index
    %21 = vector.load %arg3[%c0_21, %c512_22] : memref<1x1024xf32, #tpu.memory_space<vmem>>, vector<1x256xf32>
    %22 = vector.broadcast %21 : vector<1x256xf32> to vector<128x256xf32>
    %23 = arith.addf %20, %22 : vector<128x256xf32>
    %cst_23 = arith.constant 0.000000e+00 : f32
    %24 = vector.broadcast %cst_23 : f32 to vector<128x256xf32>
    %25 = arith.maximumf %23, %24 : vector<128x256xf32>
    %c0_24 = arith.constant 0 : index
    %c512_25 = arith.constant 512 : index
    %26 = vector.load %arg12[%c0_24, %c512_25] : memref<128x1024xf32, #tpu.memory_space<vmem>>, vector<128x256xf32>
    tpu.vector_store %arg12[%c0_24, %c512_25], %25 {strides = array<i32>} : memref<128x1024xf32, #tpu.memory_space<vmem>>, vector<128x256xf32>,
    %c0_26 = arith.constant 0 : index
    %c0_27 = arith.constant 0 : index
    %27 = vector.load %arg1[%c0_26, %c0_27] : memref<128x256xf32, #tpu.memory_space<vmem>>, vector<128x256xf32>
    %c0_28 = arith.constant 0 : index
    %c768 = arith.constant 768 : index
    %28 = vector.load %arg2[%c0_28, %c768] : memref<256x1024xf32, #tpu.memory_space<vmem>>, vector<256x256xf32>
    %cst_29 = arith.constant dense<0.000000e+00> : vector<128x256xf32>
    %29 = tpu.matmul %27, %28, %cst_29 {dimension_numbers = #tpu.dot_dimension_numbers<[1], [0], [0], [1], [0, 0, 1, 1], [], []>} : vector<128x256xf32>, vector<256x256xf32>, vector<128x256xf32> -> vector<128x256xf32>
    %c0_30 = arith.constant 0 : index
    %c768_31 = arith.constant 768 : index
    %30 = vector.load %arg3[%c0_30, %c768_31] : memref<1x1024xf32, #tpu.memory_space<vmem>>, vector<1x256xf32>
    %31 = vector.broadcast %30 : vector<1x256xf32> to vector<128x256xf32>
    %32 = arith.addf %29, %31 : vector<128x256xf32>
    %cst_32 = arith.constant 0.000000e+00 : f32
    %33 = vector.broadcast %cst_32 : f32 to vector<128x256xf32>
    %34 = arith.maximumf %32, %33 : vector<128x256xf32>
    %c0_33 = arith.constant 0 : index
    %c768_34 = arith.constant 768 : index
    %35 = vector.load %arg12[%c0_33, %c768_34] : memref<128x1024xf32, #tpu.memory_space<vmem>>, vector<128x256xf32>
    tpu.vector_store %arg12[%c0_33, %c768_34], %34 {strides = array<i32>} : memref<128x1024xf32, #tpu.memory_space<vmem>>, vector<128x256xf32>,
    %cst_35 = arith.constant 0.000000e+00 : f32
    %36 = vector.broadcast %cst_35 : f32 to vector<128x16xf32>
    %cst_36 = arith.constant 0.000000e+00 : f32
    %37 = vector.broadcast %cst_36 : f32 to vector<128x16xf32>
    %c0_37 = arith.constant 0 : index
    %c0_38 = arith.constant 0 : index
    %38 = vector.load %arg12[%c0_37, %c0_38] : memref<128x1024xf32, #tpu.memory_space<vmem>>, vector<128x256xf32>
    %c0_39 = arith.constant 0 : index
    %c0_40 = arith.constant 0 : index
    %c0_41 = arith.constant 0 : index
    %39 = vector.load %arg4[%c0_39, %c0_40, %c0_41] : memref<7x1024x16xf32, #tpu.memory_space<vmem>>, vector<1x256x16xf32>
    %40 = vector.shape_cast %39 : vector<1x256x16xf32> to vector<256x16xf32>
    %cst_42 = arith.constant dense<0.000000e+00> : vector<128x16xf32>
    %41 = tpu.matmul %38, %40, %cst_42 {dimension_numbers = #tpu.dot_dimension_numbers<[1], [0], [0], [1], [0, 0, 1, 1], [], []>} : vector<128x256xf32>, vector<256x16xf32>, vector<128x16xf32> -> vector<128x16xf32>
    %42 = arith.addf %37, %41 : vector<128x16xf32>
    %c0_43 = arith.constant 0 : index
    %c256_44 = arith.constant 256 : index
    %43 = vector.load %arg12[%c0_43, %c256_44] : memref<128x1024xf32, #tpu.memory_space<vmem>>, vector<128x256xf32>
    %c0_45 = arith.constant 0 : index
    %c256_46 = arith.constant 256 : index
    %c0_47 = arith.constant 0 : index
    %44 = vector.load %arg4[%c0_45, %c256_46, %c0_47] : memref<7x1024x16xf32, #tpu.memory_space<vmem>>, vector<1x256x16xf32>
    %45 = vector.shape_cast %44 : vector<1x256x16xf32> to vector<256x16xf32>
    %cst_48 = arith.constant dense<0.000000e+00> : vector<128x16xf32>
    %46 = tpu.matmul %43, %45, %cst_48 {dimension_numbers = #tpu.dot_dimension_numbers<[1], [0], [0], [1], [0, 0, 1, 1], [], []>} : vector<128x256xf32>, vector<256x16xf32>, vector<128x16xf32> -> vector<128x16xf32>
    %47 = arith.addf %42, %46 : vector<128x16xf32>
    %c0_49 = arith.constant 0 : index
    %c512_50 = arith.constant 512 : index
    %48 = vector.load %arg12[%c0_49, %c512_50] : memref<128x1024xf32, #tpu.memory_space<vmem>>, vector<128x256xf32>
    %c0_51 = arith.constant 0 : index
    %c512_52 = arith.constant 512 : index
    %c0_53 = arith.constant 0 : index
    %49 = vector.load %arg4[%c0_51, %c512_52, %c0_53] : memref<7x1024x16xf32, #tpu.memory_space<vmem>>, vector<1x256x16xf32>
    %50 = vector.shape_cast %49 : vector<1x256x16xf32> to vector<256x16xf32>
    %cst_54 = arith.constant dense<0.000000e+00> : vector<128x16xf32>
    %51 = tpu.matmul %48, %50, %cst_54 {dimension_numbers = #tpu.dot_dimension_numbers<[1], [0], [0], [1], [0, 0, 1, 1], [], []>} : vector<128x256xf32>, vector<256x16xf32>, vector<128x16xf32> -> vector<128x16xf32>
    %52 = arith.addf %47, %51 : vector<128x16xf32>
    %c0_55 = arith.constant 0 : index
    %c768_56 = arith.constant 768 : index
    %53 = vector.load %arg12[%c0_55, %c768_56] : memref<128x1024xf32, #tpu.memory_space<vmem>>, vector<128x256xf32>
    %c0_57 = arith.constant 0 : index
    %c768_58 = arith.constant 768 : index
    %c0_59 = arith.constant 0 : index
    %54 = vector.load %arg4[%c0_57, %c768_58, %c0_59] : memref<7x1024x16xf32, #tpu.memory_space<vmem>>, vector<1x256x16xf32>
    %55 = vector.shape_cast %54 : vector<1x256x16xf32> to vector<256x16xf32>
    %cst_60 = arith.constant dense<0.000000e+00> : vector<128x16xf32>
    %56 = tpu.matmul %53, %55, %cst_60 {dimension_numbers = #tpu.dot_dimension_numbers<[1], [0], [0], [1], [0, 0, 1, 1], [], []>} : vector<128x256xf32>, vector<256x16xf32>, vector<128x16xf32> -> vector<128x16xf32>
    %57 = arith.addf %52, %56 : vector<128x16xf32>
    %c0_61 = arith.constant 0 : index
    %c0_62 = arith.constant 0 : index
    %c0_63 = arith.constant 0 : index
    %58 = vector.load %arg6[%c0_61, %c0_62, %c0_63] : memref<7x128x128xf32, #tpu.memory_space<vmem>>, vector<1x128x128xf32>
    %59 = vector.shape_cast %58 : vector<1x128x128xf32> to vector<128x128xf32>
    %cst_64 = arith.constant dense<0.000000e+00> : vector<128x16xf32>
    %60 = tpu.matmul %59, %57, %cst_64 {dimension_numbers = #tpu.dot_dimension_numbers<[1], [0], [0], [1], [0, 0, 1, 1], [], []>} : vector<128x128xf32>, vector<128x16xf32>, vector<128x16xf32> -> vector<128x16xf32>
    %61 = arith.addf %36, %60 : vector<128x16xf32>
    %cst_65 = arith.constant 0.000000e+00 : f32
    %62 = vector.broadcast %cst_65 : f32 to vector<128x16xf32>
    %c0_66 = arith.constant 0 : index
    %c0_67 = arith.constant 0 : index
    %63 = vector.load %arg12[%c0_66, %c0_67] : memref<128x1024xf32, #tpu.memory_space<vmem>>, vector<128x256xf32>
    %c1 = arith.constant 1 : index
    %c0_68 = arith.constant 0 : index
    %c0_69 = arith.constant 0 : index
    %64 = vector.load %arg4[%c1, %c0_68, %c0_69] : memref<7x1024x16xf32, #tpu.memory_space<vmem>>, vector<1x256x16xf32>
    %65 = vector.shape_cast %64 : vector<1x256x16xf32> to vector<256x16xf32>
    %cst_70 = arith.constant dense<0.000000e+00> : vector<128x16xf32>
    %66 = tpu.matmul %63, %65, %cst_70 {dimension_numbers = #tpu.dot_dimension_numbers<[1], [0], [0], [1], [0, 0, 1, 1], [], []>} : vector<128x256xf32>, vector<256x16xf32>, vector<128x16xf32> -> vector<128x16xf32>
    %67 = arith.addf %62, %66 : vector<128x16xf32>
    %c0_71 = arith.constant 0 : index
    %c256_72 = arith.constant 256 : index
    %68 = vector.load %arg12[%c0_71, %c256_72] : memref<128x1024xf32, #tpu.memory_space<vmem>>, vector<128x256xf32>
    %c1_73 = arith.constant 1 : index
    %c256_74 = arith.constant 256 : index
    %c0_75 = arith.constant 0 : index
    %69 = vector.load %arg4[%c1_73, %c256_74, %c0_75] : memref<7x1024x16xf32, #tpu.memory_space<vmem>>, vector<1x256x16xf32>
    %70 = vector.shape_cast %69 : vector<1x256x16xf32> to vector<256x16xf32>
    %cst_76 = arith.constant dense<0.000000e+00> : vector<128x16xf32>
    %71 = tpu.matmul %68, %70, %cst_76 {dimension_numbers = #tpu.dot_dimension_numbers<[1], [0], [0], [1], [0, 0, 1, 1], [], []>} : vector<128x256xf32>, vector<256x16xf32>, vector<128x16xf32> -> vector<128x16xf32>
    %72 = arith.addf %67, %71 : vector<128x16xf32>
    %c0_77 = arith.constant 0 : index
    %c512_78 = arith.constant 512 : index
    %73 = vector.load %arg12[%c0_77, %c512_78] : memref<128x1024xf32, #tpu.memory_space<vmem>>, vector<128x256xf32>
    %c1_79 = arith.constant 1 : index
    %c512_80 = arith.constant 512 : index
    %c0_81 = arith.constant 0 : index
    %74 = vector.load %arg4[%c1_79, %c512_80, %c0_81] : memref<7x1024x16xf32, #tpu.memory_space<vmem>>, vector<1x256x16xf32>
    %75 = vector.shape_cast %74 : vector<1x256x16xf32> to vector<256x16xf32>
    %cst_82 = arith.constant dense<0.000000e+00> : vector<128x16xf32>
    %76 = tpu.matmul %73, %75, %cst_82 {dimension_numbers = #tpu.dot_dimension_numbers<[1], [0], [0], [1], [0, 0, 1, 1], [], []>} : vector<128x256xf32>, vector<256x16xf32>, vector<128x16xf32> -> vector<128x16xf32>
    %77 = arith.addf %72, %76 : vector<128x16xf32>
    %c0_83 = arith.constant 0 : index
    %c768_84 = arith.constant 768 : index
    %78 = vector.load %arg12[%c0_83, %c768_84] : memref<128x1024xf32, #tpu.memory_space<vmem>>, vector<128x256xf32>
    %c1_85 = arith.constant 1 : index
    %c768_86 = arith.constant 768 : index
    %c0_87 = arith.constant 0 : index
    %79 = vector.load %arg4[%c1_85, %c768_86, %c0_87] : memref<7x1024x16xf32, #tpu.memory_space<vmem>>, vector<1x256x16xf32>
    %80 = vector.shape_cast %79 : vector<1x256x16xf32> to vector<256x16xf32>
    %cst_88 = arith.constant dense<0.000000e+00> : vector<128x16xf32>
    %81 = tpu.matmul %78, %80, %cst_88 {dimension_numbers = #tpu.dot_dimension_numbers<[1], [0], [0], [1], [0, 0, 1, 1], [], []>} : vector<128x256xf32>, vector<256x16xf32>, vector<128x16xf32> -> vector<128x16xf32>
    %82 = arith.addf %77, %81 : vector<128x16xf32>
    %c1_89 = arith.constant 1 : index
    %c0_90 = arith.constant 0 : index
    %c0_91 = arith.constant 0 : index
    %83 = vector.load %arg6[%c1_89, %c0_90, %c0_91] : memref<7x128x128xf32, #tpu.memory_space<vmem>>, vector<1x128x128xf32>
    %84 = vector.shape_cast %83 : vector<1x128x128xf32> to vector<128x128xf32>
    %cst_92 = arith.constant dense<0.000000e+00> : vector<128x16xf32>
    %85 = tpu.matmul %84, %82, %cst_92 {dimension_numbers = #tpu.dot_dimension_numbers<[1], [0], [0], [1], [0, 0, 1, 1], [], []>} : vector<128x128xf32>, vector<128x16xf32>, vector<128x16xf32> -> vector<128x16xf32>
    %86 = arith.addf %61, %85 : vector<128x16xf32>
    %cst_93 = arith.constant 0.000000e+00 : f32
    %87 = vector.broadcast %cst_93 : f32 to vector<128x16xf32>
    %c0_94 = arith.constant 0 : index
    %c0_95 = arith.constant 0 : index
    %88 = vector.load %arg12[%c0_94, %c0_95] : memref<128x1024xf32, #tpu.memory_space<vmem>>, vector<128x256xf32>
    %c2 = arith.constant 2 : index
    %c0_96 = arith.constant 0 : index
    %c0_97 = arith.constant 0 : index
    %89 = vector.load %arg4[%c2, %c0_96, %c0_97] : memref<7x1024x16xf32, #tpu.memory_space<vmem>>, vector<1x256x16xf32>
    %90 = vector.shape_cast %89 : vector<1x256x16xf32> to vector<256x16xf32>
    %cst_98 = arith.constant dense<0.000000e+00> : vector<128x16xf32>
    %91 = tpu.matmul %88, %90, %cst_98 {dimension_numbers = #tpu.dot_dimension_numbers<[1], [0], [0], [1], [0, 0, 1, 1], [], []>} : vector<128x256xf32>, vector<256x16xf32>, vector<128x16xf32> -> vector<128x16xf32>
    %92 = arith.addf %87, %91 : vector<128x16xf32>
    %c0_99 = arith.constant 0 : index
    %c256_100 = arith.constant 256 : index
    %93 = vector.load %arg12[%c0_99, %c256_100] : memref<128x1024xf32, #tpu.memory_space<vmem>>, vector<128x256xf32>
    %c2_101 = arith.constant 2 : index
    %c256_102 = arith.constant 256 : index
    %c0_103 = arith.constant 0 : index
    %94 = vector.load %arg4[%c2_101, %c256_102, %c0_103] : memref<7x1024x16xf32, #tpu.memory_space<vmem>>, vector<1x256x16xf32>
    %95 = vector.shape_cast %94 : vector<1x256x16xf32> to vector<256x16xf32>
    %cst_104 = arith.constant dense<0.000000e+00> : vector<128x16xf32>
    %96 = tpu.matmul %93, %95, %cst_104 {dimension_numbers = #tpu.dot_dimension_numbers<[1], [0], [0], [1], [0, 0, 1, 1], [], []>} : vector<128x256xf32>, vector<256x16xf32>, vector<128x16xf32> -> vector<128x16xf32>
    %97 = arith.addf %92, %96 : vector<128x16xf32>
    %c0_105 = arith.constant 0 : index
    %c512_106 = arith.constant 512 : index
    %98 = vector.load %arg12[%c0_105, %c512_106] : memref<128x1024xf32, #tpu.memory_space<vmem>>, vector<128x256xf32>
    %c2_107 = arith.constant 2 : index
    %c512_108 = arith.constant 512 : index
    %c0_109 = arith.constant 0 : index
    %99 = vector.load %arg4[%c2_107, %c512_108, %c0_109] : memref<7x1024x16xf32, #tpu.memory_space<vmem>>, vector<1x256x16xf32>
    %100 = vector.shape_cast %99 : vector<1x256x16xf32> to vector<256x16xf32>
    %cst_110 = arith.constant dense<0.000000e+00> : vector<128x16xf32>
    %101 = tpu.matmul %98, %100, %cst_110 {dimension_numbers = #tpu.dot_dimension_numbers<[1], [0], [0], [1], [0, 0, 1, 1], [], []>} : vector<128x256xf32>, vector<256x16xf32>, vector<128x16xf32> -> vector<128x16xf32>
    %102 = arith.addf %97, %101 : vector<128x16xf32>
    %c0_111 = arith.constant 0 : index
    %c768_112 = arith.constant 768 : index
    %103 = vector.load %arg12[%c0_111, %c768_112] : memref<128x1024xf32, #tpu.memory_space<vmem>>, vector<128x256xf32>
    %c2_113 = arith.constant 2 : index
    %c768_114 = arith.constant 768 : index
    %c0_115 = arith.constant 0 : index
    %104 = vector.load %arg4[%c2_113, %c768_114, %c0_115] : memref<7x1024x16xf32, #tpu.memory_space<vmem>>, vector<1x256x16xf32>
    %105 = vector.shape_cast %104 : vector<1x256x16xf32> to vector<256x16xf32>
    %cst_116 = arith.constant dense<0.000000e+00> : vector<128x16xf32>
    %106 = tpu.matmul %103, %105, %cst_116 {dimension_numbers = #tpu.dot_dimension_numbers<[1], [0], [0], [1], [0, 0, 1, 1], [], []>} : vector<128x256xf32>, vector<256x16xf32>, vector<128x16xf32> -> vector<128x16xf32>
    %107 = arith.addf %102, %106 : vector<128x16xf32>
    %c2_117 = arith.constant 2 : index
    %c0_118 = arith.constant 0 : index
    %c0_119 = arith.constant 0 : index
    %108 = vector.load %arg6[%c2_117, %c0_118, %c0_119] : memref<7x128x128xf32, #tpu.memory_space<vmem>>, vector<1x128x128xf32>
    %109 = vector.shape_cast %108 : vector<1x128x128xf32> to vector<128x128xf32>
    %cst_120 = arith.constant dense<0.000000e+00> : vector<128x16xf32>
    %110 = tpu.matmul %109, %107, %cst_120 {dimension_numbers = #tpu.dot_dimension_numbers<[1], [0], [0], [1], [0, 0, 1, 1], [], []>} : vector<128x128xf32>, vector<128x16xf32>, vector<128x16xf32> -> vector<128x16xf32>
    %111 = arith.addf %86, %110 : vector<128x16xf32>
    %cst_121 = arith.constant 0.000000e+00 : f32
    %112 = vector.broadcast %cst_121 : f32 to vector<128x16xf32>
    %c0_122 = arith.constant 0 : index
    %c0_123 = arith.constant 0 : index
    %113 = vector.load %arg12[%c0_122, %c0_123] : memref<128x1024xf32, #tpu.memory_space<vmem>>, vector<128x256xf32>
    %c3 = arith.constant 3 : index
    %c0_124 = arith.constant 0 : index
    %c0_125 = arith.constant 0 : index
    %114 = vector.load %arg4[%c3, %c0_124, %c0_125] : memref<7x1024x16xf32, #tpu.memory_space<vmem>>, vector<1x256x16xf32>
    %115 = vector.shape_cast %114 : vector<1x256x16xf32> to vector<256x16xf32>
    %cst_126 = arith.constant dense<0.000000e+00> : vector<128x16xf32>
    %116 = tpu.matmul %113, %115, %cst_126 {dimension_numbers = #tpu.dot_dimension_numbers<[1], [0], [0], [1], [0, 0, 1, 1], [], []>} : vector<128x256xf32>, vector<256x16xf32>, vector<128x16xf32> -> vector<128x16xf32>
    %117 = arith.addf %112, %116 : vector<128x16xf32>
    %c0_127 = arith.constant 0 : index
    %c256_128 = arith.constant 256 : index
    %118 = vector.load %arg12[%c0_127, %c256_128] : memref<128x1024xf32, #tpu.memory_space<vmem>>, vector<128x256xf32>
    %c3_129 = arith.constant 3 : index
    %c256_130 = arith.constant 256 : index
    %c0_131 = arith.constant 0 : index
    %119 = vector.load %arg4[%c3_129, %c256_130, %c0_131] : memref<7x1024x16xf32, #tpu.memory_space<vmem>>, vector<1x256x16xf32>
    %120 = vector.shape_cast %119 : vector<1x256x16xf32> to vector<256x16xf32>
    %cst_132 = arith.constant dense<0.000000e+00> : vector<128x16xf32>
    %121 = tpu.matmul %118, %120, %cst_132 {dimension_numbers = #tpu.dot_dimension_numbers<[1], [0], [0], [1], [0, 0, 1, 1], [], []>} : vector<128x256xf32>, vector<256x16xf32>, vector<128x16xf32> -> vector<128x16xf32>
    %122 = arith.addf %117, %121 : vector<128x16xf32>
    %c0_133 = arith.constant 0 : index
    %c512_134 = arith.constant 512 : index
    %123 = vector.load %arg12[%c0_133, %c512_134] : memref<128x1024xf32, #tpu.memory_space<vmem>>, vector<128x256xf32>
    %c3_135 = arith.constant 3 : index
    %c512_136 = arith.constant 512 : index
    %c0_137 = arith.constant 0 : index
    %124 = vector.load %arg4[%c3_135, %c512_136, %c0_137] : memref<7x1024x16xf32, #tpu.memory_space<vmem>>, vector<1x256x16xf32>
    %125 = vector.shape_cast %124 : vector<1x256x16xf32> to vector<256x16xf32>
    %cst_138 = arith.constant dense<0.000000e+00> : vector<128x16xf32>
    %126 = tpu.matmul %123, %125, %cst_138 {dimension_numbers = #tpu.dot_dimension_numbers<[1], [0], [0], [1], [0, 0, 1, 1], [], []>} : vector<128x256xf32>, vector<256x16xf32>, vector<128x16xf32> -> vector<128x16xf32>
    %127 = arith.addf %122, %126 : vector<128x16xf32>
    %c0_139 = arith.constant 0 : index
    %c768_140 = arith.constant 768 : index
    %128 = vector.load %arg12[%c0_139, %c768_140] : memref<128x1024xf32, #tpu.memory_space<vmem>>, vector<128x256xf32>
    %c3_141 = arith.constant 3 : index
    %c768_142 = arith.constant 768 : index
    %c0_143 = arith.constant 0 : index
    %129 = vector.load %arg4[%c3_141, %c768_142, %c0_143] : memref<7x1024x16xf32, #tpu.memory_space<vmem>>, vector<1x256x16xf32>
    %130 = vector.shape_cast %129 : vector<1x256x16xf32> to vector<256x16xf32>
    %cst_144 = arith.constant dense<0.000000e+00> : vector<128x16xf32>
    %131 = tpu.matmul %128, %130, %cst_144 {dimension_numbers = #tpu.dot_dimension_numbers<[1], [0], [0], [1], [0, 0, 1, 1], [], []>} : vector<128x256xf32>, vector<256x16xf32>, vector<128x16xf32> -> vector<128x16xf32>
    %132 = arith.addf %127, %131 : vector<128x16xf32>
    %c3_145 = arith.constant 3 : index
    %c0_146 = arith.constant 0 : index
    %c0_147 = arith.constant 0 : index
    %133 = vector.load %arg6[%c3_145, %c0_146, %c0_147] : memref<7x128x128xf32, #tpu.memory_space<vmem>>, vector<1x128x128xf32>
    %134 = vector.shape_cast %133 : vector<1x128x128xf32> to vector<128x128xf32>
    %cst_148 = arith.constant dense<0.000000e+00> : vector<128x16xf32>
    %135 = tpu.matmul %134, %132, %cst_148 {dimension_numbers = #tpu.dot_dimension_numbers<[1], [0], [0], [1], [0, 0, 1, 1], [], []>} : vector<128x128xf32>, vector<128x16xf32>, vector<128x16xf32> -> vector<128x16xf32>
    %136 = arith.addf %111, %135 : vector<128x16xf32>
    %cst_149 = arith.constant 0.000000e+00 : f32
    %137 = vector.broadcast %cst_149 : f32 to vector<128x16xf32>
    %c0_150 = arith.constant 0 : index
    %c0_151 = arith.constant 0 : index
    %138 = vector.load %arg12[%c0_150, %c0_151] : memref<128x1024xf32, #tpu.memory_space<vmem>>, vector<128x256xf32>
    %c4 = arith.constant 4 : index
    %c0_152 = arith.constant 0 : index
    %c0_153 = arith.constant 0 : index
    %139 = vector.load %arg4[%c4, %c0_152, %c0_153] : memref<7x1024x16xf32, #tpu.memory_space<vmem>>, vector<1x256x16xf32>
    %140 = vector.shape_cast %139 : vector<1x256x16xf32> to vector<256x16xf32>
    %cst_154 = arith.constant dense<0.000000e+00> : vector<128x16xf32>
    %141 = tpu.matmul %138, %140, %cst_154 {dimension_numbers = #tpu.dot_dimension_numbers<[1], [0], [0], [1], [0, 0, 1, 1], [], []>} : vector<128x256xf32>, vector<256x16xf32>, vector<128x16xf32> -> vector<128x16xf32>
    %142 = arith.addf %137, %141 : vector<128x16xf32>
    %c0_155 = arith.constant 0 : index
    %c256_156 = arith.constant 256 : index
    %143 = vector.load %arg12[%c0_155, %c256_156] : memref<128x1024xf32, #tpu.memory_space<vmem>>, vector<128x256xf32>
    %c4_157 = arith.constant 4 : index
    %c256_158 = arith.constant 256 : index
    %c0_159 = arith.constant 0 : index
    %144 = vector.load %arg4[%c4_157, %c256_158, %c0_159] : memref<7x1024x16xf32, #tpu.memory_space<vmem>>, vector<1x256x16xf32>
    %145 = vector.shape_cast %144 : vector<1x256x16xf32> to vector<256x16xf32>
    %cst_160 = arith.constant dense<0.000000e+00> : vector<128x16xf32>
    %146 = tpu.matmul %143, %145, %cst_160 {dimension_numbers = #tpu.dot_dimension_numbers<[1], [0], [0], [1], [0, 0, 1, 1], [], []>} : vector<128x256xf32>, vector<256x16xf32>, vector<128x16xf32> -> vector<128x16xf32>
    %147 = arith.addf %142, %146 : vector<128x16xf32>
    %c0_161 = arith.constant 0 : index
    %c512_162 = arith.constant 512 : index
    %148 = vector.load %arg12[%c0_161, %c512_162] : memref<128x1024xf32, #tpu.memory_space<vmem>>, vector<128x256xf32>
    %c4_163 = arith.constant 4 : index
    %c512_164 = arith.constant 512 : index
    %c0_165 = arith.constant 0 : index
    %149 = vector.load %arg4[%c4_163, %c512_164, %c0_165] : memref<7x1024x16xf32, #tpu.memory_space<vmem>>, vector<1x256x16xf32>
    %150 = vector.shape_cast %149 : vector<1x256x16xf32> to vector<256x16xf32>
    %cst_166 = arith.constant dense<0.000000e+00> : vector<128x16xf32>
    %151 = tpu.matmul %148, %150, %cst_166 {dimension_numbers = #tpu.dot_dimension_numbers<[1], [0], [0], [1], [0, 0, 1, 1], [], []>} : vector<128x256xf32>, vector<256x16xf32>, vector<128x16xf32> -> vector<128x16xf32>
    %152 = arith.addf %147, %151 : vector<128x16xf32>
    %c0_167 = arith.constant 0 : index
    %c768_168 = arith.constant 768 : index
    %153 = vector.load %arg12[%c0_167, %c768_168] : memref<128x1024xf32, #tpu.memory_space<vmem>>, vector<128x256xf32>
    %c4_169 = arith.constant 4 : index
    %c768_170 = arith.constant 768 : index
    %c0_171 = arith.constant 0 : index
    %154 = vector.load %arg4[%c4_169, %c768_170, %c0_171] : memref<7x1024x16xf32, #tpu.memory_space<vmem>>, vector<1x256x16xf32>
    %155 = vector.shape_cast %154 : vector<1x256x16xf32> to vector<256x16xf32>
    %cst_172 = arith.constant dense<0.000000e+00> : vector<128x16xf32>
    %156 = tpu.matmul %153, %155, %cst_172 {dimension_numbers = #tpu.dot_dimension_numbers<[1], [0], [0], [1], [0, 0, 1, 1], [], []>} : vector<128x256xf32>, vector<256x16xf32>, vector<128x16xf32> -> vector<128x16xf32>
    %157 = arith.addf %152, %156 : vector<128x16xf32>
    %c4_173 = arith.constant 4 : index
    %c0_174 = arith.constant 0 : index
    %c0_175 = arith.constant 0 : index
    %158 = vector.load %arg6[%c4_173, %c0_174, %c0_175] : memref<7x128x128xf32, #tpu.memory_space<vmem>>, vector<1x128x128xf32>
    %159 = vector.shape_cast %158 : vector<1x128x128xf32> to vector<128x128xf32>
    %cst_176 = arith.constant dense<0.000000e+00> : vector<128x16xf32>
    %160 = tpu.matmul %159, %157, %cst_176 {dimension_numbers = #tpu.dot_dimension_numbers<[1], [0], [0], [1], [0, 0, 1, 1], [], []>} : vector<128x128xf32>, vector<128x16xf32>, vector<128x16xf32> -> vector<128x16xf32>
    %161 = arith.addf %136, %160 : vector<128x16xf32>
    %cst_177 = arith.constant 0.000000e+00 : f32
    %162 = vector.broadcast %cst_177 : f32 to vector<128x16xf32>
    %c0_178 = arith.constant 0 : index
    %c0_179 = arith.constant 0 : index
    %163 = vector.load %arg12[%c0_178, %c0_179] : memref<128x1024xf32, #tpu.memory_space<vmem>>, vector<128x256xf32>
    %c5 = arith.constant 5 : index
    %c0_180 = arith.constant 0 : index
    %c0_181 = arith.constant 0 : index
    %164 = vector.load %arg4[%c5, %c0_180, %c0_181] : memref<7x1024x16xf32, #tpu.memory_space<vmem>>, vector<1x256x16xf32>
    %165 = vector.shape_cast %164 : vector<1x256x16xf32> to vector<256x16xf32>
    %cst_182 = arith.constant dense<0.000000e+00> : vector<128x16xf32>
    %166 = tpu.matmul %163, %165, %cst_182 {dimension_numbers = #tpu.dot_dimension_numbers<[1], [0], [0], [1], [0, 0, 1, 1], [], []>} : vector<128x256xf32>, vector<256x16xf32>, vector<128x16xf32> -> vector<128x16xf32>
    %167 = arith.addf %162, %166 : vector<128x16xf32>
    %c0_183 = arith.constant 0 : index
    %c256_184 = arith.constant 256 : index
    %168 = vector.load %arg12[%c0_183, %c256_184] : memref<128x1024xf32, #tpu.memory_space<vmem>>, vector<128x256xf32>
    %c5_185 = arith.constant 5 : index
    %c256_186 = arith.constant 256 : index
    %c0_187 = arith.constant 0 : index
    %169 = vector.load %arg4[%c5_185, %c256_186, %c0_187] : memref<7x1024x16xf32, #tpu.memory_space<vmem>>, vector<1x256x16xf32>
    %170 = vector.shape_cast %169 : vector<1x256x16xf32> to vector<256x16xf32>
    %cst_188 = arith.constant dense<0.000000e+00> : vector<128x16xf32>
    %171 = tpu.matmul %168, %170, %cst_188 {dimension_numbers = #tpu.dot_dimension_numbers<[1], [0], [0], [1], [0, 0, 1, 1], [], []>} : vector<128x256xf32>, vector<256x16xf32>, vector<128x16xf32> -> vector<128x16xf32>
    %172 = arith.addf %167, %171 : vector<128x16xf32>
    %c0_189 = arith.constant 0 : index
    %c512_190 = arith.constant 512 : index
    %173 = vector.load %arg12[%c0_189, %c512_190] : memref<128x1024xf32, #tpu.memory_space<vmem>>, vector<128x256xf32>
    %c5_191 = arith.constant 5 : index
    %c512_192 = arith.constant 512 : index
    %c0_193 = arith.constant 0 : index
    %174 = vector.load %arg4[%c5_191, %c512_192, %c0_193] : memref<7x1024x16xf32, #tpu.memory_space<vmem>>, vector<1x256x16xf32>
    %175 = vector.shape_cast %174 : vector<1x256x16xf32> to vector<256x16xf32>
    %cst_194 = arith.constant dense<0.000000e+00> : vector<128x16xf32>
    %176 = tpu.matmul %173, %175, %cst_194 {dimension_numbers = #tpu.dot_dimension_numbers<[1], [0], [0], [1], [0, 0, 1, 1], [], []>} : vector<128x256xf32>, vector<256x16xf32>, vector<128x16xf32> -> vector<128x16xf32>
    %177 = arith.addf %172, %176 : vector<128x16xf32>
    %c0_195 = arith.constant 0 : index
    %c768_196 = arith.constant 768 : index
    %178 = vector.load %arg12[%c0_195, %c768_196] : memref<128x1024xf32, #tpu.memory_space<vmem>>, vector<128x256xf32>
    %c5_197 = arith.constant 5 : index
    %c768_198 = arith.constant 768 : index
    %c0_199 = arith.constant 0 : index
    %179 = vector.load %arg4[%c5_197, %c768_198, %c0_199] : memref<7x1024x16xf32, #tpu.memory_space<vmem>>, vector<1x256x16xf32>
    %180 = vector.shape_cast %179 : vector<1x256x16xf32> to vector<256x16xf32>
    %cst_200 = arith.constant dense<0.000000e+00> : vector<128x16xf32>
    %181 = tpu.matmul %178, %180, %cst_200 {dimension_numbers = #tpu.dot_dimension_numbers<[1], [0], [0], [1], [0, 0, 1, 1], [], []>} : vector<128x256xf32>, vector<256x16xf32>, vector<128x16xf32> -> vector<128x16xf32>
    %182 = arith.addf %177, %181 : vector<128x16xf32>
    %c5_201 = arith.constant 5 : index
    %c0_202 = arith.constant 0 : index
    %c0_203 = arith.constant 0 : index
    %183 = vector.load %arg6[%c5_201, %c0_202, %c0_203] : memref<7x128x128xf32, #tpu.memory_space<vmem>>, vector<1x128x128xf32>
    %184 = vector.shape_cast %183 : vector<1x128x128xf32> to vector<128x128xf32>
    %cst_204 = arith.constant dense<0.000000e+00> : vector<128x16xf32>
    %185 = tpu.matmul %184, %182, %cst_204 {dimension_numbers = #tpu.dot_dimension_numbers<[1], [0], [0], [1], [0, 0, 1, 1], [], []>} : vector<128x128xf32>, vector<128x16xf32>, vector<128x16xf32> -> vector<128x16xf32>
    %186 = arith.addf %161, %185 : vector<128x16xf32>
    %cst_205 = arith.constant 0.000000e+00 : f32
    %187 = vector.broadcast %cst_205 : f32 to vector<128x16xf32>
    %c0_206 = arith.constant 0 : index
    %c0_207 = arith.constant 0 : index
    %188 = vector.load %arg12[%c0_206, %c0_207] : memref<128x1024xf32, #tpu.memory_space<vmem>>, vector<128x256xf32>
    %c6 = arith.constant 6 : index
    %c0_208 = arith.constant 0 : index
    %c0_209 = arith.constant 0 : index
    %189 = vector.load %arg4[%c6, %c0_208, %c0_209] : memref<7x1024x16xf32, #tpu.memory_space<vmem>>, vector<1x256x16xf32>
    %190 = vector.shape_cast %189 : vector<1x256x16xf32> to vector<256x16xf32>
    %cst_210 = arith.constant dense<0.000000e+00> : vector<128x16xf32>
    %191 = tpu.matmul %188, %190, %cst_210 {dimension_numbers = #tpu.dot_dimension_numbers<[1], [0], [0], [1], [0, 0, 1, 1], [], []>} : vector<128x256xf32>, vector<256x16xf32>, vector<128x16xf32> -> vector<128x16xf32>
    %192 = arith.addf %187, %191 : vector<128x16xf32>
    %c0_211 = arith.constant 0 : index
    %c256_212 = arith.constant 256 : index
    %193 = vector.load %arg12[%c0_211, %c256_212] : memref<128x1024xf32, #tpu.memory_space<vmem>>, vector<128x256xf32>
    %c6_213 = arith.constant 6 : index
    %c256_214 = arith.constant 256 : index
    %c0_215 = arith.constant 0 : index
    %194 = vector.load %arg4[%c6_213, %c256_214, %c0_215] : memref<7x1024x16xf32, #tpu.memory_space<vmem>>, vector<1x256x16xf32>
    %195 = vector.shape_cast %194 : vector<1x256x16xf32> to vector<256x16xf32>
    %cst_216 = arith.constant dense<0.000000e+00> : vector<128x16xf32>
    %196 = tpu.matmul %193, %195, %cst_216 {dimension_numbers = #tpu.dot_dimension_numbers<[1], [0], [0], [1], [0, 0, 1, 1], [], []>} : vector<128x256xf32>, vector<256x16xf32>, vector<128x16xf32> -> vector<128x16xf32>
    %197 = arith.addf %192, %196 : vector<128x16xf32>
    %c0_217 = arith.constant 0 : index
    %c512_218 = arith.constant 512 : index
    %198 = vector.load %arg12[%c0_217, %c512_218] : memref<128x1024xf32, #tpu.memory_space<vmem>>, vector<128x256xf32>
    %c6_219 = arith.constant 6 : index
    %c512_220 = arith.constant 512 : index
    %c0_221 = arith.constant 0 : index
    %199 = vector.load %arg4[%c6_219, %c512_220, %c0_221] : memref<7x1024x16xf32, #tpu.memory_space<vmem>>, vector<1x256x16xf32>
    %200 = vector.shape_cast %199 : vector<1x256x16xf32> to vector<256x16xf32>
    %cst_222 = arith.constant dense<0.000000e+00> : vector<128x16xf32>
    %201 = tpu.matmul %198, %200, %cst_222 {dimension_numbers = #tpu.dot_dimension_numbers<[1], [0], [0], [1], [0, 0, 1, 1], [], []>} : vector<128x256xf32>, vector<256x16xf32>, vector<128x16xf32> -> vector<128x16xf32>
    %202 = arith.addf %197, %201 : vector<128x16xf32>
    %c0_223 = arith.constant 0 : index
    %c768_224 = arith.constant 768 : index
    %203 = vector.load %arg12[%c0_223, %c768_224] : memref<128x1024xf32, #tpu.memory_space<vmem>>, vector<128x256xf32>
    %c6_225 = arith.constant 6 : index
    %c768_226 = arith.constant 768 : index
    %c0_227 = arith.constant 0 : index
    %204 = vector.load %arg4[%c6_225, %c768_226, %c0_227] : memref<7x1024x16xf32, #tpu.memory_space<vmem>>, vector<1x256x16xf32>
    %205 = vector.shape_cast %204 : vector<1x256x16xf32> to vector<256x16xf32>
    %cst_228 = arith.constant dense<0.000000e+00> : vector<128x16xf32>
    %206 = tpu.matmul %203, %205, %cst_228 {dimension_numbers = #tpu.dot_dimension_numbers<[1], [0], [0], [1], [0, 0, 1, 1], [], []>} : vector<128x256xf32>, vector<256x16xf32>, vector<128x16xf32> -> vector<128x16xf32>
    %207 = arith.addf %202, %206 : vector<128x16xf32>
    %c6_229 = arith.constant 6 : index
    %c0_230 = arith.constant 0 : index
    %c0_231 = arith.constant 0 : index
    %208 = vector.load %arg6[%c6_229, %c0_230, %c0_231] : memref<7x128x128xf32, #tpu.memory_space<vmem>>, vector<1x128x128xf32>
    %209 = vector.shape_cast %208 : vector<1x128x128xf32> to vector<128x128xf32>
    %cst_232 = arith.constant dense<0.000000e+00> : vector<128x16xf32>
    %210 = tpu.matmul %209, %207, %cst_232 {dimension_numbers = #tpu.dot_dimension_numbers<[1], [0], [0], [1], [0, 0, 1, 1], [], []>} : vector<128x128xf32>, vector<128x16xf32>, vector<128x16xf32> -> vector<128x16xf32>
    %211 = arith.addf %186, %210 : vector<128x16xf32>
    %c0_233 = arith.constant 0 : index
    %c0_234 = arith.constant 0 : index
    %212 = vector.load %arg5[%c0_233, %c0_234] : memref<1x16xf32, #tpu.memory_space<vmem>>, vector<1x16xf32>
    %213 = vector.broadcast %212 : vector<1x16xf32> to vector<128x16xf32>
    %214 = arith.addf %211, %213 : vector<128x16xf32>
    %c0_235 = arith.constant 0 : index
    %c0_236 = arith.constant 0 : index
    %215 = vector.load %arg7[%c0_235, %c0_236] : memref<16x32xf32, #tpu.memory_space<vmem>>, vector<16x32xf32>
    %cst_237 = arith.constant dense<0.000000e+00> : vector<128x32xf32>
    %216 = tpu.matmul %214, %215, %cst_237 {dimension_numbers = #tpu.dot_dimension_numbers<[1], [0], [0], [1], [0, 0, 1, 1], [], []>} : vector<128x16xf32>, vector<16x32xf32>, vector<128x32xf32> -> vector<128x32xf32>
    %c0_238 = arith.constant 0 : index
    %c0_239 = arith.constant 0 : index
    %217 = vector.load %arg8[%c0_238, %c0_239] : memref<1x32xf32, #tpu.memory_space<vmem>>, vector<1x32xf32>
    %218 = vector.broadcast %217 : vector<1x32xf32> to vector<128x32xf32>
    %219 = arith.addf %216, %218 : vector<128x32xf32>
    %cst_240 = arith.constant 0.000000e+00 : f32
    %220 = vector.broadcast %cst_240 : f32 to vector<128x32xf32>
    %221 = arith.maximumf %219, %220 : vector<128x32xf32>
    %c0_241 = arith.constant 0 : index
    %c0_242 = arith.constant 0 : index
    %222 = vector.load %arg9[%c0_241, %c0_242] : memref<32x128xf32, #tpu.memory_space<vmem>>, vector<32x128xf32>
    %cst_243 = arith.constant dense<0.000000e+00> : vector<128x128xf32>
    %223 = tpu.matmul %221, %222, %cst_243 {dimension_numbers = #tpu.dot_dimension_numbers<[1], [0], [0], [1], [0, 0, 1, 1], [], []>} : vector<128x32xf32>, vector<32x128xf32>, vector<128x128xf32> -> vector<128x128xf32>
    %c0_244 = arith.constant 0 : index
    %c0_245 = arith.constant 0 : index
    %224 = vector.load %arg10[%c0_244, %c0_245] : memref<1x128xf32, #tpu.memory_space<vmem>>, vector<1x128xf32>
    %225 = vector.broadcast %224 : vector<1x128xf32> to vector<128x128xf32>
    %226 = arith.addf %223, %225 : vector<128x128xf32>
    %227 = math.tanh %226 : vector<128x128xf32>
    %c0_246 = arith.constant 0 : index
    %c0_247 = arith.constant 0 : index
    %228 = vector.load %arg11[%c0_246, %c0_247] : memref<128x128xf32, #tpu.memory_space<vmem>>, vector<128x128xf32>
    tpu.vector_store %arg11[%c0_246, %c0_247], %227 {strides = array<i32>} : memref<128x128xf32, #tpu.memory_space<vmem>>, vector<128x128xf32>,
    return
  }
  func.func @transform_0(%arg0: i32) -> (i32, i32) {
    %c0_i32 = arith.constant 0 : i32
    %c0_i32_0 = arith.constant 0 : i32
    return %arg0, %c0_i32 : i32, i32
  }
  func.func @transform_1(%arg0: i32) -> (i32, i32) {
    %c0_i32 = arith.constant 0 : i32
    %c0_i32_0 = arith.constant 0 : i32
    %c0_i32_1 = arith.constant 0 : i32
    return %c0_i32, %c0_i32_0 : i32, i32
  }
  func.func @transform_2(%arg0: i32) -> (i32, i32) {
    %c0_i32 = arith.constant 0 : i32
    %c0_i32_0 = arith.constant 0 : i32
    %c0_i32_1 = arith.constant 0 : i32
    return %c0_i32, %c0_i32_0 : i32, i32
  }
  func.func @transform_3(%arg0: i32) -> (i32, i32, i32) {
    %c0_i32 = arith.constant 0 : i32
    %c0_i32_0 = arith.constant 0 : i32
    %c0_i32_1 = arith.constant 0 : i32
    %c0_i32_2 = arith.constant 0 : i32
    return %c0_i32, %c0_i32_0, %c0_i32_1 : i32, i32, i32
  }
  func.func @transform_4(%arg0: i32) -> (i32, i32) {
    %c0_i32 = arith.constant 0 : i32
    %c0_i32_0 = arith.constant 0 : i32
    %c0_i32_1 = arith.constant 0 : i32
    return %c0_i32, %c0_i32_0 : i32, i32
  }
  func.func @transform_5(%arg0: i32) -> (i32, i32, i32) {
    %c0_i32 = arith.constant 0 : i32
    %c0_i32_0 = arith.constant 0 : i32
    %c0_i32_1 = arith.constant 0 : i32
    %c0_i32_2 = arith.constant 0 : i32
    return %c0_i32, %c0_i32_0, %c0_i32_1 : i32, i32, i32
  }
  func.func @transform_6(%arg0: i32) -> (i32, i32) {
    %c0_i32 = arith.constant 0 : i32
    %c0_i32_0 = arith.constant 0 : i32
    %c0_i32_1 = arith.constant 0 : i32
    return %c0_i32, %c0_i32_0 : i32, i32
  }
  func.func @transform_7(%arg0: i32) -> (i32, i32) {
    %c0_i32 = arith.constant 0 : i32
    %c0_i32_0 = arith.constant 0 : i32
    %c0_i32_1 = arith.constant 0 : i32
    return %c0_i32, %c0_i32_0 : i32, i32
  }
  func.func @transform_8(%arg0: i32) -> (i32, i32) {
    %c0_i32 = arith.constant 0 : i32
    %c0_i32_0 = arith.constant 0 : i32
    %c0_i32_1 = arith.constant 0 : i32
    return %c0_i32, %c0_i32_0 : i32, i32
  }
  func.func @transform_9(%arg0: i32) -> (i32, i32) {
    %c0_i32 = arith.constant 0 : i32
    %c0_i32_0 = arith.constant 0 : i32
    %c0_i32_1 = arith.constant 0 : i32
    return %c0_i32, %c0_i32_0 : i32, i32
  }
  func.func @transform_10(%arg0: i32) -> (i32, i32) {
    %c0_i32 = arith.constant 0 : i32
    %c0_i32_0 = arith.constant 0 : i32
    return %arg0, %c0_i32 : i32, i32
  }
}

</mosaic_0001>

<llo_original>
// kernel: tile.9
$region0: #{tile.9}
  #allocation0 [shape = 's32[1]{0}', space=sflag, size = 0x4, scoped, tag = 'scoped memory for tile.9']
  %s0 = inlined_call_operand.vmem [shape: f32[64], index: 0, kind: input, shape index: {}]
  %s1 = inlined_call_operand.vmem [shape: f32[16,64], index: 1, kind: output, shape index: {}]
  // Predicated region
  $region2: #{tile.9} parent=0 // pred_check
    _
  $region3: #{tile.9} parent=0 // pred_check_branch
    %3 = sbr.rel (0) target = $region5
  $region4: #{tile.9} parent=0 // pred_region
    _
  $region5: #{tile.9} parent=0 // pred_fallthru
    _
  %v4 = vld [vmem:[%s0] ss:$0 sm:$0xff]
  %5 = vst [vmem:[%s1] sm:$0xff] %v4
  %s6 = scalar_lea.vmem %s1, 8
  %7 = vst [vmem:[%s6] sm:$0xff] %v4

// kernel: tile.10
$region0: #{tile.10}
  %s0 = inlined_call_operand.vmem [shape: f32[16,64], index: 0, kind: input, shape index: {}]
  %s1 = inlined_call_operand.vmem [shape: f32[1,1024], index: 1, kind: output, shape index: {}]
  $region1: #{tile.10} parent=0
    #allocation0 [shape = 'u8[32768]{0}', space=vmem, size = 0x8000, scoped, tag = 'scoped mem for output reshape']
    %v2 = vld [vmem:[%s0] ss:$2 sm:$0xff]
    %vm3 = vcmask 523264
    %4 = vst.msk [vmem:[#allocation0] ss:$8 sm:$0xf] %vm3, %v2
    %5 = vst.msk [vmem:[#allocation0] ss:$8 sm:$0xf0] %vm3, %v2
    %s6 = scalar_lea.vmem %s0, 1
    %v7 = vld [vmem:[%s6] ss:$2 sm:$0xff]
    %8 = vrot.lane.b32.xlu0 %v7, 64
    %v9 = vpop.permute.xlu0 %8
    %vm10 = vcmask 1048064
    %11 = vst.msk [vmem:[#allocation0] ss:$8 sm:$0xf] %vm10, %v9
    %12 = vst.msk [vmem:[#allocation0] ss:$8 sm:$0xf0] %vm10, %v9
    %s14 = ssub.s32 2, 1
    %v15 = vld [vmem:[#allocation0] sm:%s14]
    %s17 = ssub.s32 2, 1
    %18 = vst [vmem:[%s1] sm:%s17] %v15
    %s19 = scalar_lea.vmem [#allocation0], 8
    %v20 = vld [vmem:[%s19] sm:%s14]
    %s22 = ssub.s32 2, 1
    %s23 = scalar_lea.vmem %s1, 1
    %24 = vst [vmem:[%s23] sm:%s22] %v20
    %s25 = scalar_lea.vmem [#allocation0], 16
    %v26 = vld [vmem:[%s25] sm:%s14]
    %s28 = ssub.s32 2, 1
    %s29 = scalar_lea.vmem %s1, 2
    %30 = vst [vmem:[%s29] sm:%s28] %v26
    %s31 = scalar_lea.vmem [#allocation0], 24
    %v32 = vld [vmem:[%s31] sm:%s14]
    %s34 = ssub.s32 2, 1
    %s35 = scalar_lea.vmem %s1, 3
    %36 = vst [vmem:[%s35] sm:%s34] %v32
    %s37 = scalar_lea.vmem [#allocation0], 32
    %v38 = vld [vmem:[%s37] sm:%s14]
    %s40 = ssub.s32 2, 1
    %s41 = scalar_lea.vmem %s1, 4
    %42 = vst [vmem:[%s41] sm:%s40] %v38
    %s43 = scalar_lea.vmem [#allocation0], 40
    %v44 = vld [vmem:[%s43] sm:%s14]
    %s46 = ssub.s32 2, 1
    %s47 = scalar_lea.vmem %s1, 5
    %48 = vst [vmem:[%s47] sm:%s46] %v44
    %s49 = scalar_lea.vmem [#allocation0], 48
    %v50 = vld [vmem:[%s49] sm:%s14]
    %s52 = ssub.s32 2, 1
    %s53 = scalar_lea.vmem %s1, 6
    %54 = vst [vmem:[%s53] sm:%s52] %v50
    %s55 = scalar_lea.vmem [#allocation0], 56
    %v56 = vld [vmem:[%s55] sm:%s14]
    %s58 = ssub.s32 2, 1
    %s59 = scalar_lea.vmem %s1, 7
    %60 = vst [vmem:[%s59] sm:%s58] %v56

// kernel: generator_linear_forward.1
$region0: #{generator_linear_forward.1}
  #allocation0 [shape = 'u32[]', space=smem, size = 0x4, offset = 0x4, fixed_abs, tag = 'smem constant byte address 0x4 - core index']
  #allocation1 [shape = 'u32[72,128]{1,0:T(1,128)}', space=vmem, size = 0x9000, scoped, tag = 'internal scratch']
  #allocation2 [shape = 'f32[128,1024]{1,0:T(8,128)}', space=vmem, size = 0x80000, scoped, tag = 'scratch operand']
  %s0 = inlined_call_operand.vmem [shape: f32[256,256], index: 0, kind: input, shape index: {}]
  %s1 = inlined_call_operand.vmem [shape: f32[256,1024], index: 1, kind: input, shape index: {}]
  %s2 = inlined_call_operand.vmem [shape: f32[1,1024], index: 2, kind: input, shape index: {}]
  %s3 = inlined_call_operand.vmem [shape: f32[7,1024,16], index: 3, kind: input, shape index: {}]
  %s4 = inlined_call_operand.vmem [shape: f32[1,16], index: 4, kind: input, shape index: {}]
  %s5 = inlined_call_operand.vmem [shape: f32[7,128,128], index: 5, kind: input, shape index: {}]
  %s6 = inlined_call_operand.vmem [shape: f32[16,32], index: 6, kind: input, shape index: {}]
  %s7 = inlined_call_operand.vmem [shape: f32[1,32], index: 7, kind: input, shape index: {}]
  %s8 = inlined_call_operand.vmem [shape: f32[32,128], index: 8, kind: input, shape index: {}]
  %s9 = inlined_call_operand.vmem [shape: f32[1,128], index: 9, kind: input, shape index: {}]
  %s10 = inlined_call_operand.hbm [shape: f32[256,128], index: 10, kind: output, shape index: {}]
  %s11 = sld [smem:[#allocation0]]
  $region73: #{generator_linear_forward.1} parent=0
    _
  %s13 = ssub.s32 1, %s11
  %s14 = scalar_select 0, %s13, %s11
  $region1: #{generator_linear_forward.1} parent=0
    #allocation3 [shape = 'u8[131072]{0}', space=vmem, size = 0x20000, scoped, tag = 'output window, operand 0']
    #allocation4 [shape = 's32[2]{0}', space=sflag, size = 0x8, scoped, tag = 'scoped memory for generator_linear_forward.1']
    %15 = vsyncpa [#allocation4], 0
    %s16 = scalar_lea.sflag [#allocation4], 1
    %17 = vsyncpa %s16, 0
    loop: start=0, step=1, limit=4
    $region2: #{generator_linear_forward.1} parent=1 // loop_pre_header
      _
    $region3: #{generator_linear_forward.1} parent=1 // loop_header
      %s19 = sphi 0, %s23
      %p20 = scmp.ge.s32.totalorder %s19, 4
      %s29 = sphi 0, %s31
      %s32 = sphi 0, %s29
      %s33 = sphi 0, %s32
      %s49 = sphi 0, %s33
      %s53 = sphi 0, %s53
      %s55 = sphi 0, %s53
      %s56 = sphi 0, %s55
      %s70 = sphi 0, %s56
      %s74 = sphi 0, %s74
      %s76 = sphi 0, %s74
      %s77 = sphi 0, %s76
      %s91 = sphi 0, %s77
      %s95 = sphi 0, %s95
      %s97 = sphi 0, %s95
      %s98 = sphi 0, %s97
      %s112 = sphi 0, %s98
      %s116 = sphi 0, %s116
      %s118 = sphi 0, %s116
      %s119 = sphi 0, %s118
      %s133 = sphi 0, %s119
      %s137 = sphi 0, %s137
      %s139 = sphi 0, %s137
      %s140 = sphi 0, %s139
      %s154 = sphi 0, %s140
      %s158 = sphi 0, %s158
      %s160 = sphi 0, %s158
      %s161 = sphi 0, %s160
      %s175 = sphi 0, %s161
      %s179 = sphi 0, %s179
      %s181 = sphi 0, %s179
      %s182 = sphi 0, %s181
      %s196 = sphi 0, %s182
      %s200 = sphi 0, %s200
      %s202 = sphi 0, %s200
      %s203 = sphi 0, %s202
      %s217 = sphi 0, %s203
      %s221 = sphi 0, %s221
      %s223 = sphi 0, %s221
      %s224 = sphi 0, %s223
      %s238 = sphi 0, %s224
      %s244 = sphi 0, %s246
      %s247 = sphi 0, %s244
      %s248 = sphi 0, %s247
      %s264 = sphi 0, %s248
    $region4: #{generator_linear_forward.1} parent=1 // loop_header_branch
      %22 = sbr.rel (%p20) target = $region8
    $region5: #{generator_linear_forward.1} parent=1 // loop_body
      %s24 = ssub.s32 %s19, 1
      %s25 = ssub.s32 %s19, 2
      %s26 = sadd.s32 %s19, 1
      %s27 = ssub.s32 %s19, %s26
      %p28 = scmp.eq.s32.totalorder %s27, 0
      %s30 = sadd.s32 %s29, 1
      %s31 = scalar_select %p28, %s29, %s30
      %p34 = pneg %p28
      %p35 = scmp.eq.s32.totalorder %s19, 1
      %p36 = por %p34, %p35
      %p37 = scmp.ne.s32.totalorder %s29, %s32
      %p38 = scmp.eq.s32.totalorder %s19, 0
      %p39 = por %p37, %p38
      %p40 = scmp.ne.s32.totalorder %s29, %s32
      %p41 = scmp.eq.s32.totalorder %s24, 1
      %p42 = por %p40, %p41
      %p43 = scmp.ne.s32.totalorder %s32, %s33
      %p44 = scmp.eq.s32.totalorder %s24, 0
      %p45 = por %p43, %p44
      %p46 = scmp.ne.s32.totalorder %s32, %s33
      %p47 = scmp.eq.s32.totalorder %s25, 1
      %p48 = por %p46, %p47
      %p50 = scmp.ne.s32.totalorder %s33, %s49
      %p51 = scmp.eq.s32.totalorder %s25, 0
      %p52 = por %p50, %p51
      %s54 = sadd.s32 %s53, 1
      %p57 = scmp.eq.s32.totalorder %s19, 1
      %p58 = scmp.ne.s32.totalorder %s53, %s55
      %p59 = scmp.eq.s32.totalorder %s19, 0
      %p60 = por %p58, %p59
      %p61 = scmp.ne.s32.totalorder %s53, %s55
      %p62 = scmp.eq.s32.totalorder %s24, 1
      %p63 = por %p61, %p62
      %p64 = scmp.ne.s32.totalorder %s55, %s56
      %p65 = scmp.eq.s32.totalorder %s24, 0
      %p66 = por %p64, %p65
      %p67 = scmp.ne.s32.totalorder %s55, %s56
      %p68 = scmp.eq.s32.totalorder %s25, 1
      %p69 = por %p67, %p68
      %p71 = scmp.ne.s32.totalorder %s56, %s70
      %p72 = scmp.eq.s32.totalorder %s25, 0
      %p73 = por %p71, %p72
      %s75 = sadd.s32 %s74, 1
      %p78 = scmp.eq.s32.totalorder %s19, 1
      %p79 = scmp.ne.s32.totalorder %s74, %s76
      %p80 = scmp.eq.s32.totalorder %s19, 0
      %p81 = por %p79, %p80
      %p82 = scmp.ne.s32.totalorder %s74, %s76
      %p83 = scmp.eq.s32.totalorder %s24, 1
      %p84 = por %p82, %p83
      %p85 = scmp.ne.s32.totalorder %s76, %s77
      %p86 = scmp.eq.s32.totalorder %s24, 0
      %p87 = por %p85, %p86
      %p88 = scmp.ne.s32.totalorder %s76, %s77
      %p89 = scmp.eq.s32.totalorder %s25, 1
      %p90 = por %p88, %p89
      %p92 = scmp.ne.s32.totalorder %s77, %s91
      %p93 = scmp.eq.s32.totalorder %s25, 0
      %p94 = por %p92, %p93
      %s96 = sadd.s32 %s95, 1
      %p99 = scmp.eq.s32.totalorder %s19, 1
      %p100 = scmp.ne.s32.totalorder %s95, %s97
      %p101 = scmp.eq.s32.totalorder %s19, 0
      %p102 = por %p100, %p101
      %p103 = scmp.ne.s32.totalorder %s95, %s97
      %p104 = scmp.eq.s32.totalorder %s24, 1
      %p105 = por %p103, %p104
      %p106 = scmp.ne.s32.totalorder %s97, %s98
      %p107 = scmp.eq.s32.totalorder %s24, 0
      %p108 = por %p106, %p107
      %p109 = scmp.ne.s32.totalorder %s97, %s98
      %p110 = scmp.eq.s32.totalorder %s25, 1
      %p111 = por %p109, %p110
      %p113 = scmp.ne.s32.totalorder %s98, %s112
      %p114 = scmp.eq.s32.totalorder %s25, 0
      %p115 = por %p113, %p114
      %s117 = sadd.s32 %s116, 1
      %p120 = scmp.eq.s32.totalorder %s19, 1
      %p121 = scmp.ne.s32.totalorder %s116, %s118
      %p122 = scmp.eq.s32.totalorder %s19, 0
      %p123 = por %p121, %p122
      %p124 = scmp.ne.s32.totalorder %s116, %s118
      %p125 = scmp.eq.s32.totalorder %s24, 1
      %p126 = por %p124, %p125
      %p127 = scmp.ne.s32.totalorder %s118, %s119
      %p128 = scmp.eq.s32.totalorder %s24, 0
      %p129 = por %p127, %p128
      %p130 = scmp.ne.s32.totalorder %s118, %s119
      %p131 = scmp.eq.s32.totalorder %s25, 1
      %p132 = por %p130, %p131
      %p134 = scmp.ne.s32.totalorder %s119, %s133
      %p135 = scmp.eq.s32.totalorder %s25, 0
      %p136 = por %p134, %p135
      %s138 = sadd.s32 %s137, 1
      %p141 = scmp.eq.s32.totalorder %s19, 1
      %p142 = scmp.ne.s32.totalorder %s137, %s139
      %p143 = scmp.eq.s32.totalorder %s19, 0
      %p144 = por %p142, %p143
      %p145 = scmp.ne.s32.totalorder %s137, %s139
      %p146 = scmp.eq.s32.totalorder %s24, 1
      %p147 = por %p145, %p146
      %p148 = scmp.ne.s32.totalorder %s139, %s140
      %p149 = scmp.eq.s32.totalorder %s24, 0
      %p150 = por %p148, %p149
      %p151 = scmp.ne.s32.totalorder %s139, %s140
      %p152 = scmp.eq.s32.totalorder %s25, 1
      %p153 = por %p151, %p152
      %p155 = scmp.ne.s32.totalorder %s140, %s154
      %p156 = scmp.eq.s32.totalorder %s25, 0
      %p157 = por %p155, %p156
      %s159 = sadd.s32 %s158, 1
      %p162 = scmp.eq.s32.totalorder %s19, 1
      %p163 = scmp.ne.s32.totalorder %s158, %s160
      %p164 = scmp.eq.s32.totalorder %s19, 0
      %p165 = por %p163, %p164
      %p166 = scmp.ne.s32.totalorder %s158, %s160
      %p167 = scmp.eq.s32.totalorder %s24, 1
      %p168 = por %p166, %p167
      %p169 = scmp.ne.s32.totalorder %s160, %s161
      %p170 = scmp.eq.s32.totalorder %s24, 0
      %p171 = por %p169, %p170
      %p172 = scmp.ne.s32.totalorder %s160, %s161
      %p173 = scmp.eq.s32.totalorder %s25, 1
      %p174 = por %p172, %p173
      %p176 = scmp.ne.s32.totalorder %s161, %s175
      %p177 = scmp.eq.s32.totalorder %s25, 0
      %p178 = por %p176, %p177
      %s180 = sadd.s32 %s179, 1
      %p183 = scmp.eq.s32.totalorder %s19, 1
      %p184 = scmp.ne.s32.totalorder %s179, %s181
      %p185 = scmp.eq.s32.totalorder %s19, 0
      %p186 = por %p184, %p185
      %p187 = scmp.ne.s32.totalorder %s179, %s181
      %p188 = scmp.eq.s32.totalorder %s24, 1
      %p189 = por %p187, %p188
      %p190 = scmp.ne.s32.totalorder %s181, %s182
      %p191 = scmp.eq.s32.totalorder %s24, 0
      %p192 = por %p190, %p191
      %p193 = scmp.ne.s32.totalorder %s181, %s182
      %p194 = scmp.eq.s32.totalorder %s25, 1
      %p195 = por %p193, %p194
      %p197 = scmp.ne.s32.totalorder %s182, %s196
      %p198 = scmp.eq.s32.totalorder %s25, 0
      %p199 = por %p197, %p198
      %s201 = sadd.s32 %s200, 1
      %p204 = scmp.eq.s32.totalorder %s19, 1
      %p205 = scmp.ne.s32.totalorder %s200, %s202
      %p206 = scmp.eq.s32.totalorder %s19, 0
      %p207 = por %p205, %p206
      %p208 = scmp.ne.s32.totalorder %s200, %s202
      %p209 = scmp.eq.s32.totalorder %s24, 1
      %p210 = por %p208, %p209
      %p211 = scmp.ne.s32.totalorder %s202, %s203
      %p212 = scmp.eq.s32.totalorder %s24, 0
      %p213 = por %p211, %p212
      %p214 = scmp.ne.s32.totalorder %s202, %s203
      %p215 = scmp.eq.s32.totalorder %s25, 1
      %p216 = por %p214, %p215
      %p218 = scmp.ne.s32.totalorder %s203, %s217
      %p219 = scmp.eq.s32.totalorder %s25, 0
      %p220 = por %p218, %p219
      %s222 = sadd.s32 %s221, 1
      %p225 = scmp.eq.s32.totalorder %s19, 1
      %p226 = scmp.ne.s32.totalorder %s221, %s223
      %p227 = scmp.eq.s32.totalorder %s19, 0
      %p228 = por %p226, %p227
      %p229 = scmp.ne.s32.totalorder %s221, %s223
      %p230 = scmp.eq.s32.totalorder %s24, 1
      %p231 = por %p229, %p230
      %p232 = scmp.ne.s32.totalorder %s223, %s224
      %p233 = scmp.eq.s32.totalorder %s24, 0
      %p234 = por %p232, %p233
      %p235 = scmp.ne.s32.totalorder %s223, %s224
      %p236 = scmp.eq.s32.totalorder %s25, 1
      %p237 = por %p235, %p236
      %p239 = scmp.ne.s32.totalorder %s224, %s238
      %p240 = scmp.eq.s32.totalorder %s25, 0
      %p241 = por %p239, %p240
      %s242 = ssub.s32 %s19, %s26
      %p243 = scmp.eq.s32.totalorder %s242, 0
      %s245 = sadd.s32 %s244, 1
      %s246 = scalar_select %p243, %s244, %s245
      %p249 = pneg %p243
      %p250 = scmp.eq.s32.totalorder %s19, 1
      %p251 = por %p249, %p250
      %p252 = scmp.ne.s32.totalorder %s244, %s247
      %p253 = scmp.eq.s32.totalorder %s19, 0
      %p254 = por %p252, %p253
      %p255 = scmp.ne.s32.totalorder %s244, %s247
      %p256 = scmp.eq.s32.totalorder %s24, 1
      %p257 = por %p255, %p256
      %p258 = scmp.ne.s32.totalorder %s247, %s248
      %p259 = scmp.eq.s32.totalorder %s24, 0
      %p260 = por %p258, %p259
      %p261 = scmp.ne.s32.totalorder %s247, %s248
      %p262 = scmp.eq.s32.totalorder %s25, 1
      %p263 = por %p261, %p262
      %p265 = scmp.ne.s32.totalorder %s248, %s264
      %p266 = scmp.eq.s32.totalorder %s25, 0
      %p267 = por %p265, %p266
      %p268 = scmp.le.s32.totalorder 1, %s19
      %p269 = scmp.lt.s32.totalorder %s19, 3
      %p270 = pnand %p268, %p269
      %p271 = pneg %p270
      // Predicated region
      $region9: #{generator_linear_forward.1} parent=5 // pred_check
        _
      $region10: #{generator_linear_forward.1} parent=5 // pred_check_branch
        %273 = sbr.rel (%p270) target = $region12
      $region11: #{generator_linear_forward.1} parent=5 // pred_region
        %s274 = ssub.s32 %s19, 1
        // Predicated region
        $region13: #{generator_linear_forward.1} parent=11 // pred_check
          %p275 = pneg %p66
        $region14: #{generator_linear_forward.1} parent=11 // pred_check_branch
          %277 = sbr.rel (%p275) target = $region16
        $region15: #{generator_linear_forward.1} parent=11 // pred_region
          _
        $region16: #{generator_linear_forward.1} parent=11 // pred_fallthru
          _
        // Predicated region
        $region17: #{generator_linear_forward.1} parent=11 // pred_check
          %p278 = pneg %p87
        $region18: #{generator_linear_forward.1} parent=11 // pred_check_branch
          %280 = sbr.rel (%p278) target = $region20
        $region19: #{generator_linear_forward.1} parent=11 // pred_region
          _
        $region20: #{generator_linear_forward.1} parent=11 // pred_fallthru
          _
        // Predicated region
        $region21: #{generator_linear_forward.1} parent=11 // pred_check
          %p281 = pneg %p108
        $region22: #{generator_linear_forward.1} parent=11 // pred_check_branch
          %283 = sbr.rel (%p281) target = $region24
        $region23: #{generator_linear_forward.1} parent=11 // pred_region
          _
        $region24: #{generator_linear_forward.1} parent=11 // pred_fallthru
          _
        // Predicated region
        $region25: #{generator_linear_forward.1} parent=11 // pred_check
          %p284 = pneg %p129
        $region26: #{generator_linear_forward.1} parent=11 // pred_check_branch
          %286 = sbr.rel (%p284) target = $region28
        $region27: #{generator_linear_forward.1} parent=11 // pred_region
          _
        $region28: #{generator_linear_forward.1} parent=11 // pred_fallthru
          _
        // Predicated region
        $region29: #{generator_linear_forward.1} parent=11 // pred_check
          %p287 = pneg %p150
        $region30: #{generator_linear_forward.1} parent=11 // pred_check_branch
          %289 = sbr.rel (%p287) target = $region32
        $region31: #{generator_linear_forward.1} parent=11 // pred_region
          _
        $region32: #{generator_linear_forward.1} parent=11 // pred_fallthru
          _
        // Predicated region
        $region33: #{generator_linear_forward.1} parent=11 // pred_check
          %p290 = pneg %p171
        $region34: #{generator_linear_forward.1} parent=11 // pred_check_branch
          %292 = sbr.rel (%p290) target = $region36
        $region35: #{generator_linear_forward.1} parent=11 // pred_region
          _
        $region36: #{generator_linear_forward.1} parent=11 // pred_fallthru
          _
        // Predicated region
        $region37: #{generator_linear_forward.1} parent=11 // pred_check
          %p293 = pneg %p192
        $region38: #{generator_linear_forward.1} parent=11 // pred_check_branch
          %295 = sbr.rel (%p293) target = $region40
        $region39: #{generator_linear_forward.1} parent=11 // pred_region
          _
        $region40: #{generator_linear_forward.1} parent=11 // pred_fallthru
          _
        // Predicated region
        $region41: #{generator_linear_forward.1} parent=11 // pred_check
          %p296 = pneg %p213
        $region42: #{generator_linear_forward.1} parent=11 // pred_check_branch
          %298 = sbr.rel (%p296) target = $region44
        $region43: #{generator_linear_forward.1} parent=11 // pred_region
          _
        $region44: #{generator_linear_forward.1} parent=11 // pred_fallthru
          _
        // Predicated region
        $region45: #{generator_linear_forward.1} parent=11 // pred_check
          %p299 = pneg %p234
        $region46: #{generator_linear_forward.1} parent=11 // pred_check_branch
          %301 = sbr.rel (%p299) target = $region48
        $region47: #{generator_linear_forward.1} parent=11 // pred_region
          _
        $region48: #{generator_linear_forward.1} parent=11 // pred_fallthru
          _
      $region12: #{generator_linear_forward.1} parent=5 // pred_fallthru
        _
      %p302 = scmp.lt.s32.totalorder %s19, 2
      // Predicated region
      $region49: #{generator_linear_forward.1} parent=5 // pred_check
        %p303 = pneg %p302
      $region50: #{generator_linear_forward.1} parent=5 // pred_check_branch
        %305 = sbr.rel (%p303) target = $region52
      $region51: #{generator_linear_forward.1} parent=5 // pred_region
        // Predicated region
        $region53: #{generator_linear_forward.1} parent=51 // pred_check
          %p306 = pneg %p39
        $region54: #{generator_linear_forward.1} parent=51 // pred_check_branch
          %308 = sbr.rel (%p306) target = $region56
        $region55: #{generator_linear_forward.1} parent=51 // pred_region
          %s309 = smul.u32 16, %s19
          %p310 = scmp.lt.s32.totalorder %s309, 31
          %s311 = scalar_select %p310, %s309, 31
          %s312 = smul.addr %s311, 2
          %s313 = smul.addr %s312, 8
          %s314 = scalar_lea.vmem %s0, %s313
          %s315 = smul.u32 16, %s19
        $region56: #{generator_linear_forward.1} parent=51 // pred_fallthru
          _
      $region52: #{generator_linear_forward.1} parent=5 // pred_fallthru
        _
      %p316 = scmp.le.s32.totalorder 1, %s19
      %p317 = scmp.lt.s32.totalorder %s19, 3
      %p318 = pnand %p316, %p317
      %p319 = pneg %p318
      // Predicated region
      $region57: #{generator_linear_forward.1} parent=5 // pred_check
        _
      $region58: #{generator_linear_forward.1} parent=5 // pred_check_branch
        %321 = sbr.rel (%p318) target = $region60
      $region59: #{generator_linear_forward.1} parent=5 // pred_region
        %s322 = ssub.s32 %s19, 1
        %s323 = smul.u32 16, %s24
        %p324 = scmp.lt.s32.totalorder %s323, 31
        %s325 = scalar_select %p324, %s323, 31
        %s326 = smul.addr %s325, 2
        %s327 = smul.addr %s326, 8
        %s328 = scalar_lea.vmem %s0, %s327
        %p329 = pneg %p45
        %p330 = pneg %p42
        %p331 = pneg %p66
        %p332 = pneg %p63
        %p333 = pneg %p87
        %p334 = pneg %p84
        %p335 = pneg %p108
        %p336 = pneg %p105
        %p337 = pneg %p129
        %p338 = pneg %p126
        %p339 = pneg %p150
        %p340 = pneg %p147
        %p341 = pneg %p171
        %p342 = pneg %p168
        %p343 = pneg %p192
        %p344 = pneg %p189
        %p345 = pneg %p213
        %p346 = pneg %p210
        %p347 = pneg %p234
        %p348 = pneg %p231
        %p349 = pneg %p260
        %p350 = pneg %p257
        %s351 = sand.u32 %s247, 1
        %s352 = scalar_lea.sflag [#allocation4], %s351
        %s353 = sand.u32 %s247, 1
        %s354 = smul.addr %s353, 128
        %s355 = scalar_lea.vmem [#allocation3], %s354
        %s356 = smul.u32 16, %s24
        %p357 = scmp.lt.s32.totalorder %s356, 31
        %s358 = scalar_select %p357, %s356, 31
        %s359 = smul.addr %s358, 2
        %s360 = smul.addr %s359, 8
        %s361 = scalar_lea.vmem %s0, %s360
        %s362 = smul.u32 16, %s24
        %s363 = smul.u32 16, %s24
        %v364 = vld [vmem:[%s361] sm:$0xff]
        %v365 = vld [vmem:[%s361 + $0x8] sm:$0xff]
        %v366 = vld [vmem:[%s361 + $0x10] sm:$0xff]
        %v367 = vld [vmem:[%s361 + $0x18] sm:$0xff]
        %v368 = vld [vmem:[%s361 + $0x20] sm:$0xff]
        %v369 = vld [vmem:[%s361 + $0x28] sm:$0xff]
        %v370 = vld [vmem:[%s361 + $0x30] sm:$0xff]
        %v371 = vld [vmem:[%s361 + $0x38] sm:$0xff]
        %v372 = vld [vmem:[%s361 + $0x40] sm:$0xff]
        %v373 = vld [vmem:[%s361 + $0x48] sm:$0xff]
        %v374 = vld [vmem:[%s361 + $0x50] sm:$0xff]
        %v375 = vld [vmem:[%s361 + $0x58] sm:$0xff]
        %v376 = vld [vmem:[%s361 + $0x60] sm:$0xff]
        %v377 = vld [vmem:[%s361 + $0x68] sm:$0xff]
        %v378 = vld [vmem:[%s361 + $0x70] sm:$0xff]
        %v379 = vld [vmem:[%s361 + $0x78] sm:$0xff]
        %v380 = vld [vmem:[%s361 + $0x80] sm:$0xff]
        %v381 = vld [vmem:[%s361 + $0x88] sm:$0xff]
        %v382 = vld [vmem:[%s361 + $0x90] sm:$0xff]
        %v383 = vld [vmem:[%s361 + $0x98] sm:$0xff]
        %v384 = vld [vmem:[%s361 + $0xa0] sm:$0xff]
        %v385 = vld [vmem:[%s361 + $0xa8] sm:$0xff]
        %v386 = vld [vmem:[%s361 + $0xb0] sm:$0xff]
        %v387 = vld [vmem:[%s361 + $0xb8] sm:$0xff]
        %v388 = vld [vmem:[%s361 + $0xc0] sm:$0xff]
        %v389 = vld [vmem:[%s361 + $0xc8] sm:$0xff]
        %v390 = vld [vmem:[%s361 + $0xd0] sm:$0xff]
        %v391 = vld [vmem:[%s361 + $0xd8] sm:$0xff]
        %v392 = vld [vmem:[%s361 + $0xe0] sm:$0xff]
        %v393 = vld [vmem:[%s361 + $0xe8] sm:$0xff]
        %v394 = vld [vmem:[%s361 + $0xf0] sm:$0xff]
        %v395 = vld [vmem:[%s361 + $0xf8] sm:$0xff]
        %v396 = vld [vmem:[%s1] sm:$0xff]
        %v397 = vld [vmem:[%s1 + $0x8] sm:$0xff]
        %v398 = vld [vmem:[%s1 + $0x40] sm:$0xff]
        %v399 = vld [vmem:[%s1 + $0x48] sm:$0xff]
        %v400 = vld [vmem:[%s1 + $0x80] sm:$0xff]
        %v401 = vld [vmem:[%s1 + $0x88] sm:$0xff]
        %v402 = vld [vmem:[%s1 + $0xc0] sm:$0xff]
        %v403 = vld [vmem:[%s1 + $0xc8] sm:$0xff]
        %v404 = vld [vmem:[%s1 + $0x100] sm:$0xff]
        %v405 = vld [vmem:[%s1 + $0x108] sm:$0xff]
        %v406 = vld [vmem:[%s1 + $0x140] sm:$0xff]
        %v407 = vld [vmem:[%s1 + $0x148] sm:$0xff]
        %v408 = vld [vmem:[%s1 + $0x180] sm:$0xff]
        %v409 = vld [vmem:[%s1 + $0x188] sm:$0xff]
        %v410 = vld [vmem:[%s1 + $0x1c0] sm:$0xff]
        %v411 = vld [vmem:[%s1 + $0x1c8] sm:$0xff]
        %v412 = vld [vmem:[%s1 + $0x200] sm:$0xff]
        %v413 = vld [vmem:[%s1 + $0x208] sm:$0xff]
        %v414 = vld [vmem:[%s1 + $0x240] sm:$0xff]
        %v415 = vld [vmem:[%s1 + $0x248] sm:$0xff]
        %v416 = vld [vmem:[%s1 + $0x280] sm:$0xff]
        %v417 = vld [vmem:[%s1 + $0x288] sm:$0xff]
        %v418 = vld [vmem:[%s1 + $0x2c0] sm:$0xff]
        %v419 = vld [vmem:[%s1 + $0x2c8] sm:$0xff]
        %v420 = vld [vmem:[%s1 + $0x300] sm:$0xff]
        %v421 = vld [vmem:[%s1 + $0x308] sm:$0xff]
        %v422 = vld [vmem:[%s1 + $0x340] sm:$0xff]
        %v423 = vld [vmem:[%s1 + $0x348] sm:$0xff]
        %v424 = vld [vmem:[%s1 + $0x380] sm:$0xff]
        %v425 = vld [vmem:[%s1 + $0x388] sm:$0xff]
        %v426 = vld [vmem:[%s1 + $0x3c0] sm:$0xff]
        %v427 = vld [vmem:[%s1 + $0x3c8] sm:$0xff]
        %v428 = vld [vmem:[%s1 + $0x400] sm:$0xff]
        %v429 = vld [vmem:[%s1 + $0x408] sm:$0xff]
        %v430 = vld [vmem:[%s1 + $0x440] sm:$0xff]
        %v431 = vld [vmem:[%s1 + $0x448] sm:$0xff]
        %v432 = vld [vmem:[%s1 + $0x480] sm:$0xff]
        %v433 = vld [vmem:[%s1 + $0x488] sm:$0xff]
        %v434 = vld [vmem:[%s1 + $0x4c0] sm:$0xff]
        %v435 = vld [vmem:[%s1 + $0x4c8] sm:$0xff]
        %v436 = vld [vmem:[%s1 + $0x500] sm:$0xff]
        %v437 = vld [vmem:[%s1 + $0x508] sm:$0xff]
        %v438 = vld [vmem:[%s1 + $0x540] sm:$0xff]
        %v439 = vld [vmem:[%s1 + $0x548] sm:$0xff]
        %v440 = vld [vmem:[%s1 + $0x580] sm:$0xff]
        %v441 = vld [vmem:[%s1 + $0x588] sm:$0xff]
        %v442 = vld [vmem:[%s1 + $0x5c0] sm:$0xff]
        %v443 = vld [vmem:[%s1 + $0x5c8] sm:$0xff]
        %v444 = vld [vmem:[%s1 + $0x600] sm:$0xff]
        %v445 = vld [vmem:[%s1 + $0x608] sm:$0xff]
        %v446 = vld [vmem:[%s1 + $0x640] sm:$0xff]
        %v447 = vld [vmem:[%s1 + $0x648] sm:$0xff]
        %v448 = vld [vmem:[%s1 + $0x680] sm:$0xff]
        %v449 = vld [vmem:[%s1 + $0x688] sm:$0xff]
        %v450 = vld [vmem:[%s1 + $0x6c0] sm:$0xff]
        %v451 = vld [vmem:[%s1 + $0x6c8] sm:$0xff]
        %v452 = vld [vmem:[%s1 + $0x700] sm:$0xff]
        %v453 = vld [vmem:[%s1 + $0x708] sm:$0xff]
        %v454 = vld [vmem:[%s1 + $0x740] sm:$0xff]
        %v455 = vld [vmem:[%s1 + $0x748] sm:$0xff]
        %v456 = vld [vmem:[%s1 + $0x780] sm:$0xff]
        %v457 = vld [vmem:[%s1 + $0x788] sm:$0xff]
        %v458 = vld [vmem:[%s1 + $0x7c0] sm:$0xff]
        %v459 = vld [vmem:[%s1 + $0x7c8] sm:$0xff]
        %v460 = vld [vmem:[%s2] sm:$0x3]
        %v462 = vperm.slane %v460, 0
        %v463 = vperm.slane %v460, 1
        %466 = vmatpush.msra.mxu0 %v426
        %467 = vmatpush.msra.mxu0 %v424
        %468 = vmatpush.msra.mxu0 %v422
        %469 = vmatpush.msra.mxu0 %v420
        %470 = vmatpush.msra.mxu0 %v418
        %471 = vmatpush.msra.mxu0 %v416
        %472 = vmatpush.msra.mxu0 %v414
        %473 = vmatpush.msra.mxu0 %v412
        %474 = vmatpush.msra.mxu0 %v410
        %475 = vmatpush.msra.mxu0 %v408
        %476 = vmatpush.msra.mxu0 %v406
        %477 = vmatpush.msra.mxu0 %v404
        %478 = vmatpush.msra.mxu0 %v402
        %479 = vmatpush.msra.mxu0 %v400
        %480 = vmatpush.msra.mxu0 %v398
        %481 = vmatpush.msra.mxu0 %v396
        %482 = vmatmul.f32.gmra.mxu0 %v364
        %v483 = vpop.f32.mrf.mxu0
        %v484 = vadd.f32 %v462, %v483
        %485 = vmatmul.f32.gmra.mxu0 %v366
        %v486 = vpop.f32.mrf.mxu0
        %v487 = vadd.f32 %v462, %v486
        %488 = vmatmul.f32.gmra.mxu0 %v368
        %v489 = vpop.f32.mrf.mxu0
        %v490 = vadd.f32 %v462, %v489
        %491 = vmatmul.f32.gmra.mxu0 %v370
        %v492 = vpop.f32.mrf.mxu0
        %v493 = vadd.f32 %v462, %v492
        %494 = vmatmul.f32.gmra.mxu0 %v372
        %v495 = vpop.f32.mrf.mxu0
        %v496 = vadd.f32 %v462, %v495
        %497 = vmatmul.f32.gmra.mxu0 %v374
        %v498 = vpop.f32.mrf.mxu0
        %v499 = vadd.f32 %v462, %v498
        %500 = vmatmul.f32.gmra.mxu0 %v376
        %v501 = vpop.f32.mrf.mxu0
        %v502 = vadd.f32 %v462, %v501
        %503 = vmatmul.f32.gmra.mxu0 %v378
        %v504 = vpop.f32.mrf.mxu0
        %v505 = vadd.f32 %v462, %v504
        %506 = vmatmul.f32.gmra.mxu0 %v380
        %v507 = vpop.f32.mrf.mxu0
        %v508 = vadd.f32 %v462, %v507
        %509 = vmatmul.f32.gmra.mxu0 %v382
        %v510 = vpop.f32.mrf.mxu0
        %v511 = vadd.f32 %v462, %v510
        %512 = vmatmul.f32.gmra.mxu0 %v384
        %v513 = vpop.f32.mrf.mxu0
        %v514 = vadd.f32 %v462, %v513
        %515 = vmatmul.f32.gmra.mxu0 %v386
        %v516 = vpop.f32.mrf.mxu0
        %v517 = vadd.f32 %v462, %v516
        %518 = vmatmul.f32.gmra.mxu0 %v388
        %v519 = vpop.f32.mrf.mxu0
        %v520 = vadd.f32 %v462, %v519
        %521 = vmatmul.f32.gmra.mxu0 %v390
        %v522 = vpop.f32.mrf.mxu0
        %v523 = vadd.f32 %v462, %v522
        %524 = vmatmul.f32.gmra.mxu0 %v392
        %v525 = vpop.f32.mrf.mxu0
        %v526 = vadd.f32 %v462, %v525
        %527 = vmatmul.f32.gmra.mxu0 %v394
        %v528 = vpop.f32.mrf.mxu0
        %v529 = vadd.f32 %v462, %v528
        %530 = vdwg.mxu0
        %531 = vmatpush.msra.mxu0 %v458
        %532 = vmatpush.msra.mxu0 %v456
        %533 = vmatpush.msra.mxu0 %v454
        %534 = vmatpush.msra.mxu0 %v452
        %535 = vmatpush.msra.mxu0 %v450
        %536 = vmatpush.msra.mxu0 %v448
        %537 = vmatpush.msra.mxu0 %v446
        %538 = vmatpush.msra.mxu0 %v444
        %539 = vmatpush.msra.mxu0 %v442
        %540 = vmatpush.msra.mxu0 %v440
        %541 = vmatpush.msra.mxu0 %v438
        %542 = vmatpush.msra.mxu0 %v436
        %543 = vmatpush.msra.mxu0 %v434
        %544 = vmatpush.msra.mxu0 %v432
        %545 = vmatpush.msra.mxu0 %v430
        %546 = vmatpush.msra.mxu0 %v428
        %547 = vmatmul.f32.gmra.mxu0 %v365
        %v548 = vpop.f32.mrf.mxu0
        %v549 = vadd.f32 %v484, %v548
        %550 = vmatmul.f32.gmra.mxu0 %v367
        %v551 = vpop.f32.mrf.mxu0
        %v552 = vadd.f32 %v487, %v551
        %553 = vmatmul.f32.gmra.mxu0 %v369
        %v554 = vpop.f32.mrf.mxu0
        %v555 = vadd.f32 %v490, %v554
        %556 = vmatmul.f32.gmra.mxu0 %v371
        %v557 = vpop.f32.mrf.mxu0
        %v558 = vadd.f32 %v493, %v557
        %559 = vmatmul.f32.gmra.mxu0 %v373
        %v560 = vpop.f32.mrf.mxu0
        %v561 = vadd.f32 %v496, %v560
        %562 = vmatmul.f32.gmra.mxu0 %v375
        %v563 = vpop.f32.mrf.mxu0
        %v564 = vadd.f32 %v499, %v563
        %565 = vmatmul.f32.gmra.mxu0 %v377
        %v566 = vpop.f32.mrf.mxu0
        %v567 = vadd.f32 %v502, %v566
        %568 = vmatmul.f32.gmra.mxu0 %v379
        %v569 = vpop.f32.mrf.mxu0
        %v570 = vadd.f32 %v505, %v569
        %571 = vmatmul.f32.gmra.mxu0 %v381
        %v572 = vpop.f32.mrf.mxu0
        %v573 = vadd.f32 %v508, %v572
        %574 = vmatmul.f32.gmra.mxu0 %v383
        %v575 = vpop.f32.mrf.mxu0
        %v576 = vadd.f32 %v511, %v575
        %577 = vmatmul.f32.gmra.mxu0 %v385
        %v578 = vpop.f32.mrf.mxu0
        %v579 = vadd.f32 %v514, %v578
        %580 = vmatmul.f32.gmra.mxu0 %v387
        %v581 = vpop.f32.mrf.mxu0
        %v582 = vadd.f32 %v517, %v581
        %583 = vmatmul.f32.gmra.mxu0 %v389
        %v584 = vpop.f32.mrf.mxu0
        %v585 = vadd.f32 %v520, %v584
        %586 = vmatmul.f32.gmra.mxu0 %v391
        %v587 = vpop.f32.mrf.mxu0
        %v588 = vadd.f32 %v523, %v587
        %589 = vmatmul.f32.gmra.mxu0 %v393
        %v590 = vpop.f32.mrf.mxu0
        %v591 = vadd.f32 %v526, %v590
        %592 = vmatmul.f32.gmra.mxu0 %v395
        %v593 = vpop.f32.mrf.mxu0
        %v594 = vadd.f32 %v529, %v593
        %595 = vdwg.mxu0
        %596 = vmatpush.msra.mxu0 %v427
        %597 = vmatpush.msra.mxu0 %v425
        %598 = vmatpush.msra.mxu0 %v423
        %599 = vmatpush.msra.mxu0 %v421
        %600 = vmatpush.msra.mxu0 %v419
        %601 = vmatpush.msra.mxu0 %v417
        %602 = vmatpush.msra.mxu0 %v415
        %603 = vmatpush.msra.mxu0 %v413
        %604 = vmatpush.msra.mxu0 %v411
        %605 = vmatpush.msra.mxu0 %v409
        %606 = vmatpush.msra.mxu0 %v407
        %607 = vmatpush.msra.mxu0 %v405
        %608 = vmatpush.msra.mxu0 %v403
        %609 = vmatpush.msra.mxu0 %v401
        %610 = vmatpush.msra.mxu0 %v399
        %611 = vmatpush.msra.mxu0 %v397
        %612 = vmatmul.f32.gmra.mxu0 %v364
        %v613 = vpop.f32.mrf.mxu0
        %v614 = vadd.f32 %v463, %v613
        %615 = vmatmul.f32.gmra.mxu0 %v366
        %v616 = vpop.f32.mrf.mxu0
        %v617 = vadd.f32 %v463, %v616
        %618 = vmatmul.f32.gmra.mxu0 %v368
        %v619 = vpop.f32.mrf.mxu0
        %v620 = vadd.f32 %v463, %v619
        %621 = vmatmul.f32.gmra.mxu0 %v370
        %v622 = vpop.f32.mrf.mxu0
        %v623 = vadd.f32 %v463, %v622
        %624 = vmatmul.f32.gmra.mxu0 %v372
        %v625 = vpop.f32.mrf.mxu0
        %v626 = vadd.f32 %v463, %v625
        %627 = vmatmul.f32.gmra.mxu0 %v374
        %v628 = vpop.f32.mrf.mxu0
        %v629 = vadd.f32 %v463, %v628
        %630 = vmatmul.f32.gmra.mxu0 %v376
        %v631 = vpop.f32.mrf.mxu0
        %v632 = vadd.f32 %v463, %v631
        %633 = vmatmul.f32.gmra.mxu0 %v378
        %v634 = vpop.f32.mrf.mxu0
        %v635 = vadd.f32 %v463, %v634
        %636 = vmatmul.f32.gmra.mxu0 %v380
        %v637 = vpop.f32.mrf.mxu0
        %v638 = vadd.f32 %v463, %v637
        %639 = vmatmul.f32.gmra.mxu0 %v382
        %v640 = vpop.f32.mrf.mxu0
        %v641 = vadd.f32 %v463, %v640
        %642 = vmatmul.f32.gmra.mxu0 %v384
        %v643 = vpop.f32.mrf.mxu0
        %v644 = vadd.f32 %v463, %v643
        %645 = vmatmul.f32.gmra.mxu0 %v386
        %v646 = vpop.f32.mrf.mxu0
        %v647 = vadd.f32 %v463, %v646
        %648 = vmatmul.f32.gmra.mxu0 %v388
        %v649 = vpop.f32.mrf.mxu0
        %v650 = vadd.f32 %v463, %v649
        %651 = vmatmul.f32.gmra.mxu0 %v390
        %v652 = vpop.f32.mrf.mxu0
        %v653 = vadd.f32 %v463, %v652
        %654 = vmatmul.f32.gmra.mxu0 %v392
        %v655 = vpop.f32.mrf.mxu0
        %v656 = vadd.f32 %v463, %v655
        %657 = vmatmul.f32.gmra.mxu0 %v394
        %v658 = vpop.f32.mrf.mxu0
        %v659 = vadd.f32 %v463, %v658
        %660 = vdwg.mxu0
        %661 = vmatpush.msra.mxu0 %v459
        %662 = vmatpush.msra.mxu0 %v457
        %663 = vmatpush.msra.mxu0 %v455
        %664 = vmatpush.msra.mxu0 %v453
        %665 = vmatpush.msra.mxu0 %v451
        %666 = vmatpush.msra.mxu0 %v449
        %667 = vmatpush.msra.mxu0 %v447
        %668 = vmatpush.msra.mxu0 %v445
        %669 = vmatpush.msra.mxu0 %v443
        %670 = vmatpush.msra.mxu0 %v441
        %671 = vmatpush.msra.mxu0 %v439
        %672 = vmatpush.msra.mxu0 %v437
        %673 = vmatpush.msra.mxu0 %v435
        %674 = vmatpush.msra.mxu0 %v433
        %675 = vmatpush.msra.mxu0 %v431
        %676 = vmatpush.msra.mxu0 %v429
        %677 = vmatmul.f32.gmra.mxu0 %v365
        %v678 = vpop.f32.mrf.mxu0
        %v679 = vadd.f32 %v614, %v678
        %680 = vmatmul.f32.gmra.mxu0 %v367
        %v681 = vpop.f32.mrf.mxu0
        %v682 = vadd.f32 %v617, %v681
        %683 = vmatmul.f32.gmra.mxu0 %v369
        %v684 = vpop.f32.mrf.mxu0
        %v685 = vadd.f32 %v620, %v684
        %686 = vmatmul.f32.gmra.mxu0 %v371
        %v687 = vpop.f32.mrf.mxu0
        %v688 = vadd.f32 %v623, %v687
        %689 = vmatmul.f32.gmra.mxu0 %v373
        %v690 = vpop.f32.mrf.mxu0
        %v691 = vadd.f32 %v626, %v690
        %692 = vmatmul.f32.gmra.mxu0 %v375
        %v693 = vpop.f32.mrf.mxu0
        %v694 = vadd.f32 %v629, %v693
        %695 = vmatmul.f32.gmra.mxu0 %v377
        %v696 = vpop.f32.mrf.mxu0
        %v697 = vadd.f32 %v632, %v696
        %698 = vmatmul.f32.gmra.mxu0 %v379
        %v699 = vpop.f32.mrf.mxu0
        %v700 = vadd.f32 %v635, %v699
        %701 = vmatmul.f32.gmra.mxu0 %v381
        %v702 = vpop.f32.mrf.mxu0
        %v703 = vadd.f32 %v638, %v702
        %704 = vmatmul.f32.gmra.mxu0 %v383
        %v705 = vpop.f32.mrf.mxu0
        %v706 = vadd.f32 %v641, %v705
        %707 = vmatmul.f32.gmra.mxu0 %v385
        %v708 = vpop.f32.mrf.mxu0
        %v709 = vadd.f32 %v644, %v708
        %710 = vmatmul.f32.gmra.mxu0 %v387
        %v711 = vpop.f32.mrf.mxu0
        %v712 = vadd.f32 %v647, %v711
        %713 = vmatmul.f32.gmra.mxu0 %v389
        %v714 = vpop.f32.mrf.mxu0
        %v715 = vadd.f32 %v650, %v714
        %716 = vmatmul.f32.gmra.mxu0 %v391
        %v717 = vpop.f32.mrf.mxu0
        %v718 = vadd.f32 %v653, %v717
        %719 = vmatmul.f32.gmra.mxu0 %v393
        %v720 = vpop.f32.mrf.mxu0
        %v721 = vadd.f32 %v656, %v720
        %722 = vmatmul.f32.gmra.mxu0 %v395
        %v723 = vpop.f32.mrf.mxu0
        %v724 = vadd.f32 %v659, %v723
        %725 = vdwg.mxu0
        %v726 = vmax.f32 %v549, 0.0
        %v727 = vmax.f32 %v679, 0.0
        %v728 = vmax.f32 %v552, 0.0
        %v729 = vmax.f32 %v682, 0.0
        %v730 = vmax.f32 %v555, 0.0
        %v731 = vmax.f32 %v685, 0.0
        %v732 = vmax.f32 %v558, 0.0
        %v733 = vmax.f32 %v688, 0.0
        %v734 = vmax.f32 %v561, 0.0
        %v735 = vmax.f32 %v691, 0.0
        %v736 = vmax.f32 %v564, 0.0
        %v737 = vmax.f32 %v694, 0.0
        %v738 = vmax.f32 %v567, 0.0
        %v739 = vmax.f32 %v697, 0.0
        %v740 = vmax.f32 %v570, 0.0
        %v741 = vmax.f32 %v700, 0.0
        %v742 = vmax.f32 %v573, 0.0
        %v743 = vmax.f32 %v703, 0.0
        %v744 = vmax.f32 %v576, 0.0
        %v745 = vmax.f32 %v706, 0.0
        %v746 = vmax.f32 %v579, 0.0
        %v747 = vmax.f32 %v709, 0.0
        %v748 = vmax.f32 %v582, 0.0
        %v749 = vmax.f32 %v712, 0.0
        %v750 = vmax.f32 %v585, 0.0
        %v751 = vmax.f32 %v715, 0.0
        %v752 = vmax.f32 %v588, 0.0
        %v753 = vmax.f32 %v718, 0.0
        %v754 = vmax.f32 %v591, 0.0
        %v755 = vmax.f32 %v721, 0.0
        %v756 = vmax.f32 %v594, 0.0
        %v757 = vmax.f32 %v724, 0.0
        %758 = vst [vmem:[#allocation2] sm:$0xff] %v726
        %759 = vst [vmem:[#allocation2 + $0x8] sm:$0xff] %v727
        %760 = vst [vmem:[#allocation2 + $0x40] sm:$0xff] %v728
        %761 = vst [vmem:[#allocation2 + $0x48] sm:$0xff] %v729
        %762 = vst [vmem:[#allocation2 + $0x80] sm:$0xff] %v730
        %763 = vst [vmem:[#allocation2 + $0x88] sm:$0xff] %v731
        %764 = vst [vmem:[#allocation2 + $0xc0] sm:$0xff] %v732
        %765 = vst [vmem:[#allocation2 + $0xc8] sm:$0xff] %v733
        %766 = vst [vmem:[#allocation2 + $0x100] sm:$0xff] %v734
        %767 = vst [vmem:[#allocation2 + $0x108] sm:$0xff] %v735
        %768 = vst [vmem:[#allocation2 + $0x140] sm:$0xff] %v736
        %769 = vst [vmem:[#allocation2 + $0x148] sm:$0xff] %v737
        %770 = vst [vmem:[#allocation2 + $0x180] sm:$0xff] %v738
        %771 = vst [vmem:[#allocation2 + $0x188] sm:$0xff] %v739
        %772 = vst [vmem:[#allocation2 + $0x1c0] sm:$0xff] %v740
        %773 = vst [vmem:[#allocation2 + $0x1c8] sm:$0xff] %v741
        %774 = vst [vmem:[#allocation2 + $0x200] sm:$0xff] %v742
        %775 = vst [vmem:[#allocation2 + $0x208] sm:$0xff] %v743
        %776 = vst [vmem:[#allocation2 + $0x240] sm:$0xff] %v744
        %777 = vst [vmem:[#allocation2 + $0x248] sm:$0xff] %v745
        %778 = vst [vmem:[#allocation2 + $0x280] sm:$0xff] %v746
        %779 = vst [vmem:[#allocation2 + $0x288] sm:$0xff] %v747
        %780 = vst [vmem:[#allocation2 + $0x2c0] sm:$0xff] %v748
        %781 = vst [vmem:[#allocation2 + $0x2c8] sm:$0xff] %v749
        %782 = vst [vmem:[#allocation2 + $0x300] sm:$0xff] %v750
        %783 = vst [vmem:[#allocation2 + $0x308] sm:$0xff] %v751
        %784 = vst [vmem:[#allocation2 + $0x340] sm:$0xff] %v752
        %785 = vst [vmem:[#allocation2 + $0x348] sm:$0xff] %v753
        %786 = vst [vmem:[#allocation2 + $0x380] sm:$0xff] %v754
        %787 = vst [vmem:[#allocation2 + $0x388] sm:$0xff] %v755
        %788 = vst [vmem:[#allocation2 + $0x3c0] sm:$0xff] %v756
        %789 = vst [vmem:[#allocation2 + $0x3c8] sm:$0xff] %v757
        %v790 = vld [vmem:[%s361] sm:$0xff]
        %v791 = vld [vmem:[%s361 + $0x8] sm:$0xff]
        %v792 = vld [vmem:[%s361 + $0x10] sm:$0xff]
        %v793 = vld [vmem:[%s361 + $0x18] sm:$0xff]
        %v794 = vld [vmem:[%s361 + $0x20] sm:$0xff]
        %v795 = vld [vmem:[%s361 + $0x28] sm:$0xff]
        %v796 = vld [vmem:[%s361 + $0x30] sm:$0xff]
        %v797 = vld [vmem:[%s361 + $0x38] sm:$0xff]
        %v798 = vld [vmem:[%s361 + $0x40] sm:$0xff]
        %v799 = vld [vmem:[%s361 + $0x48] sm:$0xff]
        %v800 = vld [vmem:[%s361 + $0x50] sm:$0xff]
        %v801 = vld [vmem:[%s361 + $0x58] sm:$0xff]
        %v802 = vld [vmem:[%s361 + $0x60] sm:$0xff]
        %v803 = vld [vmem:[%s361 + $0x68] sm:$0xff]
        %v804 = vld [vmem:[%s361 + $0x70] sm:$0xff]
        %v805 = vld [vmem:[%s361 + $0x78] sm:$0xff]
        %v806 = vld [vmem:[%s361 + $0x80] sm:$0xff]
        %v807 = vld [vmem:[%s361 + $0x88] sm:$0xff]
        %v808 = vld [vmem:[%s361 + $0x90] sm:$0xff]
        %v809 = vld [vmem:[%s361 + $0x98] sm:$0xff]
        %v810 = vld [vmem:[%s361 + $0xa0] sm:$0xff]
        %v811 = vld [vmem:[%s361 + $0xa8] sm:$0xff]
        %v812 = vld [vmem:[%s361 + $0xb0] sm:$0xff]
        %v813 = vld [vmem:[%s361 + $0xb8] sm:$0xff]
        %v814 = vld [vmem:[%s361 + $0xc0] sm:$0xff]
        %v815 = vld [vmem:[%s361 + $0xc8] sm:$0xff]
        %v816 = vld [vmem:[%s361 + $0xd0] sm:$0xff]
        %v817 = vld [vmem:[%s361 + $0xd8] sm:$0xff]
        %v818 = vld [vmem:[%s361 + $0xe0] sm:$0xff]
        %v819 = vld [vmem:[%s361 + $0xe8] sm:$0xff]
        %v820 = vld [vmem:[%s361 + $0xf0] sm:$0xff]
        %v821 = vld [vmem:[%s361 + $0xf8] sm:$0xff]
        %v822 = vld [vmem:[%s1 + $0x10] sm:$0xff]
        %v823 = vld [vmem:[%s1 + $0x18] sm:$0xff]
        %v824 = vld [vmem:[%s1 + $0x50] sm:$0xff]
        %v825 = vld [vmem:[%s1 + $0x58] sm:$0xff]
        %v826 = vld [vmem:[%s1 + $0x90] sm:$0xff]
        %v827 = vld [vmem:[%s1 + $0x98] sm:$0xff]
        %v828 = vld [vmem:[%s1 + $0xd0] sm:$0xff]
        %v829 = vld [vmem:[%s1 + $0xd8] sm:$0xff]
        %v830 = vld [vmem:[%s1 + $0x110] sm:$0xff]
        %v831 = vld [vmem:[%s1 + $0x118] sm:$0xff]
        %v832 = vld [vmem:[%s1 + $0x150] sm:$0xff]
        %v833 = vld [vmem:[%s1 + $0x158] sm:$0xff]
        %v834 = vld [vmem:[%s1 + $0x190] sm:$0xff]
        %v835 = vld [vmem:[%s1 + $0x198] sm:$0xff]
        %v836 = vld [vmem:[%s1 + $0x1d0] sm:$0xff]
        %v837 = vld [vmem:[%s1 + $0x1d8] sm:$0xff]
        %v838 = vld [vmem:[%s1 + $0x210] sm:$0xff]
        %v839 = vld [vmem:[%s1 + $0x218] sm:$0xff]
        %v840 = vld [vmem:[%s1 + $0x250] sm:$0xff]
        %v841 = vld [vmem:[%s1 + $0x258] sm:$0xff]
        %v842 = vld [vmem:[%s1 + $0x290] sm:$0xff]
        %v843 = vld [vmem:[%s1 + $0x298] sm:$0xff]
        %v844 = vld [vmem:[%s1 + $0x2d0] sm:$0xff]
        %v845 = vld [vmem:[%s1 + $0x2d8] sm:$0xff]
        %v846 = vld [vmem:[%s1 + $0x310] sm:$0xff]
        %v847 = vld [vmem:[%s1 + $0x318] sm:$0xff]
        %v848 = vld [vmem:[%s1 + $0x350] sm:$0xff]
        %v849 = vld [vmem:[%s1 + $0x358] sm:$0xff]
        %v850 = vld [vmem:[%s1 + $0x390] sm:$0xff]
        %v851 = vld [vmem:[%s1 + $0x398] sm:$0xff]
        %v852 = vld [vmem:[%s1 + $0x3d0] sm:$0xff]
        %v853 = vld [vmem:[%s1 + $0x3d8] sm:$0xff]
        %v854 = vld [vmem:[%s1 + $0x410] sm:$0xff]
        %v855 = vld [vmem:[%s1 + $0x418] sm:$0xff]
        %v856 = vld [vmem:[%s1 + $0x450] sm:$0xff]
        %v857 = vld [vmem:[%s1 + $0x458] sm:$0xff]
        %v858 = vld [vmem:[%s1 + $0x490] sm:$0xff]
        %v859 = vld [vmem:[%s1 + $0x498] sm:$0xff]
        %v860 = vld [vmem:[%s1 + $0x4d0] sm:$0xff]
        %v861 = vld [vmem:[%s1 + $0x4d8] sm:$0xff]
        %v862 = vld [vmem:[%s1 + $0x510] sm:$0xff]
        %v863 = vld [vmem:[%s1 + $0x518] sm:$0xff]
        %v864 = vld [vmem:[%s1 + $0x550] sm:$0xff]
        %v865 = vld [vmem:[%s1 + $0x558] sm:$0xff]
        %v866 = vld [vmem:[%s1 + $0x590] sm:$0xff]
        %v867 = vld [vmem:[%s1 + $0x598] sm:$0xff]
        %v868 = vld [vmem:[%s1 + $0x5d0] sm:$0xff]
        %v869 = vld [vmem:[%s1 + $0x5d8] sm:$0xff]
        %v870 = vld [vmem:[%s1 + $0x610] sm:$0xff]
        %v871 = vld [vmem:[%s1 + $0x618] sm:$0xff]
        %v872 = vld [vmem:[%s1 + $0x650] sm:$0xff]
        %v873 = vld [vmem:[%s1 + $0x658] sm:$0xff]
        %v874 = vld [vmem:[%s1 + $0x690] sm:$0xff]
        %v875 = vld [vmem:[%s1 + $0x698] sm:$0xff]
        %v876 = vld [vmem:[%s1 + $0x6d0] sm:$0xff]
        %v877 = vld [vmem:[%s1 + $0x6d8] sm:$0xff]
        %v878 = vld [vmem:[%s1 + $0x710] sm:$0xff]
        %v879 = vld [vmem:[%s1 + $0x718] sm:$0xff]
        %v880 = vld [vmem:[%s1 + $0x750] sm:$0xff]
        %v881 = vld [vmem:[%s1 + $0x758] sm:$0xff]
        %v882 = vld [vmem:[%s1 + $0x790] sm:$0xff]
        %v883 = vld [vmem:[%s1 + $0x798] sm:$0xff]
        %v884 = vld [vmem:[%s1 + $0x7d0] sm:$0xff]
        %v885 = vld [vmem:[%s1 + $0x7d8] sm:$0xff]
        %v886 = vld [vmem:[%s2 + $0x2] sm:$0x3]
        %v888 = vperm.slane %v886, 0
        %v889 = vperm.slane %v886, 1
        %892 = vmatpush.msra.mxu0 %v852
        %893 = vmatpush.msra.mxu0 %v850
        %894 = vmatpush.msra.mxu0 %v848
        %895 = vmatpush.msra.mxu0 %v846
        %896 = vmatpush.msra.mxu0 %v844
        %897 = vmatpush.msra.mxu0 %v842
        %898 = vmatpush.msra.mxu0 %v840
        %899 = vmatpush.msra.mxu0 %v838
        %900 = vmatpush.msra.mxu0 %v836
        %901 = vmatpush.msra.mxu0 %v834
        %902 = vmatpush.msra.mxu0 %v832
        %903 = vmatpush.msra.mxu0 %v830
        %904 = vmatpush.msra.mxu0 %v828
        %905 = vmatpush.msra.mxu0 %v826
        %906 = vmatpush.msra.mxu0 %v824
        %907 = vmatpush.msra.mxu0 %v822
        %908 = vmatmul.f32.gmra.mxu0 %v790
        %v909 = vpop.f32.mrf.mxu0
        %v910 = vadd.f32 %v888, %v909
        %911 = vmatmul.f32.gmra.mxu0 %v792
        %v912 = vpop.f32.mrf.mxu0
        %v913 = vadd.f32 %v888, %v912
        %914 = vmatmul.f32.gmra.mxu0 %v794
        %v915 = vpop.f32.mrf.mxu0
        %v916 = vadd.f32 %v888, %v915
        %917 = vmatmul.f32.gmra.mxu0 %v796
        %v918 = vpop.f32.mrf.mxu0
        %v919 = vadd.f32 %v888, %v918
        %920 = vmatmul.f32.gmra.mxu0 %v798
        %v921 = vpop.f32.mrf.mxu0
        %v922 = vadd.f32 %v888, %v921
        %923 = vmatmul.f32.gmra.mxu0 %v800
        %v924 = vpop.f32.mrf.mxu0
        %v925 = vadd.f32 %v888, %v924
        %926 = vmatmul.f32.gmra.mxu0 %v802
        %v927 = vpop.f32.mrf.mxu0
        %v928 = vadd.f32 %v888, %v927
        %929 = vmatmul.f32.gmra.mxu0 %v804
        %v930 = vpop.f32.mrf.mxu0
        %v931 = vadd.f32 %v888, %v930
        %932 = vmatmul.f32.gmra.mxu0 %v806
        %v933 = vpop.f32.mrf.mxu0
        %v934 = vadd.f32 %v888, %v933
        %935 = vmatmul.f32.gmra.mxu0 %v808
        %v936 = vpop.f32.mrf.mxu0
        %v937 = vadd.f32 %v888, %v936
        %938 = vmatmul.f32.gmra.mxu0 %v810
        %v939 = vpop.f32.mrf.mxu0
        %v940 = vadd.f32 %v888, %v939
        %941 = vmatmul.f32.gmra.mxu0 %v812
        %v942 = vpop.f32.mrf.mxu0
        %v943 = vadd.f32 %v888, %v942
        %944 = vmatmul.f32.gmra.mxu0 %v814
        %v945 = vpop.f32.mrf.mxu0
        %v946 = vadd.f32 %v888, %v945
        %947 = vmatmul.f32.gmra.mxu0 %v816
        %v948 = vpop.f32.mrf.mxu0
        %v949 = vadd.f32 %v888, %v948
        %950 = vmatmul.f32.gmra.mxu0 %v818
        %v951 = vpop.f32.mrf.mxu0
        %v952 = vadd.f32 %v888, %v951
        %953 = vmatmul.f32.gmra.mxu0 %v820
        %v954 = vpop.f32.mrf.mxu0
        %v955 = vadd.f32 %v888, %v954
        %956 = vdwg.mxu0
        %957 = vmatpush.msra.mxu0 %v884
        %958 = vmatpush.msra.mxu0 %v882
        %959 = vmatpush.msra.mxu0 %v880
        %960 = vmatpush.msra.mxu0 %v878
        %961 = vmatpush.msra.mxu0 %v876
        %962 = vmatpush.msra.mxu0 %v874
        %963 = vmatpush.msra.mxu0 %v872
        %964 = vmatpush.msra.mxu0 %v870
        %965 = vmatpush.msra.mxu0 %v868
        %966 = vmatpush.msra.mxu0 %v866
        %967 = vmatpush.msra.mxu0 %v864
        %968 = vmatpush.msra.mxu0 %v862
        %969 = vmatpush.msra.mxu0 %v860
        %970 = vmatpush.msra.mxu0 %v858
        %971 = vmatpush.msra.mxu0 %v856
        %972 = vmatpush.msra.mxu0 %v854
        %973 = vmatmul.f32.gmra.mxu0 %v791
        %v974 = vpop.f32.mrf.mxu0
        %v975 = vadd.f32 %v910, %v974
        %976 = vmatmul.f32.gmra.mxu0 %v793
        %v977 = vpop.f32.mrf.mxu0
        %v978 = vadd.f32 %v913, %v977
        %979 = vmatmul.f32.gmra.mxu0 %v795
        %v980 = vpop.f32.mrf.mxu0
        %v981 = vadd.f32 %v916, %v980
        %982 = vmatmul.f32.gmra.mxu0 %v797
        %v983 = vpop.f32.mrf.mxu0
        %v984 = vadd.f32 %v919, %v983
        %985 = vmatmul.f32.gmra.mxu0 %v799
        %v986 = vpop.f32.mrf.mxu0
        %v987 = vadd.f32 %v922, %v986
        %988 = vmatmul.f32.gmra.mxu0 %v801
        %v989 = vpop.f32.mrf.mxu0
        %v990 = vadd.f32 %v925, %v989
        %991 = vmatmul.f32.gmra.mxu0 %v803
        %v992 = vpop.f32.mrf.mxu0
        %v993 = vadd.f32 %v928, %v992
        %994 = vmatmul.f32.gmra.mxu0 %v805
        %v995 = vpop.f32.mrf.mxu0
        %v996 = vadd.f32 %v931, %v995
        %997 = vmatmul.f32.gmra.mxu0 %v807
        %v998 = vpop.f32.mrf.mxu0
        %v999 = vadd.f32 %v934, %v998
        %1000 = vmatmul.f32.gmra.mxu0 %v809
        %v1001 = vpop.f32.mrf.mxu0
        %v1002 = vadd.f32 %v937, %v1001
        %1003 = vmatmul.f32.gmra.mxu0 %v811
        %v1004 = vpop.f32.mrf.mxu0
        %v1005 = vadd.f32 %v940, %v1004
        %1006 = vmatmul.f32.gmra.mxu0 %v813
        %v1007 = vpop.f32.mrf.mxu0
        %v1008 = vadd.f32 %v943, %v1007
        %1009 = vmatmul.f32.gmra.mxu0 %v815
        %v1010 = vpop.f32.mrf.mxu0
        %v1011 = vadd.f32 %v946, %v1010
        %1012 = vmatmul.f32.gmra.mxu0 %v817
        %v1013 = vpop.f32.mrf.mxu0
        %v1014 = vadd.f32 %v949, %v1013
        %1015 = vmatmul.f32.gmra.mxu0 %v819
        %v1016 = vpop.f32.mrf.mxu0
        %v1017 = vadd.f32 %v952, %v1016
        %1018 = vmatmul.f32.gmra.mxu0 %v821
        %v1019 = vpop.f32.mrf.mxu0
        %v1020 = vadd.f32 %v955, %v1019
        %1021 = vdwg.mxu0
        %1022 = vmatpush.msra.mxu0 %v853
        %1023 = vmatpush.msra.mxu0 %v851
        %1024 = vmatpush.msra.mxu0 %v849
        %1025 = vmatpush.msra.mxu0 %v847
        %1026 = vmatpush.msra.mxu0 %v845
        %1027 = vmatpush.msra.mxu0 %v843
        %1028 = vmatpush.msra.mxu0 %v841
        %1029 = vmatpush.msra.mxu0 %v839
        %1030 = vmatpush.msra.mxu0 %v837
        %1031 = vmatpush.msra.mxu0 %v835
        %1032 = vmatpush.msra.mxu0 %v833
        %1033 = vmatpush.msra.mxu0 %v831
        %1034 = vmatpush.msra.mxu0 %v829
        %1035 = vmatpush.msra.mxu0 %v827
        %1036 = vmatpush.msra.mxu0 %v825
        %1037 = vmatpush.msra.mxu0 %v823
        %1038 = vmatmul.f32.gmra.mxu0 %v790
        %v1039 = vpop.f32.mrf.mxu0
        %v1040 = vadd.f32 %v889, %v1039
        %1041 = vmatmul.f32.gmra.mxu0 %v792
        %v1042 = vpop.f32.mrf.mxu0
        %v1043 = vadd.f32 %v889, %v1042
        %1044 = vmatmul.f32.gmra.mxu0 %v794
        %v1045 = vpop.f32.mrf.mxu0
        %v1046 = vadd.f32 %v889, %v1045
        %1047 = vmatmul.f32.gmra.mxu0 %v796
        %v1048 = vpop.f32.mrf.mxu0
        %v1049 = vadd.f32 %v889, %v1048
        %1050 = vmatmul.f32.gmra.mxu0 %v798
        %v1051 = vpop.f32.mrf.mxu0
        %v1052 = vadd.f32 %v889, %v1051
        %1053 = vmatmul.f32.gmra.mxu0 %v800
        %v1054 = vpop.f32.mrf.mxu0
        %v1055 = vadd.f32 %v889, %v1054
        %1056 = vmatmul.f32.gmra.mxu0 %v802
        %v1057 = vpop.f32.mrf.mxu0
        %v1058 = vadd.f32 %v889, %v1057
        %1059 = vmatmul.f32.gmra.mxu0 %v804
        %v1060 = vpop.f32.mrf.mxu0
        %v1061 = vadd.f32 %v889, %v1060
        %1062 = vmatmul.f32.gmra.mxu0 %v806
        %v1063 = vpop.f32.mrf.mxu0
        %v1064 = vadd.f32 %v889, %v1063
        %1065 = vmatmul.f32.gmra.mxu0 %v808
        %v1066 = vpop.f32.mrf.mxu0
        %v1067 = vadd.f32 %v889, %v1066
        %1068 = vmatmul.f32.gmra.mxu0 %v810
        %v1069 = vpop.f32.mrf.mxu0
        %v1070 = vadd.f32 %v889, %v1069
        %1071 = vmatmul.f32.gmra.mxu0 %v812
        %v1072 = vpop.f32.mrf.mxu0
        %v1073 = vadd.f32 %v889, %v1072
        %1074 = vmatmul.f32.gmra.mxu0 %v814
        %v1075 = vpop.f32.mrf.mxu0
        %v1076 = vadd.f32 %v889, %v1075
        %1077 = vmatmul.f32.gmra.mxu0 %v816
        %v1078 = vpop.f32.mrf.mxu0
        %v1079 = vadd.f32 %v889, %v1078
        %1080 = vmatmul.f32.gmra.mxu0 %v818
        %v1081 = vpop.f32.mrf.mxu0
        %v1082 = vadd.f32 %v889, %v1081
        %1083 = vmatmul.f32.gmra.mxu0 %v820
        %v1084 = vpop.f32.mrf.mxu0
        %v1085 = vadd.f32 %v889, %v1084
        %1086 = vdwg.mxu0
        %1087 = vmatpush.msra.mxu0 %v885
        %1088 = vmatpush.msra.mxu0 %v883
        %1089 = vmatpush.msra.mxu0 %v881
        %1090 = vmatpush.msra.mxu0 %v879
        %1091 = vmatpush.msra.mxu0 %v877
        %1092 = vmatpush.msra.mxu0 %v875
        %1093 = vmatpush.msra.mxu0 %v873
        %1094 = vmatpush.msra.mxu0 %v871
        %1095 = vmatpush.msra.mxu0 %v869
        %1096 = vmatpush.msra.mxu0 %v867
        %1097 = vmatpush.msra.mxu0 %v865
        %1098 = vmatpush.msra.mxu0 %v863
        %1099 = vmatpush.msra.mxu0 %v861
        %1100 = vmatpush.msra.mxu0 %v859
        %1101 = vmatpush.msra.mxu0 %v857
        %1102 = vmatpush.msra.mxu0 %v855
        %1103 = vmatmul.f32.gmra.mxu0 %v791
        %v1104 = vpop.f32.mrf.mxu0
        %v1105 = vadd.f32 %v1040, %v1104
        %1106 = vmatmul.f32.gmra.mxu0 %v793
        %v1107 = vpop.f32.mrf.mxu0
        %v1108 = vadd.f32 %v1043, %v1107
        %1109 = vmatmul.f32.gmra.mxu0 %v795
        %v1110 = vpop.f32.mrf.mxu0
        %v1111 = vadd.f32 %v1046, %v1110
        %1112 = vmatmul.f32.gmra.mxu0 %v797
        %v1113 = vpop.f32.mrf.mxu0
        %v1114 = vadd.f32 %v1049, %v1113
        %1115 = vmatmul.f32.gmra.mxu0 %v799
        %v1116 = vpop.f32.mrf.mxu0
        %v1117 = vadd.f32 %v1052, %v1116
        %1118 = vmatmul.f32.gmra.mxu0 %v801
        %v1119 = vpop.f32.mrf.mxu0
        %v1120 = vadd.f32 %v1055, %v1119
        %1121 = vmatmul.f32.gmra.mxu0 %v803
        %v1122 = vpop.f32.mrf.mxu0
        %v1123 = vadd.f32 %v1058, %v1122
        %1124 = vmatmul.f32.gmra.mxu0 %v805
        %v1125 = vpop.f32.mrf.mxu0
        %v1126 = vadd.f32 %v1061, %v1125
        %1127 = vmatmul.f32.gmra.mxu0 %v807
        %v1128 = vpop.f32.mrf.mxu0
        %v1129 = vadd.f32 %v1064, %v1128
        %1130 = vmatmul.f32.gmra.mxu0 %v809
        %v1131 = vpop.f32.mrf.mxu0
        %v1132 = vadd.f32 %v1067, %v1131
        %1133 = vmatmul.f32.gmra.mxu0 %v811
        %v1134 = vpop.f32.mrf.mxu0
        %v1135 = vadd.f32 %v1070, %v1134
        %1136 = vmatmul.f32.gmra.mxu0 %v813
        %v1137 = vpop.f32.mrf.mxu0
        %v1138 = vadd.f32 %v1073, %v1137
        %1139 = vmatmul.f32.gmra.mxu0 %v815
        %v1140 = vpop.f32.mrf.mxu0
        %v1141 = vadd.f32 %v1076, %v1140
        %1142 = vmatmul.f32.gmra.mxu0 %v817
        %v1143 = vpop.f32.mrf.mxu0
        %v1144 = vadd.f32 %v1079, %v1143
        %1145 = vmatmul.f32.gmra.mxu0 %v819
        %v1146 = vpop.f32.mrf.mxu0
        %v1147 = vadd.f32 %v1082, %v1146
        %1148 = vmatmul.f32.gmra.mxu0 %v821
        %v1149 = vpop.f32.mrf.mxu0
        %v1150 = vadd.f32 %v1085, %v1149
        %1151 = vdwg.mxu0
        %v1152 = vmax.f32 %v975, 0.0
        %v1153 = vmax.f32 %v1105, 0.0
        %v1154 = vmax.f32 %v978, 0.0
        %v1155 = vmax.f32 %v1108, 0.0
        %v1156 = vmax.f32 %v981, 0.0
        %v1157 = vmax.f32 %v1111, 0.0
        %v1158 = vmax.f32 %v984, 0.0
        %v1159 = vmax.f32 %v1114, 0.0
        %v1160 = vmax.f32 %v987, 0.0
        %v1161 = vmax.f32 %v1117, 0.0
        %v1162 = vmax.f32 %v990, 0.0
        %v1163 = vmax.f32 %v1120, 0.0
        %v1164 = vmax.f32 %v993, 0.0
        %v1165 = vmax.f32 %v1123, 0.0
        %v1166 = vmax.f32 %v996, 0.0
        %v1167 = vmax.f32 %v1126, 0.0
        %v1168 = vmax.f32 %v999, 0.0
        %v1169 = vmax.f32 %v1129, 0.0
        %v1170 = vmax.f32 %v1002, 0.0
        %v1171 = vmax.f32 %v1132, 0.0
        %v1172 = vmax.f32 %v1005, 0.0
        %v1173 = vmax.f32 %v1135, 0.0
        %v1174 = vmax.f32 %v1008, 0.0
        %v1175 = vmax.f32 %v1138, 0.0
        %v1176 = vmax.f32 %v1011, 0.0
        %v1177 = vmax.f32 %v1141, 0.0
        %v1178 = vmax.f32 %v1014, 0.0
        %v1179 = vmax.f32 %v1144, 0.0
        %v1180 = vmax.f32 %v1017, 0.0
        %v1181 = vmax.f32 %v1147, 0.0
        %v1182 = vmax.f32 %v1020, 0.0
        %v1183 = vmax.f32 %v1150, 0.0
        %1184 = vst [vmem:[#allocation2 + $0x10] sm:$0xff] %v1152
        %1185 = vst [vmem:[#allocation2 + $0x18] sm:$0xff] %v1153
        %1186 = vst [vmem:[#allocation2 + $0x50] sm:$0xff] %v1154
        %1187 = vst [vmem:[#allocation2 + $0x58] sm:$0xff] %v1155
        %1188 = vst [vmem:[#allocation2 + $0x90] sm:$0xff] %v1156
        %1189 = vst [vmem:[#allocation2 + $0x98] sm:$0xff] %v1157
        %1190 = vst [vmem:[#allocation2 + $0xd0] sm:$0xff] %v1158
        %1191 = vst [vmem:[#allocation2 + $0xd8] sm:$0xff] %v1159
        %1192 = vst [vmem:[#allocation2 + $0x110] sm:$0xff] %v1160
        %1193 = vst [vmem:[#allocation2 + $0x118] sm:$0xff] %v1161
        %1194 = vst [vmem:[#allocation2 + $0x150] sm:$0xff] %v1162
        %1195 = vst [vmem:[#allocation2 + $0x158] sm:$0xff] %v1163
        %1196 = vst [vmem:[#allocation2 + $0x190] sm:$0xff] %v1164
        %1197 = vst [vmem:[#allocation2 + $0x198] sm:$0xff] %v1165
        %1198 = vst [vmem:[#allocation2 + $0x1d0] sm:$0xff] %v1166
        %1199 = vst [vmem:[#allocation2 + $0x1d8] sm:$0xff] %v1167
        %1200 = vst [vmem:[#allocation2 + $0x210] sm:$0xff] %v1168
        %1201 = vst [vmem:[#allocation2 + $0x218] sm:$0xff] %v1169
        %1202 = vst [vmem:[#allocation2 + $0x250] sm:$0xff] %v1170
        %1203 = vst [vmem:[#allocation2 + $0x258] sm:$0xff] %v1171
        %1204 = vst [vmem:[#allocation2 + $0x290] sm:$0xff] %v1172
        %1205 = vst [vmem:[#allocation2 + $0x298] sm:$0xff] %v1173
        %1206 = vst [vmem:[#allocation2 + $0x2d0] sm:$0xff] %v1174
        %1207 = vst [vmem:[#allocation2 + $0x2d8] sm:$0xff] %v1175
        %1208 = vst [vmem:[#allocation2 + $0x310] sm:$0xff] %v1176
        %1209 = vst [vmem:[#allocation2 + $0x318] sm:$0xff] %v1177
        %1210 = vst [vmem:[#allocation2 + $0x350] sm:$0xff] %v1178
        %1211 = vst [vmem:[#allocation2 + $0x358] sm:$0xff] %v1179
        %1212 = vst [vmem:[#allocation2 + $0x390] sm:$0xff] %v1180
        %1213 = vst [vmem:[#allocation2 + $0x398] sm:$0xff] %v1181
        %1214 = vst [vmem:[#allocation2 + $0x3d0] sm:$0xff] %v1182
        %1215 = vst [vmem:[#allocation2 + $0x3d8] sm:$0xff] %v1183
        %v1216 = vld [vmem:[%s361] sm:$0xff]
        %v1217 = vld [vmem:[%s361 + $0x8] sm:$0xff]
        %v1218 = vld [vmem:[%s361 + $0x10] sm:$0xff]
        %v1219 = vld [vmem:[%s361 + $0x18] sm:$0xff]
        %v1220 = vld [vmem:[%s361 + $0x20] sm:$0xff]
        %v1221 = vld [vmem:[%s361 + $0x28] sm:$0xff]
        %v1222 = vld [vmem:[%s361 + $0x30] sm:$0xff]
        %v1223 = vld [vmem:[%s361 + $0x38] sm:$0xff]
        %v1224 = vld [vmem:[%s361 + $0x40] sm:$0xff]
        %v1225 = vld [vmem:[%s361 + $0x48] sm:$0xff]
        %v1226 = vld [vmem:[%s361 + $0x50] sm:$0xff]
        %v1227 = vld [vmem:[%s361 + $0x58] sm:$0xff]
        %v1228 = vld [vmem:[%s361 + $0x60] sm:$0xff]
        %v1229 = vld [vmem:[%s361 + $0x68] sm:$0xff]
        %v1230 = vld [vmem:[%s361 + $0x70] sm:$0xff]
        %v1231 = vld [vmem:[%s361 + $0x78] sm:$0xff]
        %v1232 = vld [vmem:[%s361 + $0x80] sm:$0xff]
        %v1233 = vld [vmem:[%s361 + $0x88] sm:$0xff]
        %v1234 = vld [vmem:[%s361 + $0x90] sm:$0xff]
        %v1235 = vld [vmem:[%s361 + $0x98] sm:$0xff]
        %v1236 = vld [vmem:[%s361 + $0xa0] sm:$0xff]
        %v1237 = vld [vmem:[%s361 + $0xa8] sm:$0xff]
        %v1238 = vld [vmem:[%s361 + $0xb0] sm:$0xff]
        %v1239 = vld [vmem:[%s361 + $0xb8] sm:$0xff]
        %v1240 = vld [vmem:[%s361 + $0xc0] sm:$0xff]
        %v1241 = vld [vmem:[%s361 + $0xc8] sm:$0xff]
        %v1242 = vld [vmem:[%s361 + $0xd0] sm:$0xff]
        %v1243 = vld [vmem:[%s361 + $0xd8] sm:$0xff]
        %v1244 = vld [vmem:[%s361 + $0xe0] sm:$0xff]
        %v1245 = vld [vmem:[%s361 + $0xe8] sm:$0xff]
        %v1246 = vld [vmem:[%s361 + $0xf0] sm:$0xff]
        %v1247 = vld [vmem:[%s361 + $0xf8] sm:$0xff]
        %v1248 = vld [vmem:[%s1 + $0x20] sm:$0xff]
        %v1249 = vld [vmem:[%s1 + $0x28] sm:$0xff]
        %v1250 = vld [vmem:[%s1 + $0x60] sm:$0xff]
        %v1251 = vld [vmem:[%s1 + $0x68] sm:$0xff]
        %v1252 = vld [vmem:[%s1 + $0xa0] sm:$0xff]
        %v1253 = vld [vmem:[%s1 + $0xa8] sm:$0xff]
        %v1254 = vld [vmem:[%s1 + $0xe0] sm:$0xff]
        %v1255 = vld [vmem:[%s1 + $0xe8] sm:$0xff]
        %v1256 = vld [vmem:[%s1 + $0x120] sm:$0xff]
        %v1257 = vld [vmem:[%s1 + $0x128] sm:$0xff]
        %v1258 = vld [vmem:[%s1 + $0x160] sm:$0xff]
        %v1259 = vld [vmem:[%s1 + $0x168] sm:$0xff]
        %v1260 = vld [vmem:[%s1 + $0x1a0] sm:$0xff]
        %v1261 = vld [vmem:[%s1 + $0x1a8] sm:$0xff]
        %v1262 = vld [vmem:[%s1 + $0x1e0] sm:$0xff]
        %v1263 = vld [vmem:[%s1 + $0x1e8] sm:$0xff]
        %v1264 = vld [vmem:[%s1 + $0x220] sm:$0xff]
        %v1265 = vld [vmem:[%s1 + $0x228] sm:$0xff]
        %v1266 = vld [vmem:[%s1 + $0x260] sm:$0xff]
        %v1267 = vld [vmem:[%s1 + $0x268] sm:$0xff]
        %v1268 = vld [vmem:[%s1 + $0x2a0] sm:$0xff]
        %v1269 = vld [vmem:[%s1 + $0x2a8] sm:$0xff]
        %v1270 = vld [vmem:[%s1 + $0x2e0] sm:$0xff]
        %v1271 = vld [vmem:[%s1 + $0x2e8] sm:$0xff]
        %v1272 = vld [vmem:[%s1 + $0x320] sm:$0xff]
        %v1273 = vld [vmem:[%s1 + $0x328] sm:$0xff]
        %v1274 = vld [vmem:[%s1 + $0x360] sm:$0xff]
        %v1275 = vld [vmem:[%s1 + $0x368] sm:$0xff]
        %v1276 = vld [vmem:[%s1 + $0x3a0] sm:$0xff]
        %v1277 = vld [vmem:[%s1 + $0x3a8] sm:$0xff]
        %v1278 = vld [vmem:[%s1 + $0x3e0] sm:$0xff]
        %v1279 = vld [vmem:[%s1 + $0x3e8] sm:$0xff]
        %v1280 = vld [vmem:[%s1 + $0x420] sm:$0xff]
        %v1281 = vld [vmem:[%s1 + $0x428] sm:$0xff]
        %v1282 = vld [vmem:[%s1 + $0x460] sm:$0xff]
        %v1283 = vld [vmem:[%s1 + $0x468] sm:$0xff]
        %v1284 = vld [vmem:[%s1 + $0x4a0] sm:$0xff]
        %v1285 = vld [vmem:[%s1 + $0x4a8] sm:$0xff]
        %v1286 = vld [vmem:[%s1 + $0x4e0] sm:$0xff]
        %v1287 = vld [vmem:[%s1 + $0x4e8] sm:$0xff]
        %v1288 = vld [vmem:[%s1 + $0x520] sm:$0xff]
        %v1289 = vld [vmem:[%s1 + $0x528] sm:$0xff]
        %v1290 = vld [vmem:[%s1 + $0x560] sm:$0xff]
        %v1291 = vld [vmem:[%s1 + $0x568] sm:$0xff]
        %v1292 = vld [vmem:[%s1 + $0x5a0] sm:$0xff]
        %v1293 = vld [vmem:[%s1 + $0x5a8] sm:$0xff]
        %v1294 = vld [vmem:[%s1 + $0x5e0] sm:$0xff]
        %v1295 = vld [vmem:[%s1 + $0x5e8] sm:$0xff]
        %v1296 = vld [vmem:[%s1 + $0x620] sm:$0xff]
        %v1297 = vld [vmem:[%s1 + $0x628] sm:$0xff]
        %v1298 = vld [vmem:[%s1 + $0x660] sm:$0xff]
        %v1299 = vld [vmem:[%s1 + $0x668] sm:$0xff]
        %v1300 = vld [vmem:[%s1 + $0x6a0] sm:$0xff]
        %v1301 = vld [vmem:[%s1 + $0x6a8] sm:$0xff]
        %v1302 = vld [vmem:[%s1 + $0x6e0] sm:$0xff]
        %v1303 = vld [vmem:[%s1 + $0x6e8] sm:$0xff]
        %v1304 = vld [vmem:[%s1 + $0x720] sm:$0xff]
        %v1305 = vld [vmem:[%s1 + $0x728] sm:$0xff]
        %v1306 = vld [vmem:[%s1 + $0x760] sm:$0xff]
        %v1307 = vld [vmem:[%s1 + $0x768] sm:$0xff]
        %v1308 = vld [vmem:[%s1 + $0x7a0] sm:$0xff]
        %v1309 = vld [vmem:[%s1 + $0x7a8] sm:$0xff]
        %v1310 = vld [vmem:[%s1 + $0x7e0] sm:$0xff]
        %v1311 = vld [vmem:[%s1 + $0x7e8] sm:$0xff]
        %v1312 = vld [vmem:[%s2 + $0x4] sm:$0x3]
        %v1314 = vperm.slane %v1312, 0
        %v1315 = vperm.slane %v1312, 1
        %1318 = vmatpush.msra.mxu0 %v1278
        %1319 = vmatpush.msra.mxu0 %v1276
        %1320 = vmatpush.msra.mxu0 %v1274
        %1321 = vmatpush.msra.mxu0 %v1272
        %1322 = vmatpush.msra.mxu0 %v1270
        %1323 = vmatpush.msra.mxu0 %v1268
        %1324 = vmatpush.msra.mxu0 %v1266
        %1325 = vmatpush.msra.mxu0 %v1264
        %1326 = vmatpush.msra.mxu0 %v1262
        %1327 = vmatpush.msra.mxu0 %v1260
        %1328 = vmatpush.msra.mxu0 %v1258
        %1329 = vmatpush.msra.mxu0 %v1256
        %1330 = vmatpush.msra.mxu0 %v1254
        %1331 = vmatpush.msra.mxu0 %v1252
        %1332 = vmatpush.msra.mxu0 %v1250
        %1333 = vmatpush.msra.mxu0 %v1248
        %1334 = vmatmul.f32.gmra.mxu0 %v1216
        %v1335 = vpop.f32.mrf.mxu0
        %v1336 = vadd.f32 %v1314, %v1335
        %1337 = vmatmul.f32.gmra.mxu0 %v1218
        %v1338 = vpop.f32.mrf.mxu0
        %v1339 = vadd.f32 %v1314, %v1338
        %1340 = vmatmul.f32.gmra.mxu0 %v1220
        %v1341 = vpop.f32.mrf.mxu0
        %v1342 = vadd.f32 %v1314, %v1341
        %1343 = vmatmul.f32.gmra.mxu0 %v1222
        %v1344 = vpop.f32.mrf.mxu0
        %v1345 = vadd.f32 %v1314, %v1344
        %1346 = vmatmul.f32.gmra.mxu0 %v1224
        %v1347 = vpop.f32.mrf.mxu0
        %v1348 = vadd.f32 %v1314, %v1347
        %1349 = vmatmul.f32.gmra.mxu0 %v1226
        %v1350 = vpop.f32.mrf.mxu0
        %v1351 = vadd.f32 %v1314, %v1350
        %1352 = vmatmul.f32.gmra.mxu0 %v1228
        %v1353 = vpop.f32.mrf.mxu0
        %v1354 = vadd.f32 %v1314, %v1353
        %1355 = vmatmul.f32.gmra.mxu0 %v1230
        %v1356 = vpop.f32.mrf.mxu0
        %v1357 = vadd.f32 %v1314, %v1356
        %1358 = vmatmul.f32.gmra.mxu0 %v1232
        %v1359 = vpop.f32.mrf.mxu0
        %v1360 = vadd.f32 %v1314, %v1359
        %1361 = vmatmul.f32.gmra.mxu0 %v1234
        %v1362 = vpop.f32.mrf.mxu0
        %v1363 = vadd.f32 %v1314, %v1362
        %1364 = vmatmul.f32.gmra.mxu0 %v1236
        %v1365 = vpop.f32.mrf.mxu0
        %v1366 = vadd.f32 %v1314, %v1365
        %1367 = vmatmul.f32.gmra.mxu0 %v1238
        %v1368 = vpop.f32.mrf.mxu0
        %v1369 = vadd.f32 %v1314, %v1368
        %1370 = vmatmul.f32.gmra.mxu0 %v1240
        %v1371 = vpop.f32.mrf.mxu0
        %v1372 = vadd.f32 %v1314, %v1371
        %1373 = vmatmul.f32.gmra.mxu0 %v1242
        %v1374 = vpop.f32.mrf.mxu0
        %v1375 = vadd.f32 %v1314, %v1374
        %1376 = vmatmul.f32.gmra.mxu0 %v1244
        %v1377 = vpop.f32.mrf.mxu0
        %v1378 = vadd.f32 %v1314, %v1377
        %1379 = vmatmul.f32.gmra.mxu0 %v1246
        %v1380 = vpop.f32.mrf.mxu0
        %v1381 = vadd.f32 %v1314, %v1380
        %1382 = vdwg.mxu0
        %1383 = vmatpush.msra.mxu0 %v1310
        %1384 = vmatpush.msra.mxu0 %v1308
        %1385 = vmatpush.msra.mxu0 %v1306
        %1386 = vmatpush.msra.mxu0 %v1304
        %1387 = vmatpush.msra.mxu0 %v1302
        %1388 = vmatpush.msra.mxu0 %v1300
        %1389 = vmatpush.msra.mxu0 %v1298
        %1390 = vmatpush.msra.mxu0 %v1296
        %1391 = vmatpush.msra.mxu0 %v1294
        %1392 = vmatpush.msra.mxu0 %v1292
        %1393 = vmatpush.msra.mxu0 %v1290
        %1394 = vmatpush.msra.mxu0 %v1288
        %1395 = vmatpush.msra.mxu0 %v1286
        %1396 = vmatpush.msra.mxu0 %v1284
        %1397 = vmatpush.msra.mxu0 %v1282
        %1398 = vmatpush.msra.mxu0 %v1280
        %1399 = vmatmul.f32.gmra.mxu0 %v1217
        %v1400 = vpop.f32.mrf.mxu0
        %v1401 = vadd.f32 %v1336, %v1400
        %1402 = vmatmul.f32.gmra.mxu0 %v1219
        %v1403 = vpop.f32.mrf.mxu0
        %v1404 = vadd.f32 %v1339, %v1403
        %1405 = vmatmul.f32.gmra.mxu0 %v1221
        %v1406 = vpop.f32.mrf.mxu0
        %v1407 = vadd.f32 %v1342, %v1406
        %1408 = vmatmul.f32.gmra.mxu0 %v1223
        %v1409 = vpop.f32.mrf.mxu0
        %v1410 = vadd.f32 %v1345, %v1409
        %1411 = vmatmul.f32.gmra.mxu0 %v1225
        %v1412 = vpop.f32.mrf.mxu0
        %v1413 = vadd.f32 %v1348, %v1412
        %1414 = vmatmul.f32.gmra.mxu0 %v1227
        %v1415 = vpop.f32.mrf.mxu0
        %v1416 = vadd.f32 %v1351, %v1415
        %1417 = vmatmul.f32.gmra.mxu0 %v1229
        %v1418 = vpop.f32.mrf.mxu0
        %v1419 = vadd.f32 %v1354, %v1418
        %1420 = vmatmul.f32.gmra.mxu0 %v1231
        %v1421 = vpop.f32.mrf.mxu0
        %v1422 = vadd.f32 %v1357, %v1421
        %1423 = vmatmul.f32.gmra.mxu0 %v1233
        %v1424 = vpop.f32.mrf.mxu0
        %v1425 = vadd.f32 %v1360, %v1424
        %1426 = vmatmul.f32.gmra.mxu0 %v1235
        %v1427 = vpop.f32.mrf.mxu0
        %v1428 = vadd.f32 %v1363, %v1427
        %1429 = vmatmul.f32.gmra.mxu0 %v1237
        %v1430 = vpop.f32.mrf.mxu0
        %v1431 = vadd.f32 %v1366, %v1430
        %1432 = vmatmul.f32.gmra.mxu0 %v1239
        %v1433 = vpop.f32.mrf.mxu0
        %v1434 = vadd.f32 %v1369, %v1433
        %1435 = vmatmul.f32.gmra.mxu0 %v1241
        %v1436 = vpop.f32.mrf.mxu0
        %v1437 = vadd.f32 %v1372, %v1436
        %1438 = vmatmul.f32.gmra.mxu0 %v1243
        %v1439 = vpop.f32.mrf.mxu0
        %v1440 = vadd.f32 %v1375, %v1439
        %1441 = vmatmul.f32.gmra.mxu0 %v1245
        %v1442 = vpop.f32.mrf.mxu0
        %v1443 = vadd.f32 %v1378, %v1442
        %1444 = vmatmul.f32.gmra.mxu0 %v1247
        %v1445 = vpop.f32.mrf.mxu0
        %v1446 = vadd.f32 %v1381, %v1445
        %1447 = vdwg.mxu0
        %1448 = vmatpush.msra.mxu0 %v1279
        %1449 = vmatpush.msra.mxu0 %v1277
        %1450 = vmatpush.msra.mxu0 %v1275
        %1451 = vmatpush.msra.mxu0 %v1273
        %1452 = vmatpush.msra.mxu0 %v1271
        %1453 = vmatpush.msra.mxu0 %v1269
        %1454 = vmatpush.msra.mxu0 %v1267
        %1455 = vmatpush.msra.mxu0 %v1265
        %1456 = vmatpush.msra.mxu0 %v1263
        %1457 = vmatpush.msra.mxu0 %v1261
        %1458 = vmatpush.msra.mxu0 %v1259
        %1459 = vmatpush.msra.mxu0 %v1257
        %1460 = vmatpush.msra.mxu0 %v1255
        %1461 = vmatpush.msra.mxu0 %v1253
        %1462 = vmatpush.msra.mxu0 %v1251
        %1463 = vmatpush.msra.mxu0 %v1249
        %1464 = vmatmul.f32.gmra.mxu0 %v1216
        %v1465 = vpop.f32.mrf.mxu0
        %v1466 = vadd.f32 %v1315, %v1465
        %1467 = vmatmul.f32.gmra.mxu0 %v1218
        %v1468 = vpop.f32.mrf.mxu0
        %v1469 = vadd.f32 %v1315, %v1468
        %1470 = vmatmul.f32.gmra.mxu0 %v1220
        %v1471 = vpop.f32.mrf.mxu0
        %v1472 = vadd.f32 %v1315, %v1471
        %1473 = vmatmul.f32.gmra.mxu0 %v1222
        %v1474 = vpop.f32.mrf.mxu0
        %v1475 = vadd.f32 %v1315, %v1474
        %1476 = vmatmul.f32.gmra.mxu0 %v1224
        %v1477 = vpop.f32.mrf.mxu0
        %v1478 = vadd.f32 %v1315, %v1477
        %1479 = vmatmul.f32.gmra.mxu0 %v1226
        %v1480 = vpop.f32.mrf.mxu0
        %v1481 = vadd.f32 %v1315, %v1480
        %1482 = vmatmul.f32.gmra.mxu0 %v1228
        %v1483 = vpop.f32.mrf.mxu0
        %v1484 = vadd.f32 %v1315, %v1483
        %1485 = vmatmul.f32.gmra.mxu0 %v1230
        %v1486 = vpop.f32.mrf.mxu0
        %v1487 = vadd.f32 %v1315, %v1486
        %1488 = vmatmul.f32.gmra.mxu0 %v1232
        %v1489 = vpop.f32.mrf.mxu0
        %v1490 = vadd.f32 %v1315, %v1489
        %1491 = vmatmul.f32.gmra.mxu0 %v1234
        %v1492 = vpop.f32.mrf.mxu0
        %v1493 = vadd.f32 %v1315, %v1492
        %1494 = vmatmul.f32.gmra.mxu0 %v1236
        %v1495 = vpop.f32.mrf.mxu0
        %v1496 = vadd.f32 %v1315, %v1495
        %1497 = vmatmul.f32.gmra.mxu0 %v1238
        %v1498 = vpop.f32.mrf.mxu0
        %v1499 = vadd.f32 %v1315, %v1498
        %1500 = vmatmul.f32.gmra.mxu0 %v1240
        %v1501 = vpop.f32.mrf.mxu0
        %v1502 = vadd.f32 %v1315, %v1501
        %1503 = vmatmul.f32.gmra.mxu0 %v1242
        %v1504 = vpop.f32.mrf.mxu0
        %v1505 = vadd.f32 %v1315, %v1504
        %1506 = vmatmul.f32.gmra.mxu0 %v1244
        %v1507 = vpop.f32.mrf.mxu0
        %v1508 = vadd.f32 %v1315, %v1507
        %1509 = vmatmul.f32.gmra.mxu0 %v1246
        %v1510 = vpop.f32.mrf.mxu0
        %v1511 = vadd.f32 %v1315, %v1510
        %1512 = vdwg.mxu0
        %1513 = vmatpush.msra.mxu0 %v1311
        %1514 = vmatpush.msra.mxu0 %v1309
        %1515 = vmatpush.msra.mxu0 %v1307
        %1516 = vmatpush.msra.mxu0 %v1305
        %1517 = vmatpush.msra.mxu0 %v1303
        %1518 = vmatpush.msra.mxu0 %v1301
        %1519 = vmatpush.msra.mxu0 %v1299
        %1520 = vmatpush.msra.mxu0 %v1297
        %1521 = vmatpush.msra.mxu0 %v1295
        %1522 = vmatpush.msra.mxu0 %v1293
        %1523 = vmatpush.msra.mxu0 %v1291
        %1524 = vmatpush.msra.mxu0 %v1289
        %1525 = vmatpush.msra.mxu0 %v1287
        %1526 = vmatpush.msra.mxu0 %v1285
        %1527 = vmatpush.msra.mxu0 %v1283
        %1528 = vmatpush.msra.mxu0 %v1281
        %1529 = vmatmul.f32.gmra.mxu0 %v1217
        %v1530 = vpop.f32.mrf.mxu0
        %v1531 = vadd.f32 %v1466, %v1530
        %1532 = vmatmul.f32.gmra.mxu0 %v1219
        %v1533 = vpop.f32.mrf.mxu0
        %v1534 = vadd.f32 %v1469, %v1533
        %1535 = vmatmul.f32.gmra.mxu0 %v1221
        %v1536 = vpop.f32.mrf.mxu0
        %v1537 = vadd.f32 %v1472, %v1536
        %1538 = vmatmul.f32.gmra.mxu0 %v1223
        %v1539 = vpop.f32.mrf.mxu0
        %v1540 = vadd.f32 %v1475, %v1539
        %1541 = vmatmul.f32.gmra.mxu0 %v1225
        %v1542 = vpop.f32.mrf.mxu0
        %v1543 = vadd.f32 %v1478, %v1542
        %1544 = vmatmul.f32.gmra.mxu0 %v1227
        %v1545 = vpop.f32.mrf.mxu0
        %v1546 = vadd.f32 %v1481, %v1545
        %1547 = vmatmul.f32.gmra.mxu0 %v1229
        %v1548 = vpop.f32.mrf.mxu0
        %v1549 = vadd.f32 %v1484, %v1548
        %1550 = vmatmul.f32.gmra.mxu0 %v1231
        %v1551 = vpop.f32.mrf.mxu0
        %v1552 = vadd.f32 %v1487, %v1551
        %1553 = vmatmul.f32.gmra.mxu0 %v1233
        %v1554 = vpop.f32.mrf.mxu0
        %v1555 = vadd.f32 %v1490, %v1554
        %1556 = vmatmul.f32.gmra.mxu0 %v1235
        %v1557 = vpop.f32.mrf.mxu0
        %v1558 = vadd.f32 %v1493, %v1557
        %1559 = vmatmul.f32.gmra.mxu0 %v1237
        %v1560 = vpop.f32.mrf.mxu0
        %v1561 = vadd.f32 %v1496, %v1560
        %1562 = vmatmul.f32.gmra.mxu0 %v1239
        %v1563 = vpop.f32.mrf.mxu0
        %v1564 = vadd.f32 %v1499, %v1563
        %1565 = vmatmul.f32.gmra.mxu0 %v1241
        %v1566 = vpop.f32.mrf.mxu0
        %v1567 = vadd.f32 %v1502, %v1566
        %1568 = vmatmul.f32.gmra.mxu0 %v1243
        %v1569 = vpop.f32.mrf.mxu0
        %v1570 = vadd.f32 %v1505, %v1569
        %1571 = vmatmul.f32.gmra.mxu0 %v1245
        %v1572 = vpop.f32.mrf.mxu0
        %v1573 = vadd.f32 %v1508, %v1572
        %1574 = vmatmul.f32.gmra.mxu0 %v1247
        %v1575 = vpop.f32.mrf.mxu0
        %v1576 = vadd.f32 %v1511, %v1575
        %1577 = vdwg.mxu0
        %v1578 = vmax.f32 %v1401, 0.0
        %v1579 = vmax.f32 %v1531, 0.0
        %v1580 = vmax.f32 %v1404, 0.0
        %v1581 = vmax.f32 %v1534, 0.0
        %v1582 = vmax.f32 %v1407, 0.0
        %v1583 = vmax.f32 %v1537, 0.0
        %v1584 = vmax.f32 %v1410, 0.0
        %v1585 = vmax.f32 %v1540, 0.0
        %v1586 = vmax.f32 %v1413, 0.0
        %v1587 = vmax.f32 %v1543, 0.0
        %v1588 = vmax.f32 %v1416, 0.0
        %v1589 = vmax.f32 %v1546, 0.0
        %v1590 = vmax.f32 %v1419, 0.0
        %v1591 = vmax.f32 %v1549, 0.0
        %v1592 = vmax.f32 %v1422, 0.0
        %v1593 = vmax.f32 %v1552, 0.0
        %v1594 = vmax.f32 %v1425, 0.0
        %v1595 = vmax.f32 %v1555, 0.0
        %v1596 = vmax.f32 %v1428, 0.0
        %v1597 = vmax.f32 %v1558, 0.0
        %v1598 = vmax.f32 %v1431, 0.0
        %v1599 = vmax.f32 %v1561, 0.0
        %v1600 = vmax.f32 %v1434, 0.0
        %v1601 = vmax.f32 %v1564, 0.0
        %v1602 = vmax.f32 %v1437, 0.0
        %v1603 = vmax.f32 %v1567, 0.0
        %v1604 = vmax.f32 %v1440, 0.0
        %v1605 = vmax.f32 %v1570, 0.0
        %v1606 = vmax.f32 %v1443, 0.0
        %v1607 = vmax.f32 %v1573, 0.0
        %v1608 = vmax.f32 %v1446, 0.0
        %v1609 = vmax.f32 %v1576, 0.0
        %1610 = vst [vmem:[#allocation2 + $0x20] sm:$0xff] %v1578
        %1611 = vst [vmem:[#allocation2 + $0x28] sm:$0xff] %v1579
        %1612 = vst [vmem:[#allocation2 + $0x60] sm:$0xff] %v1580
        %1613 = vst [vmem:[#allocation2 + $0x68] sm:$0xff] %v1581
        %1614 = vst [vmem:[#allocation2 + $0xa0] sm:$0xff] %v1582
        %1615 = vst [vmem:[#allocation2 + $0xa8] sm:$0xff] %v1583
        %1616 = vst [vmem:[#allocation2 + $0xe0] sm:$0xff] %v1584
        %1617 = vst [vmem:[#allocation2 + $0xe8] sm:$0xff] %v1585
        %1618 = vst [vmem:[#allocation2 + $0x120] sm:$0xff] %v1586
        %1619 = vst [vmem:[#allocation2 + $0x128] sm:$0xff] %v1587
        %1620 = vst [vmem:[#allocation2 + $0x160] sm:$0xff] %v1588
        %1621 = vst [vmem:[#allocation2 + $0x168] sm:$0xff] %v1589
        %1622 = vst [vmem:[#allocation2 + $0x1a0] sm:$0xff] %v1590
        %1623 = vst [vmem:[#allocation2 + $0x1a8] sm:$0xff] %v1591
        %1624 = vst [vmem:[#allocation2 + $0x1e0] sm:$0xff] %v1592
        %1625 = vst [vmem:[#allocation2 + $0x1e8] sm:$0xff] %v1593
        %1626 = vst [vmem:[#allocation2 + $0x220] sm:$0xff] %v1594
        %1627 = vst [vmem:[#allocation2 + $0x228] sm:$0xff] %v1595
        %1628 = vst [vmem:[#allocation2 + $0x260] sm:$0xff] %v1596
        %1629 = vst [vmem:[#allocation2 + $0x268] sm:$0xff] %v1597
        %1630 = vst [vmem:[#allocation2 + $0x2a0] sm:$0xff] %v1598
        %1631 = vst [vmem:[#allocation2 + $0x2a8] sm:$0xff] %v1599
        %1632 = vst [vmem:[#allocation2 + $0x2e0] sm:$0xff] %v1600
        %1633 = vst [vmem:[#allocation2 + $0x2e8] sm:$0xff] %v1601
        %1634 = vst [vmem:[#allocation2 + $0x320] sm:$0xff] %v1602
        %1635 = vst [vmem:[#allocation2 + $0x328] sm:$0xff] %v1603
        %1636 = vst [vmem:[#allocation2 + $0x360] sm:$0xff] %v1604
        %1637 = vst [vmem:[#allocation2 + $0x368] sm:$0xff] %v1605
        %1638 = vst [vmem:[#allocation2 + $0x3a0] sm:$0xff] %v1606
        %1639 = vst [vmem:[#allocation2 + $0x3a8] sm:$0xff] %v1607
        %1640 = vst [vmem:[#allocation2 + $0x3e0] sm:$0xff] %v1608
        %1641 = vst [vmem:[#allocation2 + $0x3e8] sm:$0xff] %v1609
        %v1642 = vld [vmem:[%s361] sm:$0xff]
        %v1643 = vld [vmem:[%s361 + $0x8] sm:$0xff]
        %v1644 = vld [vmem:[%s361 + $0x10] sm:$0xff]
        %v1645 = vld [vmem:[%s361 + $0x18] sm:$0xff]
        %v1646 = vld [vmem:[%s361 + $0x20] sm:$0xff]
        %v1647 = vld [vmem:[%s361 + $0x28] sm:$0xff]
        %v1648 = vld [vmem:[%s361 + $0x30] sm:$0xff]
        %v1649 = vld [vmem:[%s361 + $0x38] sm:$0xff]
        %v1650 = vld [vmem:[%s361 + $0x40] sm:$0xff]
        %v1651 = vld [vmem:[%s361 + $0x48] sm:$0xff]
        %v1652 = vld [vmem:[%s361 + $0x50] sm:$0xff]
        %v1653 = vld [vmem:[%s361 + $0x58] sm:$0xff]
        %v1654 = vld [vmem:[%s361 + $0x60] sm:$0xff]
        %v1655 = vld [vmem:[%s361 + $0x68] sm:$0xff]
        %v1656 = vld [vmem:[%s361 + $0x70] sm:$0xff]
        %v1657 = vld [vmem:[%s361 + $0x78] sm:$0xff]
        %v1658 = vld [vmem:[%s361 + $0x80] sm:$0xff]
        %v1659 = vld [vmem:[%s361 + $0x88] sm:$0xff]
        %v1660 = vld [vmem:[%s361 + $0x90] sm:$0xff]
        %v1661 = vld [vmem:[%s361 + $0x98] sm:$0xff]
        %v1662 = vld [vmem:[%s361 + $0xa0] sm:$0xff]
        %v1663 = vld [vmem:[%s361 + $0xa8] sm:$0xff]
        %v1664 = vld [vmem:[%s361 + $0xb0] sm:$0xff]
        %v1665 = vld [vmem:[%s361 + $0xb8] sm:$0xff]
        %v1666 = vld [vmem:[%s361 + $0xc0] sm:$0xff]
        %v1667 = vld [vmem:[%s361 + $0xc8] sm:$0xff]
        %v1668 = vld [vmem:[%s361 + $0xd0] sm:$0xff]
        %v1669 = vld [vmem:[%s361 + $0xd8] sm:$0xff]
        %v1670 = vld [vmem:[%s361 + $0xe0] sm:$0xff]
        %v1671 = vld [vmem:[%s361 + $0xe8] sm:$0xff]
        %v1672 = vld [vmem:[%s361 + $0xf0] sm:$0xff]
        %v1673 = vld [vmem:[%s361 + $0xf8] sm:$0xff]
        %v1674 = vld [vmem:[%s1 + $0x30] sm:$0xff]
        %v1675 = vld [vmem:[%s1 + $0x38] sm:$0xff]
        %v1676 = vld [vmem:[%s1 + $0x70] sm:$0xff]
        %v1677 = vld [vmem:[%s1 + $0x78] sm:$0xff]
        %v1678 = vld [vmem:[%s1 + $0xb0] sm:$0xff]
        %v1679 = vld [vmem:[%s1 + $0xb8] sm:$0xff]
        %v1680 = vld [vmem:[%s1 + $0xf0] sm:$0xff]
        %v1681 = vld [vmem:[%s1 + $0xf8] sm:$0xff]
        %v1682 = vld [vmem:[%s1 + $0x130] sm:$0xff]
        %v1683 = vld [vmem:[%s1 + $0x138] sm:$0xff]
        %v1684 = vld [vmem:[%s1 + $0x170] sm:$0xff]
        %v1685 = vld [vmem:[%s1 + $0x178] sm:$0xff]
        %v1686 = vld [vmem:[%s1 + $0x1b0] sm:$0xff]
        %v1687 = vld [vmem:[%s1 + $0x1b8] sm:$0xff]
        %v1688 = vld [vmem:[%s1 + $0x1f0] sm:$0xff]
        %v1689 = vld [vmem:[%s1 + $0x1f8] sm:$0xff]
        %v1690 = vld [vmem:[%s1 + $0x230] sm:$0xff]
        %v1691 = vld [vmem:[%s1 + $0x238] sm:$0xff]
        %v1692 = vld [vmem:[%s1 + $0x270] sm:$0xff]
        %v1693 = vld [vmem:[%s1 + $0x278] sm:$0xff]
        %v1694 = vld [vmem:[%s1 + $0x2b0] sm:$0xff]
        %v1695 = vld [vmem:[%s1 + $0x2b8] sm:$0xff]
        %v1696 = vld [vmem:[%s1 + $0x2f0] sm:$0xff]
        %v1697 = vld [vmem:[%s1 + $0x2f8] sm:$0xff]
        %v1698 = vld [vmem:[%s1 + $0x330] sm:$0xff]
        %v1699 = vld [vmem:[%s1 + $0x338] sm:$0xff]
        %v1700 = vld [vmem:[%s1 + $0x370] sm:$0xff]
        %v1701 = vld [vmem:[%s1 + $0x378] sm:$0xff]
        %v1702 = vld [vmem:[%s1 + $0x3b0] sm:$0xff]
        %v1703 = vld [vmem:[%s1 + $0x3b8] sm:$0xff]
        %v1704 = vld [vmem:[%s1 + $0x3f0] sm:$0xff]
        %v1705 = vld [vmem:[%s1 + $0x3f8] sm:$0xff]
        %v1706 = vld [vmem:[%s1 + $0x430] sm:$0xff]
        %v1707 = vld [vmem:[%s1 + $0x438] sm:$0xff]
        %v1708 = vld [vmem:[%s1 + $0x470] sm:$0xff]
        %v1709 = vld [vmem:[%s1 + $0x478] sm:$0xff]
        %v1710 = vld [vmem:[%s1 + $0x4b0] sm:$0xff]
        %v1711 = vld [vmem:[%s1 + $0x4b8] sm:$0xff]
        %v1712 = vld [vmem:[%s1 + $0x4f0] sm:$0xff]
        %v1713 = vld [vmem:[%s1 + $0x4f8] sm:$0xff]
        %v1714 = vld [vmem:[%s1 + $0x530] sm:$0xff]
        %v1715 = vld [vmem:[%s1 + $0x538] sm:$0xff]
        %v1716 = vld [vmem:[%s1 + $0x570] sm:$0xff]
        %v1717 = vld [vmem:[%s1 + $0x578] sm:$0xff]
        %v1718 = vld [vmem:[%s1 + $0x5b0] sm:$0xff]
        %v1719 = vld [vmem:[%s1 + $0x5b8] sm:$0xff]
        %v1720 = vld [vmem:[%s1 + $0x5f0] sm:$0xff]
        %v1721 = vld [vmem:[%s1 + $0x5f8] sm:$0xff]
        %v1722 = vld [vmem:[%s1 + $0x630] sm:$0xff]
        %v1723 = vld [vmem:[%s1 + $0x638] sm:$0xff]
        %v1724 = vld [vmem:[%s1 + $0x670] sm:$0xff]
        %v1725 = vld [vmem:[%s1 + $0x678] sm:$0xff]
        %v1726 = vld [vmem:[%s1 + $0x6b0] sm:$0xff]
        %v1727 = vld [vmem:[%s1 + $0x6b8] sm:$0xff]
        %v1728 = vld [vmem:[%s1 + $0x6f0] sm:$0xff]
        %v1729 = vld [vmem:[%s1 + $0x6f8] sm:$0xff]
        %v1730 = vld [vmem:[%s1 + $0x730] sm:$0xff]
        %v1731 = vld [vmem:[%s1 + $0x738] sm:$0xff]
        %v1732 = vld [vmem:[%s1 + $0x770] sm:$0xff]
        %v1733 = vld [vmem:[%s1 + $0x778] sm:$0xff]
        %v1734 = vld [vmem:[%s1 + $0x7b0] sm:$0xff]
        %v1735 = vld [vmem:[%s1 + $0x7b8] sm:$0xff]
        %v1736 = vld [vmem:[%s1 + $0x7f0] sm:$0xff]
        %v1737 = vld [vmem:[%s1 + $0x7f8] sm:$0xff]
        %v1738 = vld [vmem:[%s2 + $0x6] sm:$0x3]
        %v1740 = vperm.slane %v1738, 0
        %v1741 = vperm.slane %v1738, 1
        %1744 = vmatpush.msra.mxu0 %v1704
        %1745 = vmatpush.msra.mxu0 %v1702
        %1746 = vmatpush.msra.mxu0 %v1700
        %1747 = vmatpush.msra.mxu0 %v1698
        %1748 = vmatpush.msra.mxu0 %v1696
        %1749 = vmatpush.msra.mxu0 %v1694
        %1750 = vmatpush.msra.mxu0 %v1692
        %1751 = vmatpush.msra.mxu0 %v1690
        %1752 = vmatpush.msra.mxu0 %v1688
        %1753 = vmatpush.msra.mxu0 %v1686
        %1754 = vmatpush.msra.mxu0 %v1684
        %1755 = vmatpush.msra.mxu0 %v1682
        %1756 = vmatpush.msra.mxu0 %v1680
        %1757 = vmatpush.msra.mxu0 %v1678
        %1758 = vmatpush.msra.mxu0 %v1676
        %1759 = vmatpush.msra.mxu0 %v1674
        %1760 = vmatmul.f32.gmra.mxu0 %v1642
        %v1761 = vpop.f32.mrf.mxu0
        %v1762 = vadd.f32 %v1740, %v1761
        %1763 = vmatmul.f32.gmra.mxu0 %v1644
        %v1764 = vpop.f32.mrf.mxu0
        %v1765 = vadd.f32 %v1740, %v1764
        %1766 = vmatmul.f32.gmra.mxu0 %v1646
        %v1767 = vpop.f32.mrf.mxu0
        %v1768 = vadd.f32 %v1740, %v1767
        %1769 = vmatmul.f32.gmra.mxu0 %v1648
        %v1770 = vpop.f32.mrf.mxu0
        %v1771 = vadd.f32 %v1740, %v1770
        %1772 = vmatmul.f32.gmra.mxu0 %v1650
        %v1773 = vpop.f32.mrf.mxu0
        %v1774 = vadd.f32 %v1740, %v1773
        %1775 = vmatmul.f32.gmra.mxu0 %v1652
        %v1776 = vpop.f32.mrf.mxu0
        %v1777 = vadd.f32 %v1740, %v1776
        %1778 = vmatmul.f32.gmra.mxu0 %v1654
        %v1779 = vpop.f32.mrf.mxu0
        %v1780 = vadd.f32 %v1740, %v1779
        %1781 = vmatmul.f32.gmra.mxu0 %v1656
        %v1782 = vpop.f32.mrf.mxu0
        %v1783 = vadd.f32 %v1740, %v1782
        %1784 = vmatmul.f32.gmra.mxu0 %v1658
        %v1785 = vpop.f32.mrf.mxu0
        %v1786 = vadd.f32 %v1740, %v1785
        %1787 = vmatmul.f32.gmra.mxu0 %v1660
        %v1788 = vpop.f32.mrf.mxu0
        %v1789 = vadd.f32 %v1740, %v1788
        %1790 = vmatmul.f32.gmra.mxu0 %v1662
        %v1791 = vpop.f32.mrf.mxu0
        %v1792 = vadd.f32 %v1740, %v1791
        %1793 = vmatmul.f32.gmra.mxu0 %v1664
        %v1794 = vpop.f32.mrf.mxu0
        %v1795 = vadd.f32 %v1740, %v1794
        %1796 = vmatmul.f32.gmra.mxu0 %v1666
        %v1797 = vpop.f32.mrf.mxu0
        %v1798 = vadd.f32 %v1740, %v1797
        %1799 = vmatmul.f32.gmra.mxu0 %v1668
        %v1800 = vpop.f32.mrf.mxu0
        %v1801 = vadd.f32 %v1740, %v1800
        %1802 = vmatmul.f32.gmra.mxu0 %v1670
        %v1803 = vpop.f32.mrf.mxu0
        %v1804 = vadd.f32 %v1740, %v1803
        %1805 = vmatmul.f32.gmra.mxu0 %v1672
        %v1806 = vpop.f32.mrf.mxu0
        %v1807 = vadd.f32 %v1740, %v1806
        %1808 = vdwg.mxu0
        %1809 = vmatpush.msra.mxu0 %v1736
        %1810 = vmatpush.msra.mxu0 %v1734
        %1811 = vmatpush.msra.mxu0 %v1732
        %1812 = vmatpush.msra.mxu0 %v1730
        %1813 = vmatpush.msra.mxu0 %v1728
        %1814 = vmatpush.msra.mxu0 %v1726
        %1815 = vmatpush.msra.mxu0 %v1724
        %1816 = vmatpush.msra.mxu0 %v1722
        %1817 = vmatpush.msra.mxu0 %v1720
        %1818 = vmatpush.msra.mxu0 %v1718
        %1819 = vmatpush.msra.mxu0 %v1716
        %1820 = vmatpush.msra.mxu0 %v1714
        %1821 = vmatpush.msra.mxu0 %v1712
        %1822 = vmatpush.msra.mxu0 %v1710
        %1823 = vmatpush.msra.mxu0 %v1708
        %1824 = vmatpush.msra.mxu0 %v1706
        %1825 = vmatmul.f32.gmra.mxu0 %v1643
        %v1826 = vpop.f32.mrf.mxu0
        %v1827 = vadd.f32 %v1762, %v1826
        %1828 = vmatmul.f32.gmra.mxu0 %v1645
        %v1829 = vpop.f32.mrf.mxu0
        %v1830 = vadd.f32 %v1765, %v1829
        %1831 = vmatmul.f32.gmra.mxu0 %v1647
        %v1832 = vpop.f32.mrf.mxu0
        %v1833 = vadd.f32 %v1768, %v1832
        %1834 = vmatmul.f32.gmra.mxu0 %v1649
        %v1835 = vpop.f32.mrf.mxu0
        %v1836 = vadd.f32 %v1771, %v1835
        %1837 = vmatmul.f32.gmra.mxu0 %v1651
        %v1838 = vpop.f32.mrf.mxu0
        %v1839 = vadd.f32 %v1774, %v1838
        %1840 = vmatmul.f32.gmra.mxu0 %v1653
        %v1841 = vpop.f32.mrf.mxu0
        %v1842 = vadd.f32 %v1777, %v1841
        %1843 = vmatmul.f32.gmra.mxu0 %v1655
        %v1844 = vpop.f32.mrf.mxu0
        %v1845 = vadd.f32 %v1780, %v1844
        %1846 = vmatmul.f32.gmra.mxu0 %v1657
        %v1847 = vpop.f32.mrf.mxu0
        %v1848 = vadd.f32 %v1783, %v1847
        %1849 = vmatmul.f32.gmra.mxu0 %v1659
        %v1850 = vpop.f32.mrf.mxu0
        %v1851 = vadd.f32 %v1786, %v1850
        %1852 = vmatmul.f32.gmra.mxu0 %v1661
        %v1853 = vpop.f32.mrf.mxu0
        %v1854 = vadd.f32 %v1789, %v1853
        %1855 = vmatmul.f32.gmra.mxu0 %v1663
        %v1856 = vpop.f32.mrf.mxu0
        %v1857 = vadd.f32 %v1792, %v1856
        %1858 = vmatmul.f32.gmra.mxu0 %v1665
        %v1859 = vpop.f32.mrf.mxu0
        %v1860 = vadd.f32 %v1795, %v1859
        %1861 = vmatmul.f32.gmra.mxu0 %v1667
        %v1862 = vpop.f32.mrf.mxu0
        %v1863 = vadd.f32 %v1798, %v1862
        %1864 = vmatmul.f32.gmra.mxu0 %v1669
        %v1865 = vpop.f32.mrf.mxu0
        %v1866 = vadd.f32 %v1801, %v1865
        %1867 = vmatmul.f32.gmra.mxu0 %v1671
        %v1868 = vpop.f32.mrf.mxu0
        %v1869 = vadd.f32 %v1804, %v1868
        %1870 = vmatmul.f32.gmra.mxu0 %v1673
        %v1871 = vpop.f32.mrf.mxu0
        %v1872 = vadd.f32 %v1807, %v1871
        %1873 = vdwg.mxu0
        %1874 = vmatpush.msra.mxu0 %v1705
        %1875 = vmatpush.msra.mxu0 %v1703
        %1876 = vmatpush.msra.mxu0 %v1701
        %1877 = vmatpush.msra.mxu0 %v1699
        %1878 = vmatpush.msra.mxu0 %v1697
        %1879 = vmatpush.msra.mxu0 %v1695
        %1880 = vmatpush.msra.mxu0 %v1693
        %1881 = vmatpush.msra.mxu0 %v1691
        %1882 = vmatpush.msra.mxu0 %v1689
        %1883 = vmatpush.msra.mxu0 %v1687
        %1884 = vmatpush.msra.mxu0 %v1685
        %1885 = vmatpush.msra.mxu0 %v1683
        %1886 = vmatpush.msra.mxu0 %v1681
        %1887 = vmatpush.msra.mxu0 %v1679
        %1888 = vmatpush.msra.mxu0 %v1677
        %1889 = vmatpush.msra.mxu0 %v1675
        %1890 = vmatmul.f32.gmra.mxu0 %v1642
        %v1891 = vpop.f32.mrf.mxu0
        %v1892 = vadd.f32 %v1741, %v1891
        %1893 = vmatmul.f32.gmra.mxu0 %v1644
        %v1894 = vpop.f32.mrf.mxu0
        %v1895 = vadd.f32 %v1741, %v1894
        %1896 = vmatmul.f32.gmra.mxu0 %v1646
        %v1897 = vpop.f32.mrf.mxu0
        %v1898 = vadd.f32 %v1741, %v1897
        %1899 = vmatmul.f32.gmra.mxu0 %v1648
        %v1900 = vpop.f32.mrf.mxu0
        %v1901 = vadd.f32 %v1741, %v1900
        %1902 = vmatmul.f32.gmra.mxu0 %v1650
        %v1903 = vpop.f32.mrf.mxu0
        %v1904 = vadd.f32 %v1741, %v1903
        %1905 = vmatmul.f32.gmra.mxu0 %v1652
        %v1906 = vpop.f32.mrf.mxu0
        %v1907 = vadd.f32 %v1741, %v1906
        %1908 = vmatmul.f32.gmra.mxu0 %v1654
        %v1909 = vpop.f32.mrf.mxu0
        %v1910 = vadd.f32 %v1741, %v1909
        %1911 = vmatmul.f32.gmra.mxu0 %v1656
        %v1912 = vpop.f32.mrf.mxu0
        %v1913 = vadd.f32 %v1741, %v1912
        %1914 = vmatmul.f32.gmra.mxu0 %v1658
        %v1915 = vpop.f32.mrf.mxu0
        %v1916 = vadd.f32 %v1741, %v1915
        %1917 = vmatmul.f32.gmra.mxu0 %v1660
        %v1918 = vpop.f32.mrf.mxu0
        %v1919 = vadd.f32 %v1741, %v1918
        %1920 = vmatmul.f32.gmra.mxu0 %v1662
        %v1921 = vpop.f32.mrf.mxu0
        %v1922 = vadd.f32 %v1741, %v1921
        %1923 = vmatmul.f32.gmra.mxu0 %v1664
        %v1924 = vpop.f32.mrf.mxu0
        %v1925 = vadd.f32 %v1741, %v1924
        %1926 = vmatmul.f32.gmra.mxu0 %v1666
        %v1927 = vpop.f32.mrf.mxu0
        %v1928 = vadd.f32 %v1741, %v1927
        %1929 = vmatmul.f32.gmra.mxu0 %v1668
        %v1930 = vpop.f32.mrf.mxu0
        %v1931 = vadd.f32 %v1741, %v1930
        %1932 = vmatmul.f32.gmra.mxu0 %v1670
        %v1933 = vpop.f32.mrf.mxu0
        %v1934 = vadd.f32 %v1741, %v1933
        %1935 = vmatmul.f32.gmra.mxu0 %v1672
        %v1936 = vpop.f32.mrf.mxu0
        %v1937 = vadd.f32 %v1741, %v1936
        %1938 = vdwg.mxu0
        %1939 = vmatpush.msra.mxu0 %v1737
        %1940 = vmatpush.msra.mxu0 %v1735
        %1941 = vmatpush.msra.mxu0 %v1733
        %1942 = vmatpush.msra.mxu0 %v1731
        %1943 = vmatpush.msra.mxu0 %v1729
        %1944 = vmatpush.msra.mxu0 %v1727
        %1945 = vmatpush.msra.mxu0 %v1725
        %1946 = vmatpush.msra.mxu0 %v1723
        %1947 = vmatpush.msra.mxu0 %v1721
        %1948 = vmatpush.msra.mxu0 %v1719
        %1949 = vmatpush.msra.mxu0 %v1717
        %1950 = vmatpush.msra.mxu0 %v1715
        %1951 = vmatpush.msra.mxu0 %v1713
        %1952 = vmatpush.msra.mxu0 %v1711
        %1953 = vmatpush.msra.mxu0 %v1709
        %1954 = vmatpush.msra.mxu0 %v1707
        %1955 = vmatmul.f32.gmra.mxu0 %v1643
        %v1956 = vpop.f32.mrf.mxu0
        %v1957 = vadd.f32 %v1892, %v1956
        %1958 = vmatmul.f32.gmra.mxu0 %v1645
        %v1959 = vpop.f32.mrf.mxu0
        %v1960 = vadd.f32 %v1895, %v1959
        %1961 = vmatmul.f32.gmra.mxu0 %v1647
        %v1962 = vpop.f32.mrf.mxu0
        %v1963 = vadd.f32 %v1898, %v1962
        %1964 = vmatmul.f32.gmra.mxu0 %v1649
        %v1965 = vpop.f32.mrf.mxu0
        %v1966 = vadd.f32 %v1901, %v1965
        %1967 = vmatmul.f32.gmra.mxu0 %v1651
        %v1968 = vpop.f32.mrf.mxu0
        %v1969 = vadd.f32 %v1904, %v1968
        %1970 = vmatmul.f32.gmra.mxu0 %v1653
        %v1971 = vpop.f32.mrf.mxu0
        %v1972 = vadd.f32 %v1907, %v1971
        %1973 = vmatmul.f32.gmra.mxu0 %v1655
        %v1974 = vpop.f32.mrf.mxu0
        %v1975 = vadd.f32 %v1910, %v1974
        %1976 = vmatmul.f32.gmra.mxu0 %v1657
        %v1977 = vpop.f32.mrf.mxu0
        %v1978 = vadd.f32 %v1913, %v1977
        %1979 = vmatmul.f32.gmra.mxu0 %v1659
        %v1980 = vpop.f32.mrf.mxu0
        %v1981 = vadd.f32 %v1916, %v1980
        %1982 = vmatmul.f32.gmra.mxu0 %v1661
        %v1983 = vpop.f32.mrf.mxu0
        %v1984 = vadd.f32 %v1919, %v1983
        %1985 = vmatmul.f32.gmra.mxu0 %v1663
        %v1986 = vpop.f32.mrf.mxu0
        %v1987 = vadd.f32 %v1922, %v1986
        %1988 = vmatmul.f32.gmra.mxu0 %v1665
        %v1989 = vpop.f32.mrf.mxu0
        %v1990 = vadd.f32 %v1925, %v1989
        %1991 = vmatmul.f32.gmra.mxu0 %v1667
        %v1992 = vpop.f32.mrf.mxu0
        %v1993 = vadd.f32 %v1928, %v1992
        %1994 = vmatmul.f32.gmra.mxu0 %v1669
        %v1995 = vpop.f32.mrf.mxu0
        %v1996 = vadd.f32 %v1931, %v1995
        %1997 = vmatmul.f32.gmra.mxu0 %v1671
        %v1998 = vpop.f32.mrf.mxu0
        %v1999 = vadd.f32 %v1934, %v1998
        %2000 = vmatmul.f32.gmra.mxu0 %v1673
        %v2001 = vpop.f32.mrf.mxu0
        %v2002 = vadd.f32 %v1937, %v2001
        %2003 = vdwg.mxu0
        %v2004 = vmax.f32 %v1827, 0.0
        %v2005 = vmax.f32 %v1957, 0.0
        %v2006 = vmax.f32 %v1830, 0.0
        %v2007 = vmax.f32 %v1960, 0.0
        %v2008 = vmax.f32 %v1833, 0.0
        %v2009 = vmax.f32 %v1963, 0.0
        %v2010 = vmax.f32 %v1836, 0.0
        %v2011 = vmax.f32 %v1966, 0.0
        %v2012 = vmax.f32 %v1839, 0.0
        %v2013 = vmax.f32 %v1969, 0.0
        %v2014 = vmax.f32 %v1842, 0.0
        %v2015 = vmax.f32 %v1972, 0.0
        %v2016 = vmax.f32 %v1845, 0.0
        %v2017 = vmax.f32 %v1975, 0.0
        %v2018 = vmax.f32 %v1848, 0.0
        %v2019 = vmax.f32 %v1978, 0.0
        %v2020 = vmax.f32 %v1851, 0.0
        %v2021 = vmax.f32 %v1981, 0.0
        %v2022 = vmax.f32 %v1854, 0.0
        %v2023 = vmax.f32 %v1984, 0.0
        %v2024 = vmax.f32 %v1857, 0.0
        %v2025 = vmax.f32 %v1987, 0.0
        %v2026 = vmax.f32 %v1860, 0.0
        %v2027 = vmax.f32 %v1990, 0.0
        %v2028 = vmax.f32 %v1863, 0.0
        %v2029 = vmax.f32 %v1993, 0.0
        %v2030 = vmax.f32 %v1866, 0.0
        %v2031 = vmax.f32 %v1996, 0.0
        %v2032 = vmax.f32 %v1869, 0.0
        %v2033 = vmax.f32 %v1999, 0.0
        %v2034 = vmax.f32 %v1872, 0.0
        %v2035 = vmax.f32 %v2002, 0.0
        %2036 = vst [vmem:[#allocation2 + $0x30] sm:$0xff] %v2004
        %2037 = vst [vmem:[#allocation2 + $0x38] sm:$0xff] %v2005
        %2038 = vst [vmem:[#allocation2 + $0x70] sm:$0xff] %v2006
        %2039 = vst [vmem:[#allocation2 + $0x78] sm:$0xff] %v2007
        %2040 = vst [vmem:[#allocation2 + $0xb0] sm:$0xff] %v2008
        %2041 = vst [vmem:[#allocation2 + $0xb8] sm:$0xff] %v2009
        %2042 = vst [vmem:[#allocation2 + $0xf0] sm:$0xff] %v2010
        %2043 = vst [vmem:[#allocation2 + $0xf8] sm:$0xff] %v2011
        %2044 = vst [vmem:[#allocation2 + $0x130] sm:$0xff] %v2012
        %2045 = vst [vmem:[#allocation2 + $0x138] sm:$0xff] %v2013
        %2046 = vst [vmem:[#allocation2 + $0x170] sm:$0xff] %v2014
        %2047 = vst [vmem:[#allocation2 + $0x178] sm:$0xff] %v2015
        %2048 = vst [vmem:[#allocation2 + $0x1b0] sm:$0xff] %v2016
        %2049 = vst [vmem:[#allocation2 + $0x1b8] sm:$0xff] %v2017
        %2050 = vst [vmem:[#allocation2 + $0x1f0] sm:$0xff] %v2018
        %2051 = vst [vmem:[#allocation2 + $0x1f8] sm:$0xff] %v2019
        %2052 = vst [vmem:[#allocation2 + $0x230] sm:$0xff] %v2020
        %2053 = vst [vmem:[#allocation2 + $0x238] sm:$0xff] %v2021
        %2054 = vst [vmem:[#allocation2 + $0x270] sm:$0xff] %v2022
        %2055 = vst [vmem:[#allocation2 + $0x278] sm:$0xff] %v2023
        %2056 = vst [vmem:[#allocation2 + $0x2b0] sm:$0xff] %v2024
        %2057 = vst [vmem:[#allocation2 + $0x2b8] sm:$0xff] %v2025
        %2058 = vst [vmem:[#allocation2 + $0x2f0] sm:$0xff] %v2026
        %2059 = vst [vmem:[#allocation2 + $0x2f8] sm:$0xff] %v2027
        %2060 = vst [vmem:[#allocation2 + $0x330] sm:$0xff] %v2028
        %2061 = vst [vmem:[#allocation2 + $0x338] sm:$0xff] %v2029
        %2062 = vst [vmem:[#allocation2 + $0x370] sm:$0xff] %v2030
        %2063 = vst [vmem:[#allocation2 + $0x378] sm:$0xff] %v2031
        %2064 = vst [vmem:[#allocation2 + $0x3b0] sm:$0xff] %v2032
        %2065 = vst [vmem:[#allocation2 + $0x3b8] sm:$0xff] %v2033
        %2066 = vst [vmem:[#allocation2 + $0x3f0] sm:$0xff] %v2034
        %2067 = vst [vmem:[#allocation2 + $0x3f8] sm:$0xff] %v2035
        %v2068 = vld [vmem:[#allocation2] sm:$0xff]
        %v2069 = vld [vmem:[#allocation2 + $0x8] sm:$0xff]
        %v2070 = vld [vmem:[#allocation2 + $0x40] sm:$0xff]
        %v2071 = vld [vmem:[#allocation2 + $0x48] sm:$0xff]
        %v2072 = vld [vmem:[#allocation2 + $0x80] sm:$0xff]
        %v2073 = vld [vmem:[#allocation2 + $0x88] sm:$0xff]
        %v2074 = vld [vmem:[#allocation2 + $0xc0] sm:$0xff]
        %v2075 = vld [vmem:[#allocation2 + $0xc8] sm:$0xff]
        %v2076 = vld [vmem:[#allocation2 + $0x100] sm:$0xff]
        %v2077 = vld [vmem:[#allocation2 + $0x108] sm:$0xff]
        %v2078 = vld [vmem:[#allocation2 + $0x140] sm:$0xff]
        %v2079 = vld [vmem:[#allocation2 + $0x148] sm:$0xff]
        %v2080 = vld [vmem:[#allocation2 + $0x180] sm:$0xff]
        %v2081 = vld [vmem:[#allocation2 + $0x188] sm:$0xff]
        %v2082 = vld [vmem:[#allocation2 + $0x1c0] sm:$0xff]
        %v2083 = vld [vmem:[#allocation2 + $0x1c8] sm:$0xff]
        %v2084 = vld [vmem:[#allocation2 + $0x200] sm:$0xff]
        %v2085 = vld [vmem:[#allocation2 + $0x208] sm:$0xff]
        %v2086 = vld [vmem:[#allocation2 + $0x240] sm:$0xff]
        %v2087 = vld [vmem:[#allocation2 + $0x248] sm:$0xff]
        %v2088 = vld [vmem:[#allocation2 + $0x280] sm:$0xff]
        %v2089 = vld [vmem:[#allocation2 + $0x288] sm:$0xff]
        %v2090 = vld [vmem:[#allocation2 + $0x2c0] sm:$0xff]
        %v2091 = vld [vmem:[#allocation2 + $0x2c8] sm:$0xff]
        %v2092 = vld [vmem:[#allocation2 + $0x300] sm:$0xff]
        %v2093 = vld [vmem:[#allocation2 + $0x308] sm:$0xff]
        %v2094 = vld [vmem:[#allocation2 + $0x340] sm:$0xff]
        %v2095 = vld [vmem:[#allocation2 + $0x348] sm:$0xff]
        %v2096 = vld [vmem:[#allocation2 + $0x380] sm:$0xff]
        %v2097 = vld [vmem:[#allocation2 + $0x388] sm:$0xff]
        %v2098 = vld [vmem:[#allocation2 + $0x3c0] sm:$0xff]
        %v2099 = vld [vmem:[#allocation2 + $0x3c8] sm:$0xff]
        %v2100 = vld [vmem:[%s3] sm:$0xff]
        %v2101 = vld [vmem:[%s3 + $0x8] sm:$0xff]
        %v2102 = vld [vmem:[%s3 + $0x10] sm:$0xff]
        %v2103 = vld [vmem:[%s3 + $0x18] sm:$0xff]
        %v2104 = vld [vmem:[%s3 + $0x20] sm:$0xff]
        %v2105 = vld [vmem:[%s3 + $0x28] sm:$0xff]
        %v2106 = vld [vmem:[%s3 + $0x30] sm:$0xff]
        %v2107 = vld [vmem:[%s3 + $0x38] sm:$0xff]
        %v2108 = vld [vmem:[%s3 + $0x40] sm:$0xff]
        %v2109 = vld [vmem:[%s3 + $0x48] sm:$0xff]
        %v2110 = vld [vmem:[%s3 + $0x50] sm:$0xff]
        %v2111 = vld [vmem:[%s3 + $0x58] sm:$0xff]
        %v2112 = vld [vmem:[%s3 + $0x60] sm:$0xff]
        %v2113 = vld [vmem:[%s3 + $0x68] sm:$0xff]
        %v2114 = vld [vmem:[%s3 + $0x70] sm:$0xff]
        %v2115 = vld [vmem:[%s3 + $0x78] sm:$0xff]
        %v2116 = vld [vmem:[%s3 + $0x80] sm:$0xff]
        %v2117 = vld [vmem:[%s3 + $0x88] sm:$0xff]
        %v2118 = vld [vmem:[%s3 + $0x90] sm:$0xff]
        %v2119 = vld [vmem:[%s3 + $0x98] sm:$0xff]
        %v2120 = vld [vmem:[%s3 + $0xa0] sm:$0xff]
        %v2121 = vld [vmem:[%s3 + $0xa8] sm:$0xff]
        %v2122 = vld [vmem:[%s3 + $0xb0] sm:$0xff]
        %v2123 = vld [vmem:[%s3 + $0xb8] sm:$0xff]
        %v2124 = vld [vmem:[%s3 + $0xc0] sm:$0xff]
        %v2125 = vld [vmem:[%s3 + $0xc8] sm:$0xff]
        %v2126 = vld [vmem:[%s3 + $0xd0] sm:$0xff]
        %v2127 = vld [vmem:[%s3 + $0xd8] sm:$0xff]
        %v2128 = vld [vmem:[%s3 + $0xe0] sm:$0xff]
        %v2129 = vld [vmem:[%s3 + $0xe8] sm:$0xff]
        %v2130 = vld [vmem:[%s3 + $0xf0] sm:$0xff]
        %v2131 = vld [vmem:[%s3 + $0xf8] sm:$0xff]
        %v2132 = vld [vmem:[#allocation2 + $0x10] sm:$0xff]
        %v2133 = vld [vmem:[#allocation2 + $0x18] sm:$0xff]
        %v2134 = vld [vmem:[#allocation2 + $0x50] sm:$0xff]
        %v2135 = vld [vmem:[#allocation2 + $0x58] sm:$0xff]
        %v2136 = vld [vmem:[#allocation2 + $0x90] sm:$0xff]
        %v2137 = vld [vmem:[#allocation2 + $0x98] sm:$0xff]
        %v2138 = vld [vmem:[#allocation2 + $0xd0] sm:$0xff]
        %v2139 = vld [vmem:[#allocation2 + $0xd8] sm:$0xff]
        %v2140 = vld [vmem:[#allocation2 + $0x110] sm:$0xff]
        %v2141 = vld [vmem:[#allocation2 + $0x118] sm:$0xff]
        %v2142 = vld [vmem:[#allocation2 + $0x150] sm:$0xff]
        %v2143 = vld [vmem:[#allocation2 + $0x158] sm:$0xff]
        %v2144 = vld [vmem:[#allocation2 + $0x190] sm:$0xff]
        %v2145 = vld [vmem:[#allocation2 + $0x198] sm:$0xff]
        %v2146 = vld [vmem:[#allocation2 + $0x1d0] sm:$0xff]
        %v2147 = vld [vmem:[#allocation2 + $0x1d8] sm:$0xff]
        %v2148 = vld [vmem:[#allocation2 + $0x210] sm:$0xff]
        %v2149 = vld [vmem:[#allocation2 + $0x218] sm:$0xff]
        %v2150 = vld [vmem:[#allocation2 + $0x250] sm:$0xff]
        %v2151 = vld [vmem:[#allocation2 + $0x258] sm:$0xff]
        %v2152 = vld [vmem:[#allocation2 + $0x290] sm:$0xff]
        %v2153 = vld [vmem:[#allocation2 + $0x298] sm:$0xff]
        %v2154 = vld [vmem:[#allocation2 + $0x2d0] sm:$0xff]
        %v2155 = vld [vmem:[#allocation2 + $0x2d8] sm:$0xff]
        %v2156 = vld [vmem:[#allocation2 + $0x310] sm:$0xff]
        %v2157 = vld [vmem:[#allocation2 + $0x318] sm:$0xff]
        %v2158 = vld [vmem:[#allocation2 + $0x350] sm:$0xff]
        %v2159 = vld [vmem:[#allocation2 + $0x358] sm:$0xff]
        %v2160 = vld [vmem:[#allocation2 + $0x390] sm:$0xff]
        %v2161 = vld [vmem:[#allocation2 + $0x398] sm:$0xff]
        %v2162 = vld [vmem:[#allocation2 + $0x3d0] sm:$0xff]
        %v2163 = vld [vmem:[#allocation2 + $0x3d8] sm:$0xff]
        %v2164 = vld [vmem:[%s3 + $0x100] sm:$0xff]
        %v2165 = vld [vmem:[%s3 + $0x108] sm:$0xff]
        %v2166 = vld [vmem:[%s3 + $0x110] sm:$0xff]
        %v2167 = vld [vmem:[%s3 + $0x118] sm:$0xff]
        %v2168 = vld [vmem:[%s3 + $0x120] sm:$0xff]
        %v2169 = vld [vmem:[%s3 + $0x128] sm:$0xff]
        %v2170 = vld [vmem:[%s3 + $0x130] sm:$0xff]
        %v2171 = vld [vmem:[%s3 + $0x138] sm:$0xff]
        %v2172 = vld [vmem:[%s3 + $0x140] sm:$0xff]
        %v2173 = vld [vmem:[%s3 + $0x148] sm:$0xff]
        %v2174 = vld [vmem:[%s3 + $0x150] sm:$0xff]
        %v2175 = vld [vmem:[%s3 + $0x158] sm:$0xff]
        %v2176 = vld [vmem:[%s3 + $0x160] sm:$0xff]
        %v2177 = vld [vmem:[%s3 + $0x168] sm:$0xff]
        %v2178 = vld [vmem:[%s3 + $0x170] sm:$0xff]
        %v2179 = vld [vmem:[%s3 + $0x178] sm:$0xff]
        %v2180 = vld [vmem:[%s3 + $0x180] sm:$0xff]
        %v2181 = vld [vmem:[%s3 + $0x188] sm:$0xff]
        %v2182 = vld [vmem:[%s3 + $0x190] sm:$0xff]
        %v2183 = vld [vmem:[%s3 + $0x198] sm:$0xff]
        %v2184 = vld [vmem:[%s3 + $0x1a0] sm:$0xff]
        %v2185 = vld [vmem:[%s3 + $0x1a8] sm:$0xff]
        %v2186 = vld [vmem:[%s3 + $0x1b0] sm:$0xff]
        %v2187 = vld [vmem:[%s3 + $0x1b8] sm:$0xff]
        %v2188 = vld [vmem:[%s3 + $0x1c0] sm:$0xff]
        %v2189 = vld [vmem:[%s3 + $0x1c8] sm:$0xff]
        %v2190 = vld [vmem:[%s3 + $0x1d0] sm:$0xff]
        %v2191 = vld [vmem:[%s3 + $0x1d8] sm:$0xff]
        %v2192 = vld [vmem:[%s3 + $0x1e0] sm:$0xff]
        %v2193 = vld [vmem:[%s3 + $0x1e8] sm:$0xff]
        %v2194 = vld [vmem:[%s3 + $0x1f0] sm:$0xff]
        %v2195 = vld [vmem:[%s3 + $0x1f8] sm:$0xff]
        %2196 = vmatpush.msra.mxu0 %v2179
        %2197 = vmatpush.msra.mxu0 %v2178
        %2198 = vmatpush.msra.mxu0 %v2177
        %2199 = vmatpush.msra.mxu0 %v2176
        %2200 = vmatpush.msra.mxu0 %v2175
        %2201 = vmatpush.msra.mxu0 %v2174
        %2202 = vmatpush.msra.mxu0 %v2173
        %2203 = vmatpush.msra.mxu0 %v2172
        %2204 = vmatpush.msra.mxu0 %v2171
        %2205 = vmatpush.msra.mxu0 %v2170
        %2206 = vmatpush.msra.mxu0 %v2169
        %2207 = vmatpush.msra.mxu0 %v2168
        %2208 = vmatpush.msra.mxu0 %v2167
        %2209 = vmatpush.msra.mxu0 %v2166
        %2210 = vmatpush.msra.mxu0 %v2165
        %2211 = vmatpush.msra.mxu0 %v2164
        %2212 = vmatmul.f32.gmra.mxu0 %v2132
        %v2213 = vpop.f32.mrf.mxu0
        %v2214 = vadd.f32 0.0, %v2213
        %2215 = vmatmul.f32.gmra.mxu0 %v2134
        %v2216 = vpop.f32.mrf.mxu0
        %v2217 = vadd.f32 0.0, %v2216
        %2218 = vmatmul.f32.gmra.mxu0 %v2136
        %v2219 = vpop.f32.mrf.mxu0
        %v2220 = vadd.f32 0.0, %v2219
        %2221 = vmatmul.f32.gmra.mxu0 %v2138
        %v2222 = vpop.f32.mrf.mxu0
        %v2223 = vadd.f32 0.0, %v2222
        %2224 = vmatmul.f32.gmra.mxu0 %v2140
        %v2225 = vpop.f32.mrf.mxu0
        %v2226 = vadd.f32 0.0, %v2225
        %2227 = vmatmul.f32.gmra.mxu0 %v2142
        %v2228 = vpop.f32.mrf.mxu0
        %v2229 = vadd.f32 0.0, %v2228
        %2230 = vmatmul.f32.gmra.mxu0 %v2144
        %v2231 = vpop.f32.mrf.mxu0
        %v2232 = vadd.f32 0.0, %v2231
        %2233 = vmatmul.f32.gmra.mxu0 %v2146
        %v2234 = vpop.f32.mrf.mxu0
        %v2235 = vadd.f32 0.0, %v2234
        %2236 = vmatmul.f32.gmra.mxu0 %v2148
        %v2237 = vpop.f32.mrf.mxu0
        %v2238 = vadd.f32 0.0, %v2237
        %2239 = vmatmul.f32.gmra.mxu0 %v2150
        %v2240 = vpop.f32.mrf.mxu0
        %v2241 = vadd.f32 0.0, %v2240
        %2242 = vmatmul.f32.gmra.mxu0 %v2152
        %v2243 = vpop.f32.mrf.mxu0
        %v2244 = vadd.f32 0.0, %v2243
        %2245 = vmatmul.f32.gmra.mxu0 %v2154
        %v2246 = vpop.f32.mrf.mxu0
        %v2247 = vadd.f32 0.0, %v2246
        %2248 = vmatmul.f32.gmra.mxu0 %v2156
        %v2249 = vpop.f32.mrf.mxu0
        %v2250 = vadd.f32 0.0, %v2249
        %2251 = vmatmul.f32.gmra.mxu0 %v2158
        %v2252 = vpop.f32.mrf.mxu0
        %v2253 = vadd.f32 0.0, %v2252
        %2254 = vmatmul.f32.gmra.mxu0 %v2160
        %v2255 = vpop.f32.mrf.mxu0
        %v2256 = vadd.f32 0.0, %v2255
        %2257 = vmatmul.f32.gmra.mxu0 %v2162
        %v2258 = vpop.f32.mrf.mxu0
        %v2259 = vadd.f32 0.0, %v2258
        %2260 = vdwg.mxu0
        %2261 = vmatpush.msra.mxu0 %v2195
        %2262 = vmatpush.msra.mxu0 %v2194
        %2263 = vmatpush.msra.mxu0 %v2193
        %2264 = vmatpush.msra.mxu0 %v2192
        %2265 = vmatpush.msra.mxu0 %v2191
        %2266 = vmatpush.msra.mxu0 %v2190
        %2267 = vmatpush.msra.mxu0 %v2189
        %2268 = vmatpush.msra.mxu0 %v2188
        %2269 = vmatpush.msra.mxu0 %v2187
        %2270 = vmatpush.msra.mxu0 %v2186
        %2271 = vmatpush.msra.mxu0 %v2185
        %2272 = vmatpush.msra.mxu0 %v2184
        %2273 = vmatpush.msra.mxu0 %v2183
        %2274 = vmatpush.msra.mxu0 %v2182
        %2275 = vmatpush.msra.mxu0 %v2181
        %2276 = vmatpush.msra.mxu0 %v2180
        %2277 = vmatmul.f32.gmra.mxu0 %v2133
        %v2278 = vpop.f32.mrf.mxu0
        %v2279 = vadd.f32 %v2214, %v2278
        %2280 = vmatmul.f32.gmra.mxu0 %v2135
        %v2281 = vpop.f32.mrf.mxu0
        %v2282 = vadd.f32 %v2217, %v2281
        %2283 = vmatmul.f32.gmra.mxu0 %v2137
        %v2284 = vpop.f32.mrf.mxu0
        %v2285 = vadd.f32 %v2220, %v2284
        %2286 = vmatmul.f32.gmra.mxu0 %v2139
        %v2287 = vpop.f32.mrf.mxu0
        %v2288 = vadd.f32 %v2223, %v2287
        %2289 = vmatmul.f32.gmra.mxu0 %v2141
        %v2290 = vpop.f32.mrf.mxu0
        %v2291 = vadd.f32 %v2226, %v2290
        %2292 = vmatmul.f32.gmra.mxu0 %v2143
        %v2293 = vpop.f32.mrf.mxu0
        %v2294 = vadd.f32 %v2229, %v2293
        %2295 = vmatmul.f32.gmra.mxu0 %v2145
        %v2296 = vpop.f32.mrf.mxu0
        %v2297 = vadd.f32 %v2232, %v2296
        %2298 = vmatmul.f32.gmra.mxu0 %v2147
        %v2299 = vpop.f32.mrf.mxu0
        %v2300 = vadd.f32 %v2235, %v2299
        %2301 = vmatmul.f32.gmra.mxu0 %v2149
        %v2302 = vpop.f32.mrf.mxu0
        %v2303 = vadd.f32 %v2238, %v2302
        %2304 = vmatmul.f32.gmra.mxu0 %v2151
        %v2305 = vpop.f32.mrf.mxu0
        %v2306 = vadd.f32 %v2241, %v2305
        %2307 = vmatmul.f32.gmra.mxu0 %v2153
        %v2308 = vpop.f32.mrf.mxu0
        %v2309 = vadd.f32 %v2244, %v2308
        %2310 = vmatmul.f32.gmra.mxu0 %v2155
        %v2311 = vpop.f32.mrf.mxu0
        %v2312 = vadd.f32 %v2247, %v2311
        %2313 = vmatmul.f32.gmra.mxu0 %v2157
        %v2314 = vpop.f32.mrf.mxu0
        %v2315 = vadd.f32 %v2250, %v2314
        %2316 = vmatmul.f32.gmra.mxu0 %v2159
        %v2317 = vpop.f32.mrf.mxu0
        %v2318 = vadd.f32 %v2253, %v2317
        %2319 = vmatmul.f32.gmra.mxu0 %v2161
        %v2320 = vpop.f32.mrf.mxu0
        %v2321 = vadd.f32 %v2256, %v2320
        %2322 = vmatmul.f32.gmra.mxu0 %v2163
        %v2323 = vpop.f32.mrf.mxu0
        %v2324 = vadd.f32 %v2259, %v2323
        %2325 = vdwg.mxu0
        %2326 = vmatpush.msra.mxu0 %v2115
        %2327 = vmatpush.msra.mxu0 %v2114
        %2328 = vmatpush.msra.mxu0 %v2113
        %2329 = vmatpush.msra.mxu0 %v2112
        %2330 = vmatpush.msra.mxu0 %v2111
        %2331 = vmatpush.msra.mxu0 %v2110
        %2332 = vmatpush.msra.mxu0 %v2109
        %2333 = vmatpush.msra.mxu0 %v2108
        %2334 = vmatpush.msra.mxu0 %v2107
        %2335 = vmatpush.msra.mxu0 %v2106
        %2336 = vmatpush.msra.mxu0 %v2105
        %2337 = vmatpush.msra.mxu0 %v2104
        %2338 = vmatpush.msra.mxu0 %v2103
        %2339 = vmatpush.msra.mxu0 %v2102
        %2340 = vmatpush.msra.mxu0 %v2101
        %2341 = vmatpush.msra.mxu0 %v2100
        %2342 = vmatmul.f32.gmra.mxu0 %v2068
        %v2343 = vpop.f32.mrf.mxu0
        %v2344 = vadd.f32 %v2279, %v2343
        %2345 = vmatmul.f32.gmra.mxu0 %v2070
        %v2346 = vpop.f32.mrf.mxu0
        %v2347 = vadd.f32 %v2282, %v2346
        %2348 = vmatmul.f32.gmra.mxu0 %v2072
        %v2349 = vpop.f32.mrf.mxu0
        %v2350 = vadd.f32 %v2285, %v2349
        %2351 = vmatmul.f32.gmra.mxu0 %v2074
        %v2352 = vpop.f32.mrf.mxu0
        %v2353 = vadd.f32 %v2288, %v2352
        %2354 = vmatmul.f32.gmra.mxu0 %v2076
        %v2355 = vpop.f32.mrf.mxu0
        %v2356 = vadd.f32 %v2291, %v2355
        %2357 = vmatmul.f32.gmra.mxu0 %v2078
        %v2358 = vpop.f32.mrf.mxu0
        %v2359 = vadd.f32 %v2294, %v2358
        %2360 = vmatmul.f32.gmra.mxu0 %v2080
        %v2361 = vpop.f32.mrf.mxu0
        %v2362 = vadd.f32 %v2297, %v2361
        %2363 = vmatmul.f32.gmra.mxu0 %v2082
        %v2364 = vpop.f32.mrf.mxu0
        %v2365 = vadd.f32 %v2300, %v2364
        %2366 = vmatmul.f32.gmra.mxu0 %v2084
        %v2367 = vpop.f32.mrf.mxu0
        %v2368 = vadd.f32 %v2303, %v2367
        %2369 = vmatmul.f32.gmra.mxu0 %v2086
        %v2370 = vpop.f32.mrf.mxu0
        %v2371 = vadd.f32 %v2306, %v2370
        %2372 = vmatmul.f32.gmra.mxu0 %v2088
        %v2373 = vpop.f32.mrf.mxu0
        %v2374 = vadd.f32 %v2309, %v2373
        %2375 = vmatmul.f32.gmra.mxu0 %v2090
        %v2376 = vpop.f32.mrf.mxu0
        %v2377 = vadd.f32 %v2312, %v2376
        %2378 = vmatmul.f32.gmra.mxu0 %v2092
        %v2379 = vpop.f32.mrf.mxu0
        %v2380 = vadd.f32 %v2315, %v2379
        %2381 = vmatmul.f32.gmra.mxu0 %v2094
        %v2382 = vpop.f32.mrf.mxu0
        %v2383 = vadd.f32 %v2318, %v2382
        %2384 = vmatmul.f32.gmra.mxu0 %v2096
        %v2385 = vpop.f32.mrf.mxu0
        %v2386 = vadd.f32 %v2321, %v2385
        %2387 = vmatmul.f32.gmra.mxu0 %v2098
        %v2388 = vpop.f32.mrf.mxu0
        %v2389 = vadd.f32 %v2324, %v2388
        %2390 = vdwg.mxu0
        %2391 = vmatpush.msra.mxu0 %v2131
        %2392 = vmatpush.msra.mxu0 %v2130
        %2393 = vmatpush.msra.mxu0 %v2129
        %2394 = vmatpush.msra.mxu0 %v2128
        %2395 = vmatpush.msra.mxu0 %v2127
        %2396 = vmatpush.msra.mxu0 %v2126
        %2397 = vmatpush.msra.mxu0 %v2125
        %2398 = vmatpush.msra.mxu0 %v2124
        %2399 = vmatpush.msra.mxu0 %v2123
        %2400 = vmatpush.msra.mxu0 %v2122
        %2401 = vmatpush.msra.mxu0 %v2121
        %2402 = vmatpush.msra.mxu0 %v2120
        %2403 = vmatpush.msra.mxu0 %v2119
        %2404 = vmatpush.msra.mxu0 %v2118
        %2405 = vmatpush.msra.mxu0 %v2117
        %2406 = vmatpush.msra.mxu0 %v2116
        %2407 = vmatmul.f32.gmra.mxu0 %v2069
        %v2408 = vpop.f32.mrf.mxu0
        %v2409 = vadd.f32 %v2344, %v2408
        %2410 = vmatmul.f32.gmra.mxu0 %v2071
        %v2411 = vpop.f32.mrf.mxu0
        %v2412 = vadd.f32 %v2347, %v2411
        %2413 = vmatmul.f32.gmra.mxu0 %v2073
        %v2414 = vpop.f32.mrf.mxu0
        %v2415 = vadd.f32 %v2350, %v2414
        %2416 = vmatmul.f32.gmra.mxu0 %v2075
        %v2417 = vpop.f32.mrf.mxu0
        %v2418 = vadd.f32 %v2353, %v2417
        %2419 = vmatmul.f32.gmra.mxu0 %v2077
        %v2420 = vpop.f32.mrf.mxu0
        %v2421 = vadd.f32 %v2356, %v2420
        %2422 = vmatmul.f32.gmra.mxu0 %v2079
        %v2423 = vpop.f32.mrf.mxu0
        %v2424 = vadd.f32 %v2359, %v2423
        %2425 = vmatmul.f32.gmra.mxu0 %v2081
        %v2426 = vpop.f32.mrf.mxu0
        %v2427 = vadd.f32 %v2362, %v2426
        %2428 = vmatmul.f32.gmra.mxu0 %v2083
        %v2429 = vpop.f32.mrf.mxu0
        %v2430 = vadd.f32 %v2365, %v2429
        %2431 = vmatmul.f32.gmra.mxu0 %v2085
        %v2432 = vpop.f32.mrf.mxu0
        %v2433 = vadd.f32 %v2368, %v2432
        %2434 = vmatmul.f32.gmra.mxu0 %v2087
        %v2435 = vpop.f32.mrf.mxu0
        %v2436 = vadd.f32 %v2371, %v2435
        %2437 = vmatmul.f32.gmra.mxu0 %v2089
        %v2438 = vpop.f32.mrf.mxu0
        %v2439 = vadd.f32 %v2374, %v2438
        %2440 = vmatmul.f32.gmra.mxu0 %v2091
        %v2441 = vpop.f32.mrf.mxu0
        %v2442 = vadd.f32 %v2377, %v2441
        %2443 = vmatmul.f32.gmra.mxu0 %v2093
        %v2444 = vpop.f32.mrf.mxu0
        %v2445 = vadd.f32 %v2380, %v2444
        %2446 = vmatmul.f32.gmra.mxu0 %v2095
        %v2447 = vpop.f32.mrf.mxu0
        %v2448 = vadd.f32 %v2383, %v2447
        %2449 = vmatmul.f32.gmra.mxu0 %v2097
        %v2450 = vpop.f32.mrf.mxu0
        %v2451 = vadd.f32 %v2386, %v2450
        %2452 = vmatmul.f32.gmra.mxu0 %v2099
        %v2453 = vpop.f32.mrf.mxu0
        %v2454 = vadd.f32 %v2389, %v2453
        %2455 = vdwg.mxu0
        %v2456 = vld [vmem:[#allocation2 + $0x20] sm:$0xff]
        %v2457 = vld [vmem:[#allocation2 + $0x28] sm:$0xff]
        %v2458 = vld [vmem:[#allocation2 + $0x60] sm:$0xff]
        %v2459 = vld [vmem:[#allocation2 + $0x68] sm:$0xff]
        %v2460 = vld [vmem:[#allocation2 + $0xa0] sm:$0xff]
        %v2461 = vld [vmem:[#allocation2 + $0xa8] sm:$0xff]
        %v2462 = vld [vmem:[#allocation2 + $0xe0] sm:$0xff]
        %v2463 = vld [vmem:[#allocation2 + $0xe8] sm:$0xff]
        %v2464 = vld [vmem:[#allocation2 + $0x120] sm:$0xff]
        %v2465 = vld [vmem:[#allocation2 + $0x128] sm:$0xff]
        %v2466 = vld [vmem:[#allocation2 + $0x160] sm:$0xff]
        %v2467 = vld [vmem:[#allocation2 + $0x168] sm:$0xff]
        %v2468 = vld [vmem:[#allocation2 + $0x1a0] sm:$0xff]
        %v2469 = vld [vmem:[#allocation2 + $0x1a8] sm:$0xff]
        %v2470 = vld [vmem:[#allocation2 + $0x1e0] sm:$0xff]
        %v2471 = vld [vmem:[#allocation2 + $0x1e8] sm:$0xff]
        %v2472 = vld [vmem:[#allocation2 + $0x220] sm:$0xff]
        %v2473 = vld [vmem:[#allocation2 + $0x228] sm:$0xff]
        %v2474 = vld [vmem:[#allocation2 + $0x260] sm:$0xff]
        %v2475 = vld [vmem:[#allocation2 + $0x268] sm:$0xff]
        %v2476 = vld [vmem:[#allocation2 + $0x2a0] sm:$0xff]
        %v2477 = vld [vmem:[#allocation2 + $0x2a8] sm:$0xff]
        %v2478 = vld [vmem:[#allocation2 + $0x2e0] sm:$0xff]
        %v2479 = vld [vmem:[#allocation2 + $0x2e8] sm:$0xff]
        %v2480 = vld [vmem:[#allocation2 + $0x320] sm:$0xff]
        %v2481 = vld [vmem:[#allocation2 + $0x328] sm:$0xff]
        %v2482 = vld [vmem:[#allocation2 + $0x360] sm:$0xff]
        %v2483 = vld [vmem:[#allocation2 + $0x368] sm:$0xff]
        %v2484 = vld [vmem:[#allocation2 + $0x3a0] sm:$0xff]
        %v2485 = vld [vmem:[#allocation2 + $0x3a8] sm:$0xff]
        %v2486 = vld [vmem:[#allocation2 + $0x3e0] sm:$0xff]
        %v2487 = vld [vmem:[#allocation2 + $0x3e8] sm:$0xff]
        %v2488 = vld [vmem:[%s3 + $0x200] sm:$0xff]
        %v2489 = vld [vmem:[%s3 + $0x208] sm:$0xff]
        %v2490 = vld [vmem:[%s3 + $0x210] sm:$0xff]
        %v2491 = vld [vmem:[%s3 + $0x218] sm:$0xff]
        %v2492 = vld [vmem:[%s3 + $0x220] sm:$0xff]
        %v2493 = vld [vmem:[%s3 + $0x228] sm:$0xff]
        %v2494 = vld [vmem:[%s3 + $0x230] sm:$0xff]
        %v2495 = vld [vmem:[%s3 + $0x238] sm:$0xff]
        %v2496 = vld [vmem:[%s3 + $0x240] sm:$0xff]
        %v2497 = vld [vmem:[%s3 + $0x248] sm:$0xff]
        %v2498 = vld [vmem:[%s3 + $0x250] sm:$0xff]
        %v2499 = vld [vmem:[%s3 + $0x258] sm:$0xff]
        %v2500 = vld [vmem:[%s3 + $0x260] sm:$0xff]
        %v2501 = vld [vmem:[%s3 + $0x268] sm:$0xff]
        %v2502 = vld [vmem:[%s3 + $0x270] sm:$0xff]
        %v2503 = vld [vmem:[%s3 + $0x278] sm:$0xff]
        %v2504 = vld [vmem:[%s3 + $0x280] sm:$0xff]
        %v2505 = vld [vmem:[%s3 + $0x288] sm:$0xff]
        %v2506 = vld [vmem:[%s3 + $0x290] sm:$0xff]
        %v2507 = vld [vmem:[%s3 + $0x298] sm:$0xff]
        %v2508 = vld [vmem:[%s3 + $0x2a0] sm:$0xff]
        %v2509 = vld [vmem:[%s3 + $0x2a8] sm:$0xff]
        %v2510 = vld [vmem:[%s3 + $0x2b0] sm:$0xff]
        %v2511 = vld [vmem:[%s3 + $0x2b8] sm:$0xff]
        %v2512 = vld [vmem:[%s3 + $0x2c0] sm:$0xff]
        %v2513 = vld [vmem:[%s3 + $0x2c8] sm:$0xff]
        %v2514 = vld [vmem:[%s3 + $0x2d0] sm:$0xff]
        %v2515 = vld [vmem:[%s3 + $0x2d8] sm:$0xff]
        %v2516 = vld [vmem:[%s3 + $0x2e0] sm:$0xff]
        %v2517 = vld [vmem:[%s3 + $0x2e8] sm:$0xff]
        %v2518 = vld [vmem:[%s3 + $0x2f0] sm:$0xff]
        %v2519 = vld [vmem:[%s3 + $0x2f8] sm:$0xff]
        %2520 = vmatpush.msra.mxu0 %v2503
        %2521 = vmatpush.msra.mxu0 %v2502
        %2522 = vmatpush.msra.mxu0 %v2501
        %2523 = vmatpush.msra.mxu0 %v2500
        %2524 = vmatpush.msra.mxu0 %v2499
        %2525 = vmatpush.msra.mxu0 %v2498
        %2526 = vmatpush.msra.mxu0 %v2497
        %2527 = vmatpush.msra.mxu0 %v2496
        %2528 = vmatpush.msra.mxu0 %v2495
        %2529 = vmatpush.msra.mxu0 %v2494
        %2530 = vmatpush.msra.mxu0 %v2493
        %2531 = vmatpush.msra.mxu0 %v2492
        %2532 = vmatpush.msra.mxu0 %v2491
        %2533 = vmatpush.msra.mxu0 %v2490
        %2534 = vmatpush.msra.mxu0 %v2489
        %2535 = vmatpush.msra.mxu0 %v2488
        %2536 = vmatmul.f32.gmra.mxu0 %v2456
        %v2537 = vpop.f32.mrf.mxu0
        %v2538 = vadd.f32 0.0, %v2537
        %2539 = vmatmul.f32.gmra.mxu0 %v2458
        %v2540 = vpop.f32.mrf.mxu0
        %v2541 = vadd.f32 0.0, %v2540
        %2542 = vmatmul.f32.gmra.mxu0 %v2460
        %v2543 = vpop.f32.mrf.mxu0
        %v2544 = vadd.f32 0.0, %v2543
        %2545 = vmatmul.f32.gmra.mxu0 %v2462
        %v2546 = vpop.f32.mrf.mxu0
        %v2547 = vadd.f32 0.0, %v2546
        %2548 = vmatmul.f32.gmra.mxu0 %v2464
        %v2549 = vpop.f32.mrf.mxu0
        %v2550 = vadd.f32 0.0, %v2549
        %2551 = vmatmul.f32.gmra.mxu0 %v2466
        %v2552 = vpop.f32.mrf.mxu0
        %v2553 = vadd.f32 0.0, %v2552
        %2554 = vmatmul.f32.gmra.mxu0 %v2468
        %v2555 = vpop.f32.mrf.mxu0
        %v2556 = vadd.f32 0.0, %v2555
        %2557 = vmatmul.f32.gmra.mxu0 %v2470
        %v2558 = vpop.f32.mrf.mxu0
        %v2559 = vadd.f32 0.0, %v2558
        %2560 = vmatmul.f32.gmra.mxu0 %v2472
        %v2561 = vpop.f32.mrf.mxu0
        %v2562 = vadd.f32 0.0, %v2561
        %2563 = vmatmul.f32.gmra.mxu0 %v2474
        %v2564 = vpop.f32.mrf.mxu0
        %v2565 = vadd.f32 0.0, %v2564
        %2566 = vmatmul.f32.gmra.mxu0 %v2476
        %v2567 = vpop.f32.mrf.mxu0
        %v2568 = vadd.f32 0.0, %v2567
        %2569 = vmatmul.f32.gmra.mxu0 %v2478
        %v2570 = vpop.f32.mrf.mxu0
        %v2571 = vadd.f32 0.0, %v2570
        %2572 = vmatmul.f32.gmra.mxu0 %v2480
        %v2573 = vpop.f32.mrf.mxu0
        %v2574 = vadd.f32 0.0, %v2573
        %2575 = vmatmul.f32.gmra.mxu0 %v2482
        %v2576 = vpop.f32.mrf.mxu0
        %v2577 = vadd.f32 0.0, %v2576
        %2578 = vmatmul.f32.gmra.mxu0 %v2484
        %v2579 = vpop.f32.mrf.mxu0
        %v2580 = vadd.f32 0.0, %v2579
        %2581 = vmatmul.f32.gmra.mxu0 %v2486
        %v2582 = vpop.f32.mrf.mxu0
        %v2583 = vadd.f32 0.0, %v2582
        %2584 = vdwg.mxu0
        %2585 = vmatpush.msra.mxu0 %v2519
        %2586 = vmatpush.msra.mxu0 %v2518
        %2587 = vmatpush.msra.mxu0 %v2517
        %2588 = vmatpush.msra.mxu0 %v2516
        %2589 = vmatpush.msra.mxu0 %v2515
        %2590 = vmatpush.msra.mxu0 %v2514
        %2591 = vmatpush.msra.mxu0 %v2513
        %2592 = vmatpush.msra.mxu0 %v2512
        %2593 = vmatpush.msra.mxu0 %v2511
        %2594 = vmatpush.msra.mxu0 %v2510
        %2595 = vmatpush.msra.mxu0 %v2509
        %2596 = vmatpush.msra.mxu0 %v2508
        %2597 = vmatpush.msra.mxu0 %v2507
        %2598 = vmatpush.msra.mxu0 %v2506
        %2599 = vmatpush.msra.mxu0 %v2505
        %2600 = vmatpush.msra.mxu0 %v2504
        %2601 = vmatmul.f32.gmra.mxu0 %v2457
        %v2602 = vpop.f32.mrf.mxu0
        %v2603 = vadd.f32 %v2538, %v2602
        %2604 = vmatmul.f32.gmra.mxu0 %v2459
        %v2605 = vpop.f32.mrf.mxu0
        %v2606 = vadd.f32 %v2541, %v2605
        %2607 = vmatmul.f32.gmra.mxu0 %v2461
        %v2608 = vpop.f32.mrf.mxu0
        %v2609 = vadd.f32 %v2544, %v2608
        %2610 = vmatmul.f32.gmra.mxu0 %v2463
        %v2611 = vpop.f32.mrf.mxu0
        %v2612 = vadd.f32 %v2547, %v2611
        %2613 = vmatmul.f32.gmra.mxu0 %v2465
        %v2614 = vpop.f32.mrf.mxu0
        %v2615 = vadd.f32 %v2550, %v2614
        %2616 = vmatmul.f32.gmra.mxu0 %v2467
        %v2617 = vpop.f32.mrf.mxu0
        %v2618 = vadd.f32 %v2553, %v2617
        %2619 = vmatmul.f32.gmra.mxu0 %v2469
        %v2620 = vpop.f32.mrf.mxu0
        %v2621 = vadd.f32 %v2556, %v2620
        %2622 = vmatmul.f32.gmra.mxu0 %v2471
        %v2623 = vpop.f32.mrf.mxu0
        %v2624 = vadd.f32 %v2559, %v2623
        %2625 = vmatmul.f32.gmra.mxu0 %v2473
        %v2626 = vpop.f32.mrf.mxu0
        %v2627 = vadd.f32 %v2562, %v2626
        %2628 = vmatmul.f32.gmra.mxu0 %v2475
        %v2629 = vpop.f32.mrf.mxu0
        %v2630 = vadd.f32 %v2565, %v2629
        %2631 = vmatmul.f32.gmra.mxu0 %v2477
        %v2632 = vpop.f32.mrf.mxu0
        %v2633 = vadd.f32 %v2568, %v2632
        %2634 = vmatmul.f32.gmra.mxu0 %v2479
        %v2635 = vpop.f32.mrf.mxu0
        %v2636 = vadd.f32 %v2571, %v2635
        %2637 = vmatmul.f32.gmra.mxu0 %v2481
        %v2638 = vpop.f32.mrf.mxu0
        %v2639 = vadd.f32 %v2574, %v2638
        %2640 = vmatmul.f32.gmra.mxu0 %v2483
        %v2641 = vpop.f32.mrf.mxu0
        %v2642 = vadd.f32 %v2577, %v2641
        %2643 = vmatmul.f32.gmra.mxu0 %v2485
        %v2644 = vpop.f32.mrf.mxu0
        %v2645 = vadd.f32 %v2580, %v2644
        %2646 = vmatmul.f32.gmra.mxu0 %v2487
        %v2647 = vpop.f32.mrf.mxu0
        %v2648 = vadd.f32 %v2583, %v2647
        %2649 = vdwg.mxu0
        %v2650 = vadd.f32 %v2409, %v2603
        %v2651 = vadd.f32 %v2412, %v2606
        %v2652 = vadd.f32 %v2415, %v2609
        %v2653 = vadd.f32 %v2418, %v2612
        %v2654 = vadd.f32 %v2421, %v2615
        %v2655 = vadd.f32 %v2424, %v2618
        %v2656 = vadd.f32 %v2427, %v2621
        %v2657 = vadd.f32 %v2430, %v2624
        %v2658 = vadd.f32 %v2433, %v2627
        %v2659 = vadd.f32 %v2436, %v2630
        %v2660 = vadd.f32 %v2439, %v2633
        %v2661 = vadd.f32 %v2442, %v2636
        %v2662 = vadd.f32 %v2445, %v2639
        %v2663 = vadd.f32 %v2448, %v2642
        %v2664 = vadd.f32 %v2451, %v2645
        %v2665 = vadd.f32 %v2454, %v2648
        %v2666 = vld [vmem:[#allocation2 + $0x30] sm:$0xff]
        %v2667 = vld [vmem:[#allocation2 + $0x38] sm:$0xff]
        %v2668 = vld [vmem:[#allocation2 + $0x70] sm:$0xff]
        %v2669 = vld [vmem:[#allocation2 + $0x78] sm:$0xff]
        %v2670 = vld [vmem:[#allocation2 + $0xb0] sm:$0xff]
        %v2671 = vld [vmem:[#allocation2 + $0xb8] sm:$0xff]
        %v2672 = vld [vmem:[#allocation2 + $0xf0] sm:$0xff]
        %v2673 = vld [vmem:[#allocation2 + $0xf8] sm:$0xff]
        %v2674 = vld [vmem:[#allocation2 + $0x130] sm:$0xff]
        %v2675 = vld [vmem:[#allocation2 + $0x138] sm:$0xff]
        %v2676 = vld [vmem:[#allocation2 + $0x170] sm:$0xff]
        %v2677 = vld [vmem:[#allocation2 + $0x178] sm:$0xff]
        %v2678 = vld [vmem:[#allocation2 + $0x1b0] sm:$0xff]
        %v2679 = vld [vmem:[#allocation2 + $0x1b8] sm:$0xff]
        %v2680 = vld [vmem:[#allocation2 + $0x1f0] sm:$0xff]
        %v2681 = vld [vmem:[#allocation2 + $0x1f8] sm:$0xff]
        %v2682 = vld [vmem:[#allocation2 + $0x230] sm:$0xff]
        %v2683 = vld [vmem:[#allocation2 + $0x238] sm:$0xff]
        %v2684 = vld [vmem:[#allocation2 + $0x270] sm:$0xff]
        %v2685 = vld [vmem:[#allocation2 + $0x278] sm:$0xff]
        %v2686 = vld [vmem:[#allocation2 + $0x2b0] sm:$0xff]
        %v2687 = vld [vmem:[#allocation2 + $0x2b8] sm:$0xff]
        %v2688 = vld [vmem:[#allocation2 + $0x2f0] sm:$0xff]
        %v2689 = vld [vmem:[#allocation2 + $0x2f8] sm:$0xff]
        %v2690 = vld [vmem:[#allocation2 + $0x330] sm:$0xff]
        %v2691 = vld [vmem:[#allocation2 + $0x338] sm:$0xff]
        %v2692 = vld [vmem:[#allocation2 + $0x370] sm:$0xff]
        %v2693 = vld [vmem:[#allocation2 + $0x378] sm:$0xff]
        %v2694 = vld [vmem:[#allocation2 + $0x3b0] sm:$0xff]
        %v2695 = vld [vmem:[#allocation2 + $0x3b8] sm:$0xff]
        %v2696 = vld [vmem:[#allocation2 + $0x3f0] sm:$0xff]
        %v2697 = vld [vmem:[#allocation2 + $0x3f8] sm:$0xff]
        %v2698 = vld [vmem:[%s3 + $0x300] sm:$0xff]
        %v2699 = vld [vmem:[%s3 + $0x308] sm:$0xff]
        %v2700 = vld [vmem:[%s3 + $0x310] sm:$0xff]
        %v2701 = vld [vmem:[%s3 + $0x318] sm:$0xff]
        %v2702 = vld [vmem:[%s3 + $0x320] sm:$0xff]
        %v2703 = vld [vmem:[%s3 + $0x328] sm:$0xff]
        %v2704 = vld [vmem:[%s3 + $0x330] sm:$0xff]
        %v2705 = vld [vmem:[%s3 + $0x338] sm:$0xff]
        %v2706 = vld [vmem:[%s3 + $0x340] sm:$0xff]
        %v2707 = vld [vmem:[%s3 + $0x348] sm:$0xff]
        %v2708 = vld [vmem:[%s3 + $0x350] sm:$0xff]
        %v2709 = vld [vmem:[%s3 + $0x358] sm:$0xff]
        %v2710 = vld [vmem:[%s3 + $0x360] sm:$0xff]
        %v2711 = vld [vmem:[%s3 + $0x368] sm:$0xff]
        %v2712 = vld [vmem:[%s3 + $0x370] sm:$0xff]
        %v2713 = vld [vmem:[%s3 + $0x378] sm:$0xff]
        %v2714 = vld [vmem:[%s3 + $0x380] sm:$0xff]
        %v2715 = vld [vmem:[%s3 + $0x388] sm:$0xff]
        %v2716 = vld [vmem:[%s3 + $0x390] sm:$0xff]
        %v2717 = vld [vmem:[%s3 + $0x398] sm:$0xff]
        %v2718 = vld [vmem:[%s3 + $0x3a0] sm:$0xff]
        %v2719 = vld [vmem:[%s3 + $0x3a8] sm:$0xff]
        %v2720 = vld [vmem:[%s3 + $0x3b0] sm:$0xff]
        %v2721 = vld [vmem:[%s3 + $0x3b8] sm:$0xff]
        %v2722 = vld [vmem:[%s3 + $0x3c0] sm:$0xff]
        %v2723 = vld [vmem:[%s3 + $0x3c8] sm:$0xff]
        %v2724 = vld [vmem:[%s3 + $0x3d0] sm:$0xff]
        %v2725 = vld [vmem:[%s3 + $0x3d8] sm:$0xff]
        %v2726 = vld [vmem:[%s3 + $0x3e0] sm:$0xff]
        %v2727 = vld [vmem:[%s3 + $0x3e8] sm:$0xff]
        %v2728 = vld [vmem:[%s3 + $0x3f0] sm:$0xff]
        %v2729 = vld [vmem:[%s3 + $0x3f8] sm:$0xff]
        %2730 = vmatpush.msra.mxu0 %v2713
        %2731 = vmatpush.msra.mxu0 %v2712
        %2732 = vmatpush.msra.mxu0 %v2711
        %2733 = vmatpush.msra.mxu0 %v2710
        %2734 = vmatpush.msra.mxu0 %v2709
        %2735 = vmatpush.msra.mxu0 %v2708
        %2736 = vmatpush.msra.mxu0 %v2707
        %2737 = vmatpush.msra.mxu0 %v2706
        %2738 = vmatpush.msra.mxu0 %v2705
        %2739 = vmatpush.msra.mxu0 %v2704
        %2740 = vmatpush.msra.mxu0 %v2703
        %2741 = vmatpush.msra.mxu0 %v2702
        %2742 = vmatpush.msra.mxu0 %v2701
        %2743 = vmatpush.msra.mxu0 %v2700
        %2744 = vmatpush.msra.mxu0 %v2699
        %2745 = vmatpush.msra.mxu0 %v2698
        %2746 = vmatmul.f32.gmra.mxu0 %v2666
        %v2747 = vpop.f32.mrf.mxu0
        %v2748 = vadd.f32 0.0, %v2747
        %2749 = vmatmul.f32.gmra.mxu0 %v2668
        %v2750 = vpop.f32.mrf.mxu0
        %v2751 = vadd.f32 0.0, %v2750
        %2752 = vmatmul.f32.gmra.mxu0 %v2670
        %v2753 = vpop.f32.mrf.mxu0
        %v2754 = vadd.f32 0.0, %v2753
        %2755 = vmatmul.f32.gmra.mxu0 %v2672
        %v2756 = vpop.f32.mrf.mxu0
        %v2757 = vadd.f32 0.0, %v2756
        %2758 = vmatmul.f32.gmra.mxu0 %v2674
        %v2759 = vpop.f32.mrf.mxu0
        %v2760 = vadd.f32 0.0, %v2759
        %2761 = vmatmul.f32.gmra.mxu0 %v2676
        %v2762 = vpop.f32.mrf.mxu0
        %v2763 = vadd.f32 0.0, %v2762
        %2764 = vmatmul.f32.gmra.mxu0 %v2678
        %v2765 = vpop.f32.mrf.mxu0
        %v2766 = vadd.f32 0.0, %v2765
        %2767 = vmatmul.f32.gmra.mxu0 %v2680
        %v2768 = vpop.f32.mrf.mxu0
        %v2769 = vadd.f32 0.0, %v2768
        %2770 = vmatmul.f32.gmra.mxu0 %v2682
        %v2771 = vpop.f32.mrf.mxu0
        %v2772 = vadd.f32 0.0, %v2771
        %2773 = vmatmul.f32.gmra.mxu0 %v2684
        %v2774 = vpop.f32.mrf.mxu0
        %v2775 = vadd.f32 0.0, %v2774
        %2776 = vmatmul.f32.gmra.mxu0 %v2686
        %v2777 = vpop.f32.mrf.mxu0
        %v2778 = vadd.f32 0.0, %v2777
        %2779 = vmatmul.f32.gmra.mxu0 %v2688
        %v2780 = vpop.f32.mrf.mxu0
        %v2781 = vadd.f32 0.0, %v2780
        %2782 = vmatmul.f32.gmra.mxu0 %v2690
        %v2783 = vpop.f32.mrf.mxu0
        %v2784 = vadd.f32 0.0, %v2783
        %2785 = vmatmul.f32.gmra.mxu0 %v2692
        %v2786 = vpop.f32.mrf.mxu0
        %v2787 = vadd.f32 0.0, %v2786
        %2788 = vmatmul.f32.gmra.mxu0 %v2694
        %v2789 = vpop.f32.mrf.mxu0
        %v2790 = vadd.f32 0.0, %v2789
        %2791 = vmatmul.f32.gmra.mxu0 %v2696
        %v2792 = vpop.f32.mrf.mxu0
        %v2793 = vadd.f32 0.0, %v2792
        %2794 = vdwg.mxu0
        %2795 = vmatpush.msra.mxu0 %v2729
        %2796 = vmatpush.msra.mxu0 %v2728
        %2797 = vmatpush.msra.mxu0 %v2727
        %2798 = vmatpush.msra.mxu0 %v2726
        %2799 = vmatpush.msra.mxu0 %v2725
        %2800 = vmatpush.msra.mxu0 %v2724
        %2801 = vmatpush.msra.mxu0 %v2723
        %2802 = vmatpush.msra.mxu0 %v2722
        %2803 = vmatpush.msra.mxu0 %v2721
        %2804 = vmatpush.msra.mxu0 %v2720
        %2805 = vmatpush.msra.mxu0 %v2719
        %2806 = vmatpush.msra.mxu0 %v2718
        %2807 = vmatpush.msra.mxu0 %v2717
        %2808 = vmatpush.msra.mxu0 %v2716
        %2809 = vmatpush.msra.mxu0 %v2715
        %2810 = vmatpush.msra.mxu0 %v2714
        %2811 = vmatmul.f32.gmra.mxu0 %v2667
        %v2812 = vpop.f32.mrf.mxu0
        %v2813 = vadd.f32 %v2748, %v2812
        %2814 = vmatmul.f32.gmra.mxu0 %v2669
        %v2815 = vpop.f32.mrf.mxu0
        %v2816 = vadd.f32 %v2751, %v2815
        %2817 = vmatmul.f32.gmra.mxu0 %v2671
        %v2818 = vpop.f32.mrf.mxu0
        %v2819 = vadd.f32 %v2754, %v2818
        %2820 = vmatmul.f32.gmra.mxu0 %v2673
        %v2821 = vpop.f32.mrf.mxu0
        %v2822 = vadd.f32 %v2757, %v2821
        %2823 = vmatmul.f32.gmra.mxu0 %v2675
        %v2824 = vpop.f32.mrf.mxu0
        %v2825 = vadd.f32 %v2760, %v2824
        %2826 = vmatmul.f32.gmra.mxu0 %v2677
        %v2827 = vpop.f32.mrf.mxu0
        %v2828 = vadd.f32 %v2763, %v2827
        %2829 = vmatmul.f32.gmra.mxu0 %v2679
        %v2830 = vpop.f32.mrf.mxu0
        %v2831 = vadd.f32 %v2766, %v2830
        %2832 = vmatmul.f32.gmra.mxu0 %v2681
        %v2833 = vpop.f32.mrf.mxu0
        %v2834 = vadd.f32 %v2769, %v2833
        %2835 = vmatmul.f32.gmra.mxu0 %v2683
        %v2836 = vpop.f32.mrf.mxu0
        %v2837 = vadd.f32 %v2772, %v2836
        %2838 = vmatmul.f32.gmra.mxu0 %v2685
        %v2839 = vpop.f32.mrf.mxu0
        %v2840 = vadd.f32 %v2775, %v2839
        %2841 = vmatmul.f32.gmra.mxu0 %v2687
        %v2842 = vpop.f32.mrf.mxu0
        %v2843 = vadd.f32 %v2778, %v2842
        %2844 = vmatmul.f32.gmra.mxu0 %v2689
        %v2845 = vpop.f32.mrf.mxu0
        %v2846 = vadd.f32 %v2781, %v2845
        %2847 = vmatmul.f32.gmra.mxu0 %v2691
        %v2848 = vpop.f32.mrf.mxu0
        %v2849 = vadd.f32 %v2784, %v2848
        %2850 = vmatmul.f32.gmra.mxu0 %v2693
        %v2851 = vpop.f32.mrf.mxu0
        %v2852 = vadd.f32 %v2787, %v2851
        %2853 = vmatmul.f32.gmra.mxu0 %v2695
        %v2854 = vpop.f32.mrf.mxu0
        %v2855 = vadd.f32 %v2790, %v2854
        %2856 = vmatmul.f32.gmra.mxu0 %v2697
        %v2857 = vpop.f32.mrf.mxu0
        %v2858 = vadd.f32 %v2793, %v2857
        %2859 = vdwg.mxu0
        %v2860 = vadd.f32 %v2650, %v2813
        %v2861 = vadd.f32 %v2651, %v2816
        %v2862 = vadd.f32 %v2652, %v2819
        %v2863 = vadd.f32 %v2653, %v2822
        %v2864 = vadd.f32 %v2654, %v2825
        %v2865 = vadd.f32 %v2655, %v2828
        %v2866 = vadd.f32 %v2656, %v2831
        %v2867 = vadd.f32 %v2657, %v2834
        %v2868 = vadd.f32 %v2658, %v2837
        %v2869 = vadd.f32 %v2659, %v2840
        %v2870 = vadd.f32 %v2660, %v2843
        %v2871 = vadd.f32 %v2661, %v2846
        %v2872 = vadd.f32 %v2662, %v2849
        %v2873 = vadd.f32 %v2663, %v2852
        %v2874 = vadd.f32 %v2664, %v2855
        %v2875 = vadd.f32 %v2665, %v2858
        %v2876 = vld [vmem:[%s5] sm:$0xff]
        %v2877 = vld [vmem:[%s5 + $0x8] sm:$0xff]
        %v2878 = vld [vmem:[%s5 + $0x10] sm:$0xff]
        %v2879 = vld [vmem:[%s5 + $0x18] sm:$0xff]
        %v2880 = vld [vmem:[%s5 + $0x20] sm:$0xff]
        %v2881 = vld [vmem:[%s5 + $0x28] sm:$0xff]
        %v2882 = vld [vmem:[%s5 + $0x30] sm:$0xff]
        %v2883 = vld [vmem:[%s5 + $0x38] sm:$0xff]
        %v2884 = vld [vmem:[%s5 + $0x40] sm:$0xff]
        %v2885 = vld [vmem:[%s5 + $0x48] sm:$0xff]
        %v2886 = vld [vmem:[%s5 + $0x50] sm:$0xff]
        %v2887 = vld [vmem:[%s5 + $0x58] sm:$0xff]
        %v2888 = vld [vmem:[%s5 + $0x60] sm:$0xff]
        %v2889 = vld [vmem:[%s5 + $0x68] sm:$0xff]
        %v2890 = vld [vmem:[%s5 + $0x70] sm:$0xff]
        %v2891 = vld [vmem:[%s5 + $0x78] sm:$0xff]
        %s2892 = scalar_lea.vmem %s3, 1024
        %v2893 = vld [vmem:[%s2892] sm:$0xff]
        %v2894 = vld [vmem:[%s2892 + $0x8] sm:$0xff]
        %v2895 = vld [vmem:[%s2892 + $0x10] sm:$0xff]
        %v2896 = vld [vmem:[%s2892 + $0x18] sm:$0xff]
        %v2897 = vld [vmem:[%s2892 + $0x20] sm:$0xff]
        %v2898 = vld [vmem:[%s2892 + $0x28] sm:$0xff]
        %v2899 = vld [vmem:[%s2892 + $0x30] sm:$0xff]
        %v2900 = vld [vmem:[%s2892 + $0x38] sm:$0xff]
        %v2901 = vld [vmem:[%s2892 + $0x40] sm:$0xff]
        %v2902 = vld [vmem:[%s2892 + $0x48] sm:$0xff]
        %v2903 = vld [vmem:[%s2892 + $0x50] sm:$0xff]
        %v2904 = vld [vmem:[%s2892 + $0x58] sm:$0xff]
        %v2905 = vld [vmem:[%s2892 + $0x60] sm:$0xff]
        %v2906 = vld [vmem:[%s2892 + $0x68] sm:$0xff]
        %v2907 = vld [vmem:[%s2892 + $0x70] sm:$0xff]
        %v2908 = vld [vmem:[%s2892 + $0x78] sm:$0xff]
        %v2909 = vld [vmem:[%s2892 + $0x80] sm:$0xff]
        %v2910 = vld [vmem:[%s2892 + $0x88] sm:$0xff]
        %v2911 = vld [vmem:[%s2892 + $0x90] sm:$0xff]
        %v2912 = vld [vmem:[%s2892 + $0x98] sm:$0xff]
        %v2913 = vld [vmem:[%s2892 + $0xa0] sm:$0xff]
        %v2914 = vld [vmem:[%s2892 + $0xa8] sm:$0xff]
        %v2915 = vld [vmem:[%s2892 + $0xb0] sm:$0xff]
        %v2916 = vld [vmem:[%s2892 + $0xb8] sm:$0xff]
        %v2917 = vld [vmem:[%s2892 + $0xc0] sm:$0xff]
        %v2918 = vld [vmem:[%s2892 + $0xc8] sm:$0xff]
        %v2919 = vld [vmem:[%s2892 + $0xd0] sm:$0xff]
        %v2920 = vld [vmem:[%s2892 + $0xd8] sm:$0xff]
        %v2921 = vld [vmem:[%s2892 + $0xe0] sm:$0xff]
        %v2922 = vld [vmem:[%s2892 + $0xe8] sm:$0xff]
        %v2923 = vld [vmem:[%s2892 + $0xf0] sm:$0xff]
        %v2924 = vld [vmem:[%s2892 + $0xf8] sm:$0xff]
        %v2925 = vld [vmem:[%s2892 + $0x100] sm:$0xff]
        %v2926 = vld [vmem:[%s2892 + $0x108] sm:$0xff]
        %v2927 = vld [vmem:[%s2892 + $0x110] sm:$0xff]
        %v2928 = vld [vmem:[%s2892 + $0x118] sm:$0xff]
        %v2929 = vld [vmem:[%s2892 + $0x120] sm:$0xff]
        %v2930 = vld [vmem:[%s2892 + $0x128] sm:$0xff]
        %v2931 = vld [vmem:[%s2892 + $0x130] sm:$0xff]
        %v2932 = vld [vmem:[%s2892 + $0x138] sm:$0xff]
        %v2933 = vld [vmem:[%s2892 + $0x140] sm:$0xff]
        %v2934 = vld [vmem:[%s2892 + $0x148] sm:$0xff]
        %v2935 = vld [vmem:[%s2892 + $0x150] sm:$0xff]
        %v2936 = vld [vmem:[%s2892 + $0x158] sm:$0xff]
        %v2937 = vld [vmem:[%s2892 + $0x160] sm:$0xff]
        %v2938 = vld [vmem:[%s2892 + $0x168] sm:$0xff]
        %v2939 = vld [vmem:[%s2892 + $0x170] sm:$0xff]
        %v2940 = vld [vmem:[%s2892 + $0x178] sm:$0xff]
        %v2941 = vld [vmem:[%s2892 + $0x180] sm:$0xff]
        %v2942 = vld [vmem:[%s2892 + $0x188] sm:$0xff]
        %v2943 = vld [vmem:[%s2892 + $0x190] sm:$0xff]
        %v2944 = vld [vmem:[%s2892 + $0x198] sm:$0xff]
        %v2945 = vld [vmem:[%s2892 + $0x1a0] sm:$0xff]
        %v2946 = vld [vmem:[%s2892 + $0x1a8] sm:$0xff]
        %v2947 = vld [vmem:[%s2892 + $0x1b0] sm:$0xff]
        %v2948 = vld [vmem:[%s2892 + $0x1b8] sm:$0xff]
        %v2949 = vld [vmem:[%s2892 + $0x1c0] sm:$0xff]
        %v2950 = vld [vmem:[%s2892 + $0x1c8] sm:$0xff]
        %v2951 = vld [vmem:[%s2892 + $0x1d0] sm:$0xff]
        %v2952 = vld [vmem:[%s2892 + $0x1d8] sm:$0xff]
        %v2953 = vld [vmem:[%s2892 + $0x1e0] sm:$0xff]
        %v2954 = vld [vmem:[%s2892 + $0x1e8] sm:$0xff]
        %v2955 = vld [vmem:[%s2892 + $0x1f0] sm:$0xff]
        %v2956 = vld [vmem:[%s2892 + $0x1f8] sm:$0xff]
        %2957 = vmatpush.msra.mxu0 %v2940
        %2958 = vmatpush.msra.mxu0 %v2939
        %2959 = vmatpush.msra.mxu0 %v2938
        %2960 = vmatpush.msra.mxu0 %v2937
        %2961 = vmatpush.msra.mxu0 %v2936
        %2962 = vmatpush.msra.mxu0 %v2935
        %2963 = vmatpush.msra.mxu0 %v2934
        %2964 = vmatpush.msra.mxu0 %v2933
        %2965 = vmatpush.msra.mxu0 %v2932
        %2966 = vmatpush.msra.mxu0 %v2931
        %2967 = vmatpush.msra.mxu0 %v2930
        %2968 = vmatpush.msra.mxu0 %v2929
        %2969 = vmatpush.msra.mxu0 %v2928
        %2970 = vmatpush.msra.mxu0 %v2927
        %2971 = vmatpush.msra.mxu0 %v2926
        %2972 = vmatpush.msra.mxu0 %v2925
        %2973 = vmatmul.f32.gmra.mxu0 %v2132
        %v2974 = vpop.f32.mrf.mxu0
        %v2975 = vadd.f32 0.0, %v2974
        %2976 = vmatmul.f32.gmra.mxu0 %v2134
        %v2977 = vpop.f32.mrf.mxu0
        %v2978 = vadd.f32 0.0, %v2977
        %2979 = vmatmul.f32.gmra.mxu0 %v2136
        %v2980 = vpop.f32.mrf.mxu0
        %v2981 = vadd.f32 0.0, %v2980
        %2982 = vmatmul.f32.gmra.mxu0 %v2138
        %v2983 = vpop.f32.mrf.mxu0
        %v2984 = vadd.f32 0.0, %v2983
        %2985 = vmatmul.f32.gmra.mxu0 %v2140
        %v2986 = vpop.f32.mrf.mxu0
        %v2987 = vadd.f32 0.0, %v2986
        %2988 = vmatmul.f32.gmra.mxu0 %v2142
        %v2989 = vpop.f32.mrf.mxu0
        %v2990 = vadd.f32 0.0, %v2989
        %2991 = vmatmul.f32.gmra.mxu0 %v2144
        %v2992 = vpop.f32.mrf.mxu0
        %v2993 = vadd.f32 0.0, %v2992
        %2994 = vmatmul.f32.gmra.mxu0 %v2146
        %v2995 = vpop.f32.mrf.mxu0
        %v2996 = vadd.f32 0.0, %v2995
        %2997 = vmatmul.f32.gmra.mxu0 %v2148
        %v2998 = vpop.f32.mrf.mxu0
        %v2999 = vadd.f32 0.0, %v2998
        %3000 = vmatmul.f32.gmra.mxu0 %v2150
        %v3001 = vpop.f32.mrf.mxu0
        %v3002 = vadd.f32 0.0, %v3001
        %3003 = vmatmul.f32.gmra.mxu0 %v2152
        %v3004 = vpop.f32.mrf.mxu0
        %v3005 = vadd.f32 0.0, %v3004
        %3006 = vmatmul.f32.gmra.mxu0 %v2154
        %v3007 = vpop.f32.mrf.mxu0
        %v3008 = vadd.f32 0.0, %v3007
        %3009 = vmatmul.f32.gmra.mxu0 %v2156
        %v3010 = vpop.f32.mrf.mxu0
        %v3011 = vadd.f32 0.0, %v3010
        %3012 = vmatmul.f32.gmra.mxu0 %v2158
        %v3013 = vpop.f32.mrf.mxu0
        %v3014 = vadd.f32 0.0, %v3013
        %3015 = vmatmul.f32.gmra.mxu0 %v2160
        %v3016 = vpop.f32.mrf.mxu0
        %v3017 = vadd.f32 0.0, %v3016
        %3018 = vmatmul.f32.gmra.mxu0 %v2162
        %v3019 = vpop.f32.mrf.mxu0
        %v3020 = vadd.f32 0.0, %v3019
        %3021 = vdwg.mxu0
        %3022 = vmatpush.msra.mxu0 %v2956
        %3023 = vmatpush.msra.mxu0 %v2955
        %3024 = vmatpush.msra.mxu0 %v2954
        %3025 = vmatpush.msra.mxu0 %v2953
        %3026 = vmatpush.msra.mxu0 %v2952
        %3027 = vmatpush.msra.mxu0 %v2951
        %3028 = vmatpush.msra.mxu0 %v2950
        %3029 = vmatpush.msra.mxu0 %v2949
        %3030 = vmatpush.msra.mxu0 %v2948
        %3031 = vmatpush.msra.mxu0 %v2947
        %3032 = vmatpush.msra.mxu0 %v2946
        %3033 = vmatpush.msra.mxu0 %v2945
        %3034 = vmatpush.msra.mxu0 %v2944
        %3035 = vmatpush.msra.mxu0 %v2943
        %3036 = vmatpush.msra.mxu0 %v2942
        %3037 = vmatpush.msra.mxu0 %v2941
        %3038 = vmatmul.f32.gmra.mxu0 %v2133
        %v3039 = vpop.f32.mrf.mxu0
        %v3040 = vadd.f32 %v2975, %v3039
        %3041 = vmatmul.f32.gmra.mxu0 %v2135
        %v3042 = vpop.f32.mrf.mxu0
        %v3043 = vadd.f32 %v2978, %v3042
        %3044 = vmatmul.f32.gmra.mxu0 %v2137
        %v3045 = vpop.f32.mrf.mxu0
        %v3046 = vadd.f32 %v2981, %v3045
        %3047 = vmatmul.f32.gmra.mxu0 %v2139
        %v3048 = vpop.f32.mrf.mxu0
        %v3049 = vadd.f32 %v2984, %v3048
        %3050 = vmatmul.f32.gmra.mxu0 %v2141
        %v3051 = vpop.f32.mrf.mxu0
        %v3052 = vadd.f32 %v2987, %v3051
        %3053 = vmatmul.f32.gmra.mxu0 %v2143
        %v3054 = vpop.f32.mrf.mxu0
        %v3055 = vadd.f32 %v2990, %v3054
        %3056 = vmatmul.f32.gmra.mxu0 %v2145
        %v3057 = vpop.f32.mrf.mxu0
        %v3058 = vadd.f32 %v2993, %v3057
        %3059 = vmatmul.f32.gmra.mxu0 %v2147
        %v3060 = vpop.f32.mrf.mxu0
        %v3061 = vadd.f32 %v2996, %v3060
        %3062 = vmatmul.f32.gmra.mxu0 %v2149
        %v3063 = vpop.f32.mrf.mxu0
        %v3064 = vadd.f32 %v2999, %v3063
        %3065 = vmatmul.f32.gmra.mxu0 %v2151
        %v3066 = vpop.f32.mrf.mxu0
        %v3067 = vadd.f32 %v3002, %v3066
        %3068 = vmatmul.f32.gmra.mxu0 %v2153
        %v3069 = vpop.f32.mrf.mxu0
        %v3070 = vadd.f32 %v3005, %v3069
        %3071 = vmatmul.f32.gmra.mxu0 %v2155
        %v3072 = vpop.f32.mrf.mxu0
        %v3073 = vadd.f32 %v3008, %v3072
        %3074 = vmatmul.f32.gmra.mxu0 %v2157
        %v3075 = vpop.f32.mrf.mxu0
        %v3076 = vadd.f32 %v3011, %v3075
        %3077 = vmatmul.f32.gmra.mxu0 %v2159
        %v3078 = vpop.f32.mrf.mxu0
        %v3079 = vadd.f32 %v3014, %v3078
        %3080 = vmatmul.f32.gmra.mxu0 %v2161
        %v3081 = vpop.f32.mrf.mxu0
        %v3082 = vadd.f32 %v3017, %v3081
        %3083 = vmatmul.f32.gmra.mxu0 %v2163
        %v3084 = vpop.f32.mrf.mxu0
        %v3085 = vadd.f32 %v3020, %v3084
        %3086 = vdwg.mxu0
        %3087 = vmatpush.msra.mxu0 %v2908
        %3088 = vmatpush.msra.mxu0 %v2907
        %3089 = vmatpush.msra.mxu0 %v2906
        %3090 = vmatpush.msra.mxu0 %v2905
        %3091 = vmatpush.msra.mxu0 %v2904
        %3092 = vmatpush.msra.mxu0 %v2903
        %3093 = vmatpush.msra.mxu0 %v2902
        %3094 = vmatpush.msra.mxu0 %v2901
        %3095 = vmatpush.msra.mxu0 %v2900
        %3096 = vmatpush.msra.mxu0 %v2899
        %3097 = vmatpush.msra.mxu0 %v2898
        %3098 = vmatpush.msra.mxu0 %v2897
        %3099 = vmatpush.msra.mxu0 %v2896
        %3100 = vmatpush.msra.mxu0 %v2895
        %3101 = vmatpush.msra.mxu0 %v2894
        %3102 = vmatpush.msra.mxu0 %v2893
        %3103 = vmatmul.f32.gmra.mxu0 %v2068
        %v3104 = vpop.f32.mrf.mxu0
        %v3105 = vadd.f32 %v3040, %v3104
        %3106 = vmatmul.f32.gmra.mxu0 %v2070
        %v3107 = vpop.f32.mrf.mxu0
        %v3108 = vadd.f32 %v3043, %v3107
        %3109 = vmatmul.f32.gmra.mxu0 %v2072
        %v3110 = vpop.f32.mrf.mxu0
        %v3111 = vadd.f32 %v3046, %v3110
        %3112 = vmatmul.f32.gmra.mxu0 %v2074
        %v3113 = vpop.f32.mrf.mxu0
        %v3114 = vadd.f32 %v3049, %v3113
        %3115 = vmatmul.f32.gmra.mxu0 %v2076
        %v3116 = vpop.f32.mrf.mxu0
        %v3117 = vadd.f32 %v3052, %v3116
        %3118 = vmatmul.f32.gmra.mxu0 %v2078
        %v3119 = vpop.f32.mrf.mxu0
        %v3120 = vadd.f32 %v3055, %v3119
        %3121 = vmatmul.f32.gmra.mxu0 %v2080
        %v3122 = vpop.f32.mrf.mxu0
        %v3123 = vadd.f32 %v3058, %v3122
        %3124 = vmatmul.f32.gmra.mxu0 %v2082
        %v3125 = vpop.f32.mrf.mxu0
        %v3126 = vadd.f32 %v3061, %v3125
        %3127 = vmatmul.f32.gmra.mxu0 %v2084
        %v3128 = vpop.f32.mrf.mxu0
        %v3129 = vadd.f32 %v3064, %v3128
        %3130 = vmatmul.f32.gmra.mxu0 %v2086
        %v3131 = vpop.f32.mrf.mxu0
        %v3132 = vadd.f32 %v3067, %v3131
        %3133 = vmatmul.f32.gmra.mxu0 %v2088
        %v3134 = vpop.f32.mrf.mxu0
        %v3135 = vadd.f32 %v3070, %v3134
        %3136 = vmatmul.f32.gmra.mxu0 %v2090
        %v3137 = vpop.f32.mrf.mxu0
        %v3138 = vadd.f32 %v3073, %v3137
        %3139 = vmatmul.f32.gmra.mxu0 %v2092
        %v3140 = vpop.f32.mrf.mxu0
        %v3141 = vadd.f32 %v3076, %v3140
        %3142 = vmatmul.f32.gmra.mxu0 %v2094
        %v3143 = vpop.f32.mrf.mxu0
        %v3144 = vadd.f32 %v3079, %v3143
        %3145 = vmatmul.f32.gmra.mxu0 %v2096
        %v3146 = vpop.f32.mrf.mxu0
        %v3147 = vadd.f32 %v3082, %v3146
        %3148 = vmatmul.f32.gmra.mxu0 %v2098
        %v3149 = vpop.f32.mrf.mxu0
        %v3150 = vadd.f32 %v3085, %v3149
        %3151 = vdwg.mxu0
        %3152 = vmatpush.msra.mxu0 %v2924
        %3153 = vmatpush.msra.mxu0 %v2923
        %3154 = vmatpush.msra.mxu0 %v2922
        %3155 = vmatpush.msra.mxu0 %v2921
        %3156 = vmatpush.msra.mxu0 %v2920
        %3157 = vmatpush.msra.mxu0 %v2919
        %3158 = vmatpush.msra.mxu0 %v2918
        %3159 = vmatpush.msra.mxu0 %v2917
        %3160 = vmatpush.msra.mxu0 %v2916
        %3161 = vmatpush.msra.mxu0 %v2915
        %3162 = vmatpush.msra.mxu0 %v2914
        %3163 = vmatpush.msra.mxu0 %v2913
        %3164 = vmatpush.msra.mxu0 %v2912
        %3165 = vmatpush.msra.mxu0 %v2911
        %3166 = vmatpush.msra.mxu0 %v2910
        %3167 = vmatpush.msra.mxu0 %v2909
        %3168 = vmatmul.f32.gmra.mxu0 %v2069
        %v3169 = vpop.f32.mrf.mxu0
        %v3170 = vadd.f32 %v3105, %v3169
        %3171 = vmatmul.f32.gmra.mxu0 %v2071
        %v3172 = vpop.f32.mrf.mxu0
        %v3173 = vadd.f32 %v3108, %v3172
        %3174 = vmatmul.f32.gmra.mxu0 %v2073
        %v3175 = vpop.f32.mrf.mxu0
        %v3176 = vadd.f32 %v3111, %v3175
        %3177 = vmatmul.f32.gmra.mxu0 %v2075
        %v3178 = vpop.f32.mrf.mxu0
        %v3179 = vadd.f32 %v3114, %v3178
        %3180 = vmatmul.f32.gmra.mxu0 %v2077
        %v3181 = vpop.f32.mrf.mxu0
        %v3182 = vadd.f32 %v3117, %v3181
        %3183 = vmatmul.f32.gmra.mxu0 %v2079
        %v3184 = vpop.f32.mrf.mxu0
        %v3185 = vadd.f32 %v3120, %v3184
        %3186 = vmatmul.f32.gmra.mxu0 %v2081
        %v3187 = vpop.f32.mrf.mxu0
        %v3188 = vadd.f32 %v3123, %v3187
        %3189 = vmatmul.f32.gmra.mxu0 %v2083
        %v3190 = vpop.f32.mrf.mxu0
        %v3191 = vadd.f32 %v3126, %v3190
        %3192 = vmatmul.f32.gmra.mxu0 %v2085
        %v3193 = vpop.f32.mrf.mxu0
        %v3194 = vadd.f32 %v3129, %v3193
        %3195 = vmatmul.f32.gmra.mxu0 %v2087
        %v3196 = vpop.f32.mrf.mxu0
        %v3197 = vadd.f32 %v3132, %v3196
        %3198 = vmatmul.f32.gmra.mxu0 %v2089
        %v3199 = vpop.f32.mrf.mxu0
        %v3200 = vadd.f32 %v3135, %v3199
        %3201 = vmatmul.f32.gmra.mxu0 %v2091
        %v3202 = vpop.f32.mrf.mxu0
        %v3203 = vadd.f32 %v3138, %v3202
        %3204 = vmatmul.f32.gmra.mxu0 %v2093
        %v3205 = vpop.f32.mrf.mxu0
        %v3206 = vadd.f32 %v3141, %v3205
        %3207 = vmatmul.f32.gmra.mxu0 %v2095
        %v3208 = vpop.f32.mrf.mxu0
        %v3209 = vadd.f32 %v3144, %v3208
        %3210 = vmatmul.f32.gmra.mxu0 %v2097
        %v3211 = vpop.f32.mrf.mxu0
        %v3212 = vadd.f32 %v3147, %v3211
        %3213 = vmatmul.f32.gmra.mxu0 %v2099
        %v3214 = vpop.f32.mrf.mxu0
        %v3215 = vadd.f32 %v3150, %v3214
        %3216 = vdwg.mxu0
        %v3217 = vld [vmem:[%s2892 + $0x200] sm:$0xff]
        %v3218 = vld [vmem:[%s2892 + $0x208] sm:$0xff]
        %v3219 = vld [vmem:[%s2892 + $0x210] sm:$0xff]
        %v3220 = vld [vmem:[%s2892 + $0x218] sm:$0xff]
        %v3221 = vld [vmem:[%s2892 + $0x220] sm:$0xff]
        %v3222 = vld [vmem:[%s2892 + $0x228] sm:$0xff]
        %v3223 = vld [vmem:[%s2892 + $0x230] sm:$0xff]
        %v3224 = vld [vmem:[%s2892 + $0x238] sm:$0xff]
        %v3225 = vld [vmem:[%s2892 + $0x240] sm:$0xff]
        %v3226 = vld [vmem:[%s2892 + $0x248] sm:$0xff]
        %v3227 = vld [vmem:[%s2892 + $0x250] sm:$0xff]
        %v3228 = vld [vmem:[%s2892 + $0x258] sm:$0xff]
        %v3229 = vld [vmem:[%s2892 + $0x260] sm:$0xff]
        %v3230 = vld [vmem:[%s2892 + $0x268] sm:$0xff]
        %v3231 = vld [vmem:[%s2892 + $0x270] sm:$0xff]
        %v3232 = vld [vmem:[%s2892 + $0x278] sm:$0xff]
        %v3233 = vld [vmem:[%s2892 + $0x280] sm:$0xff]
        %v3234 = vld [vmem:[%s2892 + $0x288] sm:$0xff]
        %v3235 = vld [vmem:[%s2892 + $0x290] sm:$0xff]
        %v3236 = vld [vmem:[%s2892 + $0x298] sm:$0xff]
        %v3237 = vld [vmem:[%s2892 + $0x2a0] sm:$0xff]
        %v3238 = vld [vmem:[%s2892 + $0x2a8] sm:$0xff]
        %v3239 = vld [vmem:[%s2892 + $0x2b0] sm:$0xff]
        %v3240 = vld [vmem:[%s2892 + $0x2b8] sm:$0xff]
        %v3241 = vld [vmem:[%s2892 + $0x2c0] sm:$0xff]
        %v3242 = vld [vmem:[%s2892 + $0x2c8] sm:$0xff]
        %v3243 = vld [vmem:[%s2892 + $0x2d0] sm:$0xff]
        %v3244 = vld [vmem:[%s2892 + $0x2d8] sm:$0xff]
        %v3245 = vld [vmem:[%s2892 + $0x2e0] sm:$0xff]
        %v3246 = vld [vmem:[%s2892 + $0x2e8] sm:$0xff]
        %v3247 = vld [vmem:[%s2892 + $0x2f0] sm:$0xff]
        %v3248 = vld [vmem:[%s2892 + $0x2f8] sm:$0xff]
        %3249 = vmatpush.msra.mxu0 %v3232
        %3250 = vmatpush.msra.mxu0 %v3231
        %3251 = vmatpush.msra.mxu0 %v3230
        %3252 = vmatpush.msra.mxu0 %v3229
        %3253 = vmatpush.msra.mxu0 %v3228
        %3254 = vmatpush.msra.mxu0 %v3227
        %3255 = vmatpush.msra.mxu0 %v3226
        %3256 = vmatpush.msra.mxu0 %v3225
        %3257 = vmatpush.msra.mxu0 %v3224
        %3258 = vmatpush.msra.mxu0 %v3223
        %3259 = vmatpush.msra.mxu0 %v3222
        %3260 = vmatpush.msra.mxu0 %v3221
        %3261 = vmatpush.msra.mxu0 %v3220
        %3262 = vmatpush.msra.mxu0 %v3219
        %3263 = vmatpush.msra.mxu0 %v3218
        %3264 = vmatpush.msra.mxu0 %v3217
        %3265 = vmatmul.f32.gmra.mxu0 %v2456
        %v3266 = vpop.f32.mrf.mxu0
        %v3267 = vadd.f32 0.0, %v3266
        %3268 = vmatmul.f32.gmra.mxu0 %v2458
        %v3269 = vpop.f32.mrf.mxu0
        %v3270 = vadd.f32 0.0, %v3269
        %3271 = vmatmul.f32.gmra.mxu0 %v2460
        %v3272 = vpop.f32.mrf.mxu0
        %v3273 = vadd.f32 0.0, %v3272
        %3274 = vmatmul.f32.gmra.mxu0 %v2462
        %v3275 = vpop.f32.mrf.mxu0
        %v3276 = vadd.f32 0.0, %v3275
        %3277 = vmatmul.f32.gmra.mxu0 %v2464
        %v3278 = vpop.f32.mrf.mxu0
        %v3279 = vadd.f32 0.0, %v3278
        %3280 = vmatmul.f32.gmra.mxu0 %v2466
        %v3281 = vpop.f32.mrf.mxu0
        %v3282 = vadd.f32 0.0, %v3281
        %3283 = vmatmul.f32.gmra.mxu0 %v2468
        %v3284 = vpop.f32.mrf.mxu0
        %v3285 = vadd.f32 0.0, %v3284
        %3286 = vmatmul.f32.gmra.mxu0 %v2470
        %v3287 = vpop.f32.mrf.mxu0
        %v3288 = vadd.f32 0.0, %v3287
        %3289 = vmatmul.f32.gmra.mxu0 %v2472
        %v3290 = vpop.f32.mrf.mxu0
        %v3291 = vadd.f32 0.0, %v3290
        %3292 = vmatmul.f32.gmra.mxu0 %v2474
        %v3293 = vpop.f32.mrf.mxu0
        %v3294 = vadd.f32 0.0, %v3293
        %3295 = vmatmul.f32.gmra.mxu0 %v2476
        %v3296 = vpop.f32.mrf.mxu0
        %v3297 = vadd.f32 0.0, %v3296
        %3298 = vmatmul.f32.gmra.mxu0 %v2478
        %v3299 = vpop.f32.mrf.mxu0
        %v3300 = vadd.f32 0.0, %v3299
        %3301 = vmatmul.f32.gmra.mxu0 %v2480
        %v3302 = vpop.f32.mrf.mxu0
        %v3303 = vadd.f32 0.0, %v3302
        %3304 = vmatmul.f32.gmra.mxu0 %v2482
        %v3305 = vpop.f32.mrf.mxu0
        %v3306 = vadd.f32 0.0, %v3305
        %3307 = vmatmul.f32.gmra.mxu0 %v2484
        %v3308 = vpop.f32.mrf.mxu0
        %v3309 = vadd.f32 0.0, %v3308
        %3310 = vmatmul.f32.gmra.mxu0 %v2486
        %v3311 = vpop.f32.mrf.mxu0
        %v3312 = vadd.f32 0.0, %v3311
        %3313 = vdwg.mxu0
        %3314 = vmatpush.msra.mxu0 %v3248
        %3315 = vmatpush.msra.mxu0 %v3247
        %3316 = vmatpush.msra.mxu0 %v3246
        %3317 = vmatpush.msra.mxu0 %v3245
        %3318 = vmatpush.msra.mxu0 %v3244
        %3319 = vmatpush.msra.mxu0 %v3243
        %3320 = vmatpush.msra.mxu0 %v3242
        %3321 = vmatpush.msra.mxu0 %v3241
        %3322 = vmatpush.msra.mxu0 %v3240
        %3323 = vmatpush.msra.mxu0 %v3239
        %3324 = vmatpush.msra.mxu0 %v3238
        %3325 = vmatpush.msra.mxu0 %v3237
        %3326 = vmatpush.msra.mxu0 %v3236
        %3327 = vmatpush.msra.mxu0 %v3235
        %3328 = vmatpush.msra.mxu0 %v3234
        %3329 = vmatpush.msra.mxu0 %v3233
        %3330 = vmatmul.f32.gmra.mxu0 %v2457
        %v3331 = vpop.f32.mrf.mxu0
        %v3332 = vadd.f32 %v3267, %v3331
        %3333 = vmatmul.f32.gmra.mxu0 %v2459
        %v3334 = vpop.f32.mrf.mxu0
        %v3335 = vadd.f32 %v3270, %v3334
        %3336 = vmatmul.f32.gmra.mxu0 %v2461
        %v3337 = vpop.f32.mrf.mxu0
        %v3338 = vadd.f32 %v3273, %v3337
        %3339 = vmatmul.f32.gmra.mxu0 %v2463
        %v3340 = vpop.f32.mrf.mxu0
        %v3341 = vadd.f32 %v3276, %v3340
        %3342 = vmatmul.f32.gmra.mxu0 %v2465
        %v3343 = vpop.f32.mrf.mxu0
        %v3344 = vadd.f32 %v3279, %v3343
        %3345 = vmatmul.f32.gmra.mxu0 %v2467
        %v3346 = vpop.f32.mrf.mxu0
        %v3347 = vadd.f32 %v3282, %v3346
        %3348 = vmatmul.f32.gmra.mxu0 %v2469
        %v3349 = vpop.f32.mrf.mxu0
        %v3350 = vadd.f32 %v3285, %v3349
        %3351 = vmatmul.f32.gmra.mxu0 %v2471
        %v3352 = vpop.f32.mrf.mxu0
        %v3353 = vadd.f32 %v3288, %v3352
        %3354 = vmatmul.f32.gmra.mxu0 %v2473
        %v3355 = vpop.f32.mrf.mxu0
        %v3356 = vadd.f32 %v3291, %v3355
        %3357 = vmatmul.f32.gmra.mxu0 %v2475
        %v3358 = vpop.f32.mrf.mxu0
        %v3359 = vadd.f32 %v3294, %v3358
        %3360 = vmatmul.f32.gmra.mxu0 %v2477
        %v3361 = vpop.f32.mrf.mxu0
        %v3362 = vadd.f32 %v3297, %v3361
        %3363 = vmatmul.f32.gmra.mxu0 %v2479
        %v3364 = vpop.f32.mrf.mxu0
        %v3365 = vadd.f32 %v3300, %v3364
        %3366 = vmatmul.f32.gmra.mxu0 %v2481
        %v3367 = vpop.f32.mrf.mxu0
        %v3368 = vadd.f32 %v3303, %v3367
        %3369 = vmatmul.f32.gmra.mxu0 %v2483
        %v3370 = vpop.f32.mrf.mxu0
        %v3371 = vadd.f32 %v3306, %v3370
        %3372 = vmatmul.f32.gmra.mxu0 %v2485
        %v3373 = vpop.f32.mrf.mxu0
        %v3374 = vadd.f32 %v3309, %v3373
        %3375 = vmatmul.f32.gmra.mxu0 %v2487
        %v3376 = vpop.f32.mrf.mxu0
        %v3377 = vadd.f32 %v3312, %v3376
        %3378 = vdwg.mxu0
        %v3379 = vadd.f32 %v3170, %v3332
        %v3380 = vadd.f32 %v3173, %v3335
        %v3381 = vadd.f32 %v3176, %v3338
        %v3382 = vadd.f32 %v3179, %v3341
        %v3383 = vadd.f32 %v3182, %v3344
        %v3384 = vadd.f32 %v3185, %v3347
        %v3385 = vadd.f32 %v3188, %v3350
        %v3386 = vadd.f32 %v3191, %v3353
        %v3387 = vadd.f32 %v3194, %v3356
        %v3388 = vadd.f32 %v3197, %v3359
        %v3389 = vadd.f32 %v3200, %v3362
        %v3390 = vadd.f32 %v3203, %v3365
        %v3391 = vadd.f32 %v3206, %v3368
        %v3392 = vadd.f32 %v3209, %v3371
        %v3393 = vadd.f32 %v3212, %v3374
        %v3394 = vadd.f32 %v3215, %v3377
        %v3395 = vld [vmem:[%s2892 + $0x300] sm:$0xff]
        %v3396 = vld [vmem:[%s2892 + $0x308] sm:$0xff]
        %v3397 = vld [vmem:[%s2892 + $0x310] sm:$0xff]
        %v3398 = vld [vmem:[%s2892 + $0x318] sm:$0xff]
        %v3399 = vld [vmem:[%s2892 + $0x320] sm:$0xff]
        %v3400 = vld [vmem:[%s2892 + $0x328] sm:$0xff]
        %v3401 = vld [vmem:[%s2892 + $0x330] sm:$0xff]
        %v3402 = vld [vmem:[%s2892 + $0x338] sm:$0xff]
        %v3403 = vld [vmem:[%s2892 + $0x340] sm:$0xff]
        %v3404 = vld [vmem:[%s2892 + $0x348] sm:$0xff]
        %v3405 = vld [vmem:[%s2892 + $0x350] sm:$0xff]
        %v3406 = vld [vmem:[%s2892 + $0x358] sm:$0xff]
        %v3407 = vld [vmem:[%s2892 + $0x360] sm:$0xff]
        %v3408 = vld [vmem:[%s2892 + $0x368] sm:$0xff]
        %v3409 = vld [vmem:[%s2892 + $0x370] sm:$0xff]
        %v3410 = vld [vmem:[%s2892 + $0x378] sm:$0xff]
        %v3411 = vld [vmem:[%s2892 + $0x380] sm:$0xff]
        %v3412 = vld [vmem:[%s2892 + $0x388] sm:$0xff]
        %v3413 = vld [vmem:[%s2892 + $0x390] sm:$0xff]
        %v3414 = vld [vmem:[%s2892 + $0x398] sm:$0xff]
        %v3415 = vld [vmem:[%s2892 + $0x3a0] sm:$0xff]
        %v3416 = vld [vmem:[%s2892 + $0x3a8] sm:$0xff]
        %v3417 = vld [vmem:[%s2892 + $0x3b0] sm:$0xff]
        %v3418 = vld [vmem:[%s2892 + $0x3b8] sm:$0xff]
        %v3419 = vld [vmem:[%s2892 + $0x3c0] sm:$0xff]
        %v3420 = vld [vmem:[%s2892 + $0x3c8] sm:$0xff]
        %v3421 = vld [vmem:[%s2892 + $0x3d0] sm:$0xff]
        %v3422 = vld [vmem:[%s2892 + $0x3d8] sm:$0xff]
        %v3423 = vld [vmem:[%s2892 + $0x3e0] sm:$0xff]
        %v3424 = vld [vmem:[%s2892 + $0x3e8] sm:$0xff]
        %v3425 = vld [vmem:[%s2892 + $0x3f0] sm:$0xff]
        %v3426 = vld [vmem:[%s2892 + $0x3f8] sm:$0xff]
        %3427 = vmatpush.msra.mxu0 %v3410
        %3428 = vmatpush.msra.mxu0 %v3409
        %3429 = vmatpush.msra.mxu0 %v3408
        %3430 = vmatpush.msra.mxu0 %v3407
        %3431 = vmatpush.msra.mxu0 %v3406
        %3432 = vmatpush.msra.mxu0 %v3405
        %3433 = vmatpush.msra.mxu0 %v3404
        %3434 = vmatpush.msra.mxu0 %v3403
        %3435 = vmatpush.msra.mxu0 %v3402
        %3436 = vmatpush.msra.mxu0 %v3401
        %3437 = vmatpush.msra.mxu0 %v3400
        %3438 = vmatpush.msra.mxu0 %v3399
        %3439 = vmatpush.msra.mxu0 %v3398
        %3440 = vmatpush.msra.mxu0 %v3397
        %3441 = vmatpush.msra.mxu0 %v3396
        %3442 = vmatpush.msra.mxu0 %v3395
        %3443 = vmatmul.f32.gmra.mxu0 %v2666
        %v3444 = vpop.f32.mrf.mxu0
        %v3445 = vadd.f32 0.0, %v3444
        %3446 = vmatmul.f32.gmra.mxu0 %v2668
        %v3447 = vpop.f32.mrf.mxu0
        %v3448 = vadd.f32 0.0, %v3447
        %3449 = vmatmul.f32.gmra.mxu0 %v2670
        %v3450 = vpop.f32.mrf.mxu0
        %v3451 = vadd.f32 0.0, %v3450
        %3452 = vmatmul.f32.gmra.mxu0 %v2672
        %v3453 = vpop.f32.mrf.mxu0
        %v3454 = vadd.f32 0.0, %v3453
        %3455 = vmatmul.f32.gmra.mxu0 %v2674
        %v3456 = vpop.f32.mrf.mxu0
        %v3457 = vadd.f32 0.0, %v3456
        %3458 = vmatmul.f32.gmra.mxu0 %v2676
        %v3459 = vpop.f32.mrf.mxu0
        %v3460 = vadd.f32 0.0, %v3459
        %3461 = vmatmul.f32.gmra.mxu0 %v2678
        %v3462 = vpop.f32.mrf.mxu0
        %v3463 = vadd.f32 0.0, %v3462
        %3464 = vmatmul.f32.gmra.mxu0 %v2680
        %v3465 = vpop.f32.mrf.mxu0
        %v3466 = vadd.f32 0.0, %v3465
        %3467 = vmatmul.f32.gmra.mxu0 %v2682
        %v3468 = vpop.f32.mrf.mxu0
        %v3469 = vadd.f32 0.0, %v3468
        %3470 = vmatmul.f32.gmra.mxu0 %v2684
        %v3471 = vpop.f32.mrf.mxu0
        %v3472 = vadd.f32 0.0, %v3471
        %3473 = vmatmul.f32.gmra.mxu0 %v2686
        %v3474 = vpop.f32.mrf.mxu0
        %v3475 = vadd.f32 0.0, %v3474
        %3476 = vmatmul.f32.gmra.mxu0 %v2688
        %v3477 = vpop.f32.mrf.mxu0
        %v3478 = vadd.f32 0.0, %v3477
        %3479 = vmatmul.f32.gmra.mxu0 %v2690
        %v3480 = vpop.f32.mrf.mxu0
        %v3481 = vadd.f32 0.0, %v3480
        %3482 = vmatmul.f32.gmra.mxu0 %v2692
        %v3483 = vpop.f32.mrf.mxu0
        %v3484 = vadd.f32 0.0, %v3483
        %3485 = vmatmul.f32.gmra.mxu0 %v2694
        %v3486 = vpop.f32.mrf.mxu0
        %v3487 = vadd.f32 0.0, %v3486
        %3488 = vmatmul.f32.gmra.mxu0 %v2696
        %v3489 = vpop.f32.mrf.mxu0
        %v3490 = vadd.f32 0.0, %v3489
        %3491 = vdwg.mxu0
        %3492 = vmatpush.msra.mxu0 %v3426
        %3493 = vmatpush.msra.mxu0 %v3425
        %3494 = vmatpush.msra.mxu0 %v3424
        %3495 = vmatpush.msra.mxu0 %v3423
        %3496 = vmatpush.msra.mxu0 %v3422
        %3497 = vmatpush.msra.mxu0 %v3421
        %3498 = vmatpush.msra.mxu0 %v3420
        %3499 = vmatpush.msra.mxu0 %v3419
        %3500 = vmatpush.msra.mxu0 %v3418
        %3501 = vmatpush.msra.mxu0 %v3417
        %3502 = vmatpush.msra.mxu0 %v3416
        %3503 = vmatpush.msra.mxu0 %v3415
        %3504 = vmatpush.msra.mxu0 %v3414
        %3505 = vmatpush.msra.mxu0 %v3413
        %3506 = vmatpush.msra.mxu0 %v3412
        %3507 = vmatpush.msra.mxu0 %v3411
        %3508 = vmatmul.f32.gmra.mxu0 %v2667
        %v3509 = vpop.f32.mrf.mxu0
        %v3510 = vadd.f32 %v3445, %v3509
        %3511 = vmatmul.f32.gmra.mxu0 %v2669
        %v3512 = vpop.f32.mrf.mxu0
        %v3513 = vadd.f32 %v3448, %v3512
        %3514 = vmatmul.f32.gmra.mxu0 %v2671
        %v3515 = vpop.f32.mrf.mxu0
        %v3516 = vadd.f32 %v3451, %v3515
        %3517 = vmatmul.f32.gmra.mxu0 %v2673
        %v3518 = vpop.f32.mrf.mxu0
        %v3519 = vadd.f32 %v3454, %v3518
        %3520 = vmatmul.f32.gmra.mxu0 %v2675
        %v3521 = vpop.f32.mrf.mxu0
        %v3522 = vadd.f32 %v3457, %v3521
        %3523 = vmatmul.f32.gmra.mxu0 %v2677
        %v3524 = vpop.f32.mrf.mxu0
        %v3525 = vadd.f32 %v3460, %v3524
        %3526 = vmatmul.f32.gmra.mxu0 %v2679
        %v3527 = vpop.f32.mrf.mxu0
        %v3528 = vadd.f32 %v3463, %v3527
        %3529 = vmatmul.f32.gmra.mxu0 %v2681
        %v3530 = vpop.f32.mrf.mxu0
        %v3531 = vadd.f32 %v3466, %v3530
        %3532 = vmatmul.f32.gmra.mxu0 %v2683
        %v3533 = vpop.f32.mrf.mxu0
        %v3534 = vadd.f32 %v3469, %v3533
        %3535 = vmatmul.f32.gmra.mxu0 %v2685
        %v3536 = vpop.f32.mrf.mxu0
        %v3537 = vadd.f32 %v3472, %v3536
        %3538 = vmatmul.f32.gmra.mxu0 %v2687
        %v3539 = vpop.f32.mrf.mxu0
        %v3540 = vadd.f32 %v3475, %v3539
        %3541 = vmatmul.f32.gmra.mxu0 %v2689
        %v3542 = vpop.f32.mrf.mxu0
        %v3543 = vadd.f32 %v3478, %v3542
        %3544 = vmatmul.f32.gmra.mxu0 %v2691
        %v3545 = vpop.f32.mrf.mxu0
        %v3546 = vadd.f32 %v3481, %v3545
        %3547 = vmatmul.f32.gmra.mxu0 %v2693
        %v3548 = vpop.f32.mrf.mxu0
        %v3549 = vadd.f32 %v3484, %v3548
        %3550 = vmatmul.f32.gmra.mxu0 %v2695
        %v3551 = vpop.f32.mrf.mxu0
        %v3552 = vadd.f32 %v3487, %v3551
        %3553 = vmatmul.f32.gmra.mxu0 %v2697
        %v3554 = vpop.f32.mrf.mxu0
        %v3555 = vadd.f32 %v3490, %v3554
        %3556 = vdwg.mxu0
        %v3557 = vadd.f32 %v3379, %v3510
        %v3558 = vadd.f32 %v3380, %v3513
        %v3559 = vadd.f32 %v3381, %v3516
        %v3560 = vadd.f32 %v3382, %v3519
        %v3561 = vadd.f32 %v3383, %v3522
        %v3562 = vadd.f32 %v3384, %v3525
        %v3563 = vadd.f32 %v3385, %v3528
        %v3564 = vadd.f32 %v3386, %v3531
        %v3565 = vadd.f32 %v3387, %v3534
        %v3566 = vadd.f32 %v3388, %v3537
        %v3567 = vadd.f32 %v3389, %v3540
        %v3568 = vadd.f32 %v3390, %v3543
        %v3569 = vadd.f32 %v3391, %v3546
        %v3570 = vadd.f32 %v3392, %v3549
        %v3571 = vadd.f32 %v3393, %v3552
        %v3572 = vadd.f32 %v3394, %v3555
        %s3573 = scalar_lea.vmem %s5, 128
        %v3574 = vld [vmem:[%s3573] sm:$0xff]
        %v3575 = vld [vmem:[%s3573 + $0x8] sm:$0xff]
        %v3576 = vld [vmem:[%s3573 + $0x10] sm:$0xff]
        %v3577 = vld [vmem:[%s3573 + $0x18] sm:$0xff]
        %v3578 = vld [vmem:[%s3573 + $0x20] sm:$0xff]
        %v3579 = vld [vmem:[%s3573 + $0x28] sm:$0xff]
        %v3580 = vld [vmem:[%s3573 + $0x30] sm:$0xff]
        %v3581 = vld [vmem:[%s3573 + $0x38] sm:$0xff]
        %v3582 = vld [vmem:[%s3573 + $0x40] sm:$0xff]
        %v3583 = vld [vmem:[%s3573 + $0x48] sm:$0xff]
        %v3584 = vld [vmem:[%s3573 + $0x50] sm:$0xff]
        %v3585 = vld [vmem:[%s3573 + $0x58] sm:$0xff]
        %v3586 = vld [vmem:[%s3573 + $0x60] sm:$0xff]
        %v3587 = vld [vmem:[%s3573 + $0x68] sm:$0xff]
        %v3588 = vld [vmem:[%s3573 + $0x70] sm:$0xff]
        %v3589 = vld [vmem:[%s3573 + $0x78] sm:$0xff]
        %3590 = vmatpush.msra.mxu0 %v3572
        %3591 = vmatpush.msra.mxu0 %v3571
        %3592 = vmatpush.msra.mxu0 %v3570
        %3593 = vmatpush.msra.mxu0 %v3569
        %3594 = vmatpush.msra.mxu0 %v3568
        %3595 = vmatpush.msra.mxu0 %v3567
        %3596 = vmatpush.msra.mxu0 %v3566
        %3597 = vmatpush.msra.mxu0 %v3565
        %3598 = vmatpush.msra.mxu0 %v3564
        %3599 = vmatpush.msra.mxu0 %v3563
        %3600 = vmatpush.msra.mxu0 %v3562
        %3601 = vmatpush.msra.mxu0 %v3561
        %3602 = vmatpush.msra.mxu0 %v3560
        %3603 = vmatpush.msra.mxu0 %v3559
        %3604 = vmatpush.msra.mxu0 %v3558
        %3605 = vmatpush.msra.mxu0 %v3557
        %3606 = vmatmul.f32.gmra.mxu0 %v3574
        %v3607 = vpop.f32.mrf.mxu0
        %v3608 = vadd.f32 0.0, %v3607
        %3609 = vmatmul.f32.gmra.mxu0 %v3575
        %v3610 = vpop.f32.mrf.mxu0
        %v3611 = vadd.f32 0.0, %v3610
        %3612 = vmatmul.f32.gmra.mxu0 %v3576
        %v3613 = vpop.f32.mrf.mxu0
        %v3614 = vadd.f32 0.0, %v3613
        %3615 = vmatmul.f32.gmra.mxu0 %v3577
        %v3616 = vpop.f32.mrf.mxu0
        %v3617 = vadd.f32 0.0, %v3616
        %3618 = vmatmul.f32.gmra.mxu0 %v3578
        %v3619 = vpop.f32.mrf.mxu0
        %v3620 = vadd.f32 0.0, %v3619
        %3621 = vmatmul.f32.gmra.mxu0 %v3579
        %v3622 = vpop.f32.mrf.mxu0
        %v3623 = vadd.f32 0.0, %v3622
        %3624 = vmatmul.f32.gmra.mxu0 %v3580
        %v3625 = vpop.f32.mrf.mxu0
        %v3626 = vadd.f32 0.0, %v3625
        %3627 = vmatmul.f32.gmra.mxu0 %v3581
        %v3628 = vpop.f32.mrf.mxu0
        %v3629 = vadd.f32 0.0, %v3628
        %3630 = vmatmul.f32.gmra.mxu0 %v3582
        %v3631 = vpop.f32.mrf.mxu0
        %v3632 = vadd.f32 0.0, %v3631
        %3633 = vmatmul.f32.gmra.mxu0 %v3583
        %v3634 = vpop.f32.mrf.mxu0
        %v3635 = vadd.f32 0.0, %v3634
        %3636 = vmatmul.f32.gmra.mxu0 %v3584
        %v3637 = vpop.f32.mrf.mxu0
        %v3638 = vadd.f32 0.0, %v3637
        %3639 = vmatmul.f32.gmra.mxu0 %v3585
        %v3640 = vpop.f32.mrf.mxu0
        %v3641 = vadd.f32 0.0, %v3640
        %3642 = vmatmul.f32.gmra.mxu0 %v3586
        %v3643 = vpop.f32.mrf.mxu0
        %v3644 = vadd.f32 0.0, %v3643
        %3645 = vmatmul.f32.gmra.mxu0 %v3587
        %v3646 = vpop.f32.mrf.mxu0
        %v3647 = vadd.f32 0.0, %v3646
        %3648 = vmatmul.f32.gmra.mxu0 %v3588
        %v3649 = vpop.f32.mrf.mxu0
        %v3650 = vadd.f32 0.0, %v3649
        %3651 = vmatmul.f32.gmra.mxu0 %v3589
        %v3652 = vpop.f32.mrf.mxu0
        %v3653 = vadd.f32 0.0, %v3652
        %3654 = vdwg.mxu0
        %3655 = vmatpush.msra.mxu0 %v2875
        %3656 = vmatpush.msra.mxu0 %v2874
        %3657 = vmatpush.msra.mxu0 %v2873
        %3658 = vmatpush.msra.mxu0 %v2872
        %3659 = vmatpush.msra.mxu0 %v2871
        %3660 = vmatpush.msra.mxu0 %v2870
        %3661 = vmatpush.msra.mxu0 %v2869
        %3662 = vmatpush.msra.mxu0 %v2868
        %3663 = vmatpush.msra.mxu0 %v2867
        %3664 = vmatpush.msra.mxu0 %v2866
        %3665 = vmatpush.msra.mxu0 %v2865
        %3666 = vmatpush.msra.mxu0 %v2864
        %3667 = vmatpush.msra.mxu0 %v2863
        %3668 = vmatpush.msra.mxu0 %v2862
        %3669 = vmatpush.msra.mxu0 %v2861
        %3670 = vmatpush.msra.mxu0 %v2860
        %3671 = vmatmul.f32.gmra.mxu0 %v2876
        %v3672 = vpop.f32.mrf.mxu0
        %v3673 = vadd.f32 %v3608, %v3672
        %3674 = vmatmul.f32.gmra.mxu0 %v2877
        %v3675 = vpop.f32.mrf.mxu0
        %v3676 = vadd.f32 %v3611, %v3675
        %3677 = vmatmul.f32.gmra.mxu0 %v2878
        %v3678 = vpop.f32.mrf.mxu0
        %v3679 = vadd.f32 %v3614, %v3678
        %3680 = vmatmul.f32.gmra.mxu0 %v2879
        %v3681 = vpop.f32.mrf.mxu0
        %v3682 = vadd.f32 %v3617, %v3681
        %3683 = vmatmul.f32.gmra.mxu0 %v2880
        %v3684 = vpop.f32.mrf.mxu0
        %v3685 = vadd.f32 %v3620, %v3684
        %3686 = vmatmul.f32.gmra.mxu0 %v2881
        %v3687 = vpop.f32.mrf.mxu0
        %v3688 = vadd.f32 %v3623, %v3687
        %3689 = vmatmul.f32.gmra.mxu0 %v2882
        %v3690 = vpop.f32.mrf.mxu0
        %v3691 = vadd.f32 %v3626, %v3690
        %3692 = vmatmul.f32.gmra.mxu0 %v2883
        %v3693 = vpop.f32.mrf.mxu0
        %v3694 = vadd.f32 %v3629, %v3693
        %3695 = vmatmul.f32.gmra.mxu0 %v2884
        %v3696 = vpop.f32.mrf.mxu0
        %v3697 = vadd.f32 %v3632, %v3696
        %3698 = vmatmul.f32.gmra.mxu0 %v2885
        %v3699 = vpop.f32.mrf.mxu0
        %v3700 = vadd.f32 %v3635, %v3699
        %3701 = vmatmul.f32.gmra.mxu0 %v2886
        %v3702 = vpop.f32.mrf.mxu0
        %v3703 = vadd.f32 %v3638, %v3702
        %3704 = vmatmul.f32.gmra.mxu0 %v2887
        %v3705 = vpop.f32.mrf.mxu0
        %v3706 = vadd.f32 %v3641, %v3705
        %3707 = vmatmul.f32.gmra.mxu0 %v2888
        %v3708 = vpop.f32.mrf.mxu0
        %v3709 = vadd.f32 %v3644, %v3708
        %3710 = vmatmul.f32.gmra.mxu0 %v2889
        %v3711 = vpop.f32.mrf.mxu0
        %v3712 = vadd.f32 %v3647, %v3711
        %3713 = vmatmul.f32.gmra.mxu0 %v2890
        %v3714 = vpop.f32.mrf.mxu0
        %v3715 = vadd.f32 %v3650, %v3714
        %3716 = vmatmul.f32.gmra.mxu0 %v2891
        %v3717 = vpop.f32.mrf.mxu0
        %v3718 = vadd.f32 %v3653, %v3717
        %3719 = vdwg.mxu0
        %s3720 = scalar_lea.vmem %s3, 2048
        %v3721 = vld [vmem:[%s3720] sm:$0xff]
        %v3722 = vld [vmem:[%s3720 + $0x8] sm:$0xff]
        %v3723 = vld [vmem:[%s3720 + $0x10] sm:$0xff]
        %v3724 = vld [vmem:[%s3720 + $0x18] sm:$0xff]
        %v3725 = vld [vmem:[%s3720 + $0x20] sm:$0xff]
        %v3726 = vld [vmem:[%s3720 + $0x28] sm:$0xff]
        %v3727 = vld [vmem:[%s3720 + $0x30] sm:$0xff]
        %v3728 = vld [vmem:[%s3720 + $0x38] sm:$0xff]
        %v3729 = vld [vmem:[%s3720 + $0x40] sm:$0xff]
        %v3730 = vld [vmem:[%s3720 + $0x48] sm:$0xff]
        %v3731 = vld [vmem:[%s3720 + $0x50] sm:$0xff]
        %v3732 = vld [vmem:[%s3720 + $0x58] sm:$0xff]
        %v3733 = vld [vmem:[%s3720 + $0x60] sm:$0xff]
        %v3734 = vld [vmem:[%s3720 + $0x68] sm:$0xff]
        %v3735 = vld [vmem:[%s3720 + $0x70] sm:$0xff]
        %v3736 = vld [vmem:[%s3720 + $0x78] sm:$0xff]
        %v3737 = vld [vmem:[%s3720 + $0x80] sm:$0xff]
        %v3738 = vld [vmem:[%s3720 + $0x88] sm:$0xff]
        %v3739 = vld [vmem:[%s3720 + $0x90] sm:$0xff]
        %v3740 = vld [vmem:[%s3720 + $0x98] sm:$0xff]
        %v3741 = vld [vmem:[%s3720 + $0xa0] sm:$0xff]
        %v3742 = vld [vmem:[%s3720 + $0xa8] sm:$0xff]
        %v3743 = vld [vmem:[%s3720 + $0xb0] sm:$0xff]
        %v3744 = vld [vmem:[%s3720 + $0xb8] sm:$0xff]
        %v3745 = vld [vmem:[%s3720 + $0xc0] sm:$0xff]
        %v3746 = vld [vmem:[%s3720 + $0xc8] sm:$0xff]
        %v3747 = vld [vmem:[%s3720 + $0xd0] sm:$0xff]
        %v3748 = vld [vmem:[%s3720 + $0xd8] sm:$0xff]
        %v3749 = vld [vmem:[%s3720 + $0xe0] sm:$0xff]
        %v3750 = vld [vmem:[%s3720 + $0xe8] sm:$0xff]
        %v3751 = vld [vmem:[%s3720 + $0xf0] sm:$0xff]
        %v3752 = vld [vmem:[%s3720 + $0xf8] sm:$0xff]
        %v3753 = vld [vmem:[%s3720 + $0x100] sm:$0xff]
        %v3754 = vld [vmem:[%s3720 + $0x108] sm:$0xff]
        %v3755 = vld [vmem:[%s3720 + $0x110] sm:$0xff]
        %v3756 = vld [vmem:[%s3720 + $0x118] sm:$0xff]
        %v3757 = vld [vmem:[%s3720 + $0x120] sm:$0xff]
        %v3758 = vld [vmem:[%s3720 + $0x128] sm:$0xff]
        %v3759 = vld [vmem:[%s3720 + $0x130] sm:$0xff]
        %v3760 = vld [vmem:[%s3720 + $0x138] sm:$0xff]
        %v3761 = vld [vmem:[%s3720 + $0x140] sm:$0xff]
        %v3762 = vld [vmem:[%s3720 + $0x148] sm:$0xff]
        %v3763 = vld [vmem:[%s3720 + $0x150] sm:$0xff]
        %v3764 = vld [vmem:[%s3720 + $0x158] sm:$0xff]
        %v3765 = vld [vmem:[%s3720 + $0x160] sm:$0xff]
        %v3766 = vld [vmem:[%s3720 + $0x168] sm:$0xff]
        %v3767 = vld [vmem:[%s3720 + $0x170] sm:$0xff]
        %v3768 = vld [vmem:[%s3720 + $0x178] sm:$0xff]
        %v3769 = vld [vmem:[%s3720 + $0x180] sm:$0xff]
        %v3770 = vld [vmem:[%s3720 + $0x188] sm:$0xff]
        %v3771 = vld [vmem:[%s3720 + $0x190] sm:$0xff]
        %v3772 = vld [vmem:[%s3720 + $0x198] sm:$0xff]
        %v3773 = vld [vmem:[%s3720 + $0x1a0] sm:$0xff]
        %v3774 = vld [vmem:[%s3720 + $0x1a8] sm:$0xff]
        %v3775 = vld [vmem:[%s3720 + $0x1b0] sm:$0xff]
        %v3776 = vld [vmem:[%s3720 + $0x1b8] sm:$0xff]
        %v3777 = vld [vmem:[%s3720 + $0x1c0] sm:$0xff]
        %v3778 = vld [vmem:[%s3720 + $0x1c8] sm:$0xff]
        %v3779 = vld [vmem:[%s3720 + $0x1d0] sm:$0xff]
        %v3780 = vld [vmem:[%s3720 + $0x1d8] sm:$0xff]
        %v3781 = vld [vmem:[%s3720 + $0x1e0] sm:$0xff]
        %v3782 = vld [vmem:[%s3720 + $0x1e8] sm:$0xff]
        %v3783 = vld [vmem:[%s3720 + $0x1f0] sm:$0xff]
        %v3784 = vld [vmem:[%s3720 + $0x1f8] sm:$0xff]
        %3785 = vmatpush.msra.mxu0 %v3768
        %3786 = vmatpush.msra.mxu0 %v3767
        %3787 = vmatpush.msra.mxu0 %v3766
        %3788 = vmatpush.msra.mxu0 %v3765
        %3789 = vmatpush.msra.mxu0 %v3764
        %3790 = vmatpush.msra.mxu0 %v3763
        %3791 = vmatpush.msra.mxu0 %v3762
        %3792 = vmatpush.msra.mxu0 %v3761
        %3793 = vmatpush.msra.mxu0 %v3760
        %3794 = vmatpush.msra.mxu0 %v3759
        %3795 = vmatpush.msra.mxu0 %v3758
        %3796 = vmatpush.msra.mxu0 %v3757
        %3797 = vmatpush.msra.mxu0 %v3756
        %3798 = vmatpush.msra.mxu0 %v3755
        %3799 = vmatpush.msra.mxu0 %v3754
        %3800 = vmatpush.msra.mxu0 %v3753
        %3801 = vmatmul.f32.gmra.mxu0 %v2132
        %v3802 = vpop.f32.mrf.mxu0
        %v3803 = vadd.f32 0.0, %v3802
        %3804 = vmatmul.f32.gmra.mxu0 %v2134
        %v3805 = vpop.f32.mrf.mxu0
        %v3806 = vadd.f32 0.0, %v3805
        %3807 = vmatmul.f32.gmra.mxu0 %v2136
        %v3808 = vpop.f32.mrf.mxu0
        %v3809 = vadd.f32 0.0, %v3808
        %3810 = vmatmul.f32.gmra.mxu0 %v2138
        %v3811 = vpop.f32.mrf.mxu0
        %v3812 = vadd.f32 0.0, %v3811
        %3813 = vmatmul.f32.gmra.mxu0 %v2140
        %v3814 = vpop.f32.mrf.mxu0
        %v3815 = vadd.f32 0.0, %v3814
        %3816 = vmatmul.f32.gmra.mxu0 %v2142
        %v3817 = vpop.f32.mrf.mxu0
        %v3818 = vadd.f32 0.0, %v3817
        %3819 = vmatmul.f32.gmra.mxu0 %v2144
        %v3820 = vpop.f32.mrf.mxu0
        %v3821 = vadd.f32 0.0, %v3820
        %3822 = vmatmul.f32.gmra.mxu0 %v2146
        %v3823 = vpop.f32.mrf.mxu0
        %v3824 = vadd.f32 0.0, %v3823
        %3825 = vmatmul.f32.gmra.mxu0 %v2148
        %v3826 = vpop.f32.mrf.mxu0
        %v3827 = vadd.f32 0.0, %v3826
        %3828 = vmatmul.f32.gmra.mxu0 %v2150
        %v3829 = vpop.f32.mrf.mxu0
        %v3830 = vadd.f32 0.0, %v3829
        %3831 = vmatmul.f32.gmra.mxu0 %v2152
        %v3832 = vpop.f32.mrf.mxu0
        %v3833 = vadd.f32 0.0, %v3832
        %3834 = vmatmul.f32.gmra.mxu0 %v2154
        %v3835 = vpop.f32.mrf.mxu0
        %v3836 = vadd.f32 0.0, %v3835
        %3837 = vmatmul.f32.gmra.mxu0 %v2156
        %v3838 = vpop.f32.mrf.mxu0
        %v3839 = vadd.f32 0.0, %v3838
        %3840 = vmatmul.f32.gmra.mxu0 %v2158
        %v3841 = vpop.f32.mrf.mxu0
        %v3842 = vadd.f32 0.0, %v3841
        %3843 = vmatmul.f32.gmra.mxu0 %v2160
        %v3844 = vpop.f32.mrf.mxu0
        %v3845 = vadd.f32 0.0, %v3844
        %3846 = vmatmul.f32.gmra.mxu0 %v2162
        %v3847 = vpop.f32.mrf.mxu0
        %v3848 = vadd.f32 0.0, %v3847
        %3849 = vdwg.mxu0
        %3850 = vmatpush.msra.mxu0 %v3784
        %3851 = vmatpush.msra.mxu0 %v3783
        %3852 = vmatpush.msra.mxu0 %v3782
        %3853 = vmatpush.msra.mxu0 %v3781
        %3854 = vmatpush.msra.mxu0 %v3780
        %3855 = vmatpush.msra.mxu0 %v3779
        %3856 = vmatpush.msra.mxu0 %v3778
        %3857 = vmatpush.msra.mxu0 %v3777
        %3858 = vmatpush.msra.mxu0 %v3776
        %3859 = vmatpush.msra.mxu0 %v3775
        %3860 = vmatpush.msra.mxu0 %v3774
        %3861 = vmatpush.msra.mxu0 %v3773
        %3862 = vmatpush.msra.mxu0 %v3772
        %3863 = vmatpush.msra.mxu0 %v3771
        %3864 = vmatpush.msra.mxu0 %v3770
        %3865 = vmatpush.msra.mxu0 %v3769
        %3866 = vmatmul.f32.gmra.mxu0 %v2133
        %v3867 = vpop.f32.mrf.mxu0
        %v3868 = vadd.f32 %v3803, %v3867
        %3869 = vmatmul.f32.gmra.mxu0 %v2135
        %v3870 = vpop.f32.mrf.mxu0
        %v3871 = vadd.f32 %v3806, %v3870
        %3872 = vmatmul.f32.gmra.mxu0 %v2137
        %v3873 = vpop.f32.mrf.mxu0
        %v3874 = vadd.f32 %v3809, %v3873
        %3875 = vmatmul.f32.gmra.mxu0 %v2139
        %v3876 = vpop.f32.mrf.mxu0
        %v3877 = vadd.f32 %v3812, %v3876
        %3878 = vmatmul.f32.gmra.mxu0 %v2141
        %v3879 = vpop.f32.mrf.mxu0
        %v3880 = vadd.f32 %v3815, %v3879
        %3881 = vmatmul.f32.gmra.mxu0 %v2143
        %v3882 = vpop.f32.mrf.mxu0
        %v3883 = vadd.f32 %v3818, %v3882
        %3884 = vmatmul.f32.gmra.mxu0 %v2145
        %v3885 = vpop.f32.mrf.mxu0
        %v3886 = vadd.f32 %v3821, %v3885
        %3887 = vmatmul.f32.gmra.mxu0 %v2147
        %v3888 = vpop.f32.mrf.mxu0
        %v3889 = vadd.f32 %v3824, %v3888
        %3890 = vmatmul.f32.gmra.mxu0 %v2149
        %v3891 = vpop.f32.mrf.mxu0
        %v3892 = vadd.f32 %v3827, %v3891
        %3893 = vmatmul.f32.gmra.mxu0 %v2151
        %v3894 = vpop.f32.mrf.mxu0
        %v3895 = vadd.f32 %v3830, %v3894
        %3896 = vmatmul.f32.gmra.mxu0 %v2153
        %v3897 = vpop.f32.mrf.mxu0
        %v3898 = vadd.f32 %v3833, %v3897
        %3899 = vmatmul.f32.gmra.mxu0 %v2155
        %v3900 = vpop.f32.mrf.mxu0
        %v3901 = vadd.f32 %v3836, %v3900
        %3902 = vmatmul.f32.gmra.mxu0 %v2157
        %v3903 = vpop.f32.mrf.mxu0
        %v3904 = vadd.f32 %v3839, %v3903
        %3905 = vmatmul.f32.gmra.mxu0 %v2159
        %v3906 = vpop.f32.mrf.mxu0
        %v3907 = vadd.f32 %v3842, %v3906
        %3908 = vmatmul.f32.gmra.mxu0 %v2161
        %v3909 = vpop.f32.mrf.mxu0
        %v3910 = vadd.f32 %v3845, %v3909
        %3911 = vmatmul.f32.gmra.mxu0 %v2163
        %v3912 = vpop.f32.mrf.mxu0
        %v3913 = vadd.f32 %v3848, %v3912
        %3914 = vdwg.mxu0
        %3915 = vmatpush.msra.mxu0 %v3736
        %3916 = vmatpush.msra.mxu0 %v3735
        %3917 = vmatpush.msra.mxu0 %v3734
        %3918 = vmatpush.msra.mxu0 %v3733
        %3919 = vmatpush.msra.mxu0 %v3732
        %3920 = vmatpush.msra.mxu0 %v3731
        %3921 = vmatpush.msra.mxu0 %v3730
        %3922 = vmatpush.msra.mxu0 %v3729
        %3923 = vmatpush.msra.mxu0 %v3728
        %3924 = vmatpush.msra.mxu0 %v3727
        %3925 = vmatpush.msra.mxu0 %v3726
        %3926 = vmatpush.msra.mxu0 %v3725
        %3927 = vmatpush.msra.mxu0 %v3724
        %3928 = vmatpush.msra.mxu0 %v3723
        %3929 = vmatpush.msra.mxu0 %v3722
        %3930 = vmatpush.msra.mxu0 %v3721
        %3931 = vmatmul.f32.gmra.mxu0 %v2068
        %v3932 = vpop.f32.mrf.mxu0
        %v3933 = vadd.f32 %v3868, %v3932
        %3934 = vmatmul.f32.gmra.mxu0 %v2070
        %v3935 = vpop.f32.mrf.mxu0
        %v3936 = vadd.f32 %v3871, %v3935
        %3937 = vmatmul.f32.gmra.mxu0 %v2072
        %v3938 = vpop.f32.mrf.mxu0
        %v3939 = vadd.f32 %v3874, %v3938
        %3940 = vmatmul.f32.gmra.mxu0 %v2074
        %v3941 = vpop.f32.mrf.mxu0
        %v3942 = vadd.f32 %v3877, %v3941
        %3943 = vmatmul.f32.gmra.mxu0 %v2076
        %v3944 = vpop.f32.mrf.mxu0
        %v3945 = vadd.f32 %v3880, %v3944
        %3946 = vmatmul.f32.gmra.mxu0 %v2078
        %v3947 = vpop.f32.mrf.mxu0
        %v3948 = vadd.f32 %v3883, %v3947
        %3949 = vmatmul.f32.gmra.mxu0 %v2080
        %v3950 = vpop.f32.mrf.mxu0
        %v3951 = vadd.f32 %v3886, %v3950
        %3952 = vmatmul.f32.gmra.mxu0 %v2082
        %v3953 = vpop.f32.mrf.mxu0
        %v3954 = vadd.f32 %v3889, %v3953
        %3955 = vmatmul.f32.gmra.mxu0 %v2084
        %v3956 = vpop.f32.mrf.mxu0
        %v3957 = vadd.f32 %v3892, %v3956
        %3958 = vmatmul.f32.gmra.mxu0 %v2086
        %v3959 = vpop.f32.mrf.mxu0
        %v3960 = vadd.f32 %v3895, %v3959
        %3961 = vmatmul.f32.gmra.mxu0 %v2088
        %v3962 = vpop.f32.mrf.mxu0
        %v3963 = vadd.f32 %v3898, %v3962
        %3964 = vmatmul.f32.gmra.mxu0 %v2090
        %v3965 = vpop.f32.mrf.mxu0
        %v3966 = vadd.f32 %v3901, %v3965
        %3967 = vmatmul.f32.gmra.mxu0 %v2092
        %v3968 = vpop.f32.mrf.mxu0
        %v3969 = vadd.f32 %v3904, %v3968
        %3970 = vmatmul.f32.gmra.mxu0 %v2094
        %v3971 = vpop.f32.mrf.mxu0
        %v3972 = vadd.f32 %v3907, %v3971
        %3973 = vmatmul.f32.gmra.mxu0 %v2096
        %v3974 = vpop.f32.mrf.mxu0
        %v3975 = vadd.f32 %v3910, %v3974
        %3976 = vmatmul.f32.gmra.mxu0 %v2098
        %v3977 = vpop.f32.mrf.mxu0
        %v3978 = vadd.f32 %v3913, %v3977
        %3979 = vdwg.mxu0
        %3980 = vmatpush.msra.mxu0 %v3752
        %3981 = vmatpush.msra.mxu0 %v3751
        %3982 = vmatpush.msra.mxu0 %v3750
        %3983 = vmatpush.msra.mxu0 %v3749
        %3984 = vmatpush.msra.mxu0 %v3748
        %3985 = vmatpush.msra.mxu0 %v3747
        %3986 = vmatpush.msra.mxu0 %v3746
        %3987 = vmatpush.msra.mxu0 %v3745
        %3988 = vmatpush.msra.mxu0 %v3744
        %3989 = vmatpush.msra.mxu0 %v3743
        %3990 = vmatpush.msra.mxu0 %v3742
        %3991 = vmatpush.msra.mxu0 %v3741
        %3992 = vmatpush.msra.mxu0 %v3740
        %3993 = vmatpush.msra.mxu0 %v3739
        %3994 = vmatpush.msra.mxu0 %v3738
        %3995 = vmatpush.msra.mxu0 %v3737
        %3996 = vmatmul.f32.gmra.mxu0 %v2069
        %v3997 = vpop.f32.mrf.mxu0
        %v3998 = vadd.f32 %v3933, %v3997
        %3999 = vmatmul.f32.gmra.mxu0 %v2071
        %v4000 = vpop.f32.mrf.mxu0
        %v4001 = vadd.f32 %v3936, %v4000
        %4002 = vmatmul.f32.gmra.mxu0 %v2073
        %v4003 = vpop.f32.mrf.mxu0
        %v4004 = vadd.f32 %v3939, %v4003
        %4005 = vmatmul.f32.gmra.mxu0 %v2075
        %v4006 = vpop.f32.mrf.mxu0
        %v4007 = vadd.f32 %v3942, %v4006
        %4008 = vmatmul.f32.gmra.mxu0 %v2077
        %v4009 = vpop.f32.mrf.mxu0
        %v4010 = vadd.f32 %v3945, %v4009
        %4011 = vmatmul.f32.gmra.mxu0 %v2079
        %v4012 = vpop.f32.mrf.mxu0
        %v4013 = vadd.f32 %v3948, %v4012
        %4014 = vmatmul.f32.gmra.mxu0 %v2081
        %v4015 = vpop.f32.mrf.mxu0
        %v4016 = vadd.f32 %v3951, %v4015
        %4017 = vmatmul.f32.gmra.mxu0 %v2083
        %v4018 = vpop.f32.mrf.mxu0
        %v4019 = vadd.f32 %v3954, %v4018
        %4020 = vmatmul.f32.gmra.mxu0 %v2085
        %v4021 = vpop.f32.mrf.mxu0
        %v4022 = vadd.f32 %v3957, %v4021
        %4023 = vmatmul.f32.gmra.mxu0 %v2087
        %v4024 = vpop.f32.mrf.mxu0
        %v4025 = vadd.f32 %v3960, %v4024
        %4026 = vmatmul.f32.gmra.mxu0 %v2089
        %v4027 = vpop.f32.mrf.mxu0
        %v4028 = vadd.f32 %v3963, %v4027
        %4029 = vmatmul.f32.gmra.mxu0 %v2091
        %v4030 = vpop.f32.mrf.mxu0
        %v4031 = vadd.f32 %v3966, %v4030
        %4032 = vmatmul.f32.gmra.mxu0 %v2093
        %v4033 = vpop.f32.mrf.mxu0
        %v4034 = vadd.f32 %v3969, %v4033
        %4035 = vmatmul.f32.gmra.mxu0 %v2095
        %v4036 = vpop.f32.mrf.mxu0
        %v4037 = vadd.f32 %v3972, %v4036
        %4038 = vmatmul.f32.gmra.mxu0 %v2097
        %v4039 = vpop.f32.mrf.mxu0
        %v4040 = vadd.f32 %v3975, %v4039
        %4041 = vmatmul.f32.gmra.mxu0 %v2099
        %v4042 = vpop.f32.mrf.mxu0
        %v4043 = vadd.f32 %v3978, %v4042
        %4044 = vdwg.mxu0
        %v4045 = vld [vmem:[%s3720 + $0x200] sm:$0xff]
        %v4046 = vld [vmem:[%s3720 + $0x208] sm:$0xff]
        %v4047 = vld [vmem:[%s3720 + $0x210] sm:$0xff]
        %v4048 = vld [vmem:[%s3720 + $0x218] sm:$0xff]
        %v4049 = vld [vmem:[%s3720 + $0x220] sm:$0xff]
        %v4050 = vld [vmem:[%s3720 + $0x228] sm:$0xff]
        %v4051 = vld [vmem:[%s3720 + $0x230] sm:$0xff]
        %v4052 = vld [vmem:[%s3720 + $0x238] sm:$0xff]
        %v4053 = vld [vmem:[%s3720 + $0x240] sm:$0xff]
        %v4054 = vld [vmem:[%s3720 + $0x248] sm:$0xff]
        %v4055 = vld [vmem:[%s3720 + $0x250] sm:$0xff]
        %v4056 = vld [vmem:[%s3720 + $0x258] sm:$0xff]
        %v4057 = vld [vmem:[%s3720 + $0x260] sm:$0xff]
        %v4058 = vld [vmem:[%s3720 + $0x268] sm:$0xff]
        %v4059 = vld [vmem:[%s3720 + $0x270] sm:$0xff]
        %v4060 = vld [vmem:[%s3720 + $0x278] sm:$0xff]
        %v4061 = vld [vmem:[%s3720 + $0x280] sm:$0xff]
        %v4062 = vld [vmem:[%s3720 + $0x288] sm:$0xff]
        %v4063 = vld [vmem:[%s3720 + $0x290] sm:$0xff]
        %v4064 = vld [vmem:[%s3720 + $0x298] sm:$0xff]
        %v4065 = vld [vmem:[%s3720 + $0x2a0] sm:$0xff]
        %v4066 = vld [vmem:[%s3720 + $0x2a8] sm:$0xff]
        %v4067 = vld [vmem:[%s3720 + $0x2b0] sm:$0xff]
        %v4068 = vld [vmem:[%s3720 + $0x2b8] sm:$0xff]
        %v4069 = vld [vmem:[%s3720 + $0x2c0] sm:$0xff]
        %v4070 = vld [vmem:[%s3720 + $0x2c8] sm:$0xff]
        %v4071 = vld [vmem:[%s3720 + $0x2d0] sm:$0xff]
        %v4072 = vld [vmem:[%s3720 + $0x2d8] sm:$0xff]
        %v4073 = vld [vmem:[%s3720 + $0x2e0] sm:$0xff]
        %v4074 = vld [vmem:[%s3720 + $0x2e8] sm:$0xff]
        %v4075 = vld [vmem:[%s3720 + $0x2f0] sm:$0xff]
        %v4076 = vld [vmem:[%s3720 + $0x2f8] sm:$0xff]
        %4077 = vmatpush.msra.mxu0 %v4060
        %4078 = vmatpush.msra.mxu0 %v4059
        %4079 = vmatpush.msra.mxu0 %v4058
        %4080 = vmatpush.msra.mxu0 %v4057
        %4081 = vmatpush.msra.mxu0 %v4056
        %4082 = vmatpush.msra.mxu0 %v4055
        %4083 = vmatpush.msra.mxu0 %v4054
        %4084 = vmatpush.msra.mxu0 %v4053
        %4085 = vmatpush.msra.mxu0 %v4052
        %4086 = vmatpush.msra.mxu0 %v4051
        %4087 = vmatpush.msra.mxu0 %v4050
        %4088 = vmatpush.msra.mxu0 %v4049
        %4089 = vmatpush.msra.mxu0 %v4048
        %4090 = vmatpush.msra.mxu0 %v4047
        %4091 = vmatpush.msra.mxu0 %v4046
        %4092 = vmatpush.msra.mxu0 %v4045
        %4093 = vmatmul.f32.gmra.mxu0 %v2456
        %v4094 = vpop.f32.mrf.mxu0
        %v4095 = vadd.f32 0.0, %v4094
        %4096 = vmatmul.f32.gmra.mxu0 %v2458
        %v4097 = vpop.f32.mrf.mxu0
        %v4098 = vadd.f32 0.0, %v4097
        %4099 = vmatmul.f32.gmra.mxu0 %v2460
        %v4100 = vpop.f32.mrf.mxu0
        %v4101 = vadd.f32 0.0, %v4100
        %4102 = vmatmul.f32.gmra.mxu0 %v2462
        %v4103 = vpop.f32.mrf.mxu0
        %v4104 = vadd.f32 0.0, %v4103
        %4105 = vmatmul.f32.gmra.mxu0 %v2464
        %v4106 = vpop.f32.mrf.mxu0
        %v4107 = vadd.f32 0.0, %v4106
        %4108 = vmatmul.f32.gmra.mxu0 %v2466
        %v4109 = vpop.f32.mrf.mxu0
        %v4110 = vadd.f32 0.0, %v4109
        %4111 = vmatmul.f32.gmra.mxu0 %v2468
        %v4112 = vpop.f32.mrf.mxu0
        %v4113 = vadd.f32 0.0, %v4112
        %4114 = vmatmul.f32.gmra.mxu0 %v2470
        %v4115 = vpop.f32.mrf.mxu0
        %v4116 = vadd.f32 0.0, %v4115
        %4117 = vmatmul.f32.gmra.mxu0 %v2472
        %v4118 = vpop.f32.mrf.mxu0
        %v4119 = vadd.f32 0.0, %v4118
        %4120 = vmatmul.f32.gmra.mxu0 %v2474
        %v4121 = vpop.f32.mrf.mxu0
        %v4122 = vadd.f32 0.0, %v4121
        %4123 = vmatmul.f32.gmra.mxu0 %v2476
        %v4124 = vpop.f32.mrf.mxu0
        %v4125 = vadd.f32 0.0, %v4124
        %4126 = vmatmul.f32.gmra.mxu0 %v2478
        %v4127 = vpop.f32.mrf.mxu0
        %v4128 = vadd.f32 0.0, %v4127
        %4129 = vmatmul.f32.gmra.mxu0 %v2480
        %v4130 = vpop.f32.mrf.mxu0
        %v4131 = vadd.f32 0.0, %v4130
        %4132 = vmatmul.f32.gmra.mxu0 %v2482
        %v4133 = vpop.f32.mrf.mxu0
        %v4134 = vadd.f32 0.0, %v4133
        %4135 = vmatmul.f32.gmra.mxu0 %v2484
        %v4136 = vpop.f32.mrf.mxu0
        %v4137 = vadd.f32 0.0, %v4136
        %4138 = vmatmul.f32.gmra.mxu0 %v2486
        %v4139 = vpop.f32.mrf.mxu0
        %v4140 = vadd.f32 0.0, %v4139
        %4141 = vdwg.mxu0
        %4142 = vmatpush.msra.mxu0 %v4076
        %4143 = vmatpush.msra.mxu0 %v4075
        %4144 = vmatpush.msra.mxu0 %v4074
        %4145 = vmatpush.msra.mxu0 %v4073
        %4146 = vmatpush.msra.mxu0 %v4072
        %4147 = vmatpush.msra.mxu0 %v4071
        %4148 = vmatpush.msra.mxu0 %v4070
        %4149 = vmatpush.msra.mxu0 %v4069
        %4150 = vmatpush.msra.mxu0 %v4068
        %4151 = vmatpush.msra.mxu0 %v4067
        %4152 = vmatpush.msra.mxu0 %v4066
        %4153 = vmatpush.msra.mxu0 %v4065
        %4154 = vmatpush.msra.mxu0 %v4064
        %4155 = vmatpush.msra.mxu0 %v4063
        %4156 = vmatpush.msra.mxu0 %v4062
        %4157 = vmatpush.msra.mxu0 %v4061
        %4158 = vmatmul.f32.gmra.mxu0 %v2457
        %v4159 = vpop.f32.mrf.mxu0
        %v4160 = vadd.f32 %v4095, %v4159
        %4161 = vmatmul.f32.gmra.mxu0 %v2459
        %v4162 = vpop.f32.mrf.mxu0
        %v4163 = vadd.f32 %v4098, %v4162
        %4164 = vmatmul.f32.gmra.mxu0 %v2461
        %v4165 = vpop.f32.mrf.mxu0
        %v4166 = vadd.f32 %v4101, %v4165
        %4167 = vmatmul.f32.gmra.mxu0 %v2463
        %v4168 = vpop.f32.mrf.mxu0
        %v4169 = vadd.f32 %v4104, %v4168
        %4170 = vmatmul.f32.gmra.mxu0 %v2465
        %v4171 = vpop.f32.mrf.mxu0
        %v4172 = vadd.f32 %v4107, %v4171
        %4173 = vmatmul.f32.gmra.mxu0 %v2467
        %v4174 = vpop.f32.mrf.mxu0
        %v4175 = vadd.f32 %v4110, %v4174
        %4176 = vmatmul.f32.gmra.mxu0 %v2469
        %v4177 = vpop.f32.mrf.mxu0
        %v4178 = vadd.f32 %v4113, %v4177
        %4179 = vmatmul.f32.gmra.mxu0 %v2471
        %v4180 = vpop.f32.mrf.mxu0
        %v4181 = vadd.f32 %v4116, %v4180
        %4182 = vmatmul.f32.gmra.mxu0 %v2473
        %v4183 = vpop.f32.mrf.mxu0
        %v4184 = vadd.f32 %v4119, %v4183
        %4185 = vmatmul.f32.gmra.mxu0 %v2475
        %v4186 = vpop.f32.mrf.mxu0
        %v4187 = vadd.f32 %v4122, %v4186
        %4188 = vmatmul.f32.gmra.mxu0 %v2477
        %v4189 = vpop.f32.mrf.mxu0
        %v4190 = vadd.f32 %v4125, %v4189
        %4191 = vmatmul.f32.gmra.mxu0 %v2479
        %v4192 = vpop.f32.mrf.mxu0
        %v4193 = vadd.f32 %v4128, %v4192
        %4194 = vmatmul.f32.gmra.mxu0 %v2481
        %v4195 = vpop.f32.mrf.mxu0
        %v4196 = vadd.f32 %v4131, %v4195
        %4197 = vmatmul.f32.gmra.mxu0 %v2483
        %v4198 = vpop.f32.mrf.mxu0
        %v4199 = vadd.f32 %v4134, %v4198
        %4200 = vmatmul.f32.gmra.mxu0 %v2485
        %v4201 = vpop.f32.mrf.mxu0
        %v4202 = vadd.f32 %v4137, %v4201
        %4203 = vmatmul.f32.gmra.mxu0 %v2487
        %v4204 = vpop.f32.mrf.mxu0
        %v4205 = vadd.f32 %v4140, %v4204
        %4206 = vdwg.mxu0
        %v4207 = vadd.f32 %v3998, %v4160
        %v4208 = vadd.f32 %v4001, %v4163
        %v4209 = vadd.f32 %v4004, %v4166
        %v4210 = vadd.f32 %v4007, %v4169
        %v4211 = vadd.f32 %v4010, %v4172
        %v4212 = vadd.f32 %v4013, %v4175
        %v4213 = vadd.f32 %v4016, %v4178
        %v4214 = vadd.f32 %v4019, %v4181
        %v4215 = vadd.f32 %v4022, %v4184
        %v4216 = vadd.f32 %v4025, %v4187
        %v4217 = vadd.f32 %v4028, %v4190
        %v4218 = vadd.f32 %v4031, %v4193
        %v4219 = vadd.f32 %v4034, %v4196
        %v4220 = vadd.f32 %v4037, %v4199
        %v4221 = vadd.f32 %v4040, %v4202
        %v4222 = vadd.f32 %v4043, %v4205
        %v4223 = vld [vmem:[%s3720 + $0x300] sm:$0xff]
        %v4224 = vld [vmem:[%s3720 + $0x308] sm:$0xff]
        %v4225 = vld [vmem:[%s3720 + $0x310] sm:$0xff]
        %v4226 = vld [vmem:[%s3720 + $0x318] sm:$0xff]
        %v4227 = vld [vmem:[%s3720 + $0x320] sm:$0xff]
        %v4228 = vld [vmem:[%s3720 + $0x328] sm:$0xff]
        %v4229 = vld [vmem:[%s3720 + $0x330] sm:$0xff]
        %v4230 = vld [vmem:[%s3720 + $0x338] sm:$0xff]
        %v4231 = vld [vmem:[%s3720 + $0x340] sm:$0xff]
        %v4232 = vld [vmem:[%s3720 + $0x348] sm:$0xff]
        %v4233 = vld [vmem:[%s3720 + $0x350] sm:$0xff]
        %v4234 = vld [vmem:[%s3720 + $0x358] sm:$0xff]
        %v4235 = vld [vmem:[%s3720 + $0x360] sm:$0xff]
        %v4236 = vld [vmem:[%s3720 + $0x368] sm:$0xff]
        %v4237 = vld [vmem:[%s3720 + $0x370] sm:$0xff]
        %v4238 = vld [vmem:[%s3720 + $0x378] sm:$0xff]
        %v4239 = vld [vmem:[%s3720 + $0x380] sm:$0xff]
        %v4240 = vld [vmem:[%s3720 + $0x388] sm:$0xff]
        %v4241 = vld [vmem:[%s3720 + $0x390] sm:$0xff]
        %v4242 = vld [vmem:[%s3720 + $0x398] sm:$0xff]
        %v4243 = vld [vmem:[%s3720 + $0x3a0] sm:$0xff]
        %v4244 = vld [vmem:[%s3720 + $0x3a8] sm:$0xff]
        %v4245 = vld [vmem:[%s3720 + $0x3b0] sm:$0xff]
        %v4246 = vld [vmem:[%s3720 + $0x3b8] sm:$0xff]
        %v4247 = vld [vmem:[%s3720 + $0x3c0] sm:$0xff]
        %v4248 = vld [vmem:[%s3720 + $0x3c8] sm:$0xff]
        %v4249 = vld [vmem:[%s3720 + $0x3d0] sm:$0xff]
        %v4250 = vld [vmem:[%s3720 + $0x3d8] sm:$0xff]
        %v4251 = vld [vmem:[%s3720 + $0x3e0] sm:$0xff]
        %v4252 = vld [vmem:[%s3720 + $0x3e8] sm:$0xff]
        %v4253 = vld [vmem:[%s3720 + $0x3f0] sm:$0xff]
        %v4254 = vld [vmem:[%s3720 + $0x3f8] sm:$0xff]
        %4255 = vmatpush.msra.mxu0 %v4238
        %4256 = vmatpush.msra.mxu0 %v4237
        %4257 = vmatpush.msra.mxu0 %v4236
        %4258 = vmatpush.msra.mxu0 %v4235
        %4259 = vmatpush.msra.mxu0 %v4234
        %4260 = vmatpush.msra.mxu0 %v4233
        %4261 = vmatpush.msra.mxu0 %v4232
        %4262 = vmatpush.msra.mxu0 %v4231
        %4263 = vmatpush.msra.mxu0 %v4230
        %4264 = vmatpush.msra.mxu0 %v4229
        %4265 = vmatpush.msra.mxu0 %v4228
        %4266 = vmatpush.msra.mxu0 %v4227
        %4267 = vmatpush.msra.mxu0 %v4226
        %4268 = vmatpush.msra.mxu0 %v4225
        %4269 = vmatpush.msra.mxu0 %v4224
        %4270 = vmatpush.msra.mxu0 %v4223
        %4271 = vmatmul.f32.gmra.mxu0 %v2666
        %v4272 = vpop.f32.mrf.mxu0
        %v4273 = vadd.f32 0.0, %v4272
        %4274 = vmatmul.f32.gmra.mxu0 %v2668
        %v4275 = vpop.f32.mrf.mxu0
        %v4276 = vadd.f32 0.0, %v4275
        %4277 = vmatmul.f32.gmra.mxu0 %v2670
        %v4278 = vpop.f32.mrf.mxu0
        %v4279 = vadd.f32 0.0, %v4278
        %4280 = vmatmul.f32.gmra.mxu0 %v2672
        %v4281 = vpop.f32.mrf.mxu0
        %v4282 = vadd.f32 0.0, %v4281
        %4283 = vmatmul.f32.gmra.mxu0 %v2674
        %v4284 = vpop.f32.mrf.mxu0
        %v4285 = vadd.f32 0.0, %v4284
        %4286 = vmatmul.f32.gmra.mxu0 %v2676
        %v4287 = vpop.f32.mrf.mxu0
        %v4288 = vadd.f32 0.0, %v4287
        %4289 = vmatmul.f32.gmra.mxu0 %v2678
        %v4290 = vpop.f32.mrf.mxu0
        %v4291 = vadd.f32 0.0, %v4290
        %4292 = vmatmul.f32.gmra.mxu0 %v2680
        %v4293 = vpop.f32.mrf.mxu0
        %v4294 = vadd.f32 0.0, %v4293
        %4295 = vmatmul.f32.gmra.mxu0 %v2682
        %v4296 = vpop.f32.mrf.mxu0
        %v4297 = vadd.f32 0.0, %v4296
        %4298 = vmatmul.f32.gmra.mxu0 %v2684
        %v4299 = vpop.f32.mrf.mxu0
        %v4300 = vadd.f32 0.0, %v4299
        %4301 = vmatmul.f32.gmra.mxu0 %v2686
        %v4302 = vpop.f32.mrf.mxu0
        %v4303 = vadd.f32 0.0, %v4302
        %4304 = vmatmul.f32.gmra.mxu0 %v2688
        %v4305 = vpop.f32.mrf.mxu0
        %v4306 = vadd.f32 0.0, %v4305
        %4307 = vmatmul.f32.gmra.mxu0 %v2690
        %v4308 = vpop.f32.mrf.mxu0
        %v4309 = vadd.f32 0.0, %v4308
        %4310 = vmatmul.f32.gmra.mxu0 %v2692
        %v4311 = vpop.f32.mrf.mxu0
        %v4312 = vadd.f32 0.0, %v4311
        %4313 = vmatmul.f32.gmra.mxu0 %v2694
        %v4314 = vpop.f32.mrf.mxu0
        %v4315 = vadd.f32 0.0, %v4314
        %4316 = vmatmul.f32.gmra.mxu0 %v2696
        %v4317 = vpop.f32.mrf.mxu0
        %v4318 = vadd.f32 0.0, %v4317
        %4319 = vdwg.mxu0
        %4320 = vmatpush.msra.mxu0 %v4254
        %4321 = vmatpush.msra.mxu0 %v4253
        %4322 = vmatpush.msra.mxu0 %v4252
        %4323 = vmatpush.msra.mxu0 %v4251
        %4324 = vmatpush.msra.mxu0 %v4250
        %4325 = vmatpush.msra.mxu0 %v4249
        %4326 = vmatpush.msra.mxu0 %v4248
        %4327 = vmatpush.msra.mxu0 %v4247
        %4328 = vmatpush.msra.mxu0 %v4246
        %4329 = vmatpush.msra.mxu0 %v4245
        %4330 = vmatpush.msra.mxu0 %v4244
        %4331 = vmatpush.msra.mxu0 %v4243
        %4332 = vmatpush.msra.mxu0 %v4242
        %4333 = vmatpush.msra.mxu0 %v4241
        %4334 = vmatpush.msra.mxu0 %v4240
        %4335 = vmatpush.msra.mxu0 %v4239
        %4336 = vmatmul.f32.gmra.mxu0 %v2667
        %v4337 = vpop.f32.mrf.mxu0
        %v4338 = vadd.f32 %v4273, %v4337
        %4339 = vmatmul.f32.gmra.mxu0 %v2669
        %v4340 = vpop.f32.mrf.mxu0
        %v4341 = vadd.f32 %v4276, %v4340
        %4342 = vmatmul.f32.gmra.mxu0 %v2671
        %v4343 = vpop.f32.mrf.mxu0
        %v4344 = vadd.f32 %v4279, %v4343
        %4345 = vmatmul.f32.gmra.mxu0 %v2673
        %v4346 = vpop.f32.mrf.mxu0
        %v4347 = vadd.f32 %v4282, %v4346
        %4348 = vmatmul.f32.gmra.mxu0 %v2675
        %v4349 = vpop.f32.mrf.mxu0
        %v4350 = vadd.f32 %v4285, %v4349
        %4351 = vmatmul.f32.gmra.mxu0 %v2677
        %v4352 = vpop.f32.mrf.mxu0
        %v4353 = vadd.f32 %v4288, %v4352
        %4354 = vmatmul.f32.gmra.mxu0 %v2679
        %v4355 = vpop.f32.mrf.mxu0
        %v4356 = vadd.f32 %v4291, %v4355
        %4357 = vmatmul.f32.gmra.mxu0 %v2681
        %v4358 = vpop.f32.mrf.mxu0
        %v4359 = vadd.f32 %v4294, %v4358
        %4360 = vmatmul.f32.gmra.mxu0 %v2683
        %v4361 = vpop.f32.mrf.mxu0
        %v4362 = vadd.f32 %v4297, %v4361
        %4363 = vmatmul.f32.gmra.mxu0 %v2685
        %v4364 = vpop.f32.mrf.mxu0
        %v4365 = vadd.f32 %v4300, %v4364
        %4366 = vmatmul.f32.gmra.mxu0 %v2687
        %v4367 = vpop.f32.mrf.mxu0
        %v4368 = vadd.f32 %v4303, %v4367
        %4369 = vmatmul.f32.gmra.mxu0 %v2689
        %v4370 = vpop.f32.mrf.mxu0
        %v4371 = vadd.f32 %v4306, %v4370
        %4372 = vmatmul.f32.gmra.mxu0 %v2691
        %v4373 = vpop.f32.mrf.mxu0
        %v4374 = vadd.f32 %v4309, %v4373
        %4375 = vmatmul.f32.gmra.mxu0 %v2693
        %v4376 = vpop.f32.mrf.mxu0
        %v4377 = vadd.f32 %v4312, %v4376
        %4378 = vmatmul.f32.gmra.mxu0 %v2695
        %v4379 = vpop.f32.mrf.mxu0
        %v4380 = vadd.f32 %v4315, %v4379
        %4381 = vmatmul.f32.gmra.mxu0 %v2697
        %v4382 = vpop.f32.mrf.mxu0
        %v4383 = vadd.f32 %v4318, %v4382
        %4384 = vdwg.mxu0
        %v4385 = vadd.f32 %v4207, %v4338
        %v4386 = vadd.f32 %v4208, %v4341
        %v4387 = vadd.f32 %v4209, %v4344
        %v4388 = vadd.f32 %v4210, %v4347
        %v4389 = vadd.f32 %v4211, %v4350
        %v4390 = vadd.f32 %v4212, %v4353
        %v4391 = vadd.f32 %v4213, %v4356
        %v4392 = vadd.f32 %v4214, %v4359
        %v4393 = vadd.f32 %v4215, %v4362
        %v4394 = vadd.f32 %v4216, %v4365
        %v4395 = vadd.f32 %v4217, %v4368
        %v4396 = vadd.f32 %v4218, %v4371
        %v4397 = vadd.f32 %v4219, %v4374
        %v4398 = vadd.f32 %v4220, %v4377
        %v4399 = vadd.f32 %v4221, %v4380
        %v4400 = vadd.f32 %v4222, %v4383
        %s4401 = scalar_lea.vmem %s5, 256
        %v4402 = vld [vmem:[%s4401] sm:$0xff]
        %v4403 = vld [vmem:[%s4401 + $0x8] sm:$0xff]
        %v4404 = vld [vmem:[%s4401 + $0x10] sm:$0xff]
        %v4405 = vld [vmem:[%s4401 + $0x18] sm:$0xff]
        %v4406 = vld [vmem:[%s4401 + $0x20] sm:$0xff]
        %v4407 = vld [vmem:[%s4401 + $0x28] sm:$0xff]
        %v4408 = vld [vmem:[%s4401 + $0x30] sm:$0xff]
        %v4409 = vld [vmem:[%s4401 + $0x38] sm:$0xff]
        %v4410 = vld [vmem:[%s4401 + $0x40] sm:$0xff]
        %v4411 = vld [vmem:[%s4401 + $0x48] sm:$0xff]
        %v4412 = vld [vmem:[%s4401 + $0x50] sm:$0xff]
        %v4413 = vld [vmem:[%s4401 + $0x58] sm:$0xff]
        %v4414 = vld [vmem:[%s4401 + $0x60] sm:$0xff]
        %v4415 = vld [vmem:[%s4401 + $0x68] sm:$0xff]
        %v4416 = vld [vmem:[%s4401 + $0x70] sm:$0xff]
        %v4417 = vld [vmem:[%s4401 + $0x78] sm:$0xff]
        %4418 = vmatpush.msra.mxu0 %v4400
        %4419 = vmatpush.msra.mxu0 %v4399
        %4420 = vmatpush.msra.mxu0 %v4398
        %4421 = vmatpush.msra.mxu0 %v4397
        %4422 = vmatpush.msra.mxu0 %v4396
        %4423 = vmatpush.msra.mxu0 %v4395
        %4424 = vmatpush.msra.mxu0 %v4394
        %4425 = vmatpush.msra.mxu0 %v4393
        %4426 = vmatpush.msra.mxu0 %v4392
        %4427 = vmatpush.msra.mxu0 %v4391
        %4428 = vmatpush.msra.mxu0 %v4390
        %4429 = vmatpush.msra.mxu0 %v4389
        %4430 = vmatpush.msra.mxu0 %v4388
        %4431 = vmatpush.msra.mxu0 %v4387
        %4432 = vmatpush.msra.mxu0 %v4386
        %4433 = vmatpush.msra.mxu0 %v4385
        %4434 = vmatmul.f32.gmra.mxu0 %v4402
        %v4435 = vpop.f32.mrf.mxu0
        %v4436 = vadd.f32 0.0, %v4435
        %4437 = vmatmul.f32.gmra.mxu0 %v4403
        %v4438 = vpop.f32.mrf.mxu0
        %v4439 = vadd.f32 0.0, %v4438
        %4440 = vmatmul.f32.gmra.mxu0 %v4404
        %v4441 = vpop.f32.mrf.mxu0
        %v4442 = vadd.f32 0.0, %v4441
        %4443 = vmatmul.f32.gmra.mxu0 %v4405
        %v4444 = vpop.f32.mrf.mxu0
        %v4445 = vadd.f32 0.0, %v4444
        %4446 = vmatmul.f32.gmra.mxu0 %v4406
        %v4447 = vpop.f32.mrf.mxu0
        %v4448 = vadd.f32 0.0, %v4447
        %4449 = vmatmul.f32.gmra.mxu0 %v4407
        %v4450 = vpop.f32.mrf.mxu0
        %v4451 = vadd.f32 0.0, %v4450
        %4452 = vmatmul.f32.gmra.mxu0 %v4408
        %v4453 = vpop.f32.mrf.mxu0
        %v4454 = vadd.f32 0.0, %v4453
        %4455 = vmatmul.f32.gmra.mxu0 %v4409
        %v4456 = vpop.f32.mrf.mxu0
        %v4457 = vadd.f32 0.0, %v4456
        %4458 = vmatmul.f32.gmra.mxu0 %v4410
        %v4459 = vpop.f32.mrf.mxu0
        %v4460 = vadd.f32 0.0, %v4459
        %4461 = vmatmul.f32.gmra.mxu0 %v4411
        %v4462 = vpop.f32.mrf.mxu0
        %v4463 = vadd.f32 0.0, %v4462
        %4464 = vmatmul.f32.gmra.mxu0 %v4412
        %v4465 = vpop.f32.mrf.mxu0
        %v4466 = vadd.f32 0.0, %v4465
        %4467 = vmatmul.f32.gmra.mxu0 %v4413
        %v4468 = vpop.f32.mrf.mxu0
        %v4469 = vadd.f32 0.0, %v4468
        %4470 = vmatmul.f32.gmra.mxu0 %v4414
        %v4471 = vpop.f32.mrf.mxu0
        %v4472 = vadd.f32 0.0, %v4471
        %4473 = vmatmul.f32.gmra.mxu0 %v4415
        %v4474 = vpop.f32.mrf.mxu0
        %v4475 = vadd.f32 0.0, %v4474
        %4476 = vmatmul.f32.gmra.mxu0 %v4416
        %v4477 = vpop.f32.mrf.mxu0
        %v4478 = vadd.f32 0.0, %v4477
        %4479 = vmatmul.f32.gmra.mxu0 %v4417
        %v4480 = vpop.f32.mrf.mxu0
        %v4481 = vadd.f32 0.0, %v4480
        %4482 = vdwg.mxu0
        %v4483 = vadd.f32 %v3673, %v4436
        %v4484 = vadd.f32 %v3676, %v4439
        %v4485 = vadd.f32 %v3679, %v4442
        %v4486 = vadd.f32 %v3682, %v4445
        %v4487 = vadd.f32 %v3685, %v4448
        %v4488 = vadd.f32 %v3688, %v4451
        %v4489 = vadd.f32 %v3691, %v4454
        %v4490 = vadd.f32 %v3694, %v4457
        %v4491 = vadd.f32 %v3697, %v4460
        %v4492 = vadd.f32 %v3700, %v4463
        %v4493 = vadd.f32 %v3703, %v4466
        %v4494 = vadd.f32 %v3706, %v4469
        %v4495 = vadd.f32 %v3709, %v4472
        %v4496 = vadd.f32 %v3712, %v4475
        %v4497 = vadd.f32 %v3715, %v4478
        %v4498 = vadd.f32 %v3718, %v4481
        %s4499 = scalar_lea.vmem %s3, 3072
        %v4500 = vld [vmem:[%s4499] sm:$0xff]
        %v4501 = vld [vmem:[%s4499 + $0x8] sm:$0xff]
        %v4502 = vld [vmem:[%s4499 + $0x10] sm:$0xff]
        %v4503 = vld [vmem:[%s4499 + $0x18] sm:$0xff]
        %v4504 = vld [vmem:[%s4499 + $0x20] sm:$0xff]
        %v4505 = vld [vmem:[%s4499 + $0x28] sm:$0xff]
        %v4506 = vld [vmem:[%s4499 + $0x30] sm:$0xff]
        %v4507 = vld [vmem:[%s4499 + $0x38] sm:$0xff]
        %v4508 = vld [vmem:[%s4499 + $0x40] sm:$0xff]
        %v4509 = vld [vmem:[%s4499 + $0x48] sm:$0xff]
        %v4510 = vld [vmem:[%s4499 + $0x50] sm:$0xff]
        %v4511 = vld [vmem:[%s4499 + $0x58] sm:$0xff]
        %v4512 = vld [vmem:[%s4499 + $0x60] sm:$0xff]
        %v4513 = vld [vmem:[%s4499 + $0x68] sm:$0xff]
        %v4514 = vld [vmem:[%s4499 + $0x70] sm:$0xff]
        %v4515 = vld [vmem:[%s4499 + $0x78] sm:$0xff]
        %v4516 = vld [vmem:[%s4499 + $0x80] sm:$0xff]
        %v4517 = vld [vmem:[%s4499 + $0x88] sm:$0xff]
        %v4518 = vld [vmem:[%s4499 + $0x90] sm:$0xff]
        %v4519 = vld [vmem:[%s4499 + $0x98] sm:$0xff]
        %v4520 = vld [vmem:[%s4499 + $0xa0] sm:$0xff]
        %v4521 = vld [vmem:[%s4499 + $0xa8] sm:$0xff]
        %v4522 = vld [vmem:[%s4499 + $0xb0] sm:$0xff]
        %v4523 = vld [vmem:[%s4499 + $0xb8] sm:$0xff]
        %v4524 = vld [vmem:[%s4499 + $0xc0] sm:$0xff]
        %v4525 = vld [vmem:[%s4499 + $0xc8] sm:$0xff]
        %v4526 = vld [vmem:[%s4499 + $0xd0] sm:$0xff]
        %v4527 = vld [vmem:[%s4499 + $0xd8] sm:$0xff]
        %v4528 = vld [vmem:[%s4499 + $0xe0] sm:$0xff]
        %v4529 = vld [vmem:[%s4499 + $0xe8] sm:$0xff]
        %v4530 = vld [vmem:[%s4499 + $0xf0] sm:$0xff]
        %v4531 = vld [vmem:[%s4499 + $0xf8] sm:$0xff]
        %v4532 = vld [vmem:[%s4499 + $0x100] sm:$0xff]
        %v4533 = vld [vmem:[%s4499 + $0x108] sm:$0xff]
        %v4534 = vld [vmem:[%s4499 + $0x110] sm:$0xff]
        %v4535 = vld [vmem:[%s4499 + $0x118] sm:$0xff]
        %v4536 = vld [vmem:[%s4499 + $0x120] sm:$0xff]
        %v4537 = vld [vmem:[%s4499 + $0x128] sm:$0xff]
        %v4538 = vld [vmem:[%s4499 + $0x130] sm:$0xff]
        %v4539 = vld [vmem:[%s4499 + $0x138] sm:$0xff]
        %v4540 = vld [vmem:[%s4499 + $0x140] sm:$0xff]
        %v4541 = vld [vmem:[%s4499 + $0x148] sm:$0xff]
        %v4542 = vld [vmem:[%s4499 + $0x150] sm:$0xff]
        %v4543 = vld [vmem:[%s4499 + $0x158] sm:$0xff]
        %v4544 = vld [vmem:[%s4499 + $0x160] sm:$0xff]
        %v4545 = vld [vmem:[%s4499 + $0x168] sm:$0xff]
        %v4546 = vld [vmem:[%s4499 + $0x170] sm:$0xff]
        %v4547 = vld [vmem:[%s4499 + $0x178] sm:$0xff]
        %v4548 = vld [vmem:[%s4499 + $0x180] sm:$0xff]
        %v4549 = vld [vmem:[%s4499 + $0x188] sm:$0xff]
        %v4550 = vld [vmem:[%s4499 + $0x190] sm:$0xff]
        %v4551 = vld [vmem:[%s4499 + $0x198] sm:$0xff]
        %v4552 = vld [vmem:[%s4499 + $0x1a0] sm:$0xff]
        %v4553 = vld [vmem:[%s4499 + $0x1a8] sm:$0xff]
        %v4554 = vld [vmem:[%s4499 + $0x1b0] sm:$0xff]
        %v4555 = vld [vmem:[%s4499 + $0x1b8] sm:$0xff]
        %v4556 = vld [vmem:[%s4499 + $0x1c0] sm:$0xff]
        %v4557 = vld [vmem:[%s4499 + $0x1c8] sm:$0xff]
        %v4558 = vld [vmem:[%s4499 + $0x1d0] sm:$0xff]
        %v4559 = vld [vmem:[%s4499 + $0x1d8] sm:$0xff]
        %v4560 = vld [vmem:[%s4499 + $0x1e0] sm:$0xff]
        %v4561 = vld [vmem:[%s4499 + $0x1e8] sm:$0xff]
        %v4562 = vld [vmem:[%s4499 + $0x1f0] sm:$0xff]
        %v4563 = vld [vmem:[%s4499 + $0x1f8] sm:$0xff]
        %4564 = vmatpush.msra.mxu0 %v4547
        %4565 = vmatpush.msra.mxu0 %v4546
        %4566 = vmatpush.msra.mxu0 %v4545
        %4567 = vmatpush.msra.mxu0 %v4544
        %4568 = vmatpush.msra.mxu0 %v4543
        %4569 = vmatpush.msra.mxu0 %v4542
        %4570 = vmatpush.msra.mxu0 %v4541
        %4571 = vmatpush.msra.mxu0 %v4540
        %4572 = vmatpush.msra.mxu0 %v4539
        %4573 = vmatpush.msra.mxu0 %v4538
        %4574 = vmatpush.msra.mxu0 %v4537
        %4575 = vmatpush.msra.mxu0 %v4536
        %4576 = vmatpush.msra.mxu0 %v4535
        %4577 = vmatpush.msra.mxu0 %v4534
        %4578 = vmatpush.msra.mxu0 %v4533
        %4579 = vmatpush.msra.mxu0 %v4532
        %4580 = vmatmul.f32.gmra.mxu0 %v2132
        %v4581 = vpop.f32.mrf.mxu0
        %v4582 = vadd.f32 0.0, %v4581
        %4583 = vmatmul.f32.gmra.mxu0 %v2134
        %v4584 = vpop.f32.mrf.mxu0
        %v4585 = vadd.f32 0.0, %v4584
        %4586 = vmatmul.f32.gmra.mxu0 %v2136
        %v4587 = vpop.f32.mrf.mxu0
        %v4588 = vadd.f32 0.0, %v4587
        %4589 = vmatmul.f32.gmra.mxu0 %v2138
        %v4590 = vpop.f32.mrf.mxu0
        %v4591 = vadd.f32 0.0, %v4590
        %4592 = vmatmul.f32.gmra.mxu0 %v2140
        %v4593 = vpop.f32.mrf.mxu0
        %v4594 = vadd.f32 0.0, %v4593
        %4595 = vmatmul.f32.gmra.mxu0 %v2142
        %v4596 = vpop.f32.mrf.mxu0
        %v4597 = vadd.f32 0.0, %v4596
        %4598 = vmatmul.f32.gmra.mxu0 %v2144
        %v4599 = vpop.f32.mrf.mxu0
        %v4600 = vadd.f32 0.0, %v4599
        %4601 = vmatmul.f32.gmra.mxu0 %v2146
        %v4602 = vpop.f32.mrf.mxu0
        %v4603 = vadd.f32 0.0, %v4602
        %4604 = vmatmul.f32.gmra.mxu0 %v2148
        %v4605 = vpop.f32.mrf.mxu0
        %v4606 = vadd.f32 0.0, %v4605
        %4607 = vmatmul.f32.gmra.mxu0 %v2150
        %v4608 = vpop.f32.mrf.mxu0
        %v4609 = vadd.f32 0.0, %v4608
        %4610 = vmatmul.f32.gmra.mxu0 %v2152
        %v4611 = vpop.f32.mrf.mxu0
        %v4612 = vadd.f32 0.0, %v4611
        %4613 = vmatmul.f32.gmra.mxu0 %v2154
        %v4614 = vpop.f32.mrf.mxu0
        %v4615 = vadd.f32 0.0, %v4614
        %4616 = vmatmul.f32.gmra.mxu0 %v2156
        %v4617 = vpop.f32.mrf.mxu0
        %v4618 = vadd.f32 0.0, %v4617
        %4619 = vmatmul.f32.gmra.mxu0 %v2158
        %v4620 = vpop.f32.mrf.mxu0
        %v4621 = vadd.f32 0.0, %v4620
        %4622 = vmatmul.f32.gmra.mxu0 %v2160
        %v4623 = vpop.f32.mrf.mxu0
        %v4624 = vadd.f32 0.0, %v4623
        %4625 = vmatmul.f32.gmra.mxu0 %v2162
        %v4626 = vpop.f32.mrf.mxu0
        %v4627 = vadd.f32 0.0, %v4626
        %4628 = vdwg.mxu0
        %4629 = vmatpush.msra.mxu0 %v4563
        %4630 = vmatpush.msra.mxu0 %v4562
        %4631 = vmatpush.msra.mxu0 %v4561
        %4632 = vmatpush.msra.mxu0 %v4560
        %4633 = vmatpush.msra.mxu0 %v4559
        %4634 = vmatpush.msra.mxu0 %v4558
        %4635 = vmatpush.msra.mxu0 %v4557
        %4636 = vmatpush.msra.mxu0 %v4556
        %4637 = vmatpush.msra.mxu0 %v4555
        %4638 = vmatpush.msra.mxu0 %v4554
        %4639 = vmatpush.msra.mxu0 %v4553
        %4640 = vmatpush.msra.mxu0 %v4552
        %4641 = vmatpush.msra.mxu0 %v4551
        %4642 = vmatpush.msra.mxu0 %v4550
        %4643 = vmatpush.msra.mxu0 %v4549
        %4644 = vmatpush.msra.mxu0 %v4548
        %4645 = vmatmul.f32.gmra.mxu0 %v2133
        %v4646 = vpop.f32.mrf.mxu0
        %v4647 = vadd.f32 %v4582, %v4646
        %4648 = vmatmul.f32.gmra.mxu0 %v2135
        %v4649 = vpop.f32.mrf.mxu0
        %v4650 = vadd.f32 %v4585, %v4649
        %4651 = vmatmul.f32.gmra.mxu0 %v2137
        %v4652 = vpop.f32.mrf.mxu0
        %v4653 = vadd.f32 %v4588, %v4652
        %4654 = vmatmul.f32.gmra.mxu0 %v2139
        %v4655 = vpop.f32.mrf.mxu0
        %v4656 = vadd.f32 %v4591, %v4655
        %4657 = vmatmul.f32.gmra.mxu0 %v2141
        %v4658 = vpop.f32.mrf.mxu0
        %v4659 = vadd.f32 %v4594, %v4658
        %4660 = vmatmul.f32.gmra.mxu0 %v2143
        %v4661 = vpop.f32.mrf.mxu0
        %v4662 = vadd.f32 %v4597, %v4661
        %4663 = vmatmul.f32.gmra.mxu0 %v2145
        %v4664 = vpop.f32.mrf.mxu0
        %v4665 = vadd.f32 %v4600, %v4664
        %4666 = vmatmul.f32.gmra.mxu0 %v2147
        %v4667 = vpop.f32.mrf.mxu0
        %v4668 = vadd.f32 %v4603, %v4667
        %4669 = vmatmul.f32.gmra.mxu0 %v2149
        %v4670 = vpop.f32.mrf.mxu0
        %v4671 = vadd.f32 %v4606, %v4670
        %4672 = vmatmul.f32.gmra.mxu0 %v2151
        %v4673 = vpop.f32.mrf.mxu0
        %v4674 = vadd.f32 %v4609, %v4673
        %4675 = vmatmul.f32.gmra.mxu0 %v2153
        %v4676 = vpop.f32.mrf.mxu0
        %v4677 = vadd.f32 %v4612, %v4676
        %4678 = vmatmul.f32.gmra.mxu0 %v2155
        %v4679 = vpop.f32.mrf.mxu0
        %v4680 = vadd.f32 %v4615, %v4679
        %4681 = vmatmul.f32.gmra.mxu0 %v2157
        %v4682 = vpop.f32.mrf.mxu0
        %v4683 = vadd.f32 %v4618, %v4682
        %4684 = vmatmul.f32.gmra.mxu0 %v2159
        %v4685 = vpop.f32.mrf.mxu0
        %v4686 = vadd.f32 %v4621, %v4685
        %4687 = vmatmul.f32.gmra.mxu0 %v2161
        %v4688 = vpop.f32.mrf.mxu0
        %v4689 = vadd.f32 %v4624, %v4688
        %4690 = vmatmul.f32.gmra.mxu0 %v2163
        %v4691 = vpop.f32.mrf.mxu0
        %v4692 = vadd.f32 %v4627, %v4691
        %4693 = vdwg.mxu0
        %4694 = vmatpush.msra.mxu0 %v4515
        %4695 = vmatpush.msra.mxu0 %v4514
        %4696 = vmatpush.msra.mxu0 %v4513
        %4697 = vmatpush.msra.mxu0 %v4512
        %4698 = vmatpush.msra.mxu0 %v4511
        %4699 = vmatpush.msra.mxu0 %v4510
        %4700 = vmatpush.msra.mxu0 %v4509
        %4701 = vmatpush.msra.mxu0 %v4508
        %4702 = vmatpush.msra.mxu0 %v4507
        %4703 = vmatpush.msra.mxu0 %v4506
        %4704 = vmatpush.msra.mxu0 %v4505
        %4705 = vmatpush.msra.mxu0 %v4504
        %4706 = vmatpush.msra.mxu0 %v4503
        %4707 = vmatpush.msra.mxu0 %v4502
        %4708 = vmatpush.msra.mxu0 %v4501
        %4709 = vmatpush.msra.mxu0 %v4500
        %4710 = vmatmul.f32.gmra.mxu0 %v2068
        %v4711 = vpop.f32.mrf.mxu0
        %v4712 = vadd.f32 %v4647, %v4711
        %4713 = vmatmul.f32.gmra.mxu0 %v2070
        %v4714 = vpop.f32.mrf.mxu0
        %v4715 = vadd.f32 %v4650, %v4714
        %4716 = vmatmul.f32.gmra.mxu0 %v2072
        %v4717 = vpop.f32.mrf.mxu0
        %v4718 = vadd.f32 %v4653, %v4717
        %4719 = vmatmul.f32.gmra.mxu0 %v2074
        %v4720 = vpop.f32.mrf.mxu0
        %v4721 = vadd.f32 %v4656, %v4720
        %4722 = vmatmul.f32.gmra.mxu0 %v2076
        %v4723 = vpop.f32.mrf.mxu0
        %v4724 = vadd.f32 %v4659, %v4723
        %4725 = vmatmul.f32.gmra.mxu0 %v2078
        %v4726 = vpop.f32.mrf.mxu0
        %v4727 = vadd.f32 %v4662, %v4726
        %4728 = vmatmul.f32.gmra.mxu0 %v2080
        %v4729 = vpop.f32.mrf.mxu0
        %v4730 = vadd.f32 %v4665, %v4729
        %4731 = vmatmul.f32.gmra.mxu0 %v2082
        %v4732 = vpop.f32.mrf.mxu0
        %v4733 = vadd.f32 %v4668, %v4732
        %4734 = vmatmul.f32.gmra.mxu0 %v2084
        %v4735 = vpop.f32.mrf.mxu0
        %v4736 = vadd.f32 %v4671, %v4735
        %4737 = vmatmul.f32.gmra.mxu0 %v2086
        %v4738 = vpop.f32.mrf.mxu0
        %v4739 = vadd.f32 %v4674, %v4738
        %4740 = vmatmul.f32.gmra.mxu0 %v2088
        %v4741 = vpop.f32.mrf.mxu0
        %v4742 = vadd.f32 %v4677, %v4741
        %4743 = vmatmul.f32.gmra.mxu0 %v2090
        %v4744 = vpop.f32.mrf.mxu0
        %v4745 = vadd.f32 %v4680, %v4744
        %4746 = vmatmul.f32.gmra.mxu0 %v2092
        %v4747 = vpop.f32.mrf.mxu0
        %v4748 = vadd.f32 %v4683, %v4747
        %4749 = vmatmul.f32.gmra.mxu0 %v2094
        %v4750 = vpop.f32.mrf.mxu0
        %v4751 = vadd.f32 %v4686, %v4750
        %4752 = vmatmul.f32.gmra.mxu0 %v2096
        %v4753 = vpop.f32.mrf.mxu0
        %v4754 = vadd.f32 %v4689, %v4753
        %4755 = vmatmul.f32.gmra.mxu0 %v2098
        %v4756 = vpop.f32.mrf.mxu0
        %v4757 = vadd.f32 %v4692, %v4756
        %4758 = vdwg.mxu0
        %4759 = vmatpush.msra.mxu0 %v4531
        %4760 = vmatpush.msra.mxu0 %v4530
        %4761 = vmatpush.msra.mxu0 %v4529
        %4762 = vmatpush.msra.mxu0 %v4528
        %4763 = vmatpush.msra.mxu0 %v4527
        %4764 = vmatpush.msra.mxu0 %v4526
        %4765 = vmatpush.msra.mxu0 %v4525
        %4766 = vmatpush.msra.mxu0 %v4524
        %4767 = vmatpush.msra.mxu0 %v4523
        %4768 = vmatpush.msra.mxu0 %v4522
        %4769 = vmatpush.msra.mxu0 %v4521
        %4770 = vmatpush.msra.mxu0 %v4520
        %4771 = vmatpush.msra.mxu0 %v4519
        %4772 = vmatpush.msra.mxu0 %v4518
        %4773 = vmatpush.msra.mxu0 %v4517
        %4774 = vmatpush.msra.mxu0 %v4516
        %4775 = vmatmul.f32.gmra.mxu0 %v2069
        %v4776 = vpop.f32.mrf.mxu0
        %v4777 = vadd.f32 %v4712, %v4776
        %4778 = vmatmul.f32.gmra.mxu0 %v2071
        %v4779 = vpop.f32.mrf.mxu0
        %v4780 = vadd.f32 %v4715, %v4779
        %4781 = vmatmul.f32.gmra.mxu0 %v2073
        %v4782 = vpop.f32.mrf.mxu0
        %v4783 = vadd.f32 %v4718, %v4782
        %4784 = vmatmul.f32.gmra.mxu0 %v2075
        %v4785 = vpop.f32.mrf.mxu0
        %v4786 = vadd.f32 %v4721, %v4785
        %4787 = vmatmul.f32.gmra.mxu0 %v2077
        %v4788 = vpop.f32.mrf.mxu0
        %v4789 = vadd.f32 %v4724, %v4788
        %4790 = vmatmul.f32.gmra.mxu0 %v2079
        %v4791 = vpop.f32.mrf.mxu0
        %v4792 = vadd.f32 %v4727, %v4791
        %4793 = vmatmul.f32.gmra.mxu0 %v2081
        %v4794 = vpop.f32.mrf.mxu0
        %v4795 = vadd.f32 %v4730, %v4794
        %4796 = vmatmul.f32.gmra.mxu0 %v2083
        %v4797 = vpop.f32.mrf.mxu0
        %v4798 = vadd.f32 %v4733, %v4797
        %4799 = vmatmul.f32.gmra.mxu0 %v2085
        %v4800 = vpop.f32.mrf.mxu0
        %v4801 = vadd.f32 %v4736, %v4800
        %4802 = vmatmul.f32.gmra.mxu0 %v2087
        %v4803 = vpop.f32.mrf.mxu0
        %v4804 = vadd.f32 %v4739, %v4803
        %4805 = vmatmul.f32.gmra.mxu0 %v2089
        %v4806 = vpop.f32.mrf.mxu0
        %v4807 = vadd.f32 %v4742, %v4806
        %4808 = vmatmul.f32.gmra.mxu0 %v2091
        %v4809 = vpop.f32.mrf.mxu0
        %v4810 = vadd.f32 %v4745, %v4809
        %4811 = vmatmul.f32.gmra.mxu0 %v2093
        %v4812 = vpop.f32.mrf.mxu0
        %v4813 = vadd.f32 %v4748, %v4812
        %4814 = vmatmul.f32.gmra.mxu0 %v2095
        %v4815 = vpop.f32.mrf.mxu0
        %v4816 = vadd.f32 %v4751, %v4815
        %4817 = vmatmul.f32.gmra.mxu0 %v2097
        %v4818 = vpop.f32.mrf.mxu0
        %v4819 = vadd.f32 %v4754, %v4818
        %4820 = vmatmul.f32.gmra.mxu0 %v2099
        %v4821 = vpop.f32.mrf.mxu0
        %v4822 = vadd.f32 %v4757, %v4821
        %4823 = vdwg.mxu0
        %v4824 = vld [vmem:[%s4499 + $0x200] sm:$0xff]
        %v4825 = vld [vmem:[%s4499 + $0x208] sm:$0xff]
        %v4826 = vld [vmem:[%s4499 + $0x210] sm:$0xff]
        %v4827 = vld [vmem:[%s4499 + $0x218] sm:$0xff]
        %v4828 = vld [vmem:[%s4499 + $0x220] sm:$0xff]
        %v4829 = vld [vmem:[%s4499 + $0x228] sm:$0xff]
        %v4830 = vld [vmem:[%s4499 + $0x230] sm:$0xff]
        %v4831 = vld [vmem:[%s4499 + $0x238] sm:$0xff]
        %v4832 = vld [vmem:[%s4499 + $0x240] sm:$0xff]
        %v4833 = vld [vmem:[%s4499 + $0x248] sm:$0xff]
        %v4834 = vld [vmem:[%s4499 + $0x250] sm:$0xff]
        %v4835 = vld [vmem:[%s4499 + $0x258] sm:$0xff]
        %v4836 = vld [vmem:[%s4499 + $0x260] sm:$0xff]
        %v4837 = vld [vmem:[%s4499 + $0x268] sm:$0xff]
        %v4838 = vld [vmem:[%s4499 + $0x270] sm:$0xff]
        %v4839 = vld [vmem:[%s4499 + $0x278] sm:$0xff]
        %v4840 = vld [vmem:[%s4499 + $0x280] sm:$0xff]
        %v4841 = vld [vmem:[%s4499 + $0x288] sm:$0xff]
        %v4842 = vld [vmem:[%s4499 + $0x290] sm:$0xff]
        %v4843 = vld [vmem:[%s4499 + $0x298] sm:$0xff]
        %v4844 = vld [vmem:[%s4499 + $0x2a0] sm:$0xff]
        %v4845 = vld [vmem:[%s4499 + $0x2a8] sm:$0xff]
        %v4846 = vld [vmem:[%s4499 + $0x2b0] sm:$0xff]
        %v4847 = vld [vmem:[%s4499 + $0x2b8] sm:$0xff]
        %v4848 = vld [vmem:[%s4499 + $0x2c0] sm:$0xff]
        %v4849 = vld [vmem:[%s4499 + $0x2c8] sm:$0xff]
        %v4850 = vld [vmem:[%s4499 + $0x2d0] sm:$0xff]
        %v4851 = vld [vmem:[%s4499 + $0x2d8] sm:$0xff]
        %v4852 = vld [vmem:[%s4499 + $0x2e0] sm:$0xff]
        %v4853 = vld [vmem:[%s4499 + $0x2e8] sm:$0xff]
        %v4854 = vld [vmem:[%s4499 + $0x2f0] sm:$0xff]
        %v4855 = vld [vmem:[%s4499 + $0x2f8] sm:$0xff]
        %4856 = vmatpush.msra.mxu0 %v4839
        %4857 = vmatpush.msra.mxu0 %v4838
        %4858 = vmatpush.msra.mxu0 %v4837
        %4859 = vmatpush.msra.mxu0 %v4836
        %4860 = vmatpush.msra.mxu0 %v4835
        %4861 = vmatpush.msra.mxu0 %v4834
        %4862 = vmatpush.msra.mxu0 %v4833
        %4863 = vmatpush.msra.mxu0 %v4832
        %4864 = vmatpush.msra.mxu0 %v4831
        %4865 = vmatpush.msra.mxu0 %v4830
        %4866 = vmatpush.msra.mxu0 %v4829
        %4867 = vmatpush.msra.mxu0 %v4828
        %4868 = vmatpush.msra.mxu0 %v4827
        %4869 = vmatpush.msra.mxu0 %v4826
        %4870 = vmatpush.msra.mxu0 %v4825
        %4871 = vmatpush.msra.mxu0 %v4824
        %4872 = vmatmul.f32.gmra.mxu0 %v2456
        %v4873 = vpop.f32.mrf.mxu0
        %v4874 = vadd.f32 0.0, %v4873
        %4875 = vmatmul.f32.gmra.mxu0 %v2458
        %v4876 = vpop.f32.mrf.mxu0
        %v4877 = vadd.f32 0.0, %v4876
        %4878 = vmatmul.f32.gmra.mxu0 %v2460
        %v4879 = vpop.f32.mrf.mxu0
        %v4880 = vadd.f32 0.0, %v4879
        %4881 = vmatmul.f32.gmra.mxu0 %v2462
        %v4882 = vpop.f32.mrf.mxu0
        %v4883 = vadd.f32 0.0, %v4882
        %4884 = vmatmul.f32.gmra.mxu0 %v2464
        %v4885 = vpop.f32.mrf.mxu0
        %v4886 = vadd.f32 0.0, %v4885
        %4887 = vmatmul.f32.gmra.mxu0 %v2466
        %v4888 = vpop.f32.mrf.mxu0
        %v4889 = vadd.f32 0.0, %v4888
        %4890 = vmatmul.f32.gmra.mxu0 %v2468
        %v4891 = vpop.f32.mrf.mxu0
        %v4892 = vadd.f32 0.0, %v4891
        %4893 = vmatmul.f32.gmra.mxu0 %v2470
        %v4894 = vpop.f32.mrf.mxu0
        %v4895 = vadd.f32 0.0, %v4894
        %4896 = vmatmul.f32.gmra.mxu0 %v2472
        %v4897 = vpop.f32.mrf.mxu0
        %v4898 = vadd.f32 0.0, %v4897
        %4899 = vmatmul.f32.gmra.mxu0 %v2474
        %v4900 = vpop.f32.mrf.mxu0
        %v4901 = vadd.f32 0.0, %v4900
        %4902 = vmatmul.f32.gmra.mxu0 %v2476
        %v4903 = vpop.f32.mrf.mxu0
        %v4904 = vadd.f32 0.0, %v4903
        %4905 = vmatmul.f32.gmra.mxu0 %v2478
        %v4906 = vpop.f32.mrf.mxu0
        %v4907 = vadd.f32 0.0, %v4906
        %4908 = vmatmul.f32.gmra.mxu0 %v2480
        %v4909 = vpop.f32.mrf.mxu0
        %v4910 = vadd.f32 0.0, %v4909
        %4911 = vmatmul.f32.gmra.mxu0 %v2482
        %v4912 = vpop.f32.mrf.mxu0
        %v4913 = vadd.f32 0.0, %v4912
        %4914 = vmatmul.f32.gmra.mxu0 %v2484
        %v4915 = vpop.f32.mrf.mxu0
        %v4916 = vadd.f32 0.0, %v4915
        %4917 = vmatmul.f32.gmra.mxu0 %v2486
        %v4918 = vpop.f32.mrf.mxu0
        %v4919 = vadd.f32 0.0, %v4918
        %4920 = vdwg.mxu0
        %4921 = vmatpush.msra.mxu0 %v4855
        %4922 = vmatpush.msra.mxu0 %v4854
        %4923 = vmatpush.msra.mxu0 %v4853
        %4924 = vmatpush.msra.mxu0 %v4852
        %4925 = vmatpush.msra.mxu0 %v4851
        %4926 = vmatpush.msra.mxu0 %v4850
        %4927 = vmatpush.msra.mxu0 %v4849
        %4928 = vmatpush.msra.mxu0 %v4848
        %4929 = vmatpush.msra.mxu0 %v4847
        %4930 = vmatpush.msra.mxu0 %v4846
        %4931 = vmatpush.msra.mxu0 %v4845
        %4932 = vmatpush.msra.mxu0 %v4844
        %4933 = vmatpush.msra.mxu0 %v4843
        %4934 = vmatpush.msra.mxu0 %v4842
        %4935 = vmatpush.msra.mxu0 %v4841
        %4936 = vmatpush.msra.mxu0 %v4840
        %4937 = vmatmul.f32.gmra.mxu0 %v2457
        %v4938 = vpop.f32.mrf.mxu0
        %v4939 = vadd.f32 %v4874, %v4938
        %4940 = vmatmul.f32.gmra.mxu0 %v2459
        %v4941 = vpop.f32.mrf.mxu0
        %v4942 = vadd.f32 %v4877, %v4941
        %4943 = vmatmul.f32.gmra.mxu0 %v2461
        %v4944 = vpop.f32.mrf.mxu0
        %v4945 = vadd.f32 %v4880, %v4944
        %4946 = vmatmul.f32.gmra.mxu0 %v2463
        %v4947 = vpop.f32.mrf.mxu0
        %v4948 = vadd.f32 %v4883, %v4947
        %4949 = vmatmul.f32.gmra.mxu0 %v2465
        %v4950 = vpop.f32.mrf.mxu0
        %v4951 = vadd.f32 %v4886, %v4950
        %4952 = vmatmul.f32.gmra.mxu0 %v2467
        %v4953 = vpop.f32.mrf.mxu0
        %v4954 = vadd.f32 %v4889, %v4953
        %4955 = vmatmul.f32.gmra.mxu0 %v2469
        %v4956 = vpop.f32.mrf.mxu0
        %v4957 = vadd.f32 %v4892, %v4956
        %4958 = vmatmul.f32.gmra.mxu0 %v2471
        %v4959 = vpop.f32.mrf.mxu0
        %v4960 = vadd.f32 %v4895, %v4959
        %4961 = vmatmul.f32.gmra.mxu0 %v2473
        %v4962 = vpop.f32.mrf.mxu0
        %v4963 = vadd.f32 %v4898, %v4962
        %4964 = vmatmul.f32.gmra.mxu0 %v2475
        %v4965 = vpop.f32.mrf.mxu0
        %v4966 = vadd.f32 %v4901, %v4965
        %4967 = vmatmul.f32.gmra.mxu0 %v2477
        %v4968 = vpop.f32.mrf.mxu0
        %v4969 = vadd.f32 %v4904, %v4968
        %4970 = vmatmul.f32.gmra.mxu0 %v2479
        %v4971 = vpop.f32.mrf.mxu0
        %v4972 = vadd.f32 %v4907, %v4971
        %4973 = vmatmul.f32.gmra.mxu0 %v2481
        %v4974 = vpop.f32.mrf.mxu0
        %v4975 = vadd.f32 %v4910, %v4974
        %4976 = vmatmul.f32.gmra.mxu0 %v2483
        %v4977 = vpop.f32.mrf.mxu0
        %v4978 = vadd.f32 %v4913, %v4977
        %4979 = vmatmul.f32.gmra.mxu0 %v2485
        %v4980 = vpop.f32.mrf.mxu0
        %v4981 = vadd.f32 %v4916, %v4980
        %4982 = vmatmul.f32.gmra.mxu0 %v2487
        %v4983 = vpop.f32.mrf.mxu0
        %v4984 = vadd.f32 %v4919, %v4983
        %4985 = vdwg.mxu0
        %v4986 = vadd.f32 %v4777, %v4939
        %v4987 = vadd.f32 %v4780, %v4942
        %v4988 = vadd.f32 %v4783, %v4945
        %v4989 = vadd.f32 %v4786, %v4948
        %v4990 = vadd.f32 %v4789, %v4951
        %v4991 = vadd.f32 %v4792, %v4954
        %v4992 = vadd.f32 %v4795, %v4957
        %v4993 = vadd.f32 %v4798, %v4960
        %v4994 = vadd.f32 %v4801, %v4963
        %v4995 = vadd.f32 %v4804, %v4966
        %v4996 = vadd.f32 %v4807, %v4969
        %v4997 = vadd.f32 %v4810, %v4972
        %v4998 = vadd.f32 %v4813, %v4975
        %v4999 = vadd.f32 %v4816, %v4978
        %v5000 = vadd.f32 %v4819, %v4981
        %v5001 = vadd.f32 %v4822, %v4984
        %v5002 = vld [vmem:[%s4499 + $0x300] sm:$0xff]
        %v5003 = vld [vmem:[%s4499 + $0x308] sm:$0xff]
        %v5004 = vld [vmem:[%s4499 + $0x310] sm:$0xff]
        %v5005 = vld [vmem:[%s4499 + $0x318] sm:$0xff]
        %v5006 = vld [vmem:[%s4499 + $0x320] sm:$0xff]
        %v5007 = vld [vmem:[%s4499 + $0x328] sm:$0xff]
        %v5008 = vld [vmem:[%s4499 + $0x330] sm:$0xff]
        %v5009 = vld [vmem:[%s4499 + $0x338] sm:$0xff]
        %v5010 = vld [vmem:[%s4499 + $0x340] sm:$0xff]
        %v5011 = vld [vmem:[%s4499 + $0x348] sm:$0xff]
        %v5012 = vld [vmem:[%s4499 + $0x350] sm:$0xff]
        %v5013 = vld [vmem:[%s4499 + $0x358] sm:$0xff]
        %v5014 = vld [vmem:[%s4499 + $0x360] sm:$0xff]
        %v5015 = vld [vmem:[%s4499 + $0x368] sm:$0xff]
        %v5016 = vld [vmem:[%s4499 + $0x370] sm:$0xff]
        %v5017 = vld [vmem:[%s4499 + $0x378] sm:$0xff]
        %v5018 = vld [vmem:[%s4499 + $0x380] sm:$0xff]
        %v5019 = vld [vmem:[%s4499 + $0x388] sm:$0xff]
        %v5020 = vld [vmem:[%s4499 + $0x390] sm:$0xff]
        %v5021 = vld [vmem:[%s4499 + $0x398] sm:$0xff]
        %v5022 = vld [vmem:[%s4499 + $0x3a0] sm:$0xff]
        %v5023 = vld [vmem:[%s4499 + $0x3a8] sm:$0xff]
        %v5024 = vld [vmem:[%s4499 + $0x3b0] sm:$0xff]
        %v5025 = vld [vmem:[%s4499 + $0x3b8] sm:$0xff]
        %v5026 = vld [vmem:[%s4499 + $0x3c0] sm:$0xff]
        %v5027 = vld [vmem:[%s4499 + $0x3c8] sm:$0xff]
        %v5028 = vld [vmem:[%s4499 + $0x3d0] sm:$0xff]
        %v5029 = vld [vmem:[%s4499 + $0x3d8] sm:$0xff]
        %v5030 = vld [vmem:[%s4499 + $0x3e0] sm:$0xff]
        %v5031 = vld [vmem:[%s4499 + $0x3e8] sm:$0xff]
        %v5032 = vld [vmem:[%s4499 + $0x3f0] sm:$0xff]
        %v5033 = vld [vmem:[%s4499 + $0x3f8] sm:$0xff]
        %5034 = vmatpush.msra.mxu0 %v5017
        %5035 = vmatpush.msra.mxu0 %v5016
        %5036 = vmatpush.msra.mxu0 %v5015
        %5037 = vmatpush.msra.mxu0 %v5014
        %5038 = vmatpush.msra.mxu0 %v5013
        %5039 = vmatpush.msra.mxu0 %v5012
        %5040 = vmatpush.msra.mxu0 %v5011
        %5041 = vmatpush.msra.mxu0 %v5010
        %5042 = vmatpush.msra.mxu0 %v5009
        %5043 = vmatpush.msra.mxu0 %v5008
        %5044 = vmatpush.msra.mxu0 %v5007
        %5045 = vmatpush.msra.mxu0 %v5006
        %5046 = vmatpush.msra.mxu0 %v5005
        %5047 = vmatpush.msra.mxu0 %v5004
        %5048 = vmatpush.msra.mxu0 %v5003
        %5049 = vmatpush.msra.mxu0 %v5002
        %5050 = vmatmul.f32.gmra.mxu0 %v2666
        %v5051 = vpop.f32.mrf.mxu0
        %v5052 = vadd.f32 0.0, %v5051
        %5053 = vmatmul.f32.gmra.mxu0 %v2668
        %v5054 = vpop.f32.mrf.mxu0
        %v5055 = vadd.f32 0.0, %v5054
        %5056 = vmatmul.f32.gmra.mxu0 %v2670
        %v5057 = vpop.f32.mrf.mxu0
        %v5058 = vadd.f32 0.0, %v5057
        %5059 = vmatmul.f32.gmra.mxu0 %v2672
        %v5060 = vpop.f32.mrf.mxu0
        %v5061 = vadd.f32 0.0, %v5060
        %5062 = vmatmul.f32.gmra.mxu0 %v2674
        %v5063 = vpop.f32.mrf.mxu0
        %v5064 = vadd.f32 0.0, %v5063
        %5065 = vmatmul.f32.gmra.mxu0 %v2676
        %v5066 = vpop.f32.mrf.mxu0
        %v5067 = vadd.f32 0.0, %v5066
        %5068 = vmatmul.f32.gmra.mxu0 %v2678
        %v5069 = vpop.f32.mrf.mxu0
        %v5070 = vadd.f32 0.0, %v5069
        %5071 = vmatmul.f32.gmra.mxu0 %v2680
        %v5072 = vpop.f32.mrf.mxu0
        %v5073 = vadd.f32 0.0, %v5072
        %5074 = vmatmul.f32.gmra.mxu0 %v2682
        %v5075 = vpop.f32.mrf.mxu0
        %v5076 = vadd.f32 0.0, %v5075
        %5077 = vmatmul.f32.gmra.mxu0 %v2684
        %v5078 = vpop.f32.mrf.mxu0
        %v5079 = vadd.f32 0.0, %v5078
        %5080 = vmatmul.f32.gmra.mxu0 %v2686
        %v5081 = vpop.f32.mrf.mxu0
        %v5082 = vadd.f32 0.0, %v5081
        %5083 = vmatmul.f32.gmra.mxu0 %v2688
        %v5084 = vpop.f32.mrf.mxu0
        %v5085 = vadd.f32 0.0, %v5084
        %5086 = vmatmul.f32.gmra.mxu0 %v2690
        %v5087 = vpop.f32.mrf.mxu0
        %v5088 = vadd.f32 0.0, %v5087
        %5089 = vmatmul.f32.gmra.mxu0 %v2692
        %v5090 = vpop.f32.mrf.mxu0
        %v5091 = vadd.f32 0.0, %v5090
        %5092 = vmatmul.f32.gmra.mxu0 %v2694
        %v5093 = vpop.f32.mrf.mxu0
        %v5094 = vadd.f32 0.0, %v5093
        %5095 = vmatmul.f32.gmra.mxu0 %v2696
        %v5096 = vpop.f32.mrf.mxu0
        %v5097 = vadd.f32 0.0, %v5096
        %5098 = vdwg.mxu0
        %5099 = vmatpush.msra.mxu0 %v5033
        %5100 = vmatpush.msra.mxu0 %v5032
        %5101 = vmatpush.msra.mxu0 %v5031
        %5102 = vmatpush.msra.mxu0 %v5030
        %5103 = vmatpush.msra.mxu0 %v5029
        %5104 = vmatpush.msra.mxu0 %v5028
        %5105 = vmatpush.msra.mxu0 %v5027
        %5106 = vmatpush.msra.mxu0 %v5026
        %5107 = vmatpush.msra.mxu0 %v5025
        %5108 = vmatpush.msra.mxu0 %v5024
        %5109 = vmatpush.msra.mxu0 %v5023
        %5110 = vmatpush.msra.mxu0 %v5022
        %5111 = vmatpush.msra.mxu0 %v5021
        %5112 = vmatpush.msra.mxu0 %v5020
        %5113 = vmatpush.msra.mxu0 %v5019
        %5114 = vmatpush.msra.mxu0 %v5018
        %5115 = vmatmul.f32.gmra.mxu0 %v2667
        %v5116 = vpop.f32.mrf.mxu0
        %v5117 = vadd.f32 %v5052, %v5116
        %5118 = vmatmul.f32.gmra.mxu0 %v2669
        %v5119 = vpop.f32.mrf.mxu0
        %v5120 = vadd.f32 %v5055, %v5119
        %5121 = vmatmul.f32.gmra.mxu0 %v2671
        %v5122 = vpop.f32.mrf.mxu0
        %v5123 = vadd.f32 %v5058, %v5122
        %5124 = vmatmul.f32.gmra.mxu0 %v2673
        %v5125 = vpop.f32.mrf.mxu0
        %v5126 = vadd.f32 %v5061, %v5125
        %5127 = vmatmul.f32.gmra.mxu0 %v2675
        %v5128 = vpop.f32.mrf.mxu0
        %v5129 = vadd.f32 %v5064, %v5128
        %5130 = vmatmul.f32.gmra.mxu0 %v2677
        %v5131 = vpop.f32.mrf.mxu0
        %v5132 = vadd.f32 %v5067, %v5131
        %5133 = vmatmul.f32.gmra.mxu0 %v2679
        %v5134 = vpop.f32.mrf.mxu0
        %v5135 = vadd.f32 %v5070, %v5134
        %5136 = vmatmul.f32.gmra.mxu0 %v2681
        %v5137 = vpop.f32.mrf.mxu0
        %v5138 = vadd.f32 %v5073, %v5137
        %5139 = vmatmul.f32.gmra.mxu0 %v2683
        %v5140 = vpop.f32.mrf.mxu0
        %v5141 = vadd.f32 %v5076, %v5140
        %5142 = vmatmul.f32.gmra.mxu0 %v2685
        %v5143 = vpop.f32.mrf.mxu0
        %v5144 = vadd.f32 %v5079, %v5143
        %5145 = vmatmul.f32.gmra.mxu0 %v2687
        %v5146 = vpop.f32.mrf.mxu0
        %v5147 = vadd.f32 %v5082, %v5146
        %5148 = vmatmul.f32.gmra.mxu0 %v2689
        %v5149 = vpop.f32.mrf.mxu0
        %v5150 = vadd.f32 %v5085, %v5149
        %5151 = vmatmul.f32.gmra.mxu0 %v2691
        %v5152 = vpop.f32.mrf.mxu0
        %v5153 = vadd.f32 %v5088, %v5152
        %5154 = vmatmul.f32.gmra.mxu0 %v2693
        %v5155 = vpop.f32.mrf.mxu0
        %v5156 = vadd.f32 %v5091, %v5155
        %5157 = vmatmul.f32.gmra.mxu0 %v2695
        %v5158 = vpop.f32.mrf.mxu0
        %v5159 = vadd.f32 %v5094, %v5158
        %5160 = vmatmul.f32.gmra.mxu0 %v2697
        %v5161 = vpop.f32.mrf.mxu0
        %v5162 = vadd.f32 %v5097, %v5161
        %5163 = vdwg.mxu0
        %v5164 = vadd.f32 %v4986, %v5117
        %v5165 = vadd.f32 %v4987, %v5120
        %v5166 = vadd.f32 %v4988, %v5123
        %v5167 = vadd.f32 %v4989, %v5126
        %v5168 = vadd.f32 %v4990, %v5129
        %v5169 = vadd.f32 %v4991, %v5132
        %v5170 = vadd.f32 %v4992, %v5135
        %v5171 = vadd.f32 %v4993, %v5138
        %v5172 = vadd.f32 %v4994, %v5141
        %v5173 = vadd.f32 %v4995, %v5144
        %v5174 = vadd.f32 %v4996, %v5147
        %v5175 = vadd.f32 %v4997, %v5150
        %v5176 = vadd.f32 %v4998, %v5153
        %v5177 = vadd.f32 %v4999, %v5156
        %v5178 = vadd.f32 %v5000, %v5159
        %v5179 = vadd.f32 %v5001, %v5162
        %s5180 = scalar_lea.vmem %s5, 384
        %v5181 = vld [vmem:[%s5180] sm:$0xff]
        %v5182 = vld [vmem:[%s5180 + $0x8] sm:$0xff]
        %v5183 = vld [vmem:[%s5180 + $0x10] sm:$0xff]
        %v5184 = vld [vmem:[%s5180 + $0x18] sm:$0xff]
        %v5185 = vld [vmem:[%s5180 + $0x20] sm:$0xff]
        %v5186 = vld [vmem:[%s5180 + $0x28] sm:$0xff]
        %v5187 = vld [vmem:[%s5180 + $0x30] sm:$0xff]
        %v5188 = vld [vmem:[%s5180 + $0x38] sm:$0xff]
        %v5189 = vld [vmem:[%s5180 + $0x40] sm:$0xff]
        %v5190 = vld [vmem:[%s5180 + $0x48] sm:$0xff]
        %v5191 = vld [vmem:[%s5180 + $0x50] sm:$0xff]
        %v5192 = vld [vmem:[%s5180 + $0x58] sm:$0xff]
        %v5193 = vld [vmem:[%s5180 + $0x60] sm:$0xff]
        %v5194 = vld [vmem:[%s5180 + $0x68] sm:$0xff]
        %v5195 = vld [vmem:[%s5180 + $0x70] sm:$0xff]
        %v5196 = vld [vmem:[%s5180 + $0x78] sm:$0xff]
        %5197 = vmatpush.msra.mxu0 %v5179
        %5198 = vmatpush.msra.mxu0 %v5178
        %5199 = vmatpush.msra.mxu0 %v5177
        %5200 = vmatpush.msra.mxu0 %v5176
        %5201 = vmatpush.msra.mxu0 %v5175
        %5202 = vmatpush.msra.mxu0 %v5174
        %5203 = vmatpush.msra.mxu0 %v5173
        %5204 = vmatpush.msra.mxu0 %v5172
        %5205 = vmatpush.msra.mxu0 %v5171
        %5206 = vmatpush.msra.mxu0 %v5170
        %5207 = vmatpush.msra.mxu0 %v5169
        %5208 = vmatpush.msra.mxu0 %v5168
        %5209 = vmatpush.msra.mxu0 %v5167
        %5210 = vmatpush.msra.mxu0 %v5166
        %5211 = vmatpush.msra.mxu0 %v5165
        %5212 = vmatpush.msra.mxu0 %v5164
        %5213 = vmatmul.f32.gmra.mxu0 %v5181
        %v5214 = vpop.f32.mrf.mxu0
        %v5215 = vadd.f32 0.0, %v5214
        %5216 = vmatmul.f32.gmra.mxu0 %v5182
        %v5217 = vpop.f32.mrf.mxu0
        %v5218 = vadd.f32 0.0, %v5217
        %5219 = vmatmul.f32.gmra.mxu0 %v5183
        %v5220 = vpop.f32.mrf.mxu0
        %v5221 = vadd.f32 0.0, %v5220
        %5222 = vmatmul.f32.gmra.mxu0 %v5184
        %v5223 = vpop.f32.mrf.mxu0
        %v5224 = vadd.f32 0.0, %v5223
        %5225 = vmatmul.f32.gmra.mxu0 %v5185
        %v5226 = vpop.f32.mrf.mxu0
        %v5227 = vadd.f32 0.0, %v5226
        %5228 = vmatmul.f32.gmra.mxu0 %v5186
        %v5229 = vpop.f32.mrf.mxu0
        %v5230 = vadd.f32 0.0, %v5229
        %5231 = vmatmul.f32.gmra.mxu0 %v5187
        %v5232 = vpop.f32.mrf.mxu0
        %v5233 = vadd.f32 0.0, %v5232
        %5234 = vmatmul.f32.gmra.mxu0 %v5188
        %v5235 = vpop.f32.mrf.mxu0
        %v5236 = vadd.f32 0.0, %v5235
        %5237 = vmatmul.f32.gmra.mxu0 %v5189
        %v5238 = vpop.f32.mrf.mxu0
        %v5239 = vadd.f32 0.0, %v5238
        %5240 = vmatmul.f32.gmra.mxu0 %v5190
        %v5241 = vpop.f32.mrf.mxu0
        %v5242 = vadd.f32 0.0, %v5241
        %5243 = vmatmul.f32.gmra.mxu0 %v5191
        %v5244 = vpop.f32.mrf.mxu0
        %v5245 = vadd.f32 0.0, %v5244
        %5246 = vmatmul.f32.gmra.mxu0 %v5192
        %v5247 = vpop.f32.mrf.mxu0
        %v5248 = vadd.f32 0.0, %v5247
        %5249 = vmatmul.f32.gmra.mxu0 %v5193
        %v5250 = vpop.f32.mrf.mxu0
        %v5251 = vadd.f32 0.0, %v5250
        %5252 = vmatmul.f32.gmra.mxu0 %v5194
        %v5253 = vpop.f32.mrf.mxu0
        %v5254 = vadd.f32 0.0, %v5253
        %5255 = vmatmul.f32.gmra.mxu0 %v5195
        %v5256 = vpop.f32.mrf.mxu0
        %v5257 = vadd.f32 0.0, %v5256
        %5258 = vmatmul.f32.gmra.mxu0 %v5196
        %v5259 = vpop.f32.mrf.mxu0
        %v5260 = vadd.f32 0.0, %v5259
        %5261 = vdwg.mxu0
        %v5262 = vadd.f32 %v4483, %v5215
        %v5263 = vadd.f32 %v4484, %v5218
        %v5264 = vadd.f32 %v4485, %v5221
        %v5265 = vadd.f32 %v4486, %v5224
        %v5266 = vadd.f32 %v4487, %v5227
        %v5267 = vadd.f32 %v4488, %v5230
        %v5268 = vadd.f32 %v4489, %v5233
        %v5269 = vadd.f32 %v4490, %v5236
        %v5270 = vadd.f32 %v4491, %v5239
        %v5271 = vadd.f32 %v4492, %v5242
        %v5272 = vadd.f32 %v4493, %v5245
        %v5273 = vadd.f32 %v4494, %v5248
        %v5274 = vadd.f32 %v4495, %v5251
        %v5275 = vadd.f32 %v4496, %v5254
        %v5276 = vadd.f32 %v4497, %v5257
        %v5277 = vadd.f32 %v4498, %v5260
        %s5278 = scalar_lea.vmem %s3, 4096
        %v5279 = vld [vmem:[%s5278] sm:$0xff]
        %v5280 = vld [vmem:[%s5278 + $0x8] sm:$0xff]
        %v5281 = vld [vmem:[%s5278 + $0x10] sm:$0xff]
        %v5282 = vld [vmem:[%s5278 + $0x18] sm:$0xff]
        %v5283 = vld [vmem:[%s5278 + $0x20] sm:$0xff]
        %v5284 = vld [vmem:[%s5278 + $0x28] sm:$0xff]
        %v5285 = vld [vmem:[%s5278 + $0x30] sm:$0xff]
        %v5286 = vld [vmem:[%s5278 + $0x38] sm:$0xff]
        %v5287 = vld [vmem:[%s5278 + $0x40] sm:$0xff]
        %v5288 = vld [vmem:[%s5278 + $0x48] sm:$0xff]
        %v5289 = vld [vmem:[%s5278 + $0x50] sm:$0xff]
        %v5290 = vld [vmem:[%s5278 + $0x58] sm:$0xff]
        %v5291 = vld [vmem:[%s5278 + $0x60] sm:$0xff]
        %v5292 = vld [vmem:[%s5278 + $0x68] sm:$0xff]
        %v5293 = vld [vmem:[%s5278 + $0x70] sm:$0xff]
        %v5294 = vld [vmem:[%s5278 + $0x78] sm:$0xff]
        %v5295 = vld [vmem:[%s5278 + $0x80] sm:$0xff]
        %v5296 = vld [vmem:[%s5278 + $0x88] sm:$0xff]
        %v5297 = vld [vmem:[%s5278 + $0x90] sm:$0xff]
        %v5298 = vld [vmem:[%s5278 + $0x98] sm:$0xff]
        %v5299 = vld [vmem:[%s5278 + $0xa0] sm:$0xff]
        %v5300 = vld [vmem:[%s5278 + $0xa8] sm:$0xff]
        %v5301 = vld [vmem:[%s5278 + $0xb0] sm:$0xff]
        %v5302 = vld [vmem:[%s5278 + $0xb8] sm:$0xff]
        %v5303 = vld [vmem:[%s5278 + $0xc0] sm:$0xff]
        %v5304 = vld [vmem:[%s5278 + $0xc8] sm:$0xff]
        %v5305 = vld [vmem:[%s5278 + $0xd0] sm:$0xff]
        %v5306 = vld [vmem:[%s5278 + $0xd8] sm:$0xff]
        %v5307 = vld [vmem:[%s5278 + $0xe0] sm:$0xff]
        %v5308 = vld [vmem:[%s5278 + $0xe8] sm:$0xff]
        %v5309 = vld [vmem:[%s5278 + $0xf0] sm:$0xff]
        %v5310 = vld [vmem:[%s5278 + $0xf8] sm:$0xff]
        %v5311 = vld [vmem:[%s5278 + $0x100] sm:$0xff]
        %v5312 = vld [vmem:[%s5278 + $0x108] sm:$0xff]
        %v5313 = vld [vmem:[%s5278 + $0x110] sm:$0xff]
        %v5314 = vld [vmem:[%s5278 + $0x118] sm:$0xff]
        %v5315 = vld [vmem:[%s5278 + $0x120] sm:$0xff]
        %v5316 = vld [vmem:[%s5278 + $0x128] sm:$0xff]
        %v5317 = vld [vmem:[%s5278 + $0x130] sm:$0xff]
        %v5318 = vld [vmem:[%s5278 + $0x138] sm:$0xff]
        %v5319 = vld [vmem:[%s5278 + $0x140] sm:$0xff]
        %v5320 = vld [vmem:[%s5278 + $0x148] sm:$0xff]
        %v5321 = vld [vmem:[%s5278 + $0x150] sm:$0xff]
        %v5322 = vld [vmem:[%s5278 + $0x158] sm:$0xff]
        %v5323 = vld [vmem:[%s5278 + $0x160] sm:$0xff]
        %v5324 = vld [vmem:[%s5278 + $0x168] sm:$0xff]
        %v5325 = vld [vmem:[%s5278 + $0x170] sm:$0xff]
        %v5326 = vld [vmem:[%s5278 + $0x178] sm:$0xff]
        %v5327 = vld [vmem:[%s5278 + $0x180] sm:$0xff]
        %v5328 = vld [vmem:[%s5278 + $0x188] sm:$0xff]
        %v5329 = vld [vmem:[%s5278 + $0x190] sm:$0xff]
        %v5330 = vld [vmem:[%s5278 + $0x198] sm:$0xff]
        %v5331 = vld [vmem:[%s5278 + $0x1a0] sm:$0xff]
        %v5332 = vld [vmem:[%s5278 + $0x1a8] sm:$0xff]
        %v5333 = vld [vmem:[%s5278 + $0x1b0] sm:$0xff]
        %v5334 = vld [vmem:[%s5278 + $0x1b8] sm:$0xff]
        %v5335 = vld [vmem:[%s5278 + $0x1c0] sm:$0xff]
        %v5336 = vld [vmem:[%s5278 + $0x1c8] sm:$0xff]
        %v5337 = vld [vmem:[%s5278 + $0x1d0] sm:$0xff]
        %v5338 = vld [vmem:[%s5278 + $0x1d8] sm:$0xff]
        %v5339 = vld [vmem:[%s5278 + $0x1e0] sm:$0xff]
        %v5340 = vld [vmem:[%s5278 + $0x1e8] sm:$0xff]
        %v5341 = vld [vmem:[%s5278 + $0x1f0] sm:$0xff]
        %v5342 = vld [vmem:[%s5278 + $0x1f8] sm:$0xff]
        %5343 = vmatpush.msra.mxu0 %v5326
        %5344 = vmatpush.msra.mxu0 %v5325
        %5345 = vmatpush.msra.mxu0 %v5324
        %5346 = vmatpush.msra.mxu0 %v5323
        %5347 = vmatpush.msra.mxu0 %v5322
        %5348 = vmatpush.msra.mxu0 %v5321
        %5349 = vmatpush.msra.mxu0 %v5320
        %5350 = vmatpush.msra.mxu0 %v5319
        %5351 = vmatpush.msra.mxu0 %v5318
        %5352 = vmatpush.msra.mxu0 %v5317
        %5353 = vmatpush.msra.mxu0 %v5316
        %5354 = vmatpush.msra.mxu0 %v5315
        %5355 = vmatpush.msra.mxu0 %v5314
        %5356 = vmatpush.msra.mxu0 %v5313
        %5357 = vmatpush.msra.mxu0 %v5312
        %5358 = vmatpush.msra.mxu0 %v5311
        %5359 = vmatmul.f32.gmra.mxu0 %v2132
        %v5360 = vpop.f32.mrf.mxu0
        %v5361 = vadd.f32 0.0, %v5360
        %5362 = vmatmul.f32.gmra.mxu0 %v2134
        %v5363 = vpop.f32.mrf.mxu0
        %v5364 = vadd.f32 0.0, %v5363
        %5365 = vmatmul.f32.gmra.mxu0 %v2136
        %v5366 = vpop.f32.mrf.mxu0
        %v5367 = vadd.f32 0.0, %v5366
        %5368 = vmatmul.f32.gmra.mxu0 %v2138
        %v5369 = vpop.f32.mrf.mxu0
        %v5370 = vadd.f32 0.0, %v5369
        %5371 = vmatmul.f32.gmra.mxu0 %v2140
        %v5372 = vpop.f32.mrf.mxu0
        %v5373 = vadd.f32 0.0, %v5372
        %5374 = vmatmul.f32.gmra.mxu0 %v2142
        %v5375 = vpop.f32.mrf.mxu0
        %v5376 = vadd.f32 0.0, %v5375
        %5377 = vmatmul.f32.gmra.mxu0 %v2144
        %v5378 = vpop.f32.mrf.mxu0
        %v5379 = vadd.f32 0.0, %v5378
        %5380 = vmatmul.f32.gmra.mxu0 %v2146
        %v5381 = vpop.f32.mrf.mxu0
        %v5382 = vadd.f32 0.0, %v5381
        %5383 = vmatmul.f32.gmra.mxu0 %v2148
        %v5384 = vpop.f32.mrf.mxu0
        %v5385 = vadd.f32 0.0, %v5384
        %5386 = vmatmul.f32.gmra.mxu0 %v2150
        %v5387 = vpop.f32.mrf.mxu0
        %v5388 = vadd.f32 0.0, %v5387
        %5389 = vmatmul.f32.gmra.mxu0 %v2152
        %v5390 = vpop.f32.mrf.mxu0
        %v5391 = vadd.f32 0.0, %v5390
        %5392 = vmatmul.f32.gmra.mxu0 %v2154
        %v5393 = vpop.f32.mrf.mxu0
        %v5394 = vadd.f32 0.0, %v5393
        %5395 = vmatmul.f32.gmra.mxu0 %v2156
        %v5396 = vpop.f32.mrf.mxu0
        %v5397 = vadd.f32 0.0, %v5396
        %5398 = vmatmul.f32.gmra.mxu0 %v2158
        %v5399 = vpop.f32.mrf.mxu0
        %v5400 = vadd.f32 0.0, %v5399
        %5401 = vmatmul.f32.gmra.mxu0 %v2160
        %v5402 = vpop.f32.mrf.mxu0
        %v5403 = vadd.f32 0.0, %v5402
        %5404 = vmatmul.f32.gmra.mxu0 %v2162
        %v5405 = vpop.f32.mrf.mxu0
        %v5406 = vadd.f32 0.0, %v5405
        %5407 = vdwg.mxu0
        %5408 = vmatpush.msra.mxu0 %v5342
        %5409 = vmatpush.msra.mxu0 %v5341
        %5410 = vmatpush.msra.mxu0 %v5340
        %5411 = vmatpush.msra.mxu0 %v5339
        %5412 = vmatpush.msra.mxu0 %v5338
        %5413 = vmatpush.msra.mxu0 %v5337
        %5414 = vmatpush.msra.mxu0 %v5336
        %5415 = vmatpush.msra.mxu0 %v5335
        %5416 = vmatpush.msra.mxu0 %v5334
        %5417 = vmatpush.msra.mxu0 %v5333
        %5418 = vmatpush.msra.mxu0 %v5332
        %5419 = vmatpush.msra.mxu0 %v5331
        %5420 = vmatpush.msra.mxu0 %v5330
        %5421 = vmatpush.msra.mxu0 %v5329
        %5422 = vmatpush.msra.mxu0 %v5328
        %5423 = vmatpush.msra.mxu0 %v5327
        %5424 = vmatmul.f32.gmra.mxu0 %v2133
        %v5425 = vpop.f32.mrf.mxu0
        %v5426 = vadd.f32 %v5361, %v5425
        %5427 = vmatmul.f32.gmra.mxu0 %v2135
        %v5428 = vpop.f32.mrf.mxu0
        %v5429 = vadd.f32 %v5364, %v5428
        %5430 = vmatmul.f32.gmra.mxu0 %v2137
        %v5431 = vpop.f32.mrf.mxu0
        %v5432 = vadd.f32 %v5367, %v5431
        %5433 = vmatmul.f32.gmra.mxu0 %v2139
        %v5434 = vpop.f32.mrf.mxu0
        %v5435 = vadd.f32 %v5370, %v5434
        %5436 = vmatmul.f32.gmra.mxu0 %v2141
        %v5437 = vpop.f32.mrf.mxu0
        %v5438 = vadd.f32 %v5373, %v5437
        %5439 = vmatmul.f32.gmra.mxu0 %v2143
        %v5440 = vpop.f32.mrf.mxu0
        %v5441 = vadd.f32 %v5376, %v5440
        %5442 = vmatmul.f32.gmra.mxu0 %v2145
        %v5443 = vpop.f32.mrf.mxu0
        %v5444 = vadd.f32 %v5379, %v5443
        %5445 = vmatmul.f32.gmra.mxu0 %v2147
        %v5446 = vpop.f32.mrf.mxu0
        %v5447 = vadd.f32 %v5382, %v5446
        %5448 = vmatmul.f32.gmra.mxu0 %v2149
        %v5449 = vpop.f32.mrf.mxu0
        %v5450 = vadd.f32 %v5385, %v5449
        %5451 = vmatmul.f32.gmra.mxu0 %v2151
        %v5452 = vpop.f32.mrf.mxu0
        %v5453 = vadd.f32 %v5388, %v5452
        %5454 = vmatmul.f32.gmra.mxu0 %v2153
        %v5455 = vpop.f32.mrf.mxu0
        %v5456 = vadd.f32 %v5391, %v5455
        %5457 = vmatmul.f32.gmra.mxu0 %v2155
        %v5458 = vpop.f32.mrf.mxu0
        %v5459 = vadd.f32 %v5394, %v5458
        %5460 = vmatmul.f32.gmra.mxu0 %v2157
        %v5461 = vpop.f32.mrf.mxu0
        %v5462 = vadd.f32 %v5397, %v5461
        %5463 = vmatmul.f32.gmra.mxu0 %v2159
        %v5464 = vpop.f32.mrf.mxu0
        %v5465 = vadd.f32 %v5400, %v5464
        %5466 = vmatmul.f32.gmra.mxu0 %v2161
        %v5467 = vpop.f32.mrf.mxu0
        %v5468 = vadd.f32 %v5403, %v5467
        %5469 = vmatmul.f32.gmra.mxu0 %v2163
        %v5470 = vpop.f32.mrf.mxu0
        %v5471 = vadd.f32 %v5406, %v5470
        %5472 = vdwg.mxu0
        %5473 = vmatpush.msra.mxu0 %v5294
        %5474 = vmatpush.msra.mxu0 %v5293
        %5475 = vmatpush.msra.mxu0 %v5292
        %5476 = vmatpush.msra.mxu0 %v5291
        %5477 = vmatpush.msra.mxu0 %v5290
        %5478 = vmatpush.msra.mxu0 %v5289
        %5479 = vmatpush.msra.mxu0 %v5288
        %5480 = vmatpush.msra.mxu0 %v5287
        %5481 = vmatpush.msra.mxu0 %v5286
        %5482 = vmatpush.msra.mxu0 %v5285
        %5483 = vmatpush.msra.mxu0 %v5284
        %5484 = vmatpush.msra.mxu0 %v5283
        %5485 = vmatpush.msra.mxu0 %v5282
        %5486 = vmatpush.msra.mxu0 %v5281
        %5487 = vmatpush.msra.mxu0 %v5280
        %5488 = vmatpush.msra.mxu0 %v5279
        %5489 = vmatmul.f32.gmra.mxu0 %v2068
        %v5490 = vpop.f32.mrf.mxu0
        %v5491 = vadd.f32 %v5426, %v5490
        %5492 = vmatmul.f32.gmra.mxu0 %v2070
        %v5493 = vpop.f32.mrf.mxu0
        %v5494 = vadd.f32 %v5429, %v5493
        %5495 = vmatmul.f32.gmra.mxu0 %v2072
        %v5496 = vpop.f32.mrf.mxu0
        %v5497 = vadd.f32 %v5432, %v5496
        %5498 = vmatmul.f32.gmra.mxu0 %v2074
        %v5499 = vpop.f32.mrf.mxu0
        %v5500 = vadd.f32 %v5435, %v5499
        %5501 = vmatmul.f32.gmra.mxu0 %v2076
        %v5502 = vpop.f32.mrf.mxu0
        %v5503 = vadd.f32 %v5438, %v5502
        %5504 = vmatmul.f32.gmra.mxu0 %v2078
        %v5505 = vpop.f32.mrf.mxu0
        %v5506 = vadd.f32 %v5441, %v5505
        %5507 = vmatmul.f32.gmra.mxu0 %v2080
        %v5508 = vpop.f32.mrf.mxu0
        %v5509 = vadd.f32 %v5444, %v5508
        %5510 = vmatmul.f32.gmra.mxu0 %v2082
        %v5511 = vpop.f32.mrf.mxu0
        %v5512 = vadd.f32 %v5447, %v5511
        %5513 = vmatmul.f32.gmra.mxu0 %v2084
        %v5514 = vpop.f32.mrf.mxu0
        %v5515 = vadd.f32 %v5450, %v5514
        %5516 = vmatmul.f32.gmra.mxu0 %v2086
        %v5517 = vpop.f32.mrf.mxu0
        %v5518 = vadd.f32 %v5453, %v5517
        %5519 = vmatmul.f32.gmra.mxu0 %v2088
        %v5520 = vpop.f32.mrf.mxu0
        %v5521 = vadd.f32 %v5456, %v5520
        %5522 = vmatmul.f32.gmra.mxu0 %v2090
        %v5523 = vpop.f32.mrf.mxu0
        %v5524 = vadd.f32 %v5459, %v5523
        %5525 = vmatmul.f32.gmra.mxu0 %v2092
        %v5526 = vpop.f32.mrf.mxu0
        %v5527 = vadd.f32 %v5462, %v5526
        %5528 = vmatmul.f32.gmra.mxu0 %v2094
        %v5529 = vpop.f32.mrf.mxu0
        %v5530 = vadd.f32 %v5465, %v5529
        %5531 = vmatmul.f32.gmra.mxu0 %v2096
        %v5532 = vpop.f32.mrf.mxu0
        %v5533 = vadd.f32 %v5468, %v5532
        %5534 = vmatmul.f32.gmra.mxu0 %v2098
        %v5535 = vpop.f32.mrf.mxu0
        %v5536 = vadd.f32 %v5471, %v5535
        %5537 = vdwg.mxu0
        %5538 = vmatpush.msra.mxu0 %v5310
        %5539 = vmatpush.msra.mxu0 %v5309
        %5540 = vmatpush.msra.mxu0 %v5308
        %5541 = vmatpush.msra.mxu0 %v5307
        %5542 = vmatpush.msra.mxu0 %v5306
        %5543 = vmatpush.msra.mxu0 %v5305
        %5544 = vmatpush.msra.mxu0 %v5304
        %5545 = vmatpush.msra.mxu0 %v5303
        %5546 = vmatpush.msra.mxu0 %v5302
        %5547 = vmatpush.msra.mxu0 %v5301
        %5548 = vmatpush.msra.mxu0 %v5300
        %5549 = vmatpush.msra.mxu0 %v5299
        %5550 = vmatpush.msra.mxu0 %v5298
        %5551 = vmatpush.msra.mxu0 %v5297
        %5552 = vmatpush.msra.mxu0 %v5296
        %5553 = vmatpush.msra.mxu0 %v5295
        %5554 = vmatmul.f32.gmra.mxu0 %v2069
        %v5555 = vpop.f32.mrf.mxu0
        %v5556 = vadd.f32 %v5491, %v5555
        %5557 = vmatmul.f32.gmra.mxu0 %v2071
        %v5558 = vpop.f32.mrf.mxu0
        %v5559 = vadd.f32 %v5494, %v5558
        %5560 = vmatmul.f32.gmra.mxu0 %v2073
        %v5561 = vpop.f32.mrf.mxu0
        %v5562 = vadd.f32 %v5497, %v5561
        %5563 = vmatmul.f32.gmra.mxu0 %v2075
        %v5564 = vpop.f32.mrf.mxu0
        %v5565 = vadd.f32 %v5500, %v5564
        %5566 = vmatmul.f32.gmra.mxu0 %v2077
        %v5567 = vpop.f32.mrf.mxu0
        %v5568 = vadd.f32 %v5503, %v5567
        %5569 = vmatmul.f32.gmra.mxu0 %v2079
        %v5570 = vpop.f32.mrf.mxu0
        %v5571 = vadd.f32 %v5506, %v5570
        %5572 = vmatmul.f32.gmra.mxu0 %v2081
        %v5573 = vpop.f32.mrf.mxu0
        %v5574 = vadd.f32 %v5509, %v5573
        %5575 = vmatmul.f32.gmra.mxu0 %v2083
        %v5576 = vpop.f32.mrf.mxu0
        %v5577 = vadd.f32 %v5512, %v5576
        %5578 = vmatmul.f32.gmra.mxu0 %v2085
        %v5579 = vpop.f32.mrf.mxu0
        %v5580 = vadd.f32 %v5515, %v5579
        %5581 = vmatmul.f32.gmra.mxu0 %v2087
        %v5582 = vpop.f32.mrf.mxu0
        %v5583 = vadd.f32 %v5518, %v5582
        %5584 = vmatmul.f32.gmra.mxu0 %v2089
        %v5585 = vpop.f32.mrf.mxu0
        %v5586 = vadd.f32 %v5521, %v5585
        %5587 = vmatmul.f32.gmra.mxu0 %v2091
        %v5588 = vpop.f32.mrf.mxu0
        %v5589 = vadd.f32 %v5524, %v5588
        %5590 = vmatmul.f32.gmra.mxu0 %v2093
        %v5591 = vpop.f32.mrf.mxu0
        %v5592 = vadd.f32 %v5527, %v5591
        %5593 = vmatmul.f32.gmra.mxu0 %v2095
        %v5594 = vpop.f32.mrf.mxu0
        %v5595 = vadd.f32 %v5530, %v5594
        %5596 = vmatmul.f32.gmra.mxu0 %v2097
        %v5597 = vpop.f32.mrf.mxu0
        %v5598 = vadd.f32 %v5533, %v5597
        %5599 = vmatmul.f32.gmra.mxu0 %v2099
        %v5600 = vpop.f32.mrf.mxu0
        %v5601 = vadd.f32 %v5536, %v5600
        %5602 = vdwg.mxu0
        %v5603 = vld [vmem:[%s5278 + $0x200] sm:$0xff]
        %v5604 = vld [vmem:[%s5278 + $0x208] sm:$0xff]
        %v5605 = vld [vmem:[%s5278 + $0x210] sm:$0xff]
        %v5606 = vld [vmem:[%s5278 + $0x218] sm:$0xff]
        %v5607 = vld [vmem:[%s5278 + $0x220] sm:$0xff]
        %v5608 = vld [vmem:[%s5278 + $0x228] sm:$0xff]
        %v5609 = vld [vmem:[%s5278 + $0x230] sm:$0xff]
        %v5610 = vld [vmem:[%s5278 + $0x238] sm:$0xff]
        %v5611 = vld [vmem:[%s5278 + $0x240] sm:$0xff]
        %v5612 = vld [vmem:[%s5278 + $0x248] sm:$0xff]
        %v5613 = vld [vmem:[%s5278 + $0x250] sm:$0xff]
        %v5614 = vld [vmem:[%s5278 + $0x258] sm:$0xff]
        %v5615 = vld [vmem:[%s5278 + $0x260] sm:$0xff]
        %v5616 = vld [vmem:[%s5278 + $0x268] sm:$0xff]
        %v5617 = vld [vmem:[%s5278 + $0x270] sm:$0xff]
        %v5618 = vld [vmem:[%s5278 + $0x278] sm:$0xff]
        %v5619 = vld [vmem:[%s5278 + $0x280] sm:$0xff]
        %v5620 = vld [vmem:[%s5278 + $0x288] sm:$0xff]
        %v5621 = vld [vmem:[%s5278 + $0x290] sm:$0xff]
        %v5622 = vld [vmem:[%s5278 + $0x298] sm:$0xff]
        %v5623 = vld [vmem:[%s5278 + $0x2a0] sm:$0xff]
        %v5624 = vld [vmem:[%s5278 + $0x2a8] sm:$0xff]
        %v5625 = vld [vmem:[%s5278 + $0x2b0] sm:$0xff]
        %v5626 = vld [vmem:[%s5278 + $0x2b8] sm:$0xff]
        %v5627 = vld [vmem:[%s5278 + $0x2c0] sm:$0xff]
        %v5628 = vld [vmem:[%s5278 + $0x2c8] sm:$0xff]
        %v5629 = vld [vmem:[%s5278 + $0x2d0] sm:$0xff]
        %v5630 = vld [vmem:[%s5278 + $0x2d8] sm:$0xff]
        %v5631 = vld [vmem:[%s5278 + $0x2e0] sm:$0xff]
        %v5632 = vld [vmem:[%s5278 + $0x2e8] sm:$0xff]
        %v5633 = vld [vmem:[%s5278 + $0x2f0] sm:$0xff]
        %v5634 = vld [vmem:[%s5278 + $0x2f8] sm:$0xff]
        %5635 = vmatpush.msra.mxu0 %v5618
        %5636 = vmatpush.msra.mxu0 %v5617
        %5637 = vmatpush.msra.mxu0 %v5616
        %5638 = vmatpush.msra.mxu0 %v5615
        %5639 = vmatpush.msra.mxu0 %v5614
        %5640 = vmatpush.msra.mxu0 %v5613
        %5641 = vmatpush.msra.mxu0 %v5612
        %5642 = vmatpush.msra.mxu0 %v5611
        %5643 = vmatpush.msra.mxu0 %v5610
        %5644 = vmatpush.msra.mxu0 %v5609
        %5645 = vmatpush.msra.mxu0 %v5608
        %5646 = vmatpush.msra.mxu0 %v5607
        %5647 = vmatpush.msra.mxu0 %v5606
        %5648 = vmatpush.msra.mxu0 %v5605
        %5649 = vmatpush.msra.mxu0 %v5604
        %5650 = vmatpush.msra.mxu0 %v5603
        %5651 = vmatmul.f32.gmra.mxu0 %v2456
        %v5652 = vpop.f32.mrf.mxu0
        %v5653 = vadd.f32 0.0, %v5652
        %5654 = vmatmul.f32.gmra.mxu0 %v2458
        %v5655 = vpop.f32.mrf.mxu0
        %v5656 = vadd.f32 0.0, %v5655
        %5657 = vmatmul.f32.gmra.mxu0 %v2460
        %v5658 = vpop.f32.mrf.mxu0
        %v5659 = vadd.f32 0.0, %v5658
        %5660 = vmatmul.f32.gmra.mxu0 %v2462
        %v5661 = vpop.f32.mrf.mxu0
        %v5662 = vadd.f32 0.0, %v5661
        %5663 = vmatmul.f32.gmra.mxu0 %v2464
        %v5664 = vpop.f32.mrf.mxu0
        %v5665 = vadd.f32 0.0, %v5664
        %5666 = vmatmul.f32.gmra.mxu0 %v2466
        %v5667 = vpop.f32.mrf.mxu0
        %v5668 = vadd.f32 0.0, %v5667
        %5669 = vmatmul.f32.gmra.mxu0 %v2468
        %v5670 = vpop.f32.mrf.mxu0
        %v5671 = vadd.f32 0.0, %v5670
        %5672 = vmatmul.f32.gmra.mxu0 %v2470
        %v5673 = vpop.f32.mrf.mxu0
        %v5674 = vadd.f32 0.0, %v5673
        %5675 = vmatmul.f32.gmra.mxu0 %v2472
        %v5676 = vpop.f32.mrf.mxu0
        %v5677 = vadd.f32 0.0, %v5676
        %5678 = vmatmul.f32.gmra.mxu0 %v2474
        %v5679 = vpop.f32.mrf.mxu0
        %v5680 = vadd.f32 0.0, %v5679
        %5681 = vmatmul.f32.gmra.mxu0 %v2476
        %v5682 = vpop.f32.mrf.mxu0
        %v5683 = vadd.f32 0.0, %v5682
        %5684 = vmatmul.f32.gmra.mxu0 %v2478
        %v5685 = vpop.f32.mrf.mxu0
        %v5686 = vadd.f32 0.0, %v5685
        %5687 = vmatmul.f32.gmra.mxu0 %v2480
        %v5688 = vpop.f32.mrf.mxu0
        %v5689 = vadd.f32 0.0, %v5688
        %5690 = vmatmul.f32.gmra.mxu0 %v2482
        %v5691 = vpop.f32.mrf.mxu0
        %v5692 = vadd.f32 0.0, %v5691
        %5693 = vmatmul.f32.gmra.mxu0 %v2484
        %v5694 = vpop.f32.mrf.mxu0
        %v5695 = vadd.f32 0.0, %v5694
        %5696 = vmatmul.f32.gmra.mxu0 %v2486
        %v5697 = vpop.f32.mrf.mxu0
        %v5698 = vadd.f32 0.0, %v5697
        %5699 = vdwg.mxu0
        %5700 = vmatpush.msra.mxu0 %v5634
        %5701 = vmatpush.msra.mxu0 %v5633
        %5702 = vmatpush.msra.mxu0 %v5632
        %5703 = vmatpush.msra.mxu0 %v5631
        %5704 = vmatpush.msra.mxu0 %v5630
        %5705 = vmatpush.msra.mxu0 %v5629
        %5706 = vmatpush.msra.mxu0 %v5628
        %5707 = vmatpush.msra.mxu0 %v5627
        %5708 = vmatpush.msra.mxu0 %v5626
        %5709 = vmatpush.msra.mxu0 %v5625
        %5710 = vmatpush.msra.mxu0 %v5624
        %5711 = vmatpush.msra.mxu0 %v5623
        %5712 = vmatpush.msra.mxu0 %v5622
        %5713 = vmatpush.msra.mxu0 %v5621
        %5714 = vmatpush.msra.mxu0 %v5620
        %5715 = vmatpush.msra.mxu0 %v5619
        %5716 = vmatmul.f32.gmra.mxu0 %v2457
        %v5717 = vpop.f32.mrf.mxu0
        %v5718 = vadd.f32 %v5653, %v5717
        %5719 = vmatmul.f32.gmra.mxu0 %v2459
        %v5720 = vpop.f32.mrf.mxu0
        %v5721 = vadd.f32 %v5656, %v5720
        %5722 = vmatmul.f32.gmra.mxu0 %v2461
        %v5723 = vpop.f32.mrf.mxu0
        %v5724 = vadd.f32 %v5659, %v5723
        %5725 = vmatmul.f32.gmra.mxu0 %v2463
        %v5726 = vpop.f32.mrf.mxu0
        %v5727 = vadd.f32 %v5662, %v5726
        %5728 = vmatmul.f32.gmra.mxu0 %v2465
        %v5729 = vpop.f32.mrf.mxu0
        %v5730 = vadd.f32 %v5665, %v5729
        %5731 = vmatmul.f32.gmra.mxu0 %v2467
        %v5732 = vpop.f32.mrf.mxu0
        %v5733 = vadd.f32 %v5668, %v5732
        %5734 = vmatmul.f32.gmra.mxu0 %v2469
        %v5735 = vpop.f32.mrf.mxu0
        %v5736 = vadd.f32 %v5671, %v5735
        %5737 = vmatmul.f32.gmra.mxu0 %v2471
        %v5738 = vpop.f32.mrf.mxu0
        %v5739 = vadd.f32 %v5674, %v5738
        %5740 = vmatmul.f32.gmra.mxu0 %v2473
        %v5741 = vpop.f32.mrf.mxu0
        %v5742 = vadd.f32 %v5677, %v5741
        %5743 = vmatmul.f32.gmra.mxu0 %v2475
        %v5744 = vpop.f32.mrf.mxu0
        %v5745 = vadd.f32 %v5680, %v5744
        %5746 = vmatmul.f32.gmra.mxu0 %v2477
        %v5747 = vpop.f32.mrf.mxu0
        %v5748 = vadd.f32 %v5683, %v5747
        %5749 = vmatmul.f32.gmra.mxu0 %v2479
        %v5750 = vpop.f32.mrf.mxu0
        %v5751 = vadd.f32 %v5686, %v5750
        %5752 = vmatmul.f32.gmra.mxu0 %v2481
        %v5753 = vpop.f32.mrf.mxu0
        %v5754 = vadd.f32 %v5689, %v5753
        %5755 = vmatmul.f32.gmra.mxu0 %v2483
        %v5756 = vpop.f32.mrf.mxu0
        %v5757 = vadd.f32 %v5692, %v5756
        %5758 = vmatmul.f32.gmra.mxu0 %v2485
        %v5759 = vpop.f32.mrf.mxu0
        %v5760 = vadd.f32 %v5695, %v5759
        %5761 = vmatmul.f32.gmra.mxu0 %v2487
        %v5762 = vpop.f32.mrf.mxu0
        %v5763 = vadd.f32 %v5698, %v5762
        %5764 = vdwg.mxu0
        %v5765 = vadd.f32 %v5556, %v5718
        %v5766 = vadd.f32 %v5559, %v5721
        %v5767 = vadd.f32 %v5562, %v5724
        %v5768 = vadd.f32 %v5565, %v5727
        %v5769 = vadd.f32 %v5568, %v5730
        %v5770 = vadd.f32 %v5571, %v5733
        %v5771 = vadd.f32 %v5574, %v5736
        %v5772 = vadd.f32 %v5577, %v5739
        %v5773 = vadd.f32 %v5580, %v5742
        %v5774 = vadd.f32 %v5583, %v5745
        %v5775 = vadd.f32 %v5586, %v5748
        %v5776 = vadd.f32 %v5589, %v5751
        %v5777 = vadd.f32 %v5592, %v5754
        %v5778 = vadd.f32 %v5595, %v5757
        %v5779 = vadd.f32 %v5598, %v5760
        %v5780 = vadd.f32 %v5601, %v5763
        %v5781 = vld [vmem:[%s5278 + $0x300] sm:$0xff]
        %v5782 = vld [vmem:[%s5278 + $0x308] sm:$0xff]
        %v5783 = vld [vmem:[%s5278 + $0x310] sm:$0xff]
        %v5784 = vld [vmem:[%s5278 + $0x318] sm:$0xff]
        %v5785 = vld [vmem:[%s5278 + $0x320] sm:$0xff]
        %v5786 = vld [vmem:[%s5278 + $0x328] sm:$0xff]
        %v5787 = vld [vmem:[%s5278 + $0x330] sm:$0xff]
        %v5788 = vld [vmem:[%s5278 + $0x338] sm:$0xff]
        %v5789 = vld [vmem:[%s5278 + $0x340] sm:$0xff]
        %v5790 = vld [vmem:[%s5278 + $0x348] sm:$0xff]
        %v5791 = vld [vmem:[%s5278 + $0x350] sm:$0xff]
        %v5792 = vld [vmem:[%s5278 + $0x358] sm:$0xff]
        %v5793 = vld [vmem:[%s5278 + $0x360] sm:$0xff]
        %v5794 = vld [vmem:[%s5278 + $0x368] sm:$0xff]
        %v5795 = vld [vmem:[%s5278 + $0x370] sm:$0xff]
        %v5796 = vld [vmem:[%s5278 + $0x378] sm:$0xff]
        %v5797 = vld [vmem:[%s5278 + $0x380] sm:$0xff]
        %v5798 = vld [vmem:[%s5278 + $0x388] sm:$0xff]
        %v5799 = vld [vmem:[%s5278 + $0x390] sm:$0xff]
        %v5800 = vld [vmem:[%s5278 + $0x398] sm:$0xff]
        %v5801 = vld [vmem:[%s5278 + $0x3a0] sm:$0xff]
        %v5802 = vld [vmem:[%s5278 + $0x3a8] sm:$0xff]
        %v5803 = vld [vmem:[%s5278 + $0x3b0] sm:$0xff]
        %v5804 = vld [vmem:[%s5278 + $0x3b8] sm:$0xff]
        %v5805 = vld [vmem:[%s5278 + $0x3c0] sm:$0xff]
        %v5806 = vld [vmem:[%s5278 + $0x3c8] sm:$0xff]
        %v5807 = vld [vmem:[%s5278 + $0x3d0] sm:$0xff]
        %v5808 = vld [vmem:[%s5278 + $0x3d8] sm:$0xff]
        %v5809 = vld [vmem:[%s5278 + $0x3e0] sm:$0xff]
        %v5810 = vld [vmem:[%s5278 + $0x3e8] sm:$0xff]
        %v5811 = vld [vmem:[%s5278 + $0x3f0] sm:$0xff]
        %v5812 = vld [vmem:[%s5278 + $0x3f8] sm:$0xff]
        %5813 = vmatpush.msra.mxu0 %v5796
        %5814 = vmatpush.msra.mxu0 %v5795
        %5815 = vmatpush.msra.mxu0 %v5794
        %5816 = vmatpush.msra.mxu0 %v5793
        %5817 = vmatpush.msra.mxu0 %v5792
        %5818 = vmatpush.msra.mxu0 %v5791
        %5819 = vmatpush.msra.mxu0 %v5790
        %5820 = vmatpush.msra.mxu0 %v5789
        %5821 = vmatpush.msra.mxu0 %v5788
        %5822 = vmatpush.msra.mxu0 %v5787
        %5823 = vmatpush.msra.mxu0 %v5786
        %5824 = vmatpush.msra.mxu0 %v5785
        %5825 = vmatpush.msra.mxu0 %v5784
        %5826 = vmatpush.msra.mxu0 %v5783
        %5827 = vmatpush.msra.mxu0 %v5782
        %5828 = vmatpush.msra.mxu0 %v5781
        %5829 = vmatmul.f32.gmra.mxu0 %v2666
        %v5830 = vpop.f32.mrf.mxu0
        %v5831 = vadd.f32 0.0, %v5830
        %5832 = vmatmul.f32.gmra.mxu0 %v2668
        %v5833 = vpop.f32.mrf.mxu0
        %v5834 = vadd.f32 0.0, %v5833
        %5835 = vmatmul.f32.gmra.mxu0 %v2670
        %v5836 = vpop.f32.mrf.mxu0
        %v5837 = vadd.f32 0.0, %v5836
        %5838 = vmatmul.f32.gmra.mxu0 %v2672
        %v5839 = vpop.f32.mrf.mxu0
        %v5840 = vadd.f32 0.0, %v5839
        %5841 = vmatmul.f32.gmra.mxu0 %v2674
        %v5842 = vpop.f32.mrf.mxu0
        %v5843 = vadd.f32 0.0, %v5842
        %5844 = vmatmul.f32.gmra.mxu0 %v2676
        %v5845 = vpop.f32.mrf.mxu0
        %v5846 = vadd.f32 0.0, %v5845
        %5847 = vmatmul.f32.gmra.mxu0 %v2678
        %v5848 = vpop.f32.mrf.mxu0
        %v5849 = vadd.f32 0.0, %v5848
        %5850 = vmatmul.f32.gmra.mxu0 %v2680
        %v5851 = vpop.f32.mrf.mxu0
        %v5852 = vadd.f32 0.0, %v5851
        %5853 = vmatmul.f32.gmra.mxu0 %v2682
        %v5854 = vpop.f32.mrf.mxu0
        %v5855 = vadd.f32 0.0, %v5854
        %5856 = vmatmul.f32.gmra.mxu0 %v2684
        %v5857 = vpop.f32.mrf.mxu0
        %v5858 = vadd.f32 0.0, %v5857
        %5859 = vmatmul.f32.gmra.mxu0 %v2686
        %v5860 = vpop.f32.mrf.mxu0
        %v5861 = vadd.f32 0.0, %v5860
        %5862 = vmatmul.f32.gmra.mxu0 %v2688
        %v5863 = vpop.f32.mrf.mxu0
        %v5864 = vadd.f32 0.0, %v5863
        %5865 = vmatmul.f32.gmra.mxu0 %v2690
        %v5866 = vpop.f32.mrf.mxu0
        %v5867 = vadd.f32 0.0, %v5866
        %5868 = vmatmul.f32.gmra.mxu0 %v2692
        %v5869 = vpop.f32.mrf.mxu0
        %v5870 = vadd.f32 0.0, %v5869
        %5871 = vmatmul.f32.gmra.mxu0 %v2694
        %v5872 = vpop.f32.mrf.mxu0
        %v5873 = vadd.f32 0.0, %v5872
        %5874 = vmatmul.f32.gmra.mxu0 %v2696
        %v5875 = vpop.f32.mrf.mxu0
        %v5876 = vadd.f32 0.0, %v5875
        %5877 = vdwg.mxu0
        %5878 = vmatpush.msra.mxu0 %v5812
        %5879 = vmatpush.msra.mxu0 %v5811
        %5880 = vmatpush.msra.mxu0 %v5810
        %5881 = vmatpush.msra.mxu0 %v5809
        %5882 = vmatpush.msra.mxu0 %v5808
        %5883 = vmatpush.msra.mxu0 %v5807
        %5884 = vmatpush.msra.mxu0 %v5806
        %5885 = vmatpush.msra.mxu0 %v5805
        %5886 = vmatpush.msra.mxu0 %v5804
        %5887 = vmatpush.msra.mxu0 %v5803
        %5888 = vmatpush.msra.mxu0 %v5802
        %5889 = vmatpush.msra.mxu0 %v5801
        %5890 = vmatpush.msra.mxu0 %v5800
        %5891 = vmatpush.msra.mxu0 %v5799
        %5892 = vmatpush.msra.mxu0 %v5798
        %5893 = vmatpush.msra.mxu0 %v5797
        %5894 = vmatmul.f32.gmra.mxu0 %v2667
        %v5895 = vpop.f32.mrf.mxu0
        %v5896 = vadd.f32 %v5831, %v5895
        %5897 = vmatmul.f32.gmra.mxu0 %v2669
        %v5898 = vpop.f32.mrf.mxu0
        %v5899 = vadd.f32 %v5834, %v5898
        %5900 = vmatmul.f32.gmra.mxu0 %v2671
        %v5901 = vpop.f32.mrf.mxu0
        %v5902 = vadd.f32 %v5837, %v5901
        %5903 = vmatmul.f32.gmra.mxu0 %v2673
        %v5904 = vpop.f32.mrf.mxu0
        %v5905 = vadd.f32 %v5840, %v5904
        %5906 = vmatmul.f32.gmra.mxu0 %v2675
        %v5907 = vpop.f32.mrf.mxu0
        %v5908 = vadd.f32 %v5843, %v5907
        %5909 = vmatmul.f32.gmra.mxu0 %v2677
        %v5910 = vpop.f32.mrf.mxu0
        %v5911 = vadd.f32 %v5846, %v5910
        %5912 = vmatmul.f32.gmra.mxu0 %v2679
        %v5913 = vpop.f32.mrf.mxu0
        %v5914 = vadd.f32 %v5849, %v5913
        %5915 = vmatmul.f32.gmra.mxu0 %v2681
        %v5916 = vpop.f32.mrf.mxu0
        %v5917 = vadd.f32 %v5852, %v5916
        %5918 = vmatmul.f32.gmra.mxu0 %v2683
        %v5919 = vpop.f32.mrf.mxu0
        %v5920 = vadd.f32 %v5855, %v5919
        %5921 = vmatmul.f32.gmra.mxu0 %v2685
        %v5922 = vpop.f32.mrf.mxu0
        %v5923 = vadd.f32 %v5858, %v5922
        %5924 = vmatmul.f32.gmra.mxu0 %v2687
        %v5925 = vpop.f32.mrf.mxu0
        %v5926 = vadd.f32 %v5861, %v5925
        %5927 = vmatmul.f32.gmra.mxu0 %v2689
        %v5928 = vpop.f32.mrf.mxu0
        %v5929 = vadd.f32 %v5864, %v5928
        %5930 = vmatmul.f32.gmra.mxu0 %v2691
        %v5931 = vpop.f32.mrf.mxu0
        %v5932 = vadd.f32 %v5867, %v5931
        %5933 = vmatmul.f32.gmra.mxu0 %v2693
        %v5934 = vpop.f32.mrf.mxu0
        %v5935 = vadd.f32 %v5870, %v5934
        %5936 = vmatmul.f32.gmra.mxu0 %v2695
        %v5937 = vpop.f32.mrf.mxu0
        %v5938 = vadd.f32 %v5873, %v5937
        %5939 = vmatmul.f32.gmra.mxu0 %v2697
        %v5940 = vpop.f32.mrf.mxu0
        %v5941 = vadd.f32 %v5876, %v5940
        %5942 = vdwg.mxu0
        %v5943 = vadd.f32 %v5765, %v5896
        %v5944 = vadd.f32 %v5766, %v5899
        %v5945 = vadd.f32 %v5767, %v5902
        %v5946 = vadd.f32 %v5768, %v5905
        %v5947 = vadd.f32 %v5769, %v5908
        %v5948 = vadd.f32 %v5770, %v5911
        %v5949 = vadd.f32 %v5771, %v5914
        %v5950 = vadd.f32 %v5772, %v5917
        %v5951 = vadd.f32 %v5773, %v5920
        %v5952 = vadd.f32 %v5774, %v5923
        %v5953 = vadd.f32 %v5775, %v5926
        %v5954 = vadd.f32 %v5776, %v5929
        %v5955 = vadd.f32 %v5777, %v5932
        %v5956 = vadd.f32 %v5778, %v5935
        %v5957 = vadd.f32 %v5779, %v5938
        %v5958 = vadd.f32 %v5780, %v5941
        %s5959 = scalar_lea.vmem %s5, 512
        %v5960 = vld [vmem:[%s5959] sm:$0xff]
        %v5961 = vld [vmem:[%s5959 + $0x8] sm:$0xff]
        %v5962 = vld [vmem:[%s5959 + $0x10] sm:$0xff]
        %v5963 = vld [vmem:[%s5959 + $0x18] sm:$0xff]
        %v5964 = vld [vmem:[%s5959 + $0x20] sm:$0xff]
        %v5965 = vld [vmem:[%s5959 + $0x28] sm:$0xff]
        %v5966 = vld [vmem:[%s5959 + $0x30] sm:$0xff]
        %v5967 = vld [vmem:[%s5959 + $0x38] sm:$0xff]
        %v5968 = vld [vmem:[%s5959 + $0x40] sm:$0xff]
        %v5969 = vld [vmem:[%s5959 + $0x48] sm:$0xff]
        %v5970 = vld [vmem:[%s5959 + $0x50] sm:$0xff]
        %v5971 = vld [vmem:[%s5959 + $0x58] sm:$0xff]
        %v5972 = vld [vmem:[%s5959 + $0x60] sm:$0xff]
        %v5973 = vld [vmem:[%s5959 + $0x68] sm:$0xff]
        %v5974 = vld [vmem:[%s5959 + $0x70] sm:$0xff]
        %v5975 = vld [vmem:[%s5959 + $0x78] sm:$0xff]
        %5976 = vmatpush.msra.mxu0 %v5958
        %5977 = vmatpush.msra.mxu0 %v5957
        %5978 = vmatpush.msra.mxu0 %v5956
        %5979 = vmatpush.msra.mxu0 %v5955
        %5980 = vmatpush.msra.mxu0 %v5954
        %5981 = vmatpush.msra.mxu0 %v5953
        %5982 = vmatpush.msra.mxu0 %v5952
        %5983 = vmatpush.msra.mxu0 %v5951
        %5984 = vmatpush.msra.mxu0 %v5950
        %5985 = vmatpush.msra.mxu0 %v5949
        %5986 = vmatpush.msra.mxu0 %v5948
        %5987 = vmatpush.msra.mxu0 %v5947
        %5988 = vmatpush.msra.mxu0 %v5946
        %5989 = vmatpush.msra.mxu0 %v5945
        %5990 = vmatpush.msra.mxu0 %v5944
        %5991 = vmatpush.msra.mxu0 %v5943
        %5992 = vmatmul.f32.gmra.mxu0 %v5960
        %v5993 = vpop.f32.mrf.mxu0
        %v5994 = vadd.f32 0.0, %v5993
        %5995 = vmatmul.f32.gmra.mxu0 %v5961
        %v5996 = vpop.f32.mrf.mxu0
        %v5997 = vadd.f32 0.0, %v5996
        %5998 = vmatmul.f32.gmra.mxu0 %v5962
        %v5999 = vpop.f32.mrf.mxu0
        %v6000 = vadd.f32 0.0, %v5999
        %6001 = vmatmul.f32.gmra.mxu0 %v5963
        %v6002 = vpop.f32.mrf.mxu0
        %v6003 = vadd.f32 0.0, %v6002
        %6004 = vmatmul.f32.gmra.mxu0 %v5964
        %v6005 = vpop.f32.mrf.mxu0
        %v6006 = vadd.f32 0.0, %v6005
        %6007 = vmatmul.f32.gmra.mxu0 %v5965
        %v6008 = vpop.f32.mrf.mxu0
        %v6009 = vadd.f32 0.0, %v6008
        %6010 = vmatmul.f32.gmra.mxu0 %v5966
        %v6011 = vpop.f32.mrf.mxu0
        %v6012 = vadd.f32 0.0, %v6011
        %6013 = vmatmul.f32.gmra.mxu0 %v5967
        %v6014 = vpop.f32.mrf.mxu0
        %v6015 = vadd.f32 0.0, %v6014
        %6016 = vmatmul.f32.gmra.mxu0 %v5968
        %v6017 = vpop.f32.mrf.mxu0
        %v6018 = vadd.f32 0.0, %v6017
        %6019 = vmatmul.f32.gmra.mxu0 %v5969
        %v6020 = vpop.f32.mrf.mxu0
        %v6021 = vadd.f32 0.0, %v6020
        %6022 = vmatmul.f32.gmra.mxu0 %v5970
        %v6023 = vpop.f32.mrf.mxu0
        %v6024 = vadd.f32 0.0, %v6023
        %6025 = vmatmul.f32.gmra.mxu0 %v5971
        %v6026 = vpop.f32.mrf.mxu0
        %v6027 = vadd.f32 0.0, %v6026
        %6028 = vmatmul.f32.gmra.mxu0 %v5972
        %v6029 = vpop.f32.mrf.mxu0
        %v6030 = vadd.f32 0.0, %v6029
        %6031 = vmatmul.f32.gmra.mxu0 %v5973
        %v6032 = vpop.f32.mrf.mxu0
        %v6033 = vadd.f32 0.0, %v6032
        %6034 = vmatmul.f32.gmra.mxu0 %v5974
        %v6035 = vpop.f32.mrf.mxu0
        %v6036 = vadd.f32 0.0, %v6035
        %6037 = vmatmul.f32.gmra.mxu0 %v5975
        %v6038 = vpop.f32.mrf.mxu0
        %v6039 = vadd.f32 0.0, %v6038
        %6040 = vdwg.mxu0
        %v6041 = vadd.f32 %v5262, %v5994
        %v6042 = vadd.f32 %v5263, %v5997
        %v6043 = vadd.f32 %v5264, %v6000
        %v6044 = vadd.f32 %v5265, %v6003
        %v6045 = vadd.f32 %v5266, %v6006
        %v6046 = vadd.f32 %v5267, %v6009
        %v6047 = vadd.f32 %v5268, %v6012
        %v6048 = vadd.f32 %v5269, %v6015
        %v6049 = vadd.f32 %v5270, %v6018
        %v6050 = vadd.f32 %v5271, %v6021
        %v6051 = vadd.f32 %v5272, %v6024
        %v6052 = vadd.f32 %v5273, %v6027
        %v6053 = vadd.f32 %v5274, %v6030
        %v6054 = vadd.f32 %v5275, %v6033
        %v6055 = vadd.f32 %v5276, %v6036
        %v6056 = vadd.f32 %v5277, %v6039
        %s6057 = scalar_lea.vmem %s3, 5120
        %v6058 = vld [vmem:[%s6057] sm:$0xff]
        %v6059 = vld [vmem:[%s6057 + $0x8] sm:$0xff]
        %v6060 = vld [vmem:[%s6057 + $0x10] sm:$0xff]
        %v6061 = vld [vmem:[%s6057 + $0x18] sm:$0xff]
        %v6062 = vld [vmem:[%s6057 + $0x20] sm:$0xff]
        %v6063 = vld [vmem:[%s6057 + $0x28] sm:$0xff]
        %v6064 = vld [vmem:[%s6057 + $0x30] sm:$0xff]
        %v6065 = vld [vmem:[%s6057 + $0x38] sm:$0xff]
        %v6066 = vld [vmem:[%s6057 + $0x40] sm:$0xff]
        %v6067 = vld [vmem:[%s6057 + $0x48] sm:$0xff]
        %v6068 = vld [vmem:[%s6057 + $0x50] sm:$0xff]
        %v6069 = vld [vmem:[%s6057 + $0x58] sm:$0xff]
        %v6070 = vld [vmem:[%s6057 + $0x60] sm:$0xff]
        %v6071 = vld [vmem:[%s6057 + $0x68] sm:$0xff]
        %v6072 = vld [vmem:[%s6057 + $0x70] sm:$0xff]
        %v6073 = vld [vmem:[%s6057 + $0x78] sm:$0xff]
        %v6074 = vld [vmem:[%s6057 + $0x80] sm:$0xff]
        %v6075 = vld [vmem:[%s6057 + $0x88] sm:$0xff]
        %v6076 = vld [vmem:[%s6057 + $0x90] sm:$0xff]
        %v6077 = vld [vmem:[%s6057 + $0x98] sm:$0xff]
        %v6078 = vld [vmem:[%s6057 + $0xa0] sm:$0xff]
        %v6079 = vld [vmem:[%s6057 + $0xa8] sm:$0xff]
        %v6080 = vld [vmem:[%s6057 + $0xb0] sm:$0xff]
        %v6081 = vld [vmem:[%s6057 + $0xb8] sm:$0xff]
        %v6082 = vld [vmem:[%s6057 + $0xc0] sm:$0xff]
        %v6083 = vld [vmem:[%s6057 + $0xc8] sm:$0xff]
        %v6084 = vld [vmem:[%s6057 + $0xd0] sm:$0xff]
        %v6085 = vld [vmem:[%s6057 + $0xd8] sm:$0xff]
        %v6086 = vld [vmem:[%s6057 + $0xe0] sm:$0xff]
        %v6087 = vld [vmem:[%s6057 + $0xe8] sm:$0xff]
        %v6088 = vld [vmem:[%s6057 + $0xf0] sm:$0xff]
        %v6089 = vld [vmem:[%s6057 + $0xf8] sm:$0xff]
        %v6090 = vld [vmem:[%s6057 + $0x100] sm:$0xff]
        %v6091 = vld [vmem:[%s6057 + $0x108] sm:$0xff]
        %v6092 = vld [vmem:[%s6057 + $0x110] sm:$0xff]
        %v6093 = vld [vmem:[%s6057 + $0x118] sm:$0xff]
        %v6094 = vld [vmem:[%s6057 + $0x120] sm:$0xff]
        %v6095 = vld [vmem:[%s6057 + $0x128] sm:$0xff]
        %v6096 = vld [vmem:[%s6057 + $0x130] sm:$0xff]
        %v6097 = vld [vmem:[%s6057 + $0x138] sm:$0xff]
        %v6098 = vld [vmem:[%s6057 + $0x140] sm:$0xff]
        %v6099 = vld [vmem:[%s6057 + $0x148] sm:$0xff]
        %v6100 = vld [vmem:[%s6057 + $0x150] sm:$0xff]
        %v6101 = vld [vmem:[%s6057 + $0x158] sm:$0xff]
        %v6102 = vld [vmem:[%s6057 + $0x160] sm:$0xff]
        %v6103 = vld [vmem:[%s6057 + $0x168] sm:$0xff]
        %v6104 = vld [vmem:[%s6057 + $0x170] sm:$0xff]
        %v6105 = vld [vmem:[%s6057 + $0x178] sm:$0xff]
        %v6106 = vld [vmem:[%s6057 + $0x180] sm:$0xff]
        %v6107 = vld [vmem:[%s6057 + $0x188] sm:$0xff]
        %v6108 = vld [vmem:[%s6057 + $0x190] sm:$0xff]
        %v6109 = vld [vmem:[%s6057 + $0x198] sm:$0xff]
        %v6110 = vld [vmem:[%s6057 + $0x1a0] sm:$0xff]
        %v6111 = vld [vmem:[%s6057 + $0x1a8] sm:$0xff]
        %v6112 = vld [vmem:[%s6057 + $0x1b0] sm:$0xff]
        %v6113 = vld [vmem:[%s6057 + $0x1b8] sm:$0xff]
        %v6114 = vld [vmem:[%s6057 + $0x1c0] sm:$0xff]
        %v6115 = vld [vmem:[%s6057 + $0x1c8] sm:$0xff]
        %v6116 = vld [vmem:[%s6057 + $0x1d0] sm:$0xff]
        %v6117 = vld [vmem:[%s6057 + $0x1d8] sm:$0xff]
        %v6118 = vld [vmem:[%s6057 + $0x1e0] sm:$0xff]
        %v6119 = vld [vmem:[%s6057 + $0x1e8] sm:$0xff]
        %v6120 = vld [vmem:[%s6057 + $0x1f0] sm:$0xff]
        %v6121 = vld [vmem:[%s6057 + $0x1f8] sm:$0xff]
        %6122 = vmatpush.msra.mxu0 %v6105
        %6123 = vmatpush.msra.mxu0 %v6104
        %6124 = vmatpush.msra.mxu0 %v6103
        %6125 = vmatpush.msra.mxu0 %v6102
        %6126 = vmatpush.msra.mxu0 %v6101
        %6127 = vmatpush.msra.mxu0 %v6100
        %6128 = vmatpush.msra.mxu0 %v6099
        %6129 = vmatpush.msra.mxu0 %v6098
        %6130 = vmatpush.msra.mxu0 %v6097
        %6131 = vmatpush.msra.mxu0 %v6096
        %6132 = vmatpush.msra.mxu0 %v6095
        %6133 = vmatpush.msra.mxu0 %v6094
        %6134 = vmatpush.msra.mxu0 %v6093
        %6135 = vmatpush.msra.mxu0 %v6092
        %6136 = vmatpush.msra.mxu0 %v6091
        %6137 = vmatpush.msra.mxu0 %v6090
        %6138 = vmatmul.f32.gmra.mxu0 %v2132
        %v6139 = vpop.f32.mrf.mxu0
        %v6140 = vadd.f32 0.0, %v6139
        %6141 = vmatmul.f32.gmra.mxu0 %v2134
        %v6142 = vpop.f32.mrf.mxu0
        %v6143 = vadd.f32 0.0, %v6142
        %6144 = vmatmul.f32.gmra.mxu0 %v2136
        %v6145 = vpop.f32.mrf.mxu0
        %v6146 = vadd.f32 0.0, %v6145
        %6147 = vmatmul.f32.gmra.mxu0 %v2138
        %v6148 = vpop.f32.mrf.mxu0
        %v6149 = vadd.f32 0.0, %v6148
        %6150 = vmatmul.f32.gmra.mxu0 %v2140
        %v6151 = vpop.f32.mrf.mxu0
        %v6152 = vadd.f32 0.0, %v6151
        %6153 = vmatmul.f32.gmra.mxu0 %v2142
        %v6154 = vpop.f32.mrf.mxu0
        %v6155 = vadd.f32 0.0, %v6154
        %6156 = vmatmul.f32.gmra.mxu0 %v2144
        %v6157 = vpop.f32.mrf.mxu0
        %v6158 = vadd.f32 0.0, %v6157
        %6159 = vmatmul.f32.gmra.mxu0 %v2146
        %v6160 = vpop.f32.mrf.mxu0
        %v6161 = vadd.f32 0.0, %v6160
        %6162 = vmatmul.f32.gmra.mxu0 %v2148
        %v6163 = vpop.f32.mrf.mxu0
        %v6164 = vadd.f32 0.0, %v6163
        %6165 = vmatmul.f32.gmra.mxu0 %v2150
        %v6166 = vpop.f32.mrf.mxu0
        %v6167 = vadd.f32 0.0, %v6166
        %6168 = vmatmul.f32.gmra.mxu0 %v2152
        %v6169 = vpop.f32.mrf.mxu0
        %v6170 = vadd.f32 0.0, %v6169
        %6171 = vmatmul.f32.gmra.mxu0 %v2154
        %v6172 = vpop.f32.mrf.mxu0
        %v6173 = vadd.f32 0.0, %v6172
        %6174 = vmatmul.f32.gmra.mxu0 %v2156
        %v6175 = vpop.f32.mrf.mxu0
        %v6176 = vadd.f32 0.0, %v6175
        %6177 = vmatmul.f32.gmra.mxu0 %v2158
        %v6178 = vpop.f32.mrf.mxu0
        %v6179 = vadd.f32 0.0, %v6178
        %6180 = vmatmul.f32.gmra.mxu0 %v2160
        %v6181 = vpop.f32.mrf.mxu0
        %v6182 = vadd.f32 0.0, %v6181
        %6183 = vmatmul.f32.gmra.mxu0 %v2162
        %v6184 = vpop.f32.mrf.mxu0
        %v6185 = vadd.f32 0.0, %v6184
        %6186 = vdwg.mxu0
        %6187 = vmatpush.msra.mxu0 %v6121
        %6188 = vmatpush.msra.mxu0 %v6120
        %6189 = vmatpush.msra.mxu0 %v6119
        %6190 = vmatpush.msra.mxu0 %v6118
        %6191 = vmatpush.msra.mxu0 %v6117
        %6192 = vmatpush.msra.mxu0 %v6116
        %6193 = vmatpush.msra.mxu0 %v6115
        %6194 = vmatpush.msra.mxu0 %v6114
        %6195 = vmatpush.msra.mxu0 %v6113
        %6196 = vmatpush.msra.mxu0 %v6112
        %6197 = vmatpush.msra.mxu0 %v6111
        %6198 = vmatpush.msra.mxu0 %v6110
        %6199 = vmatpush.msra.mxu0 %v6109
        %6200 = vmatpush.msra.mxu0 %v6108
        %6201 = vmatpush.msra.mxu0 %v6107
        %6202 = vmatpush.msra.mxu0 %v6106
        %6203 = vmatmul.f32.gmra.mxu0 %v2133
        %v6204 = vpop.f32.mrf.mxu0
        %v6205 = vadd.f32 %v6140, %v6204
        %6206 = vmatmul.f32.gmra.mxu0 %v2135
        %v6207 = vpop.f32.mrf.mxu0
        %v6208 = vadd.f32 %v6143, %v6207
        %6209 = vmatmul.f32.gmra.mxu0 %v2137
        %v6210 = vpop.f32.mrf.mxu0
        %v6211 = vadd.f32 %v6146, %v6210
        %6212 = vmatmul.f32.gmra.mxu0 %v2139
        %v6213 = vpop.f32.mrf.mxu0
        %v6214 = vadd.f32 %v6149, %v6213
        %6215 = vmatmul.f32.gmra.mxu0 %v2141
        %v6216 = vpop.f32.mrf.mxu0
        %v6217 = vadd.f32 %v6152, %v6216
        %6218 = vmatmul.f32.gmra.mxu0 %v2143
        %v6219 = vpop.f32.mrf.mxu0
        %v6220 = vadd.f32 %v6155, %v6219
        %6221 = vmatmul.f32.gmra.mxu0 %v2145
        %v6222 = vpop.f32.mrf.mxu0
        %v6223 = vadd.f32 %v6158, %v6222
        %6224 = vmatmul.f32.gmra.mxu0 %v2147
        %v6225 = vpop.f32.mrf.mxu0
        %v6226 = vadd.f32 %v6161, %v6225
        %6227 = vmatmul.f32.gmra.mxu0 %v2149
        %v6228 = vpop.f32.mrf.mxu0
        %v6229 = vadd.f32 %v6164, %v6228
        %6230 = vmatmul.f32.gmra.mxu0 %v2151
        %v6231 = vpop.f32.mrf.mxu0
        %v6232 = vadd.f32 %v6167, %v6231
        %6233 = vmatmul.f32.gmra.mxu0 %v2153
        %v6234 = vpop.f32.mrf.mxu0
        %v6235 = vadd.f32 %v6170, %v6234
        %6236 = vmatmul.f32.gmra.mxu0 %v2155
        %v6237 = vpop.f32.mrf.mxu0
        %v6238 = vadd.f32 %v6173, %v6237
        %6239 = vmatmul.f32.gmra.mxu0 %v2157
        %v6240 = vpop.f32.mrf.mxu0
        %v6241 = vadd.f32 %v6176, %v6240
        %6242 = vmatmul.f32.gmra.mxu0 %v2159
        %v6243 = vpop.f32.mrf.mxu0
        %v6244 = vadd.f32 %v6179, %v6243
        %6245 = vmatmul.f32.gmra.mxu0 %v2161
        %v6246 = vpop.f32.mrf.mxu0
        %v6247 = vadd.f32 %v6182, %v6246
        %6248 = vmatmul.f32.gmra.mxu0 %v2163
        %v6249 = vpop.f32.mrf.mxu0
        %v6250 = vadd.f32 %v6185, %v6249
        %6251 = vdwg.mxu0
        %6252 = vmatpush.msra.mxu0 %v6073
        %6253 = vmatpush.msra.mxu0 %v6072
        %6254 = vmatpush.msra.mxu0 %v6071
        %6255 = vmatpush.msra.mxu0 %v6070
        %6256 = vmatpush.msra.mxu0 %v6069
        %6257 = vmatpush.msra.mxu0 %v6068
        %6258 = vmatpush.msra.mxu0 %v6067
        %6259 = vmatpush.msra.mxu0 %v6066
        %6260 = vmatpush.msra.mxu0 %v6065
        %6261 = vmatpush.msra.mxu0 %v6064
        %6262 = vmatpush.msra.mxu0 %v6063
        %6263 = vmatpush.msra.mxu0 %v6062
        %6264 = vmatpush.msra.mxu0 %v6061
        %6265 = vmatpush.msra.mxu0 %v6060
        %6266 = vmatpush.msra.mxu0 %v6059
        %6267 = vmatpush.msra.mxu0 %v6058
        %6268 = vmatmul.f32.gmra.mxu0 %v2068
        %v6269 = vpop.f32.mrf.mxu0
        %v6270 = vadd.f32 %v6205, %v6269
        %6271 = vmatmul.f32.gmra.mxu0 %v2070
        %v6272 = vpop.f32.mrf.mxu0
        %v6273 = vadd.f32 %v6208, %v6272
        %6274 = vmatmul.f32.gmra.mxu0 %v2072
        %v6275 = vpop.f32.mrf.mxu0
        %v6276 = vadd.f32 %v6211, %v6275
        %6277 = vmatmul.f32.gmra.mxu0 %v2074
        %v6278 = vpop.f32.mrf.mxu0
        %v6279 = vadd.f32 %v6214, %v6278
        %6280 = vmatmul.f32.gmra.mxu0 %v2076
        %v6281 = vpop.f32.mrf.mxu0
        %v6282 = vadd.f32 %v6217, %v6281
        %6283 = vmatmul.f32.gmra.mxu0 %v2078
        %v6284 = vpop.f32.mrf.mxu0
        %v6285 = vadd.f32 %v6220, %v6284
        %6286 = vmatmul.f32.gmra.mxu0 %v2080
        %v6287 = vpop.f32.mrf.mxu0
        %v6288 = vadd.f32 %v6223, %v6287
        %6289 = vmatmul.f32.gmra.mxu0 %v2082
        %v6290 = vpop.f32.mrf.mxu0
        %v6291 = vadd.f32 %v6226, %v6290
        %6292 = vmatmul.f32.gmra.mxu0 %v2084
        %v6293 = vpop.f32.mrf.mxu0
        %v6294 = vadd.f32 %v6229, %v6293
        %6295 = vmatmul.f32.gmra.mxu0 %v2086
        %v6296 = vpop.f32.mrf.mxu0
        %v6297 = vadd.f32 %v6232, %v6296
        %6298 = vmatmul.f32.gmra.mxu0 %v2088
        %v6299 = vpop.f32.mrf.mxu0
        %v6300 = vadd.f32 %v6235, %v6299
        %6301 = vmatmul.f32.gmra.mxu0 %v2090
        %v6302 = vpop.f32.mrf.mxu0
        %v6303 = vadd.f32 %v6238, %v6302
        %6304 = vmatmul.f32.gmra.mxu0 %v2092
        %v6305 = vpop.f32.mrf.mxu0
        %v6306 = vadd.f32 %v6241, %v6305
        %6307 = vmatmul.f32.gmra.mxu0 %v2094
        %v6308 = vpop.f32.mrf.mxu0
        %v6309 = vadd.f32 %v6244, %v6308
        %6310 = vmatmul.f32.gmra.mxu0 %v2096
        %v6311 = vpop.f32.mrf.mxu0
        %v6312 = vadd.f32 %v6247, %v6311
        %6313 = vmatmul.f32.gmra.mxu0 %v2098
        %v6314 = vpop.f32.mrf.mxu0
        %v6315 = vadd.f32 %v6250, %v6314
        %6316 = vdwg.mxu0
        %6317 = vmatpush.msra.mxu0 %v6089
        %6318 = vmatpush.msra.mxu0 %v6088
        %6319 = vmatpush.msra.mxu0 %v6087
        %6320 = vmatpush.msra.mxu0 %v6086
        %6321 = vmatpush.msra.mxu0 %v6085
        %6322 = vmatpush.msra.mxu0 %v6084
        %6323 = vmatpush.msra.mxu0 %v6083
        %6324 = vmatpush.msra.mxu0 %v6082
        %6325 = vmatpush.msra.mxu0 %v6081
        %6326 = vmatpush.msra.mxu0 %v6080
        %6327 = vmatpush.msra.mxu0 %v6079
        %6328 = vmatpush.msra.mxu0 %v6078
        %6329 = vmatpush.msra.mxu0 %v6077
        %6330 = vmatpush.msra.mxu0 %v6076
        %6331 = vmatpush.msra.mxu0 %v6075
        %6332 = vmatpush.msra.mxu0 %v6074
        %6333 = vmatmul.f32.gmra.mxu0 %v2069
        %v6334 = vpop.f32.mrf.mxu0
        %v6335 = vadd.f32 %v6270, %v6334
        %6336 = vmatmul.f32.gmra.mxu0 %v2071
        %v6337 = vpop.f32.mrf.mxu0
        %v6338 = vadd.f32 %v6273, %v6337
        %6339 = vmatmul.f32.gmra.mxu0 %v2073
        %v6340 = vpop.f32.mrf.mxu0
        %v6341 = vadd.f32 %v6276, %v6340
        %6342 = vmatmul.f32.gmra.mxu0 %v2075
        %v6343 = vpop.f32.mrf.mxu0
        %v6344 = vadd.f32 %v6279, %v6343
        %6345 = vmatmul.f32.gmra.mxu0 %v2077
        %v6346 = vpop.f32.mrf.mxu0
        %v6347 = vadd.f32 %v6282, %v6346
        %6348 = vmatmul.f32.gmra.mxu0 %v2079
        %v6349 = vpop.f32.mrf.mxu0
        %v6350 = vadd.f32 %v6285, %v6349
        %6351 = vmatmul.f32.gmra.mxu0 %v2081
        %v6352 = vpop.f32.mrf.mxu0
        %v6353 = vadd.f32 %v6288, %v6352
        %6354 = vmatmul.f32.gmra.mxu0 %v2083
        %v6355 = vpop.f32.mrf.mxu0
        %v6356 = vadd.f32 %v6291, %v6355
        %6357 = vmatmul.f32.gmra.mxu0 %v2085
        %v6358 = vpop.f32.mrf.mxu0
        %v6359 = vadd.f32 %v6294, %v6358
        %6360 = vmatmul.f32.gmra.mxu0 %v2087
        %v6361 = vpop.f32.mrf.mxu0
        %v6362 = vadd.f32 %v6297, %v6361
        %6363 = vmatmul.f32.gmra.mxu0 %v2089
        %v6364 = vpop.f32.mrf.mxu0
        %v6365 = vadd.f32 %v6300, %v6364
        %6366 = vmatmul.f32.gmra.mxu0 %v2091
        %v6367 = vpop.f32.mrf.mxu0
        %v6368 = vadd.f32 %v6303, %v6367
        %6369 = vmatmul.f32.gmra.mxu0 %v2093
        %v6370 = vpop.f32.mrf.mxu0
        %v6371 = vadd.f32 %v6306, %v6370
        %6372 = vmatmul.f32.gmra.mxu0 %v2095
        %v6373 = vpop.f32.mrf.mxu0
        %v6374 = vadd.f32 %v6309, %v6373
        %6375 = vmatmul.f32.gmra.mxu0 %v2097
        %v6376 = vpop.f32.mrf.mxu0
        %v6377 = vadd.f32 %v6312, %v6376
        %6378 = vmatmul.f32.gmra.mxu0 %v2099
        %v6379 = vpop.f32.mrf.mxu0
        %v6380 = vadd.f32 %v6315, %v6379
        %6381 = vdwg.mxu0
        %v6382 = vld [vmem:[%s6057 + $0x200] sm:$0xff]
        %v6383 = vld [vmem:[%s6057 + $0x208] sm:$0xff]
        %v6384 = vld [vmem:[%s6057 + $0x210] sm:$0xff]
        %v6385 = vld [vmem:[%s6057 + $0x218] sm:$0xff]
        %v6386 = vld [vmem:[%s6057 + $0x220] sm:$0xff]
        %v6387 = vld [vmem:[%s6057 + $0x228] sm:$0xff]
        %v6388 = vld [vmem:[%s6057 + $0x230] sm:$0xff]
        %v6389 = vld [vmem:[%s6057 + $0x238] sm:$0xff]
        %v6390 = vld [vmem:[%s6057 + $0x240] sm:$0xff]
        %v6391 = vld [vmem:[%s6057 + $0x248] sm:$0xff]
        %v6392 = vld [vmem:[%s6057 + $0x250] sm:$0xff]
        %v6393 = vld [vmem:[%s6057 + $0x258] sm:$0xff]
        %v6394 = vld [vmem:[%s6057 + $0x260] sm:$0xff]
        %v6395 = vld [vmem:[%s6057 + $0x268] sm:$0xff]
        %v6396 = vld [vmem:[%s6057 + $0x270] sm:$0xff]
        %v6397 = vld [vmem:[%s6057 + $0x278] sm:$0xff]
        %v6398 = vld [vmem:[%s6057 + $0x280] sm:$0xff]
        %v6399 = vld [vmem:[%s6057 + $0x288] sm:$0xff]
        %v6400 = vld [vmem:[%s6057 + $0x290] sm:$0xff]
        %v6401 = vld [vmem:[%s6057 + $0x298] sm:$0xff]
        %v6402 = vld [vmem:[%s6057 + $0x2a0] sm:$0xff]
        %v6403 = vld [vmem:[%s6057 + $0x2a8] sm:$0xff]
        %v6404 = vld [vmem:[%s6057 + $0x2b0] sm:$0xff]
        %v6405 = vld [vmem:[%s6057 + $0x2b8] sm:$0xff]
        %v6406 = vld [vmem:[%s6057 + $0x2c0] sm:$0xff]
        %v6407 = vld [vmem:[%s6057 + $0x2c8] sm:$0xff]
        %v6408 = vld [vmem:[%s6057 + $0x2d0] sm:$0xff]
        %v6409 = vld [vmem:[%s6057 + $0x2d8] sm:$0xff]
        %v6410 = vld [vmem:[%s6057 + $0x2e0] sm:$0xff]
        %v6411 = vld [vmem:[%s6057 + $0x2e8] sm:$0xff]
        %v6412 = vld [vmem:[%s6057 + $0x2f0] sm:$0xff]
        %v6413 = vld [vmem:[%s6057 + $0x2f8] sm:$0xff]
        %6414 = vmatpush.msra.mxu0 %v6397
        %6415 = vmatpush.msra.mxu0 %v6396
        %6416 = vmatpush.msra.mxu0 %v6395
        %6417 = vmatpush.msra.mxu0 %v6394
        %6418 = vmatpush.msra.mxu0 %v6393
        %6419 = vmatpush.msra.mxu0 %v6392
        %6420 = vmatpush.msra.mxu0 %v6391
        %6421 = vmatpush.msra.mxu0 %v6390
        %6422 = vmatpush.msra.mxu0 %v6389
        %6423 = vmatpush.msra.mxu0 %v6388
        %6424 = vmatpush.msra.mxu0 %v6387
        %6425 = vmatpush.msra.mxu0 %v6386
        %6426 = vmatpush.msra.mxu0 %v6385
        %6427 = vmatpush.msra.mxu0 %v6384
        %6428 = vmatpush.msra.mxu0 %v6383
        %6429 = vmatpush.msra.mxu0 %v6382
        %6430 = vmatmul.f32.gmra.mxu0 %v2456
        %v6431 = vpop.f32.mrf.mxu0
        %v6432 = vadd.f32 0.0, %v6431
        %6433 = vmatmul.f32.gmra.mxu0 %v2458
        %v6434 = vpop.f32.mrf.mxu0
        %v6435 = vadd.f32 0.0, %v6434
        %6436 = vmatmul.f32.gmra.mxu0 %v2460
        %v6437 = vpop.f32.mrf.mxu0
        %v6438 = vadd.f32 0.0, %v6437
        %6439 = vmatmul.f32.gmra.mxu0 %v2462
        %v6440 = vpop.f32.mrf.mxu0
        %v6441 = vadd.f32 0.0, %v6440
        %6442 = vmatmul.f32.gmra.mxu0 %v2464
        %v6443 = vpop.f32.mrf.mxu0
        %v6444 = vadd.f32 0.0, %v6443
        %6445 = vmatmul.f32.gmra.mxu0 %v2466
        %v6446 = vpop.f32.mrf.mxu0
        %v6447 = vadd.f32 0.0, %v6446
        %6448 = vmatmul.f32.gmra.mxu0 %v2468
        %v6449 = vpop.f32.mrf.mxu0
        %v6450 = vadd.f32 0.0, %v6449
        %6451 = vmatmul.f32.gmra.mxu0 %v2470
        %v6452 = vpop.f32.mrf.mxu0
        %v6453 = vadd.f32 0.0, %v6452
        %6454 = vmatmul.f32.gmra.mxu0 %v2472
        %v6455 = vpop.f32.mrf.mxu0
        %v6456 = vadd.f32 0.0, %v6455
        %6457 = vmatmul.f32.gmra.mxu0 %v2474
        %v6458 = vpop.f32.mrf.mxu0
        %v6459 = vadd.f32 0.0, %v6458
        %6460 = vmatmul.f32.gmra.mxu0 %v2476
        %v6461 = vpop.f32.mrf.mxu0
        %v6462 = vadd.f32 0.0, %v6461
        %6463 = vmatmul.f32.gmra.mxu0 %v2478
        %v6464 = vpop.f32.mrf.mxu0
        %v6465 = vadd.f32 0.0, %v6464
        %6466 = vmatmul.f32.gmra.mxu0 %v2480
        %v6467 = vpop.f32.mrf.mxu0
        %v6468 = vadd.f32 0.0, %v6467
        %6469 = vmatmul.f32.gmra.mxu0 %v2482
        %v6470 = vpop.f32.mrf.mxu0
        %v6471 = vadd.f32 0.0, %v6470
        %6472 = vmatmul.f32.gmra.mxu0 %v2484
        %v6473 = vpop.f32.mrf.mxu0
        %v6474 = vadd.f32 0.0, %v6473
        %6475 = vmatmul.f32.gmra.mxu0 %v2486
        %v6476 = vpop.f32.mrf.mxu0
        %v6477 = vadd.f32 0.0, %v6476
        %6478 = vdwg.mxu0
        %6479 = vmatpush.msra.mxu0 %v6413
        %6480 = vmatpush.msra.mxu0 %v6412
        %6481 = vmatpush.msra.mxu0 %v6411
        %6482 = vmatpush.msra.mxu0 %v6410
        %6483 = vmatpush.msra.mxu0 %v6409
        %6484 = vmatpush.msra.mxu0 %v6408
        %6485 = vmatpush.msra.mxu0 %v6407
        %6486 = vmatpush.msra.mxu0 %v6406
        %6487 = vmatpush.msra.mxu0 %v6405
        %6488 = vmatpush.msra.mxu0 %v6404
        %6489 = vmatpush.msra.mxu0 %v6403
        %6490 = vmatpush.msra.mxu0 %v6402
        %6491 = vmatpush.msra.mxu0 %v6401
        %6492 = vmatpush.msra.mxu0 %v6400
        %6493 = vmatpush.msra.mxu0 %v6399
        %6494 = vmatpush.msra.mxu0 %v6398
        %6495 = vmatmul.f32.gmra.mxu0 %v2457
        %v6496 = vpop.f32.mrf.mxu0
        %v6497 = vadd.f32 %v6432, %v6496
        %6498 = vmatmul.f32.gmra.mxu0 %v2459
        %v6499 = vpop.f32.mrf.mxu0
        %v6500 = vadd.f32 %v6435, %v6499
        %6501 = vmatmul.f32.gmra.mxu0 %v2461
        %v6502 = vpop.f32.mrf.mxu0
        %v6503 = vadd.f32 %v6438, %v6502
        %6504 = vmatmul.f32.gmra.mxu0 %v2463
        %v6505 = vpop.f32.mrf.mxu0
        %v6506 = vadd.f32 %v6441, %v6505
        %6507 = vmatmul.f32.gmra.mxu0 %v2465
        %v6508 = vpop.f32.mrf.mxu0
        %v6509 = vadd.f32 %v6444, %v6508
        %6510 = vmatmul.f32.gmra.mxu0 %v2467
        %v6511 = vpop.f32.mrf.mxu0
        %v6512 = vadd.f32 %v6447, %v6511
        %6513 = vmatmul.f32.gmra.mxu0 %v2469
        %v6514 = vpop.f32.mrf.mxu0
        %v6515 = vadd.f32 %v6450, %v6514
        %6516 = vmatmul.f32.gmra.mxu0 %v2471
        %v6517 = vpop.f32.mrf.mxu0
        %v6518 = vadd.f32 %v6453, %v6517
        %6519 = vmatmul.f32.gmra.mxu0 %v2473
        %v6520 = vpop.f32.mrf.mxu0
        %v6521 = vadd.f32 %v6456, %v6520
        %6522 = vmatmul.f32.gmra.mxu0 %v2475
        %v6523 = vpop.f32.mrf.mxu0
        %v6524 = vadd.f32 %v6459, %v6523
        %6525 = vmatmul.f32.gmra.mxu0 %v2477
        %v6526 = vpop.f32.mrf.mxu0
        %v6527 = vadd.f32 %v6462, %v6526
        %6528 = vmatmul.f32.gmra.mxu0 %v2479
        %v6529 = vpop.f32.mrf.mxu0
        %v6530 = vadd.f32 %v6465, %v6529
        %6531 = vmatmul.f32.gmra.mxu0 %v2481
        %v6532 = vpop.f32.mrf.mxu0
        %v6533 = vadd.f32 %v6468, %v6532
        %6534 = vmatmul.f32.gmra.mxu0 %v2483
        %v6535 = vpop.f32.mrf.mxu0
        %v6536 = vadd.f32 %v6471, %v6535
        %6537 = vmatmul.f32.gmra.mxu0 %v2485
        %v6538 = vpop.f32.mrf.mxu0
        %v6539 = vadd.f32 %v6474, %v6538
        %6540 = vmatmul.f32.gmra.mxu0 %v2487
        %v6541 = vpop.f32.mrf.mxu0
        %v6542 = vadd.f32 %v6477, %v6541
        %6543 = vdwg.mxu0
        %v6544 = vadd.f32 %v6335, %v6497
        %v6545 = vadd.f32 %v6338, %v6500
        %v6546 = vadd.f32 %v6341, %v6503
        %v6547 = vadd.f32 %v6344, %v6506
        %v6548 = vadd.f32 %v6347, %v6509
        %v6549 = vadd.f32 %v6350, %v6512
        %v6550 = vadd.f32 %v6353, %v6515
        %v6551 = vadd.f32 %v6356, %v6518
        %v6552 = vadd.f32 %v6359, %v6521
        %v6553 = vadd.f32 %v6362, %v6524
        %v6554 = vadd.f32 %v6365, %v6527
        %v6555 = vadd.f32 %v6368, %v6530
        %v6556 = vadd.f32 %v6371, %v6533
        %v6557 = vadd.f32 %v6374, %v6536
        %v6558 = vadd.f32 %v6377, %v6539
        %v6559 = vadd.f32 %v6380, %v6542
        %v6560 = vld [vmem:[%s6057 + $0x300] sm:$0xff]
        %v6561 = vld [vmem:[%s6057 + $0x308] sm:$0xff]
        %v6562 = vld [vmem:[%s6057 + $0x310] sm:$0xff]
        %v6563 = vld [vmem:[%s6057 + $0x318] sm:$0xff]
        %v6564 = vld [vmem:[%s6057 + $0x320] sm:$0xff]
        %v6565 = vld [vmem:[%s6057 + $0x328] sm:$0xff]
        %v6566 = vld [vmem:[%s6057 + $0x330] sm:$0xff]
        %v6567 = vld [vmem:[%s6057 + $0x338] sm:$0xff]
        %v6568 = vld [vmem:[%s6057 + $0x340] sm:$0xff]
        %v6569 = vld [vmem:[%s6057 + $0x348] sm:$0xff]
        %v6570 = vld [vmem:[%s6057 + $0x350] sm:$0xff]
        %v6571 = vld [vmem:[%s6057 + $0x358] sm:$0xff]
        %v6572 = vld [vmem:[%s6057 + $0x360] sm:$0xff]
        %v6573 = vld [vmem:[%s6057 + $0x368] sm:$0xff]
        %v6574 = vld [vmem:[%s6057 + $0x370] sm:$0xff]
        %v6575 = vld [vmem:[%s6057 + $0x378] sm:$0xff]
        %v6576 = vld [vmem:[%s6057 + $0x380] sm:$0xff]
        %v6577 = vld [vmem:[%s6057 + $0x388] sm:$0xff]
        %v6578 = vld [vmem:[%s6057 + $0x390] sm:$0xff]
        %v6579 = vld [vmem:[%s6057 + $0x398] sm:$0xff]
        %v6580 = vld [vmem:[%s6057 + $0x3a0] sm:$0xff]
        %v6581 = vld [vmem:[%s6057 + $0x3a8] sm:$0xff]
        %v6582 = vld [vmem:[%s6057 + $0x3b0] sm:$0xff]
        %v6583 = vld [vmem:[%s6057 + $0x3b8] sm:$0xff]
        %v6584 = vld [vmem:[%s6057 + $0x3c0] sm:$0xff]
        %v6585 = vld [vmem:[%s6057 + $0x3c8] sm:$0xff]
        %v6586 = vld [vmem:[%s6057 + $0x3d0] sm:$0xff]
        %v6587 = vld [vmem:[%s6057 + $0x3d8] sm:$0xff]
        %v6588 = vld [vmem:[%s6057 + $0x3e0] sm:$0xff]
        %v6589 = vld [vmem:[%s6057 + $0x3e8] sm:$0xff]
        %v6590 = vld [vmem:[%s6057 + $0x3f0] sm:$0xff]
        %v6591 = vld [vmem:[%s6057 + $0x3f8] sm:$0xff]
        %6592 = vmatpush.msra.mxu0 %v6575
        %6593 = vmatpush.msra.mxu0 %v6574
        %6594 = vmatpush.msra.mxu0 %v6573
        %6595 = vmatpush.msra.mxu0 %v6572
        %6596 = vmatpush.msra.mxu0 %v6571
        %6597 = vmatpush.msra.mxu0 %v6570
        %6598 = vmatpush.msra.mxu0 %v6569
        %6599 = vmatpush.msra.mxu0 %v6568
        %6600 = vmatpush.msra.mxu0 %v6567
        %6601 = vmatpush.msra.mxu0 %v6566
        %6602 = vmatpush.msra.mxu0 %v6565
        %6603 = vmatpush.msra.mxu0 %v6564
        %6604 = vmatpush.msra.mxu0 %v6563
        %6605 = vmatpush.msra.mxu0 %v6562
        %6606 = vmatpush.msra.mxu0 %v6561
        %6607 = vmatpush.msra.mxu0 %v6560
        %6608 = vmatmul.f32.gmra.mxu0 %v2666
        %v6609 = vpop.f32.mrf.mxu0
        %v6610 = vadd.f32 0.0, %v6609
        %6611 = vmatmul.f32.gmra.mxu0 %v2668
        %v6612 = vpop.f32.mrf.mxu0
        %v6613 = vadd.f32 0.0, %v6612
        %6614 = vmatmul.f32.gmra.mxu0 %v2670
        %v6615 = vpop.f32.mrf.mxu0
        %v6616 = vadd.f32 0.0, %v6615
        %6617 = vmatmul.f32.gmra.mxu0 %v2672
        %v6618 = vpop.f32.mrf.mxu0
        %v6619 = vadd.f32 0.0, %v6618
        %6620 = vmatmul.f32.gmra.mxu0 %v2674
        %v6621 = vpop.f32.mrf.mxu0
        %v6622 = vadd.f32 0.0, %v6621
        %6623 = vmatmul.f32.gmra.mxu0 %v2676
        %v6624 = vpop.f32.mrf.mxu0
        %v6625 = vadd.f32 0.0, %v6624
        %6626 = vmatmul.f32.gmra.mxu0 %v2678
        %v6627 = vpop.f32.mrf.mxu0
        %v6628 = vadd.f32 0.0, %v6627
        %6629 = vmatmul.f32.gmra.mxu0 %v2680
        %v6630 = vpop.f32.mrf.mxu0
        %v6631 = vadd.f32 0.0, %v6630
        %6632 = vmatmul.f32.gmra.mxu0 %v2682
        %v6633 = vpop.f32.mrf.mxu0
        %v6634 = vadd.f32 0.0, %v6633
        %6635 = vmatmul.f32.gmra.mxu0 %v2684
        %v6636 = vpop.f32.mrf.mxu0
        %v6637 = vadd.f32 0.0, %v6636
        %6638 = vmatmul.f32.gmra.mxu0 %v2686
        %v6639 = vpop.f32.mrf.mxu0
        %v6640 = vadd.f32 0.0, %v6639
        %6641 = vmatmul.f32.gmra.mxu0 %v2688
        %v6642 = vpop.f32.mrf.mxu0
        %v6643 = vadd.f32 0.0, %v6642
        %6644 = vmatmul.f32.gmra.mxu0 %v2690
        %v6645 = vpop.f32.mrf.mxu0
        %v6646 = vadd.f32 0.0, %v6645
        %6647 = vmatmul.f32.gmra.mxu0 %v2692
        %v6648 = vpop.f32.mrf.mxu0
        %v6649 = vadd.f32 0.0, %v6648
        %6650 = vmatmul.f32.gmra.mxu0 %v2694
        %v6651 = vpop.f32.mrf.mxu0
        %v6652 = vadd.f32 0.0, %v6651
        %6653 = vmatmul.f32.gmra.mxu0 %v2696
        %v6654 = vpop.f32.mrf.mxu0
        %v6655 = vadd.f32 0.0, %v6654
        %6656 = vdwg.mxu0
        %6657 = vmatpush.msra.mxu0 %v6591
        %6658 = vmatpush.msra.mxu0 %v6590
        %6659 = vmatpush.msra.mxu0 %v6589
        %6660 = vmatpush.msra.mxu0 %v6588
        %6661 = vmatpush.msra.mxu0 %v6587
        %6662 = vmatpush.msra.mxu0 %v6586
        %6663 = vmatpush.msra.mxu0 %v6585
        %6664 = vmatpush.msra.mxu0 %v6584
        %6665 = vmatpush.msra.mxu0 %v6583
        %6666 = vmatpush.msra.mxu0 %v6582
        %6667 = vmatpush.msra.mxu0 %v6581
        %6668 = vmatpush.msra.mxu0 %v6580
        %6669 = vmatpush.msra.mxu0 %v6579
        %6670 = vmatpush.msra.mxu0 %v6578
        %6671 = vmatpush.msra.mxu0 %v6577
        %6672 = vmatpush.msra.mxu0 %v6576
        %6673 = vmatmul.f32.gmra.mxu0 %v2667
        %v6674 = vpop.f32.mrf.mxu0
        %v6675 = vadd.f32 %v6610, %v6674
        %6676 = vmatmul.f32.gmra.mxu0 %v2669
        %v6677 = vpop.f32.mrf.mxu0
        %v6678 = vadd.f32 %v6613, %v6677
        %6679 = vmatmul.f32.gmra.mxu0 %v2671
        %v6680 = vpop.f32.mrf.mxu0
        %v6681 = vadd.f32 %v6616, %v6680
        %6682 = vmatmul.f32.gmra.mxu0 %v2673
        %v6683 = vpop.f32.mrf.mxu0
        %v6684 = vadd.f32 %v6619, %v6683
        %6685 = vmatmul.f32.gmra.mxu0 %v2675
        %v6686 = vpop.f32.mrf.mxu0
        %v6687 = vadd.f32 %v6622, %v6686
        %6688 = vmatmul.f32.gmra.mxu0 %v2677
        %v6689 = vpop.f32.mrf.mxu0
        %v6690 = vadd.f32 %v6625, %v6689
        %6691 = vmatmul.f32.gmra.mxu0 %v2679
        %v6692 = vpop.f32.mrf.mxu0
        %v6693 = vadd.f32 %v6628, %v6692
        %6694 = vmatmul.f32.gmra.mxu0 %v2681
        %v6695 = vpop.f32.mrf.mxu0
        %v6696 = vadd.f32 %v6631, %v6695
        %6697 = vmatmul.f32.gmra.mxu0 %v2683
        %v6698 = vpop.f32.mrf.mxu0
        %v6699 = vadd.f32 %v6634, %v6698
        %6700 = vmatmul.f32.gmra.mxu0 %v2685
        %v6701 = vpop.f32.mrf.mxu0
        %v6702 = vadd.f32 %v6637, %v6701
        %6703 = vmatmul.f32.gmra.mxu0 %v2687
        %v6704 = vpop.f32.mrf.mxu0
        %v6705 = vadd.f32 %v6640, %v6704
        %6706 = vmatmul.f32.gmra.mxu0 %v2689
        %v6707 = vpop.f32.mrf.mxu0
        %v6708 = vadd.f32 %v6643, %v6707
        %6709 = vmatmul.f32.gmra.mxu0 %v2691
        %v6710 = vpop.f32.mrf.mxu0
        %v6711 = vadd.f32 %v6646, %v6710
        %6712 = vmatmul.f32.gmra.mxu0 %v2693
        %v6713 = vpop.f32.mrf.mxu0
        %v6714 = vadd.f32 %v6649, %v6713
        %6715 = vmatmul.f32.gmra.mxu0 %v2695
        %v6716 = vpop.f32.mrf.mxu0
        %v6717 = vadd.f32 %v6652, %v6716
        %6718 = vmatmul.f32.gmra.mxu0 %v2697
        %v6719 = vpop.f32.mrf.mxu0
        %v6720 = vadd.f32 %v6655, %v6719
        %6721 = vdwg.mxu0
        %v6722 = vadd.f32 %v6544, %v6675
        %v6723 = vadd.f32 %v6545, %v6678
        %v6724 = vadd.f32 %v6546, %v6681
        %v6725 = vadd.f32 %v6547, %v6684
        %v6726 = vadd.f32 %v6548, %v6687
        %v6727 = vadd.f32 %v6549, %v6690
        %v6728 = vadd.f32 %v6550, %v6693
        %v6729 = vadd.f32 %v6551, %v6696
        %v6730 = vadd.f32 %v6552, %v6699
        %v6731 = vadd.f32 %v6553, %v6702
        %v6732 = vadd.f32 %v6554, %v6705
        %v6733 = vadd.f32 %v6555, %v6708
        %v6734 = vadd.f32 %v6556, %v6711
        %v6735 = vadd.f32 %v6557, %v6714
        %v6736 = vadd.f32 %v6558, %v6717
        %v6737 = vadd.f32 %v6559, %v6720
        %s6738 = scalar_lea.vmem %s5, 640
        %v6739 = vld [vmem:[%s6738] sm:$0xff]
        %v6740 = vld [vmem:[%s6738 + $0x8] sm:$0xff]
        %v6741 = vld [vmem:[%s6738 + $0x10] sm:$0xff]
        %v6742 = vld [vmem:[%s6738 + $0x18] sm:$0xff]
        %v6743 = vld [vmem:[%s6738 + $0x20] sm:$0xff]
        %v6744 = vld [vmem:[%s6738 + $0x28] sm:$0xff]
        %v6745 = vld [vmem:[%s6738 + $0x30] sm:$0xff]
        %v6746 = vld [vmem:[%s6738 + $0x38] sm:$0xff]
        %v6747 = vld [vmem:[%s6738 + $0x40] sm:$0xff]
        %v6748 = vld [vmem:[%s6738 + $0x48] sm:$0xff]
        %v6749 = vld [vmem:[%s6738 + $0x50] sm:$0xff]
        %v6750 = vld [vmem:[%s6738 + $0x58] sm:$0xff]
        %v6751 = vld [vmem:[%s6738 + $0x60] sm:$0xff]
        %v6752 = vld [vmem:[%s6738 + $0x68] sm:$0xff]
        %v6753 = vld [vmem:[%s6738 + $0x70] sm:$0xff]
        %v6754 = vld [vmem:[%s6738 + $0x78] sm:$0xff]
        %6755 = vmatpush.msra.mxu0 %v6737
        %6756 = vmatpush.msra.mxu0 %v6736
        %6757 = vmatpush.msra.mxu0 %v6735
        %6758 = vmatpush.msra.mxu0 %v6734
        %6759 = vmatpush.msra.mxu0 %v6733
        %6760 = vmatpush.msra.mxu0 %v6732
        %6761 = vmatpush.msra.mxu0 %v6731
        %6762 = vmatpush.msra.mxu0 %v6730
        %6763 = vmatpush.msra.mxu0 %v6729
        %6764 = vmatpush.msra.mxu0 %v6728
        %6765 = vmatpush.msra.mxu0 %v6727
        %6766 = vmatpush.msra.mxu0 %v6726
        %6767 = vmatpush.msra.mxu0 %v6725
        %6768 = vmatpush.msra.mxu0 %v6724
        %6769 = vmatpush.msra.mxu0 %v6723
        %6770 = vmatpush.msra.mxu0 %v6722
        %6771 = vmatmul.f32.gmra.mxu0 %v6739
        %v6772 = vpop.f32.mrf.mxu0
        %v6773 = vadd.f32 0.0, %v6772
        %6774 = vmatmul.f32.gmra.mxu0 %v6740
        %v6775 = vpop.f32.mrf.mxu0
        %v6776 = vadd.f32 0.0, %v6775
        %6777 = vmatmul.f32.gmra.mxu0 %v6741
        %v6778 = vpop.f32.mrf.mxu0
        %v6779 = vadd.f32 0.0, %v6778
        %6780 = vmatmul.f32.gmra.mxu0 %v6742
        %v6781 = vpop.f32.mrf.mxu0
        %v6782 = vadd.f32 0.0, %v6781
        %6783 = vmatmul.f32.gmra.mxu0 %v6743
        %v6784 = vpop.f32.mrf.mxu0
        %v6785 = vadd.f32 0.0, %v6784
        %6786 = vmatmul.f32.gmra.mxu0 %v6744
        %v6787 = vpop.f32.mrf.mxu0
        %v6788 = vadd.f32 0.0, %v6787
        %6789 = vmatmul.f32.gmra.mxu0 %v6745
        %v6790 = vpop.f32.mrf.mxu0
        %v6791 = vadd.f32 0.0, %v6790
        %6792 = vmatmul.f32.gmra.mxu0 %v6746
        %v6793 = vpop.f32.mrf.mxu0
        %v6794 = vadd.f32 0.0, %v6793
        %6795 = vmatmul.f32.gmra.mxu0 %v6747
        %v6796 = vpop.f32.mrf.mxu0
        %v6797 = vadd.f32 0.0, %v6796
        %6798 = vmatmul.f32.gmra.mxu0 %v6748
        %v6799 = vpop.f32.mrf.mxu0
        %v6800 = vadd.f32 0.0, %v6799
        %6801 = vmatmul.f32.gmra.mxu0 %v6749
        %v6802 = vpop.f32.mrf.mxu0
        %v6803 = vadd.f32 0.0, %v6802
        %6804 = vmatmul.f32.gmra.mxu0 %v6750
        %v6805 = vpop.f32.mrf.mxu0
        %v6806 = vadd.f32 0.0, %v6805
        %6807 = vmatmul.f32.gmra.mxu0 %v6751
        %v6808 = vpop.f32.mrf.mxu0
        %v6809 = vadd.f32 0.0, %v6808
        %6810 = vmatmul.f32.gmra.mxu0 %v6752
        %v6811 = vpop.f32.mrf.mxu0
        %v6812 = vadd.f32 0.0, %v6811
        %6813 = vmatmul.f32.gmra.mxu0 %v6753
        %v6814 = vpop.f32.mrf.mxu0
        %v6815 = vadd.f32 0.0, %v6814
        %6816 = vmatmul.f32.gmra.mxu0 %v6754
        %v6817 = vpop.f32.mrf.mxu0
        %v6818 = vadd.f32 0.0, %v6817
        %6819 = vdwg.mxu0
        %v6820 = vadd.f32 %v6041, %v6773
        %v6821 = vadd.f32 %v6042, %v6776
        %v6822 = vadd.f32 %v6043, %v6779
        %v6823 = vadd.f32 %v6044, %v6782
        %v6824 = vadd.f32 %v6045, %v6785
        %v6825 = vadd.f32 %v6046, %v6788
        %v6826 = vadd.f32 %v6047, %v6791
        %v6827 = vadd.f32 %v6048, %v6794
        %v6828 = vadd.f32 %v6049, %v6797
        %v6829 = vadd.f32 %v6050, %v6800
        %v6830 = vadd.f32 %v6051, %v6803
        %v6831 = vadd.f32 %v6052, %v6806
        %v6832 = vadd.f32 %v6053, %v6809
        %v6833 = vadd.f32 %v6054, %v6812
        %v6834 = vadd.f32 %v6055, %v6815
        %v6835 = vadd.f32 %v6056, %v6818
        %s6836 = scalar_lea.vmem %s3, 6144
        %v6837 = vld [vmem:[%s6836] sm:$0xff]
        %v6838 = vld [vmem:[%s6836 + $0x8] sm:$0xff]
        %v6839 = vld [vmem:[%s6836 + $0x10] sm:$0xff]
        %v6840 = vld [vmem:[%s6836 + $0x18] sm:$0xff]
        %v6841 = vld [vmem:[%s6836 + $0x20] sm:$0xff]
        %v6842 = vld [vmem:[%s6836 + $0x28] sm:$0xff]
        %v6843 = vld [vmem:[%s6836 + $0x30] sm:$0xff]
        %v6844 = vld [vmem:[%s6836 + $0x38] sm:$0xff]
        %v6845 = vld [vmem:[%s6836 + $0x40] sm:$0xff]
        %v6846 = vld [vmem:[%s6836 + $0x48] sm:$0xff]
        %v6847 = vld [vmem:[%s6836 + $0x50] sm:$0xff]
        %v6848 = vld [vmem:[%s6836 + $0x58] sm:$0xff]
        %v6849 = vld [vmem:[%s6836 + $0x60] sm:$0xff]
        %v6850 = vld [vmem:[%s6836 + $0x68] sm:$0xff]
        %v6851 = vld [vmem:[%s6836 + $0x70] sm:$0xff]
        %v6852 = vld [vmem:[%s6836 + $0x78] sm:$0xff]
        %v6853 = vld [vmem:[%s6836 + $0x80] sm:$0xff]
        %v6854 = vld [vmem:[%s6836 + $0x88] sm:$0xff]
        %v6855 = vld [vmem:[%s6836 + $0x90] sm:$0xff]
        %v6856 = vld [vmem:[%s6836 + $0x98] sm:$0xff]
        %v6857 = vld [vmem:[%s6836 + $0xa0] sm:$0xff]
        %v6858 = vld [vmem:[%s6836 + $0xa8] sm:$0xff]
        %v6859 = vld [vmem:[%s6836 + $0xb0] sm:$0xff]
        %v6860 = vld [vmem:[%s6836 + $0xb8] sm:$0xff]
        %v6861 = vld [vmem:[%s6836 + $0xc0] sm:$0xff]
        %v6862 = vld [vmem:[%s6836 + $0xc8] sm:$0xff]
        %v6863 = vld [vmem:[%s6836 + $0xd0] sm:$0xff]
        %v6864 = vld [vmem:[%s6836 + $0xd8] sm:$0xff]
        %v6865 = vld [vmem:[%s6836 + $0xe0] sm:$0xff]
        %v6866 = vld [vmem:[%s6836 + $0xe8] sm:$0xff]
        %v6867 = vld [vmem:[%s6836 + $0xf0] sm:$0xff]
        %v6868 = vld [vmem:[%s6836 + $0xf8] sm:$0xff]
        %v6869 = vld [vmem:[%s6836 + $0x100] sm:$0xff]
        %v6870 = vld [vmem:[%s6836 + $0x108] sm:$0xff]
        %v6871 = vld [vmem:[%s6836 + $0x110] sm:$0xff]
        %v6872 = vld [vmem:[%s6836 + $0x118] sm:$0xff]
        %v6873 = vld [vmem:[%s6836 + $0x120] sm:$0xff]
        %v6874 = vld [vmem:[%s6836 + $0x128] sm:$0xff]
        %v6875 = vld [vmem:[%s6836 + $0x130] sm:$0xff]
        %v6876 = vld [vmem:[%s6836 + $0x138] sm:$0xff]
        %v6877 = vld [vmem:[%s6836 + $0x140] sm:$0xff]
        %v6878 = vld [vmem:[%s6836 + $0x148] sm:$0xff]
        %v6879 = vld [vmem:[%s6836 + $0x150] sm:$0xff]
        %v6880 = vld [vmem:[%s6836 + $0x158] sm:$0xff]
        %v6881 = vld [vmem:[%s6836 + $0x160] sm:$0xff]
        %v6882 = vld [vmem:[%s6836 + $0x168] sm:$0xff]
        %v6883 = vld [vmem:[%s6836 + $0x170] sm:$0xff]
        %v6884 = vld [vmem:[%s6836 + $0x178] sm:$0xff]
        %v6885 = vld [vmem:[%s6836 + $0x180] sm:$0xff]
        %v6886 = vld [vmem:[%s6836 + $0x188] sm:$0xff]
        %v6887 = vld [vmem:[%s6836 + $0x190] sm:$0xff]
        %v6888 = vld [vmem:[%s6836 + $0x198] sm:$0xff]
        %v6889 = vld [vmem:[%s6836 + $0x1a0] sm:$0xff]
        %v6890 = vld [vmem:[%s6836 + $0x1a8] sm:$0xff]
        %v6891 = vld [vmem:[%s6836 + $0x1b0] sm:$0xff]
        %v6892 = vld [vmem:[%s6836 + $0x1b8] sm:$0xff]
        %v6893 = vld [vmem:[%s6836 + $0x1c0] sm:$0xff]
        %v6894 = vld [vmem:[%s6836 + $0x1c8] sm:$0xff]
        %v6895 = vld [vmem:[%s6836 + $0x1d0] sm:$0xff]
        %v6896 = vld [vmem:[%s6836 + $0x1d8] sm:$0xff]
        %v6897 = vld [vmem:[%s6836 + $0x1e0] sm:$0xff]
        %v6898 = vld [vmem:[%s6836 + $0x1e8] sm:$0xff]
        %v6899 = vld [vmem:[%s6836 + $0x1f0] sm:$0xff]
        %v6900 = vld [vmem:[%s6836 + $0x1f8] sm:$0xff]
        %6901 = vmatpush.msra.mxu0 %v6884
        %6902 = vmatpush.msra.mxu0 %v6883
        %6903 = vmatpush.msra.mxu0 %v6882
        %6904 = vmatpush.msra.mxu0 %v6881
        %6905 = vmatpush.msra.mxu0 %v6880
        %6906 = vmatpush.msra.mxu0 %v6879
        %6907 = vmatpush.msra.mxu0 %v6878
        %6908 = vmatpush.msra.mxu0 %v6877
        %6909 = vmatpush.msra.mxu0 %v6876
        %6910 = vmatpush.msra.mxu0 %v6875
        %6911 = vmatpush.msra.mxu0 %v6874
        %6912 = vmatpush.msra.mxu0 %v6873
        %6913 = vmatpush.msra.mxu0 %v6872
        %6914 = vmatpush.msra.mxu0 %v6871
        %6915 = vmatpush.msra.mxu0 %v6870
        %6916 = vmatpush.msra.mxu0 %v6869
        %6917 = vmatmul.f32.gmra.mxu0 %v2132
        %v6918 = vpop.f32.mrf.mxu0
        %v6919 = vadd.f32 0.0, %v6918
        %6920 = vmatmul.f32.gmra.mxu0 %v2134
        %v6921 = vpop.f32.mrf.mxu0
        %v6922 = vadd.f32 0.0, %v6921
        %6923 = vmatmul.f32.gmra.mxu0 %v2136
        %v6924 = vpop.f32.mrf.mxu0
        %v6925 = vadd.f32 0.0, %v6924
        %6926 = vmatmul.f32.gmra.mxu0 %v2138
        %v6927 = vpop.f32.mrf.mxu0
        %v6928 = vadd.f32 0.0, %v6927
        %6929 = vmatmul.f32.gmra.mxu0 %v2140
        %v6930 = vpop.f32.mrf.mxu0
        %v6931 = vadd.f32 0.0, %v6930
        %6932 = vmatmul.f32.gmra.mxu0 %v2142
        %v6933 = vpop.f32.mrf.mxu0
        %v6934 = vadd.f32 0.0, %v6933
        %6935 = vmatmul.f32.gmra.mxu0 %v2144
        %v6936 = vpop.f32.mrf.mxu0
        %v6937 = vadd.f32 0.0, %v6936
        %6938 = vmatmul.f32.gmra.mxu0 %v2146
        %v6939 = vpop.f32.mrf.mxu0
        %v6940 = vadd.f32 0.0, %v6939
        %6941 = vmatmul.f32.gmra.mxu0 %v2148
        %v6942 = vpop.f32.mrf.mxu0
        %v6943 = vadd.f32 0.0, %v6942
        %6944 = vmatmul.f32.gmra.mxu0 %v2150
        %v6945 = vpop.f32.mrf.mxu0
        %v6946 = vadd.f32 0.0, %v6945
        %6947 = vmatmul.f32.gmra.mxu0 %v2152
        %v6948 = vpop.f32.mrf.mxu0
        %v6949 = vadd.f32 0.0, %v6948
        %6950 = vmatmul.f32.gmra.mxu0 %v2154
        %v6951 = vpop.f32.mrf.mxu0
        %v6952 = vadd.f32 0.0, %v6951
        %6953 = vmatmul.f32.gmra.mxu0 %v2156
        %v6954 = vpop.f32.mrf.mxu0
        %v6955 = vadd.f32 0.0, %v6954
        %6956 = vmatmul.f32.gmra.mxu0 %v2158
        %v6957 = vpop.f32.mrf.mxu0
        %v6958 = vadd.f32 0.0, %v6957
        %6959 = vmatmul.f32.gmra.mxu0 %v2160
        %v6960 = vpop.f32.mrf.mxu0
        %v6961 = vadd.f32 0.0, %v6960
        %6962 = vmatmul.f32.gmra.mxu0 %v2162
        %v6963 = vpop.f32.mrf.mxu0
        %v6964 = vadd.f32 0.0, %v6963
        %6965 = vdwg.mxu0
        %6966 = vmatpush.msra.mxu0 %v6900
        %6967 = vmatpush.msra.mxu0 %v6899
        %6968 = vmatpush.msra.mxu0 %v6898
        %6969 = vmatpush.msra.mxu0 %v6897
        %6970 = vmatpush.msra.mxu0 %v6896
        %6971 = vmatpush.msra.mxu0 %v6895
        %6972 = vmatpush.msra.mxu0 %v6894
        %6973 = vmatpush.msra.mxu0 %v6893
        %6974 = vmatpush.msra.mxu0 %v6892
        %6975 = vmatpush.msra.mxu0 %v6891
        %6976 = vmatpush.msra.mxu0 %v6890
        %6977 = vmatpush.msra.mxu0 %v6889
        %6978 = vmatpush.msra.mxu0 %v6888
        %6979 = vmatpush.msra.mxu0 %v6887
        %6980 = vmatpush.msra.mxu0 %v6886
        %6981 = vmatpush.msra.mxu0 %v6885
        %6982 = vmatmul.f32.gmra.mxu0 %v2133
        %v6983 = vpop.f32.mrf.mxu0
        %v6984 = vadd.f32 %v6919, %v6983
        %6985 = vmatmul.f32.gmra.mxu0 %v2135
        %v6986 = vpop.f32.mrf.mxu0
        %v6987 = vadd.f32 %v6922, %v6986
        %6988 = vmatmul.f32.gmra.mxu0 %v2137
        %v6989 = vpop.f32.mrf.mxu0
        %v6990 = vadd.f32 %v6925, %v6989
        %6991 = vmatmul.f32.gmra.mxu0 %v2139
        %v6992 = vpop.f32.mrf.mxu0
        %v6993 = vadd.f32 %v6928, %v6992
        %6994 = vmatmul.f32.gmra.mxu0 %v2141
        %v6995 = vpop.f32.mrf.mxu0
        %v6996 = vadd.f32 %v6931, %v6995
        %6997 = vmatmul.f32.gmra.mxu0 %v2143
        %v6998 = vpop.f32.mrf.mxu0
        %v6999 = vadd.f32 %v6934, %v6998
        %7000 = vmatmul.f32.gmra.mxu0 %v2145
        %v7001 = vpop.f32.mrf.mxu0
        %v7002 = vadd.f32 %v6937, %v7001
        %7003 = vmatmul.f32.gmra.mxu0 %v2147
        %v7004 = vpop.f32.mrf.mxu0
        %v7005 = vadd.f32 %v6940, %v7004
        %7006 = vmatmul.f32.gmra.mxu0 %v2149
        %v7007 = vpop.f32.mrf.mxu0
        %v7008 = vadd.f32 %v6943, %v7007
        %7009 = vmatmul.f32.gmra.mxu0 %v2151
        %v7010 = vpop.f32.mrf.mxu0
        %v7011 = vadd.f32 %v6946, %v7010
        %7012 = vmatmul.f32.gmra.mxu0 %v2153
        %v7013 = vpop.f32.mrf.mxu0
        %v7014 = vadd.f32 %v6949, %v7013
        %7015 = vmatmul.f32.gmra.mxu0 %v2155
        %v7016 = vpop.f32.mrf.mxu0
        %v7017 = vadd.f32 %v6952, %v7016
        %7018 = vmatmul.f32.gmra.mxu0 %v2157
        %v7019 = vpop.f32.mrf.mxu0
        %v7020 = vadd.f32 %v6955, %v7019
        %7021 = vmatmul.f32.gmra.mxu0 %v2159
        %v7022 = vpop.f32.mrf.mxu0
        %v7023 = vadd.f32 %v6958, %v7022
        %7024 = vmatmul.f32.gmra.mxu0 %v2161
        %v7025 = vpop.f32.mrf.mxu0
        %v7026 = vadd.f32 %v6961, %v7025
        %7027 = vmatmul.f32.gmra.mxu0 %v2163
        %v7028 = vpop.f32.mrf.mxu0
        %v7029 = vadd.f32 %v6964, %v7028
        %7030 = vdwg.mxu0
        %7031 = vmatpush.msra.mxu0 %v6852
        %7032 = vmatpush.msra.mxu0 %v6851
        %7033 = vmatpush.msra.mxu0 %v6850
        %7034 = vmatpush.msra.mxu0 %v6849
        %7035 = vmatpush.msra.mxu0 %v6848
        %7036 = vmatpush.msra.mxu0 %v6847
        %7037 = vmatpush.msra.mxu0 %v6846
        %7038 = vmatpush.msra.mxu0 %v6845
        %7039 = vmatpush.msra.mxu0 %v6844
        %7040 = vmatpush.msra.mxu0 %v6843
        %7041 = vmatpush.msra.mxu0 %v6842
        %7042 = vmatpush.msra.mxu0 %v6841
        %7043 = vmatpush.msra.mxu0 %v6840
        %7044 = vmatpush.msra.mxu0 %v6839
        %7045 = vmatpush.msra.mxu0 %v6838
        %7046 = vmatpush.msra.mxu0 %v6837
        %7047 = vmatmul.f32.gmra.mxu0 %v2068
        %v7048 = vpop.f32.mrf.mxu0
        %v7049 = vadd.f32 %v6984, %v7048
        %7050 = vmatmul.f32.gmra.mxu0 %v2070
        %v7051 = vpop.f32.mrf.mxu0
        %v7052 = vadd.f32 %v6987, %v7051
        %7053 = vmatmul.f32.gmra.mxu0 %v2072
        %v7054 = vpop.f32.mrf.mxu0
        %v7055 = vadd.f32 %v6990, %v7054
        %7056 = vmatmul.f32.gmra.mxu0 %v2074
        %v7057 = vpop.f32.mrf.mxu0
        %v7058 = vadd.f32 %v6993, %v7057
        %7059 = vmatmul.f32.gmra.mxu0 %v2076
        %v7060 = vpop.f32.mrf.mxu0
        %v7061 = vadd.f32 %v6996, %v7060
        %7062 = vmatmul.f32.gmra.mxu0 %v2078
        %v7063 = vpop.f32.mrf.mxu0
        %v7064 = vadd.f32 %v6999, %v7063
        %7065 = vmatmul.f32.gmra.mxu0 %v2080
        %v7066 = vpop.f32.mrf.mxu0
        %v7067 = vadd.f32 %v7002, %v7066
        %7068 = vmatmul.f32.gmra.mxu0 %v2082
        %v7069 = vpop.f32.mrf.mxu0
        %v7070 = vadd.f32 %v7005, %v7069
        %7071 = vmatmul.f32.gmra.mxu0 %v2084
        %v7072 = vpop.f32.mrf.mxu0
        %v7073 = vadd.f32 %v7008, %v7072
        %7074 = vmatmul.f32.gmra.mxu0 %v2086
        %v7075 = vpop.f32.mrf.mxu0
        %v7076 = vadd.f32 %v7011, %v7075
        %7077 = vmatmul.f32.gmra.mxu0 %v2088
        %v7078 = vpop.f32.mrf.mxu0
        %v7079 = vadd.f32 %v7014, %v7078
        %7080 = vmatmul.f32.gmra.mxu0 %v2090
        %v7081 = vpop.f32.mrf.mxu0
        %v7082 = vadd.f32 %v7017, %v7081
        %7083 = vmatmul.f32.gmra.mxu0 %v2092
        %v7084 = vpop.f32.mrf.mxu0
        %v7085 = vadd.f32 %v7020, %v7084
        %7086 = vmatmul.f32.gmra.mxu0 %v2094
        %v7087 = vpop.f32.mrf.mxu0
        %v7088 = vadd.f32 %v7023, %v7087
        %7089 = vmatmul.f32.gmra.mxu0 %v2096
        %v7090 = vpop.f32.mrf.mxu0
        %v7091 = vadd.f32 %v7026, %v7090
        %7092 = vmatmul.f32.gmra.mxu0 %v2098
        %v7093 = vpop.f32.mrf.mxu0
        %v7094 = vadd.f32 %v7029, %v7093
        %7095 = vdwg.mxu0
        %7096 = vmatpush.msra.mxu0 %v6868
        %7097 = vmatpush.msra.mxu0 %v6867
        %7098 = vmatpush.msra.mxu0 %v6866
        %7099 = vmatpush.msra.mxu0 %v6865
        %7100 = vmatpush.msra.mxu0 %v6864
        %7101 = vmatpush.msra.mxu0 %v6863
        %7102 = vmatpush.msra.mxu0 %v6862
        %7103 = vmatpush.msra.mxu0 %v6861
        %7104 = vmatpush.msra.mxu0 %v6860
        %7105 = vmatpush.msra.mxu0 %v6859
        %7106 = vmatpush.msra.mxu0 %v6858
        %7107 = vmatpush.msra.mxu0 %v6857
        %7108 = vmatpush.msra.mxu0 %v6856
        %7109 = vmatpush.msra.mxu0 %v6855
        %7110 = vmatpush.msra.mxu0 %v6854
        %7111 = vmatpush.msra.mxu0 %v6853
        %7112 = vmatmul.f32.gmra.mxu0 %v2069
        %v7113 = vpop.f32.mrf.mxu0
        %v7114 = vadd.f32 %v7049, %v7113
        %7115 = vmatmul.f32.gmra.mxu0 %v2071
        %v7116 = vpop.f32.mrf.mxu0
        %v7117 = vadd.f32 %v7052, %v7116
        %7118 = vmatmul.f32.gmra.mxu0 %v2073
        %v7119 = vpop.f32.mrf.mxu0
        %v7120 = vadd.f32 %v7055, %v7119
        %7121 = vmatmul.f32.gmra.mxu0 %v2075
        %v7122 = vpop.f32.mrf.mxu0
        %v7123 = vadd.f32 %v7058, %v7122
        %7124 = vmatmul.f32.gmra.mxu0 %v2077
        %v7125 = vpop.f32.mrf.mxu0
        %v7126 = vadd.f32 %v7061, %v7125
        %7127 = vmatmul.f32.gmra.mxu0 %v2079
        %v7128 = vpop.f32.mrf.mxu0
        %v7129 = vadd.f32 %v7064, %v7128
        %7130 = vmatmul.f32.gmra.mxu0 %v2081
        %v7131 = vpop.f32.mrf.mxu0
        %v7132 = vadd.f32 %v7067, %v7131
        %7133 = vmatmul.f32.gmra.mxu0 %v2083
        %v7134 = vpop.f32.mrf.mxu0
        %v7135 = vadd.f32 %v7070, %v7134
        %7136 = vmatmul.f32.gmra.mxu0 %v2085
        %v7137 = vpop.f32.mrf.mxu0
        %v7138 = vadd.f32 %v7073, %v7137
        %7139 = vmatmul.f32.gmra.mxu0 %v2087
        %v7140 = vpop.f32.mrf.mxu0
        %v7141 = vadd.f32 %v7076, %v7140
        %7142 = vmatmul.f32.gmra.mxu0 %v2089
        %v7143 = vpop.f32.mrf.mxu0
        %v7144 = vadd.f32 %v7079, %v7143
        %7145 = vmatmul.f32.gmra.mxu0 %v2091
        %v7146 = vpop.f32.mrf.mxu0
        %v7147 = vadd.f32 %v7082, %v7146
        %7148 = vmatmul.f32.gmra.mxu0 %v2093
        %v7149 = vpop.f32.mrf.mxu0
        %v7150 = vadd.f32 %v7085, %v7149
        %7151 = vmatmul.f32.gmra.mxu0 %v2095
        %v7152 = vpop.f32.mrf.mxu0
        %v7153 = vadd.f32 %v7088, %v7152
        %7154 = vmatmul.f32.gmra.mxu0 %v2097
        %v7155 = vpop.f32.mrf.mxu0
        %v7156 = vadd.f32 %v7091, %v7155
        %7157 = vmatmul.f32.gmra.mxu0 %v2099
        %v7158 = vpop.f32.mrf.mxu0
        %v7159 = vadd.f32 %v7094, %v7158
        %7160 = vdwg.mxu0
        %v7161 = vld [vmem:[%s6836 + $0x200] sm:$0xff]
        %v7162 = vld [vmem:[%s6836 + $0x208] sm:$0xff]
        %v7163 = vld [vmem:[%s6836 + $0x210] sm:$0xff]
        %v7164 = vld [vmem:[%s6836 + $0x218] sm:$0xff]
        %v7165 = vld [vmem:[%s6836 + $0x220] sm:$0xff]
        %v7166 = vld [vmem:[%s6836 + $0x228] sm:$0xff]
        %v7167 = vld [vmem:[%s6836 + $0x230] sm:$0xff]
        %v7168 = vld [vmem:[%s6836 + $0x238] sm:$0xff]
        %v7169 = vld [vmem:[%s6836 + $0x240] sm:$0xff]
        %v7170 = vld [vmem:[%s6836 + $0x248] sm:$0xff]
        %v7171 = vld [vmem:[%s6836 + $0x250] sm:$0xff]
        %v7172 = vld [vmem:[%s6836 + $0x258] sm:$0xff]
        %v7173 = vld [vmem:[%s6836 + $0x260] sm:$0xff]
        %v7174 = vld [vmem:[%s6836 + $0x268] sm:$0xff]
        %v7175 = vld [vmem:[%s6836 + $0x270] sm:$0xff]
        %v7176 = vld [vmem:[%s6836 + $0x278] sm:$0xff]
        %v7177 = vld [vmem:[%s6836 + $0x280] sm:$0xff]
        %v7178 = vld [vmem:[%s6836 + $0x288] sm:$0xff]
        %v7179 = vld [vmem:[%s6836 + $0x290] sm:$0xff]
        %v7180 = vld [vmem:[%s6836 + $0x298] sm:$0xff]
        %v7181 = vld [vmem:[%s6836 + $0x2a0] sm:$0xff]
        %v7182 = vld [vmem:[%s6836 + $0x2a8] sm:$0xff]
        %v7183 = vld [vmem:[%s6836 + $0x2b0] sm:$0xff]
        %v7184 = vld [vmem:[%s6836 + $0x2b8] sm:$0xff]
        %v7185 = vld [vmem:[%s6836 + $0x2c0] sm:$0xff]
        %v7186 = vld [vmem:[%s6836 + $0x2c8] sm:$0xff]
        %v7187 = vld [vmem:[%s6836 + $0x2d0] sm:$0xff]
        %v7188 = vld [vmem:[%s6836 + $0x2d8] sm:$0xff]
        %v7189 = vld [vmem:[%s6836 + $0x2e0] sm:$0xff]
        %v7190 = vld [vmem:[%s6836 + $0x2e8] sm:$0xff]
        %v7191 = vld [vmem:[%s6836 + $0x2f0] sm:$0xff]
        %v7192 = vld [vmem:[%s6836 + $0x2f8] sm:$0xff]
        %7193 = vmatpush.msra.mxu0 %v7176
        %7194 = vmatpush.msra.mxu0 %v7175
        %7195 = vmatpush.msra.mxu0 %v7174
        %7196 = vmatpush.msra.mxu0 %v7173
        %7197 = vmatpush.msra.mxu0 %v7172
        %7198 = vmatpush.msra.mxu0 %v7171
        %7199 = vmatpush.msra.mxu0 %v7170
        %7200 = vmatpush.msra.mxu0 %v7169
        %7201 = vmatpush.msra.mxu0 %v7168
        %7202 = vmatpush.msra.mxu0 %v7167
        %7203 = vmatpush.msra.mxu0 %v7166
        %7204 = vmatpush.msra.mxu0 %v7165
        %7205 = vmatpush.msra.mxu0 %v7164
        %7206 = vmatpush.msra.mxu0 %v7163
        %7207 = vmatpush.msra.mxu0 %v7162
        %7208 = vmatpush.msra.mxu0 %v7161
        %7209 = vmatmul.f32.gmra.mxu0 %v2456
        %v7210 = vpop.f32.mrf.mxu0
        %v7211 = vadd.f32 0.0, %v7210
        %7212 = vmatmul.f32.gmra.mxu0 %v2458
        %v7213 = vpop.f32.mrf.mxu0
        %v7214 = vadd.f32 0.0, %v7213
        %7215 = vmatmul.f32.gmra.mxu0 %v2460
        %v7216 = vpop.f32.mrf.mxu0
        %v7217 = vadd.f32 0.0, %v7216
        %7218 = vmatmul.f32.gmra.mxu0 %v2462
        %v7219 = vpop.f32.mrf.mxu0
        %v7220 = vadd.f32 0.0, %v7219
        %7221 = vmatmul.f32.gmra.mxu0 %v2464
        %v7222 = vpop.f32.mrf.mxu0
        %v7223 = vadd.f32 0.0, %v7222
        %7224 = vmatmul.f32.gmra.mxu0 %v2466
        %v7225 = vpop.f32.mrf.mxu0
        %v7226 = vadd.f32 0.0, %v7225
        %7227 = vmatmul.f32.gmra.mxu0 %v2468
        %v7228 = vpop.f32.mrf.mxu0
        %v7229 = vadd.f32 0.0, %v7228
        %7230 = vmatmul.f32.gmra.mxu0 %v2470
        %v7231 = vpop.f32.mrf.mxu0
        %v7232 = vadd.f32 0.0, %v7231
        %7233 = vmatmul.f32.gmra.mxu0 %v2472
        %v7234 = vpop.f32.mrf.mxu0
        %v7235 = vadd.f32 0.0, %v7234
        %7236 = vmatmul.f32.gmra.mxu0 %v2474
        %v7237 = vpop.f32.mrf.mxu0
        %v7238 = vadd.f32 0.0, %v7237
        %7239 = vmatmul.f32.gmra.mxu0 %v2476
        %v7240 = vpop.f32.mrf.mxu0
        %v7241 = vadd.f32 0.0, %v7240
        %7242 = vmatmul.f32.gmra.mxu0 %v2478
        %v7243 = vpop.f32.mrf.mxu0
        %v7244 = vadd.f32 0.0, %v7243
        %7245 = vmatmul.f32.gmra.mxu0 %v2480
        %v7246 = vpop.f32.mrf.mxu0
        %v7247 = vadd.f32 0.0, %v7246
        %7248 = vmatmul.f32.gmra.mxu0 %v2482
        %v7249 = vpop.f32.mrf.mxu0
        %v7250 = vadd.f32 0.0, %v7249
        %7251 = vmatmul.f32.gmra.mxu0 %v2484
        %v7252 = vpop.f32.mrf.mxu0
        %v7253 = vadd.f32 0.0, %v7252
        %7254 = vmatmul.f32.gmra.mxu0 %v2486
        %v7255 = vpop.f32.mrf.mxu0
        %v7256 = vadd.f32 0.0, %v7255
        %7257 = vdwg.mxu0
        %7258 = vmatpush.msra.mxu0 %v7192
        %7259 = vmatpush.msra.mxu0 %v7191
        %7260 = vmatpush.msra.mxu0 %v7190
        %7261 = vmatpush.msra.mxu0 %v7189
        %7262 = vmatpush.msra.mxu0 %v7188
        %7263 = vmatpush.msra.mxu0 %v7187
        %7264 = vmatpush.msra.mxu0 %v7186
        %7265 = vmatpush.msra.mxu0 %v7185
        %7266 = vmatpush.msra.mxu0 %v7184
        %7267 = vmatpush.msra.mxu0 %v7183
        %7268 = vmatpush.msra.mxu0 %v7182
        %7269 = vmatpush.msra.mxu0 %v7181
        %7270 = vmatpush.msra.mxu0 %v7180
        %7271 = vmatpush.msra.mxu0 %v7179
        %7272 = vmatpush.msra.mxu0 %v7178
        %7273 = vmatpush.msra.mxu0 %v7177
        %7274 = vmatmul.f32.gmra.mxu0 %v2457
        %v7275 = vpop.f32.mrf.mxu0
        %v7276 = vadd.f32 %v7211, %v7275
        %7277 = vmatmul.f32.gmra.mxu0 %v2459
        %v7278 = vpop.f32.mrf.mxu0
        %v7279 = vadd.f32 %v7214, %v7278
        %7280 = vmatmul.f32.gmra.mxu0 %v2461
        %v7281 = vpop.f32.mrf.mxu0
        %v7282 = vadd.f32 %v7217, %v7281
        %7283 = vmatmul.f32.gmra.mxu0 %v2463
        %v7284 = vpop.f32.mrf.mxu0
        %v7285 = vadd.f32 %v7220, %v7284
        %7286 = vmatmul.f32.gmra.mxu0 %v2465
        %v7287 = vpop.f32.mrf.mxu0
        %v7288 = vadd.f32 %v7223, %v7287
        %7289 = vmatmul.f32.gmra.mxu0 %v2467
        %v7290 = vpop.f32.mrf.mxu0
        %v7291 = vadd.f32 %v7226, %v7290
        %7292 = vmatmul.f32.gmra.mxu0 %v2469
        %v7293 = vpop.f32.mrf.mxu0
        %v7294 = vadd.f32 %v7229, %v7293
        %7295 = vmatmul.f32.gmra.mxu0 %v2471
        %v7296 = vpop.f32.mrf.mxu0
        %v7297 = vadd.f32 %v7232, %v7296
        %7298 = vmatmul.f32.gmra.mxu0 %v2473
        %v7299 = vpop.f32.mrf.mxu0
        %v7300 = vadd.f32 %v7235, %v7299
        %7301 = vmatmul.f32.gmra.mxu0 %v2475
        %v7302 = vpop.f32.mrf.mxu0
        %v7303 = vadd.f32 %v7238, %v7302
        %7304 = vmatmul.f32.gmra.mxu0 %v2477
        %v7305 = vpop.f32.mrf.mxu0
        %v7306 = vadd.f32 %v7241, %v7305
        %7307 = vmatmul.f32.gmra.mxu0 %v2479
        %v7308 = vpop.f32.mrf.mxu0
        %v7309 = vadd.f32 %v7244, %v7308
        %7310 = vmatmul.f32.gmra.mxu0 %v2481
        %v7311 = vpop.f32.mrf.mxu0
        %v7312 = vadd.f32 %v7247, %v7311
        %7313 = vmatmul.f32.gmra.mxu0 %v2483
        %v7314 = vpop.f32.mrf.mxu0
        %v7315 = vadd.f32 %v7250, %v7314
        %7316 = vmatmul.f32.gmra.mxu0 %v2485
        %v7317 = vpop.f32.mrf.mxu0
        %v7318 = vadd.f32 %v7253, %v7317
        %7319 = vmatmul.f32.gmra.mxu0 %v2487
        %v7320 = vpop.f32.mrf.mxu0
        %v7321 = vadd.f32 %v7256, %v7320
        %7322 = vdwg.mxu0
        %v7323 = vadd.f32 %v7114, %v7276
        %v7324 = vadd.f32 %v7117, %v7279
        %v7325 = vadd.f32 %v7120, %v7282
        %v7326 = vadd.f32 %v7123, %v7285
        %v7327 = vadd.f32 %v7126, %v7288
        %v7328 = vadd.f32 %v7129, %v7291
        %v7329 = vadd.f32 %v7132, %v7294
        %v7330 = vadd.f32 %v7135, %v7297
        %v7331 = vadd.f32 %v7138, %v7300
        %v7332 = vadd.f32 %v7141, %v7303
        %v7333 = vadd.f32 %v7144, %v7306
        %v7334 = vadd.f32 %v7147, %v7309
        %v7335 = vadd.f32 %v7150, %v7312
        %v7336 = vadd.f32 %v7153, %v7315
        %v7337 = vadd.f32 %v7156, %v7318
        %v7338 = vadd.f32 %v7159, %v7321
        %v7339 = vld [vmem:[%s6836 + $0x300] sm:$0xff]
        %v7340 = vld [vmem:[%s6836 + $0x308] sm:$0xff]
        %v7341 = vld [vmem:[%s6836 + $0x310] sm:$0xff]
        %v7342 = vld [vmem:[%s6836 + $0x318] sm:$0xff]
        %v7343 = vld [vmem:[%s6836 + $0x320] sm:$0xff]
        %v7344 = vld [vmem:[%s6836 + $0x328] sm:$0xff]
        %v7345 = vld [vmem:[%s6836 + $0x330] sm:$0xff]
        %v7346 = vld [vmem:[%s6836 + $0x338] sm:$0xff]
        %v7347 = vld [vmem:[%s6836 + $0x340] sm:$0xff]
        %v7348 = vld [vmem:[%s6836 + $0x348] sm:$0xff]
        %v7349 = vld [vmem:[%s6836 + $0x350] sm:$0xff]
        %v7350 = vld [vmem:[%s6836 + $0x358] sm:$0xff]
        %v7351 = vld [vmem:[%s6836 + $0x360] sm:$0xff]
        %v7352 = vld [vmem:[%s6836 + $0x368] sm:$0xff]
        %v7353 = vld [vmem:[%s6836 + $0x370] sm:$0xff]
        %v7354 = vld [vmem:[%s6836 + $0x378] sm:$0xff]
        %v7355 = vld [vmem:[%s6836 + $0x380] sm:$0xff]
        %v7356 = vld [vmem:[%s6836 + $0x388] sm:$0xff]
        %v7357 = vld [vmem:[%s6836 + $0x390] sm:$0xff]
        %v7358 = vld [vmem:[%s6836 + $0x398] sm:$0xff]
        %v7359 = vld [vmem:[%s6836 + $0x3a0] sm:$0xff]
        %v7360 = vld [vmem:[%s6836 + $0x3a8] sm:$0xff]
        %v7361 = vld [vmem:[%s6836 + $0x3b0] sm:$0xff]
        %v7362 = vld [vmem:[%s6836 + $0x3b8] sm:$0xff]
        %v7363 = vld [vmem:[%s6836 + $0x3c0] sm:$0xff]
        %v7364 = vld [vmem:[%s6836 + $0x3c8] sm:$0xff]
        %v7365 = vld [vmem:[%s6836 + $0x3d0] sm:$0xff]
        %v7366 = vld [vmem:[%s6836 + $0x3d8] sm:$0xff]
        %v7367 = vld [vmem:[%s6836 + $0x3e0] sm:$0xff]
        %v7368 = vld [vmem:[%s6836 + $0x3e8] sm:$0xff]
        %v7369 = vld [vmem:[%s6836 + $0x3f0] sm:$0xff]
        %v7370 = vld [vmem:[%s6836 + $0x3f8] sm:$0xff]
        %7371 = vmatpush.msra.mxu0 %v7354
        %7372 = vmatpush.msra.mxu0 %v7353
        %7373 = vmatpush.msra.mxu0 %v7352
        %7374 = vmatpush.msra.mxu0 %v7351
        %7375 = vmatpush.msra.mxu0 %v7350
        %7376 = vmatpush.msra.mxu0 %v7349
        %7377 = vmatpush.msra.mxu0 %v7348
        %7378 = vmatpush.msra.mxu0 %v7347
        %7379 = vmatpush.msra.mxu0 %v7346
        %7380 = vmatpush.msra.mxu0 %v7345
        %7381 = vmatpush.msra.mxu0 %v7344
        %7382 = vmatpush.msra.mxu0 %v7343
        %7383 = vmatpush.msra.mxu0 %v7342
        %7384 = vmatpush.msra.mxu0 %v7341
        %7385 = vmatpush.msra.mxu0 %v7340
        %7386 = vmatpush.msra.mxu0 %v7339
        %7387 = vmatmul.f32.gmra.mxu0 %v2666
        %v7388 = vpop.f32.mrf.mxu0
        %v7389 = vadd.f32 0.0, %v7388
        %7390 = vmatmul.f32.gmra.mxu0 %v2668
        %v7391 = vpop.f32.mrf.mxu0
        %v7392 = vadd.f32 0.0, %v7391
        %7393 = vmatmul.f32.gmra.mxu0 %v2670
        %v7394 = vpop.f32.mrf.mxu0
        %v7395 = vadd.f32 0.0, %v7394
        %7396 = vmatmul.f32.gmra.mxu0 %v2672
        %v7397 = vpop.f32.mrf.mxu0
        %v7398 = vadd.f32 0.0, %v7397
        %7399 = vmatmul.f32.gmra.mxu0 %v2674
        %v7400 = vpop.f32.mrf.mxu0
        %v7401 = vadd.f32 0.0, %v7400
        %7402 = vmatmul.f32.gmra.mxu0 %v2676
        %v7403 = vpop.f32.mrf.mxu0
        %v7404 = vadd.f32 0.0, %v7403
        %7405 = vmatmul.f32.gmra.mxu0 %v2678
        %v7406 = vpop.f32.mrf.mxu0
        %v7407 = vadd.f32 0.0, %v7406
        %7408 = vmatmul.f32.gmra.mxu0 %v2680
        %v7409 = vpop.f32.mrf.mxu0
        %v7410 = vadd.f32 0.0, %v7409
        %7411 = vmatmul.f32.gmra.mxu0 %v2682
        %v7412 = vpop.f32.mrf.mxu0
        %v7413 = vadd.f32 0.0, %v7412
        %7414 = vmatmul.f32.gmra.mxu0 %v2684
        %v7415 = vpop.f32.mrf.mxu0
        %v7416 = vadd.f32 0.0, %v7415
        %7417 = vmatmul.f32.gmra.mxu0 %v2686
        %v7418 = vpop.f32.mrf.mxu0
        %v7419 = vadd.f32 0.0, %v7418
        %7420 = vmatmul.f32.gmra.mxu0 %v2688
        %v7421 = vpop.f32.mrf.mxu0
        %v7422 = vadd.f32 0.0, %v7421
        %7423 = vmatmul.f32.gmra.mxu0 %v2690
        %v7424 = vpop.f32.mrf.mxu0
        %v7425 = vadd.f32 0.0, %v7424
        %7426 = vmatmul.f32.gmra.mxu0 %v2692
        %v7427 = vpop.f32.mrf.mxu0
        %v7428 = vadd.f32 0.0, %v7427
        %7429 = vmatmul.f32.gmra.mxu0 %v2694
        %v7430 = vpop.f32.mrf.mxu0
        %v7431 = vadd.f32 0.0, %v7430
        %7432 = vmatmul.f32.gmra.mxu0 %v2696
        %v7433 = vpop.f32.mrf.mxu0
        %v7434 = vadd.f32 0.0, %v7433
        %7435 = vdwg.mxu0
        %7436 = vmatpush.msra.mxu0 %v7370
        %7437 = vmatpush.msra.mxu0 %v7369
        %7438 = vmatpush.msra.mxu0 %v7368
        %7439 = vmatpush.msra.mxu0 %v7367
        %7440 = vmatpush.msra.mxu0 %v7366
        %7441 = vmatpush.msra.mxu0 %v7365
        %7442 = vmatpush.msra.mxu0 %v7364
        %7443 = vmatpush.msra.mxu0 %v7363
        %7444 = vmatpush.msra.mxu0 %v7362
        %7445 = vmatpush.msra.mxu0 %v7361
        %7446 = vmatpush.msra.mxu0 %v7360
        %7447 = vmatpush.msra.mxu0 %v7359
        %7448 = vmatpush.msra.mxu0 %v7358
        %7449 = vmatpush.msra.mxu0 %v7357
        %7450 = vmatpush.msra.mxu0 %v7356
        %7451 = vmatpush.msra.mxu0 %v7355
        %7452 = vmatmul.f32.gmra.mxu0 %v2667
        %v7453 = vpop.f32.mrf.mxu0
        %v7454 = vadd.f32 %v7389, %v7453
        %7455 = vmatmul.f32.gmra.mxu0 %v2669
        %v7456 = vpop.f32.mrf.mxu0
        %v7457 = vadd.f32 %v7392, %v7456
        %7458 = vmatmul.f32.gmra.mxu0 %v2671
        %v7459 = vpop.f32.mrf.mxu0
        %v7460 = vadd.f32 %v7395, %v7459
        %7461 = vmatmul.f32.gmra.mxu0 %v2673
        %v7462 = vpop.f32.mrf.mxu0
        %v7463 = vadd.f32 %v7398, %v7462
        %7464 = vmatmul.f32.gmra.mxu0 %v2675
        %v7465 = vpop.f32.mrf.mxu0
        %v7466 = vadd.f32 %v7401, %v7465
        %7467 = vmatmul.f32.gmra.mxu0 %v2677
        %v7468 = vpop.f32.mrf.mxu0
        %v7469 = vadd.f32 %v7404, %v7468
        %7470 = vmatmul.f32.gmra.mxu0 %v2679
        %v7471 = vpop.f32.mrf.mxu0
        %v7472 = vadd.f32 %v7407, %v7471
        %7473 = vmatmul.f32.gmra.mxu0 %v2681
        %v7474 = vpop.f32.mrf.mxu0
        %v7475 = vadd.f32 %v7410, %v7474
        %7476 = vmatmul.f32.gmra.mxu0 %v2683
        %v7477 = vpop.f32.mrf.mxu0
        %v7478 = vadd.f32 %v7413, %v7477
        %7479 = vmatmul.f32.gmra.mxu0 %v2685
        %v7480 = vpop.f32.mrf.mxu0
        %v7481 = vadd.f32 %v7416, %v7480
        %7482 = vmatmul.f32.gmra.mxu0 %v2687
        %v7483 = vpop.f32.mrf.mxu0
        %v7484 = vadd.f32 %v7419, %v7483
        %7485 = vmatmul.f32.gmra.mxu0 %v2689
        %v7486 = vpop.f32.mrf.mxu0
        %v7487 = vadd.f32 %v7422, %v7486
        %7488 = vmatmul.f32.gmra.mxu0 %v2691
        %v7489 = vpop.f32.mrf.mxu0
        %v7490 = vadd.f32 %v7425, %v7489
        %7491 = vmatmul.f32.gmra.mxu0 %v2693
        %v7492 = vpop.f32.mrf.mxu0
        %v7493 = vadd.f32 %v7428, %v7492
        %7494 = vmatmul.f32.gmra.mxu0 %v2695
        %v7495 = vpop.f32.mrf.mxu0
        %v7496 = vadd.f32 %v7431, %v7495
        %7497 = vmatmul.f32.gmra.mxu0 %v2697
        %v7498 = vpop.f32.mrf.mxu0
        %v7499 = vadd.f32 %v7434, %v7498
        %7500 = vdwg.mxu0
        %v7501 = vadd.f32 %v7323, %v7454
        %v7502 = vadd.f32 %v7324, %v7457
        %v7503 = vadd.f32 %v7325, %v7460
        %v7504 = vadd.f32 %v7326, %v7463
        %v7505 = vadd.f32 %v7327, %v7466
        %v7506 = vadd.f32 %v7328, %v7469
        %v7507 = vadd.f32 %v7329, %v7472
        %v7508 = vadd.f32 %v7330, %v7475
        %v7509 = vadd.f32 %v7331, %v7478
        %v7510 = vadd.f32 %v7332, %v7481
        %v7511 = vadd.f32 %v7333, %v7484
        %v7512 = vadd.f32 %v7334, %v7487
        %v7513 = vadd.f32 %v7335, %v7490
        %v7514 = vadd.f32 %v7336, %v7493
        %v7515 = vadd.f32 %v7337, %v7496
        %v7516 = vadd.f32 %v7338, %v7499
        %s7517 = scalar_lea.vmem %s5, 768
        %v7518 = vld [vmem:[%s7517] sm:$0xff]
        %v7519 = vld [vmem:[%s7517 + $0x8] sm:$0xff]
        %v7520 = vld [vmem:[%s7517 + $0x10] sm:$0xff]
        %v7521 = vld [vmem:[%s7517 + $0x18] sm:$0xff]
        %v7522 = vld [vmem:[%s7517 + $0x20] sm:$0xff]
        %v7523 = vld [vmem:[%s7517 + $0x28] sm:$0xff]
        %v7524 = vld [vmem:[%s7517 + $0x30] sm:$0xff]
        %v7525 = vld [vmem:[%s7517 + $0x38] sm:$0xff]
        %v7526 = vld [vmem:[%s7517 + $0x40] sm:$0xff]
        %v7527 = vld [vmem:[%s7517 + $0x48] sm:$0xff]
        %v7528 = vld [vmem:[%s7517 + $0x50] sm:$0xff]
        %v7529 = vld [vmem:[%s7517 + $0x58] sm:$0xff]
        %v7530 = vld [vmem:[%s7517 + $0x60] sm:$0xff]
        %v7531 = vld [vmem:[%s7517 + $0x68] sm:$0xff]
        %v7532 = vld [vmem:[%s7517 + $0x70] sm:$0xff]
        %v7533 = vld [vmem:[%s7517 + $0x78] sm:$0xff]
        %7534 = vmatpush.msra.mxu0 %v7516
        %7535 = vmatpush.msra.mxu0 %v7515
        %7536 = vmatpush.msra.mxu0 %v7514
        %7537 = vmatpush.msra.mxu0 %v7513
        %7538 = vmatpush.msra.mxu0 %v7512
        %7539 = vmatpush.msra.mxu0 %v7511
        %7540 = vmatpush.msra.mxu0 %v7510
        %7541 = vmatpush.msra.mxu0 %v7509
        %7542 = vmatpush.msra.mxu0 %v7508
        %7543 = vmatpush.msra.mxu0 %v7507
        %7544 = vmatpush.msra.mxu0 %v7506
        %7545 = vmatpush.msra.mxu0 %v7505
        %7546 = vmatpush.msra.mxu0 %v7504
        %7547 = vmatpush.msra.mxu0 %v7503
        %7548 = vmatpush.msra.mxu0 %v7502
        %7549 = vmatpush.msra.mxu0 %v7501
        %7550 = vmatmul.f32.gmra.mxu0 %v7518
        %v7551 = vpop.f32.mrf.mxu0
        %v7552 = vadd.f32 0.0, %v7551
        %7553 = vmatmul.f32.gmra.mxu0 %v7519
        %v7554 = vpop.f32.mrf.mxu0
        %v7555 = vadd.f32 0.0, %v7554
        %7556 = vmatmul.f32.gmra.mxu0 %v7520
        %v7557 = vpop.f32.mrf.mxu0
        %v7558 = vadd.f32 0.0, %v7557
        %7559 = vmatmul.f32.gmra.mxu0 %v7521
        %v7560 = vpop.f32.mrf.mxu0
        %v7561 = vadd.f32 0.0, %v7560
        %7562 = vmatmul.f32.gmra.mxu0 %v7522
        %v7563 = vpop.f32.mrf.mxu0
        %v7564 = vadd.f32 0.0, %v7563
        %7565 = vmatmul.f32.gmra.mxu0 %v7523
        %v7566 = vpop.f32.mrf.mxu0
        %v7567 = vadd.f32 0.0, %v7566
        %7568 = vmatmul.f32.gmra.mxu0 %v7524
        %v7569 = vpop.f32.mrf.mxu0
        %v7570 = vadd.f32 0.0, %v7569
        %7571 = vmatmul.f32.gmra.mxu0 %v7525
        %v7572 = vpop.f32.mrf.mxu0
        %v7573 = vadd.f32 0.0, %v7572
        %7574 = vmatmul.f32.gmra.mxu0 %v7526
        %v7575 = vpop.f32.mrf.mxu0
        %v7576 = vadd.f32 0.0, %v7575
        %7577 = vmatmul.f32.gmra.mxu0 %v7527
        %v7578 = vpop.f32.mrf.mxu0
        %v7579 = vadd.f32 0.0, %v7578
        %7580 = vmatmul.f32.gmra.mxu0 %v7528
        %v7581 = vpop.f32.mrf.mxu0
        %v7582 = vadd.f32 0.0, %v7581
        %7583 = vmatmul.f32.gmra.mxu0 %v7529
        %v7584 = vpop.f32.mrf.mxu0
        %v7585 = vadd.f32 0.0, %v7584
        %7586 = vmatmul.f32.gmra.mxu0 %v7530
        %v7587 = vpop.f32.mrf.mxu0
        %v7588 = vadd.f32 0.0, %v7587
        %7589 = vmatmul.f32.gmra.mxu0 %v7531
        %v7590 = vpop.f32.mrf.mxu0
        %v7591 = vadd.f32 0.0, %v7590
        %7592 = vmatmul.f32.gmra.mxu0 %v7532
        %v7593 = vpop.f32.mrf.mxu0
        %v7594 = vadd.f32 0.0, %v7593
        %7595 = vmatmul.f32.gmra.mxu0 %v7533
        %v7596 = vpop.f32.mrf.mxu0
        %v7597 = vadd.f32 0.0, %v7596
        %7598 = vdwg.mxu0
        %v7599 = vadd.f32 %v6820, %v7552
        %v7600 = vadd.f32 %v6821, %v7555
        %v7601 = vadd.f32 %v6822, %v7558
        %v7602 = vadd.f32 %v6823, %v7561
        %v7603 = vadd.f32 %v6824, %v7564
        %v7604 = vadd.f32 %v6825, %v7567
        %v7605 = vadd.f32 %v6826, %v7570
        %v7606 = vadd.f32 %v6827, %v7573
        %v7607 = vadd.f32 %v6828, %v7576
        %v7608 = vadd.f32 %v6829, %v7579
        %v7609 = vadd.f32 %v6830, %v7582
        %v7610 = vadd.f32 %v6831, %v7585
        %v7611 = vadd.f32 %v6832, %v7588
        %v7612 = vadd.f32 %v6833, %v7591
        %v7613 = vadd.f32 %v6834, %v7594
        %v7614 = vadd.f32 %v6835, %v7597
        %v7615 = vld [vmem:[%s4] sm:$0x1]
        %v7617 = vperm.slane %v7615, 0
        %v7619 = vadd.f32 %v7599, %v7617
        %v7620 = vadd.f32 %v7600, %v7617
        %v7621 = vadd.f32 %v7601, %v7617
        %v7622 = vadd.f32 %v7602, %v7617
        %v7623 = vadd.f32 %v7603, %v7617
        %v7624 = vadd.f32 %v7604, %v7617
        %v7625 = vadd.f32 %v7605, %v7617
        %v7626 = vadd.f32 %v7606, %v7617
        %v7627 = vadd.f32 %v7607, %v7617
        %v7628 = vadd.f32 %v7608, %v7617
        %v7629 = vadd.f32 %v7609, %v7617
        %v7630 = vadd.f32 %v7610, %v7617
        %v7631 = vadd.f32 %v7611, %v7617
        %v7632 = vadd.f32 %v7612, %v7617
        %v7633 = vadd.f32 %v7613, %v7617
        %v7634 = vadd.f32 %v7614, %v7617
        %v7635 = vld [vmem:[%s6] sm:$0xff]
        %v7636 = vld [vmem:[%s6 + $0x8] sm:$0xff]
        %v7637 = vld [vmem:[%s7] sm:$0x1]
        %v7639 = vperm.slane %v7637, 0
        %vm7641 = vcmask 130048
        %v7643 = vsel %vm7641, %v7619, 0
        %v7646 = vsel %vm7641, %v7620, 0
        %v7649 = vsel %vm7641, %v7621, 0
        %v7652 = vsel %vm7641, %v7622, 0
        %v7655 = vsel %vm7641, %v7623, 0
        %v7658 = vsel %vm7641, %v7624, 0
        %v7661 = vsel %vm7641, %v7625, 0
        %v7664 = vsel %vm7641, %v7626, 0
        %v7667 = vsel %vm7641, %v7627, 0
        %v7670 = vsel %vm7641, %v7628, 0
        %v7673 = vsel %vm7641, %v7629, 0
        %v7676 = vsel %vm7641, %v7630, 0
        %v7679 = vsel %vm7641, %v7631, 0
        %v7682 = vsel %vm7641, %v7632, 0
        %v7685 = vsel %vm7641, %v7633, 0
        %v7688 = vsel %vm7641, %v7634, 0
        %7690 = vmatpush.msra.mxu0 0.0
        %7691 = vmatpush.msra.mxu0 0.0
        %7692 = vmatpush.msra.mxu0 0.0
        %7693 = vmatpush.msra.mxu0 0.0
        %7694 = vmatpush.msra.mxu0 0.0
        %7695 = vmatpush.msra.mxu0 0.0
        %7696 = vmatpush.msra.mxu0 0.0
        %7697 = vmatpush.msra.mxu0 0.0
        %7698 = vmatpush.msra.mxu0 0.0
        %7699 = vmatpush.msra.mxu0 0.0
        %7700 = vmatpush.msra.mxu0 0.0
        %7701 = vmatpush.msra.mxu0 0.0
        %7702 = vmatpush.msra.mxu0 0.0
        %7703 = vmatpush.msra.mxu0 0.0
        %7704 = vmatpush.msra.mxu0 %v7636
        %7705 = vmatpush.msra.mxu0 %v7635
        %7706 = vmatmul.f32.gmra.mxu0 %v7643
        %v7707 = vpop.f32.mrf.mxu0
        %v7708 = vadd.f32 %v7639, %v7707
        %7709 = vmatmul.f32.gmra.mxu0 %v7646
        %v7710 = vpop.f32.mrf.mxu0
        %v7711 = vadd.f32 %v7639, %v7710
        %7712 = vmatmul.f32.gmra.mxu0 %v7649
        %v7713 = vpop.f32.mrf.mxu0
        %v7714 = vadd.f32 %v7639, %v7713
        %7715 = vmatmul.f32.gmra.mxu0 %v7652
        %v7716 = vpop.f32.mrf.mxu0
        %v7717 = vadd.f32 %v7639, %v7716
        %7718 = vmatmul.f32.gmra.mxu0 %v7655
        %v7719 = vpop.f32.mrf.mxu0
        %v7720 = vadd.f32 %v7639, %v7719
        %7721 = vmatmul.f32.gmra.mxu0 %v7658
        %v7722 = vpop.f32.mrf.mxu0
        %v7723 = vadd.f32 %v7639, %v7722
        %7724 = vmatmul.f32.gmra.mxu0 %v7661
        %v7725 = vpop.f32.mrf.mxu0
        %v7726 = vadd.f32 %v7639, %v7725
        %7727 = vmatmul.f32.gmra.mxu0 %v7664
        %v7728 = vpop.f32.mrf.mxu0
        %v7729 = vadd.f32 %v7639, %v7728
        %7730 = vmatmul.f32.gmra.mxu0 %v7667
        %v7731 = vpop.f32.mrf.mxu0
        %v7732 = vadd.f32 %v7639, %v7731
        %7733 = vmatmul.f32.gmra.mxu0 %v7670
        %v7734 = vpop.f32.mrf.mxu0
        %v7735 = vadd.f32 %v7639, %v7734
        %7736 = vmatmul.f32.gmra.mxu0 %v7673
        %v7737 = vpop.f32.mrf.mxu0
        %v7738 = vadd.f32 %v7639, %v7737
        %7739 = vmatmul.f32.gmra.mxu0 %v7676
        %v7740 = vpop.f32.mrf.mxu0
        %v7741 = vadd.f32 %v7639, %v7740
        %7742 = vmatmul.f32.gmra.mxu0 %v7679
        %v7743 = vpop.f32.mrf.mxu0
        %v7744 = vadd.f32 %v7639, %v7743
        %7745 = vmatmul.f32.gmra.mxu0 %v7682
        %v7746 = vpop.f32.mrf.mxu0
        %v7747 = vadd.f32 %v7639, %v7746
        %7748 = vmatmul.f32.gmra.mxu0 %v7685
        %v7749 = vpop.f32.mrf.mxu0
        %v7750 = vadd.f32 %v7639, %v7749
        %7751 = vmatmul.f32.gmra.mxu0 %v7688
        %v7752 = vpop.f32.mrf.mxu0
        %v7753 = vadd.f32 %v7639, %v7752
        %7754 = vdwg.mxu0
        %v7755 = vmax.f32 %v7708, 0.0
        %v7756 = vmax.f32 %v7711, 0.0
        %v7757 = vmax.f32 %v7714, 0.0
        %v7758 = vmax.f32 %v7717, 0.0
        %v7759 = vmax.f32 %v7720, 0.0
        %v7760 = vmax.f32 %v7723, 0.0
        %v7761 = vmax.f32 %v7726, 0.0
        %v7762 = vmax.f32 %v7729, 0.0
        %v7763 = vmax.f32 %v7732, 0.0
        %v7764 = vmax.f32 %v7735, 0.0
        %v7765 = vmax.f32 %v7738, 0.0
        %v7766 = vmax.f32 %v7741, 0.0
        %v7767 = vmax.f32 %v7744, 0.0
        %v7768 = vmax.f32 %v7747, 0.0
        %v7769 = vmax.f32 %v7750, 0.0
        %v7770 = vmax.f32 %v7753, 0.0
        %v7771 = vld [vmem:[%s8] sm:$0xff]
        %v7772 = vld [vmem:[%s8 + $0x8] sm:$0xff]
        %v7773 = vld [vmem:[%s8 + $0x10] sm:$0xff]
        %v7774 = vld [vmem:[%s8 + $0x18] sm:$0xff]
        %v7775 = vld [vmem:[%s9] sm:$0x1]
        %v7777 = vperm.slane %v7775, 0
        %vm7779 = vcmask 261120
        %v7781 = vsel %vm7779, %v7755, 0
        %v7784 = vsel %vm7779, %v7756, 0
        %v7787 = vsel %vm7779, %v7757, 0
        %v7790 = vsel %vm7779, %v7758, 0
        %v7793 = vsel %vm7779, %v7759, 0
        %v7796 = vsel %vm7779, %v7760, 0
        %v7799 = vsel %vm7779, %v7761, 0
        %v7802 = vsel %vm7779, %v7762, 0
        %v7805 = vsel %vm7779, %v7763, 0
        %v7808 = vsel %vm7779, %v7764, 0
        %v7811 = vsel %vm7779, %v7765, 0
        %v7814 = vsel %vm7779, %v7766, 0
        %v7817 = vsel %vm7779, %v7767, 0
        %v7820 = vsel %vm7779, %v7768, 0
        %v7823 = vsel %vm7779, %v7769, 0
        %v7826 = vsel %vm7779, %v7770, 0
        %7828 = vmatpush.msra.mxu0 0.0
        %7829 = vmatpush.msra.mxu0 0.0
        %7830 = vmatpush.msra.mxu0 0.0
        %7831 = vmatpush.msra.mxu0 0.0
        %7832 = vmatpush.msra.mxu0 0.0
        %7833 = vmatpush.msra.mxu0 0.0
        %7834 = vmatpush.msra.mxu0 0.0
        %7835 = vmatpush.msra.mxu0 0.0
        %7836 = vmatpush.msra.mxu0 0.0
        %7837 = vmatpush.msra.mxu0 0.0
        %7838 = vmatpush.msra.mxu0 0.0
        %7839 = vmatpush.msra.mxu0 0.0
        %7840 = vmatpush.msra.mxu0 %v7774
        %7841 = vmatpush.msra.mxu0 %v7773
        %7842 = vmatpush.msra.mxu0 %v7772
        %7843 = vmatpush.msra.mxu0 %v7771
        %7844 = vmatmul.f32.gmra.mxu0 %v7781
        %v7845 = vpop.f32.mrf.mxu0
        %v7846 = vadd.f32 %v7777, %v7845
        %7847 = vmatmul.f32.gmra.mxu0 %v7784
        %v7848 = vpop.f32.mrf.mxu0
        %v7849 = vadd.f32 %v7777, %v7848
        %7850 = vmatmul.f32.gmra.mxu0 %v7787
        %v7851 = vpop.f32.mrf.mxu0
        %v7852 = vadd.f32 %v7777, %v7851
        %7853 = vmatmul.f32.gmra.mxu0 %v7790
        %v7854 = vpop.f32.mrf.mxu0
        %v7855 = vadd.f32 %v7777, %v7854
        %7856 = vmatmul.f32.gmra.mxu0 %v7793
        %v7857 = vpop.f32.mrf.mxu0
        %v7858 = vadd.f32 %v7777, %v7857
        %7859 = vmatmul.f32.gmra.mxu0 %v7796
        %v7860 = vpop.f32.mrf.mxu0
        %v7861 = vadd.f32 %v7777, %v7860
        %7862 = vmatmul.f32.gmra.mxu0 %v7799
        %v7863 = vpop.f32.mrf.mxu0
        %v7864 = vadd.f32 %v7777, %v7863
        %7865 = vmatmul.f32.gmra.mxu0 %v7802
        %v7866 = vpop.f32.mrf.mxu0
        %v7867 = vadd.f32 %v7777, %v7866
        %7868 = vmatmul.f32.gmra.mxu0 %v7805
        %v7869 = vpop.f32.mrf.mxu0
        %v7870 = vadd.f32 %v7777, %v7869
        %7871 = vmatmul.f32.gmra.mxu0 %v7808
        %v7872 = vpop.f32.mrf.mxu0
        %v7873 = vadd.f32 %v7777, %v7872
        %7874 = vmatmul.f32.gmra.mxu0 %v7811
        %v7875 = vpop.f32.mrf.mxu0
        %v7876 = vadd.f32 %v7777, %v7875
        %7877 = vmatmul.f32.gmra.mxu0 %v7814
        %v7878 = vpop.f32.mrf.mxu0
        %v7879 = vadd.f32 %v7777, %v7878
        %7880 = vmatmul.f32.gmra.mxu0 %v7817
        %v7881 = vpop.f32.mrf.mxu0
        %v7882 = vadd.f32 %v7777, %v7881
        %7883 = vmatmul.f32.gmra.mxu0 %v7820
        %v7884 = vpop.f32.mrf.mxu0
        %v7885 = vadd.f32 %v7777, %v7884
        %7886 = vmatmul.f32.gmra.mxu0 %v7823
        %v7887 = vpop.f32.mrf.mxu0
        %v7888 = vadd.f32 %v7777, %v7887
        %7889 = vmatmul.f32.gmra.mxu0 %v7826
        %v7890 = vpop.f32.mrf.mxu0
        %v7891 = vadd.f32 %v7777, %v7890
        %7892 = vdwg.mxu0
        %v7893 = vtanh.pop %v7846
        %v7894 = vtanh.pop %v7849
        %v7895 = vtanh.pop %v7852
        %v7896 = vtanh.pop %v7855
        %v7897 = vtanh.pop %v7858
        %v7898 = vtanh.pop %v7861
        %v7899 = vtanh.pop %v7864
        %v7900 = vtanh.pop %v7867
        %v7901 = vtanh.pop %v7870
        %v7902 = vtanh.pop %v7873
        %v7903 = vtanh.pop %v7876
        %v7904 = vtanh.pop %v7879
        %v7905 = vtanh.pop %v7882
        %v7906 = vtanh.pop %v7885
        %v7907 = vtanh.pop %v7888
        %v7908 = vtanh.pop %v7891
        %7909 = vst [vmem:[%s355] sm:$0xff] %v7893
        %7910 = vst [vmem:[%s355 + $0x8] sm:$0xff] %v7894
        %7911 = vst [vmem:[%s355 + $0x10] sm:$0xff] %v7895
        %7912 = vst [vmem:[%s355 + $0x18] sm:$0xff] %v7896
        %7913 = vst [vmem:[%s355 + $0x20] sm:$0xff] %v7897
        %7914 = vst [vmem:[%s355 + $0x28] sm:$0xff] %v7898
        %7915 = vst [vmem:[%s355 + $0x30] sm:$0xff] %v7899
        %7916 = vst [vmem:[%s355 + $0x38] sm:$0xff] %v7900
        %7917 = vst [vmem:[%s355 + $0x40] sm:$0xff] %v7901
        %7918 = vst [vmem:[%s355 + $0x48] sm:$0xff] %v7902
        %7919 = vst [vmem:[%s355 + $0x50] sm:$0xff] %v7903
        %7920 = vst [vmem:[%s355 + $0x58] sm:$0xff] %v7904
        %7921 = vst [vmem:[%s355 + $0x60] sm:$0xff] %v7905
        %7922 = vst [vmem:[%s355 + $0x68] sm:$0xff] %v7906
        %7923 = vst [vmem:[%s355 + $0x70] sm:$0xff] %v7907
        %7924 = vst [vmem:[%s355 + $0x78] sm:$0xff] %v7908
        %s7925 = sand.u32 %s247, 1
        %s7926 = scalar_lea.sflag [#allocation4], %s7925
        %s7927 = sand.u32 %s247, 1
        %s7928 = smul.addr %s7927, 128
        %s7929 = scalar_lea.vmem [#allocation3], %s7928
        // Predicated region
        $region61: #{generator_linear_forward.1} parent=59 // pred_check
          %p7930 = pneg %p257
        $region62: #{generator_linear_forward.1} parent=59 // pred_check_branch
          %7932 = sbr.rel (%p7930) target = $region64
        $region63: #{generator_linear_forward.1} parent=59 // pred_region
          %s7933 = smul.u32 16, %s24
          %7935 = vsyncadd %s7926, 0
          %s7936 = smul.addr %s7933, 8
          %s7937 = scalar_lea.hbm %s10, %s7936
          %s7938 = sshll.u32 %s7929, 4
          %s7939 = int_to_ptr.vmem [resolvable:$true] %s7938
          %s7940 = sshll.u32 %s7937, 4
          %s7941 = int_to_ptr.hbm [resolvable:$true] %s7940
          %7946 = dma.vmem_to_hbm [thread:$0]  %s7939, 2048, %s7941, %s7926, 128, 128, 8
        $region64: #{generator_linear_forward.1} parent=59 // pred_fallthru
          _
      $region60: #{generator_linear_forward.1} parent=5 // pred_fallthru
        _
      %p7947 = scmp.le.s32.totalorder 2, %s19
      // Predicated region
      $region65: #{generator_linear_forward.1} parent=5 // pred_check
        %p7948 = pneg %p7947
      $region66: #{generator_linear_forward.1} parent=5 // pred_check_branch
        %7950 = sbr.rel (%p7948) target = $region68
      $region67: #{generator_linear_forward.1} parent=5 // pred_region
        %s7951 = ssub.s32 %s19, 2
        // Predicated region
        $region69: #{generator_linear_forward.1} parent=67 // pred_check
          %p7952 = pneg %p263
        $region70: #{generator_linear_forward.1} parent=67 // pred_check_branch
          %7954 = sbr.rel (%p7952) target = $region72
        $region71: #{generator_linear_forward.1} parent=67 // pred_region
          %s7955 = sand.u32 %s248, 1
          %s7956 = scalar_lea.sflag [#allocation4], %s7955
          %s7957 = sand.u32 %s248, 1
          %s7958 = smul.addr %s7957, 128
          %s7959 = scalar_lea.vmem [#allocation3], %s7958
          %7961 = dma.done %s7956, 2048
        $region72: #{generator_linear_forward.1} parent=67 // pred_fallthru
          _
      $region68: #{generator_linear_forward.1} parent=5 // pred_fallthru
        _
    $region6: #{generator_linear_forward.1} parent=1 // loop_footer
      %s23 = sadd.s32 1, %s19
    $region7: #{generator_linear_forward.1} parent=1 // loop_footer_branch
      %18 = sbr.rel target = $region3
    $region8: #{generator_linear_forward.1} parent=1 // loop_exit
      _
    %7962 = vsyncpa [#allocation4], 1
    %s7963 = scalar_lea.sflag [#allocation4], 1
    %7964 = vsyncpa %s7963, 1

</llo_original>
